<compile_context>
chip_gen: v5e
topology: v5e:2x2
jax: 0.10.0
libtpu: 0.0.40
codegen_flags: <defaults>
</compile_context>

<pallas_src>
import jax
import jax.numpy as jnp
from jax.experimental import pallas as pl
from jax.experimental.pallas import tpu as pltpu

MLP_WEIGHT_DTYPE = jnp.bfloat16   # storage/DMA format for the MLP weights
LOGIT_PAD = 128                   # pad action logits to a full lane width


# ---------------------------------------------------------------------------
# Fused kernel: conv stack + MLP head + softmax for one batch element / step.
# ---------------------------------------------------------------------------
def _convdqn_fused_kernel(x_ref, wc1_ref, bc1_ref, wc2_ref, bc2_ref,
                          w1_ref, b1_ref, w2_ref, b2_ref, w3_ref, b3_ref,
                          o_ref, pad1_ref, pad2_ref):
    # x_ref : (1, H, W, 1)      one batch element (NHWC, Cin=1)
    # wc1   : (9, 32)           conv1 taps, row = dy*3+dx            (f32)
    # bc1   : (1, 32)
    # wc2   : (288, 64)         conv2 im2col weights                 (f32)
    # bc2   : (1, 64)
    # w1    : (1536, 1024)      fc1, rows pre-permuted to NHWC order (bf16)
    # w2    : (1024, 512)                                            (bf16)
    # w3    : (512, 128)        fc3 padded to 128 lanes              (bf16)
    # b1/b2 : (1, N)  f32;  b3: (1, 128) f32 with -1e30 on padded lanes
    # o_ref : (1, 1, 128)       softmax probabilities (padded lanes -> 0)
    # pad1  : (H+2, W+2, 1)     VMEM scratch (zero-padded conv1 input)
    # pad2  : (H+2, W+2, 32)    VMEM scratch (zero-padded conv1 output)
    _, H, W, _ = x_ref.shape
    Hp, Wp = H // 2, W // 2
    C1 = wc1_ref.shape[1]
    C2 = wc2_ref.shape[1]

    # ---- conv1 (Cin=1) + ReLU, padding=1 done in VMEM -----------------------
    # Zero every grid step (scratch persists across steps; with a "parallel"
    # batch axis a program_id==0 init would be wrong under megacore sharding).
    pad1_ref[...] = jnp.zeros_like(pad1_ref)
    pad1_ref[1:H + 1, 1:W + 1, :] = x_ref[0]

    acc1 = jnp.zeros((H * W, C1), jnp.float32)
    for dy in range(3):
        for dx in range(3):
            tap = dy * 3 + dx
            col = pad1_ref[dy:dy + H, dx:dx + W, :].reshape(H * W, 1)
            # K=1 "matmul" is just an outer-product broadcast on the VPU.
            acc1 = acc1 + col * wc1_ref[tap:tap + 1, :]
    h1 = jnp.maximum(acc1 + bc1_ref[...], 0.0)                # (H*W, 32)

    # ---- conv2 + ReLU as a single im2col matmul -----------------------------
    pad2_ref[...] = jnp.zeros_like(pad2_ref)
    pad2_ref[1:H + 1, 1:W + 1, :] = h1.reshape(H, W, C1)

    cols = [pad2_ref[dy:dy + H, dx:dx + W, :].reshape(H * W, C1)
            for dy in range(3) for dx in range(3)]
    patches = jnp.concatenate(cols, axis=1)                   # (H*W, 9*C1)
    h2 = jnp.dot(patches, wc2_ref[...], preferred_element_type=jnp.float32)
    h2 = jnp.maximum(h2 + bc2_ref[...], 0.0)                  # (H*W, 64)

    # ---- maxpool 2x2 ---------------------------------------------------------
    h2 = h2.reshape(Hp, 2, Wp, 2, C2)
    h2 = jnp.max(h2, axis=3)
    h2 = jnp.max(h2, axis=1)                                  # (Hp, Wp, 64)
    pooled = h2.reshape(Hp * Wp, C2)                          # (24, 64)

    # ---- flatten to (1, 1536) via lane-axis concat of the pooled rows -------
    # Order is p*C2 + c (NHWC flatten), matched by the pre-permuted w1 rows.
    flat = jnp.concatenate([pooled[p:p + 1, :] for p in range(Hp * Wp)],
                           axis=1)                            # (1, Hp*Wp*C2)

    # ---- MLP head + softmax --------------------------------------------------
    wdt = w1_ref.dtype
    h = jnp.dot(flat.astype(wdt), w1_ref[...],
                preferred_element_type=jnp.float32)
    h = jnp.maximum(h + b1_ref[...], 0.0)
    h = jnp.dot(h.astype(wdt), w2_ref[...],
                preferred_element_type=jnp.float32)
    h = jnp.maximum(h + b2_ref[...], 0.0)
    logits = jnp.dot(h.astype(wdt), w3_ref[...],
                     preferred_element_type=jnp.float32)
    logits = logits + b3_ref[...]          # padded action lanes carry bias -1e30
    # numerically stable softmax over the (padded, lane-dense) action axis;
    # padded lanes contribute exp(-1e30 - m) == 0, so normalization is exact.
    m = jnp.max(logits, axis=1, keepdims=True)
    e = jnp.exp(logits - m)
    o_ref[0] = e / jnp.sum(e, axis=1, keepdims=True)


# ---------------------------------------------------------------------------
# Full forward pass (ConvDQN.forward)
# ---------------------------------------------------------------------------
def conv_dqn_forward(x_nchw, params, actions_n):
    # x_nchw: (B, 1, H, W) float32, with 64 * (H//2) * (W//2) == 1536
    B, _, H, W = x_nchw.shape
    C1 = params["w_conv1"].shape[1]
    C2 = params["w_conv2"].shape[1]
    x = x_nchw.reshape(B, H, W, 1)           # NCHW(C=1)->NHWC: pure bitcast

    out = pl.pallas_call(
        _convdqn_fused_kernel,
        out_shape=jax.ShapeDtypeStruct((B, 1, LOGIT_PAD), jnp.float32),
        grid=(B,),
        in_specs=[
            pl.BlockSpec((1, H, W, 1), lambda i: (i, 0, 0, 0)),
            # constant index_maps: weights are DMA'd once and reused across steps
            pl.BlockSpec(params["w_conv1"].shape, lambda i: (0, 0)),
            pl.BlockSpec(params["b_conv1"].shape, lambda i: (0, 0)),
            pl.BlockSpec(params["w_conv2"].shape, lambda i: (0, 0)),
            pl.BlockSpec(params["b_conv2"].shape, lambda i: (0, 0)),
            pl.BlockSpec(params["w1"].shape, lambda i: (0, 0)),
            pl.BlockSpec(params["b1"].shape, lambda i: (0, 0)),
            pl.BlockSpec(params["w2"].shape, lambda i: (0, 0)),
            pl.BlockSpec(params["b2"].shape, lambda i: (0, 0)),
            pl.BlockSpec(params["w3"].shape, lambda i: (0, 0)),
            pl.BlockSpec(params["b3"].shape, lambda i: (0, 0)),
        ],
        out_specs=pl.BlockSpec((1, 1, LOGIT_PAD), lambda i: (i, 0, 0)),
        scratch_shapes=[
            pltpu.VMEM((H + 2, W + 2, 1), jnp.float32),
            pltpu.VMEM((H + 2, W + 2, C1), jnp.float32),
        ],
        compiler_params=pltpu.CompilerParams(
            dimension_semantics=("parallel",),
            vmem_limit_bytes=32 * 1024 * 1024),   # ~8.6 MB used; safe on v5e/v6e/v7x
    )(x,
      params["w_conv1"], params["b_conv1"],
      params["w_conv2"], params["b_conv2"],
      params["w1"], params["b1"],
      params["w2"], params["b2"],
      params["w3"], params["b3"])

    return out.reshape(B, LOGIT_PAD)[:, :actions_n]


# ---------------------------------------------------------------------------
# Parameters: synthetic init in PyTorch layouts + one-time kernel-layout prep.
# ---------------------------------------------------------------------------
def _uniform(key, shape, fan_in):
    bound = 1.0 / (fan_in ** 0.5)
    return jax.random.uniform(key, shape, jnp.float32, -bound, bound)


def init_params(key, actions_n):
    # Same shapes/layouts as the nn.Module state_dict (OIHW convs, (out,in) linears).
    ks = jax.random.split(key, 10)
    return {
        "conv1_w": _uniform(ks[0], (32, 1, 3, 3), 1 * 9),
        "conv1_b": _uniform(ks[1], (32,), 1 * 9),
        "conv2_w": _uniform(ks[2], (64, 32, 3, 3), 32 * 9),
        "conv2_b": _uniform(ks[3], (64,), 32 * 9),
        "fc1_w": _uniform(ks[4], (1024, 1536), 1536),
        "fc1_b": _uniform(ks[5], (1024,), 1536),
        "fc2_w": _uniform(ks[6], (512, 1024), 1024),
        "fc2_b": _uniform(ks[7], (512,), 1024),
        "fc3_w": _uniform(ks[8], (actions_n, 512), 512),
        "fc3_b": _uniform(ks[9], (actions_n,), 512),
    }


def prepare_params(tp, actions_n, spatial_hw, mlp_weight_dtype=MLP_WEIGHT_DTYPE):
    # One-time conversion of torch-layout weights into the kernel layouts.
    H, W = spatial_hw
    Hp, Wp = H // 2, W // 2
    C1 = tp["conv1_w"].shape[0]              # 32
    C2 = tp["conv2_w"].shape[0]              # 64
    A = actions_n
    assert C2 * Hp * Wp == tp["fc1_w"].shape[1]
    assert A <= LOGIT_PAD

    # conv weights: OIHW -> HWIO -> flattened-tap matrices
    w_c1 = jnp.transpose(tp["conv1_w"], (2, 3, 1, 0)).reshape(9, C1)
    w_c2 = jnp.transpose(tp["conv2_w"], (2, 3, 1, 0)).reshape(9 * C1, C2)

    # fc1: torch rows are NCHW-flatten (c*Hp*Wp + p); the kernel feeds
    # NHWC-flatten (p*C2 + c), so permute the rows once here.
    w1 = (tp["fc1_w"].T.reshape(C2, Hp * Wp, -1)
          .transpose(1, 0, 2).reshape(C2 * Hp * Wp, -1))
    w2 = tp["fc2_w"].T
    # fc3: pad to LOGIT_PAD output lanes; padded lanes get weight 0, bias -1e30.
    w3 = jnp.zeros((tp["fc3_w"].shape[1], LOGIT_PAD), jnp.float32)
    w3 = w3.at[:, :A].set(tp["fc3_w"].T)
    b3 = jnp.full((LOGIT_PAD,), -1e30, jnp.float32).at[:A].set(tp["fc3_b"])

    return {
        "w_conv1": w_c1, "b_conv1": tp["conv1_b"].reshape(1, C1),
        "w_conv2": w_c2, "b_conv2": tp["conv2_b"].reshape(1, C2),
        "w1": w1.astype(mlp_weight_dtype), "b1": tp["fc1_b"].reshape(1, -1),
        "w2": w2.astype(mlp_weight_dtype), "b2": tp["fc2_b"].reshape(1, -1),
        "w3": w3.astype(mlp_weight_dtype), "b3": b3.reshape(1, -1),
    }


# ---------------------------------------------------------------------------
# Pure-XLA reference of the nn.Module forward (torch layouts), for validation.
# ---------------------------------------------------------------------------
def reference_forward(x_nchw, tp):
    dn = ("NCHW", "OIHW", "NCHW")
    y = jax.lax.conv_general_dilated(x_nchw, tp["conv1_w"], (1, 1),
                                     ((1, 1), (1, 1)), dimension_numbers=dn)
    y = jax.nn.relu(y + tp["conv1_b"].reshape(1, -1, 1, 1))
    y = jax.lax.conv_general_dilated(y, tp["conv2_w"], (1, 1),
                                     ((1, 1), (1, 1)), dimension_numbers=dn)
    y = jax.nn.relu(y + tp["conv2_b"].reshape(1, -1, 1, 1))
    y = jax.lax.reduce_window(y, -jnp.inf, jax.lax.max,
                              (1, 1, 2, 2), (1, 1, 2, 2), "VALID")
    y = y.reshape(y.shape[0], -1)                       # torch Flatten on NCHW
    y = jax.nn.relu(y @ tp["fc1_w"].T + tp["fc1_b"])
    y = jax.nn.relu(y @ tp["fc2_w"].T + tp["fc2_b"])
    logits = y @ tp["fc3_w"].T + tp["fc3_b"]
    return jax.nn.softmax(logits, axis=1)


# TODO(synk): optimizer (Adam), epsilon-greedy select_action and the replay-batch
# training helpers (compute_state / optimize) are not part of forward() and are
# intentionally not translated.

if __name__ == "__main__":
    actions_n = 4
    # Flatten size 1536 = 64 * (H//2) * (W//2)  ->  H=12, W=8
    B, H, W = 2, 12, 8

    key = jax.random.PRNGKey(0)
    k_x, k_p = jax.random.split(key)
    x = jax.random.normal(k_x, (B, 1, H, W), jnp.float32)    # NCHW, like PyTorch
    torch_params = init_params(k_p, actions_n)
    params = prepare_params(torch_params, actions_n, (H, W))

    fwd = jax.jit(lambda xb, pp: conv_dqn_forward(xb, pp, actions_n))
    out = jax.block_until_ready(fwd(x, params))

    assert out.shape == (B, actions_n)
    row_sums = jnp.sum(out, axis=1)
    assert bool(jnp.all(jnp.abs(row_sums - 1.0) < 1e-3)), "softmax rows must sum to 1"

    ref = reference_forward(x, torch_params)                 # f32 XLA reference
    assert bool(jnp.all(jnp.abs(out - ref) < 2e-2)), "mismatch vs XLA reference"

    print("KERNEL_OK")
</pallas_src>

<mosaic_0001>
module attributes {stable_mosaic.version = 11 : i64} {
  func.func @_convdqn_fused_kernel(%arg0: i32, %arg1: memref<1x12x8x1xf32, #tpu.memory_space<vmem>>, %arg2: memref<9x32xf32, #tpu.memory_space<vmem>>, %arg3: memref<1x32xf32, #tpu.memory_space<vmem>>, %arg4: memref<288x64xf32, #tpu.memory_space<vmem>>, %arg5: memref<1x64xf32, #tpu.memory_space<vmem>>, %arg6: memref<1536x1024xbf16, #tpu.memory_space<vmem>>, %arg7: memref<1x1024xf32, #tpu.memory_space<vmem>>, %arg8: memref<1024x512xbf16, #tpu.memory_space<vmem>>, %arg9: memref<1x512xf32, #tpu.memory_space<vmem>>, %arg10: memref<512x128xbf16, #tpu.memory_space<vmem>>, %arg11: memref<1x128xf32, #tpu.memory_space<vmem>>, %arg12: memref<1x1x128xf32, #tpu.memory_space<vmem>>, %arg13: memref<14x10x1xf32, #tpu.memory_space<vmem>>, %arg14: memref<14x10x32xf32, #tpu.memory_space<vmem>>) attributes {dimension_semantics = [#tpu.dimension_semantics<parallel>], iteration_bounds = array<i64: 2>, scalar_prefetch = 0 : i64, scratch_operands = 2 : i64, tpu.core_type = #tpu.core_type<tc>, window_params = [{transform_indices = @transform_0, window_bounds = array<i64: 1, 12, 8, 1>}, {pipeline_mode = #tpu.pipeline_mode<synchronous>, transform_indices = @transform_1, window_bounds = array<i64: 9, 32>}, {pipeline_mode = #tpu.pipeline_mode<synchronous>, transform_indices = @transform_2, window_bounds = array<i64: 1, 32>}, {pipeline_mode = #tpu.pipeline_mode<synchronous>, transform_indices = @transform_3, window_bounds = array<i64: 288, 64>}, {pipeline_mode = #tpu.pipeline_mode<synchronous>, transform_indices = @transform_4, window_bounds = array<i64: 1, 64>}, {pipeline_mode = #tpu.pipeline_mode<synchronous>, transform_indices = @transform_5, window_bounds = array<i64: 1536, 1024>}, {pipeline_mode = #tpu.pipeline_mode<synchronous>, transform_indices = @transform_6, window_bounds = array<i64: 1, 1024>}, {pipeline_mode = #tpu.pipeline_mode<synchronous>, transform_indices = @transform_7, window_bounds = array<i64: 1024, 512>}, {pipeline_mode = #tpu.pipeline_mode<synchronous>, transform_indices = @transform_8, window_bounds = array<i64: 1, 512>}, {pipeline_mode = #tpu.pipeline_mode<synchronous>, transform_indices = @transform_9, window_bounds = array<i64: 512, 128>}, {pipeline_mode = #tpu.pipeline_mode<synchronous>, transform_indices = @transform_10, window_bounds = array<i64: 1, 128>}, {transform_indices = @transform_11, window_bounds = array<i64: 1, 1, 128>}]} {
    %cst = arith.constant 0.000000e+00 : f32
    %0 = vector.broadcast %cst : f32 to vector<14x10x1xf32>
    %c0 = arith.constant 0 : index
    %c0_0 = arith.constant 0 : index
    %c0_1 = arith.constant 0 : index
    %1 = vector.load %arg13[%c0, %c0_0, %c0_1] : memref<14x10x1xf32, #tpu.memory_space<vmem>>, vector<14x10x1xf32>
    tpu.vector_store %arg13[%c0, %c0_0, %c0_1], %0 {strides = array<i32>} : memref<14x10x1xf32, #tpu.memory_space<vmem>>, vector<14x10x1xf32>,
    %c0_2 = arith.constant 0 : index
    %c0_3 = arith.constant 0 : index
    %c0_4 = arith.constant 0 : index
    %c0_5 = arith.constant 0 : index
    %2 = vector.load %arg1[%c0_2, %c0_3, %c0_4, %c0_5] : memref<1x12x8x1xf32, #tpu.memory_space<vmem>>, vector<1x12x8x1xf32>
    %3 = vector.shape_cast %2 : vector<1x12x8x1xf32> to vector<12x8x1xf32>
    %c1 = arith.constant 1 : index
    %c1_6 = arith.constant 1 : index
    %c0_7 = arith.constant 0 : index
    %4 = vector.load %arg13[%c1, %c1_6, %c0_7] : memref<14x10x1xf32, #tpu.memory_space<vmem>>, vector<12x8x1xf32>
    tpu.vector_store %arg13[%c1, %c1_6, %c0_7], %3 {strides = array<i32>} : memref<14x10x1xf32, #tpu.memory_space<vmem>>, vector<12x8x1xf32>,
    %cst_8 = arith.constant 0.000000e+00 : f32
    %5 = vector.broadcast %cst_8 : f32 to vector<96x32xf32>
    %c0_9 = arith.constant 0 : index
    %c0_10 = arith.constant 0 : index
    %c0_11 = arith.constant 0 : index
    %6 = vector.load %arg13[%c0_9, %c0_10, %c0_11] : memref<14x10x1xf32, #tpu.memory_space<vmem>>, vector<12x8x1xf32>
    %7 = vector.shape_cast %6 : vector<12x8x1xf32> to vector<96x1xf32>
    %c0_12 = arith.constant 0 : index
    %c0_13 = arith.constant 0 : index
    %8 = vector.load %arg2[%c0_12, %c0_13] : memref<9x32xf32, #tpu.memory_space<vmem>>, vector<1x32xf32>
    %9 = vector.broadcast %7 : vector<96x1xf32> to vector<96x32xf32>
    %10 = vector.broadcast %8 : vector<1x32xf32> to vector<96x32xf32>
    %11 = arith.mulf %9, %10 : vector<96x32xf32>
    %12 = arith.addf %5, %11 : vector<96x32xf32>
    %c0_14 = arith.constant 0 : index
    %c1_15 = arith.constant 1 : index
    %c0_16 = arith.constant 0 : index
    %13 = vector.load %arg13[%c0_14, %c1_15, %c0_16] : memref<14x10x1xf32, #tpu.memory_space<vmem>>, vector<12x8x1xf32>
    %14 = vector.shape_cast %13 : vector<12x8x1xf32> to vector<96x1xf32>
    %c1_17 = arith.constant 1 : index
    %c0_18 = arith.constant 0 : index
    %15 = vector.load %arg2[%c1_17, %c0_18] : memref<9x32xf32, #tpu.memory_space<vmem>>, vector<1x32xf32>
    %16 = vector.broadcast %14 : vector<96x1xf32> to vector<96x32xf32>
    %17 = vector.broadcast %15 : vector<1x32xf32> to vector<96x32xf32>
    %18 = arith.mulf %16, %17 : vector<96x32xf32>
    %19 = arith.addf %12, %18 : vector<96x32xf32>
    %c0_19 = arith.constant 0 : index
    %c2 = arith.constant 2 : index
    %c0_20 = arith.constant 0 : index
    %20 = vector.load %arg13[%c0_19, %c2, %c0_20] : memref<14x10x1xf32, #tpu.memory_space<vmem>>, vector<12x8x1xf32>
    %21 = vector.shape_cast %20 : vector<12x8x1xf32> to vector<96x1xf32>
    %c2_21 = arith.constant 2 : index
    %c0_22 = arith.constant 0 : index
    %22 = vector.load %arg2[%c2_21, %c0_22] : memref<9x32xf32, #tpu.memory_space<vmem>>, vector<1x32xf32>
    %23 = vector.broadcast %21 : vector<96x1xf32> to vector<96x32xf32>
    %24 = vector.broadcast %22 : vector<1x32xf32> to vector<96x32xf32>
    %25 = arith.mulf %23, %24 : vector<96x32xf32>
    %26 = arith.addf %19, %25 : vector<96x32xf32>
    %c1_23 = arith.constant 1 : index
    %c0_24 = arith.constant 0 : index
    %c0_25 = arith.constant 0 : index
    %27 = vector.load %arg13[%c1_23, %c0_24, %c0_25] : memref<14x10x1xf32, #tpu.memory_space<vmem>>, vector<12x8x1xf32>
    %28 = vector.shape_cast %27 : vector<12x8x1xf32> to vector<96x1xf32>
    %c3 = arith.constant 3 : index
    %c0_26 = arith.constant 0 : index
    %29 = vector.load %arg2[%c3, %c0_26] : memref<9x32xf32, #tpu.memory_space<vmem>>, vector<1x32xf32>
    %30 = vector.broadcast %28 : vector<96x1xf32> to vector<96x32xf32>
    %31 = vector.broadcast %29 : vector<1x32xf32> to vector<96x32xf32>
    %32 = arith.mulf %30, %31 : vector<96x32xf32>
    %33 = arith.addf %26, %32 : vector<96x32xf32>
    %c1_27 = arith.constant 1 : index
    %c1_28 = arith.constant 1 : index
    %c0_29 = arith.constant 0 : index
    %34 = vector.load %arg13[%c1_27, %c1_28, %c0_29] : memref<14x10x1xf32, #tpu.memory_space<vmem>>, vector<12x8x1xf32>
    %35 = vector.shape_cast %34 : vector<12x8x1xf32> to vector<96x1xf32>
    %c4 = arith.constant 4 : index
    %c0_30 = arith.constant 0 : index
    %36 = vector.load %arg2[%c4, %c0_30] : memref<9x32xf32, #tpu.memory_space<vmem>>, vector<1x32xf32>
    %37 = vector.broadcast %35 : vector<96x1xf32> to vector<96x32xf32>
    %38 = vector.broadcast %36 : vector<1x32xf32> to vector<96x32xf32>
    %39 = arith.mulf %37, %38 : vector<96x32xf32>
    %40 = arith.addf %33, %39 : vector<96x32xf32>
    %c1_31 = arith.constant 1 : index
    %c2_32 = arith.constant 2 : index
    %c0_33 = arith.constant 0 : index
    %41 = vector.load %arg13[%c1_31, %c2_32, %c0_33] : memref<14x10x1xf32, #tpu.memory_space<vmem>>, vector<12x8x1xf32>
    %42 = vector.shape_cast %41 : vector<12x8x1xf32> to vector<96x1xf32>
    %c5 = arith.constant 5 : index
    %c0_34 = arith.constant 0 : index
    %43 = vector.load %arg2[%c5, %c0_34] : memref<9x32xf32, #tpu.memory_space<vmem>>, vector<1x32xf32>
    %44 = vector.broadcast %42 : vector<96x1xf32> to vector<96x32xf32>
    %45 = vector.broadcast %43 : vector<1x32xf32> to vector<96x32xf32>
    %46 = arith.mulf %44, %45 : vector<96x32xf32>
    %47 = arith.addf %40, %46 : vector<96x32xf32>
    %c2_35 = arith.constant 2 : index
    %c0_36 = arith.constant 0 : index
    %c0_37 = arith.constant 0 : index
    %48 = vector.load %arg13[%c2_35, %c0_36, %c0_37] : memref<14x10x1xf32, #tpu.memory_space<vmem>>, vector<12x8x1xf32>
    %49 = vector.shape_cast %48 : vector<12x8x1xf32> to vector<96x1xf32>
    %c6 = arith.constant 6 : index
    %c0_38 = arith.constant 0 : index
    %50 = vector.load %arg2[%c6, %c0_38] : memref<9x32xf32, #tpu.memory_space<vmem>>, vector<1x32xf32>
    %51 = vector.broadcast %49 : vector<96x1xf32> to vector<96x32xf32>
    %52 = vector.broadcast %50 : vector<1x32xf32> to vector<96x32xf32>
    %53 = arith.mulf %51, %52 : vector<96x32xf32>
    %54 = arith.addf %47, %53 : vector<96x32xf32>
    %c2_39 = arith.constant 2 : index
    %c1_40 = arith.constant 1 : index
    %c0_41 = arith.constant 0 : index
    %55 = vector.load %arg13[%c2_39, %c1_40, %c0_41] : memref<14x10x1xf32, #tpu.memory_space<vmem>>, vector<12x8x1xf32>
    %56 = vector.shape_cast %55 : vector<12x8x1xf32> to vector<96x1xf32>
    %c7 = arith.constant 7 : index
    %c0_42 = arith.constant 0 : index
    %57 = vector.load %arg2[%c7, %c0_42] : memref<9x32xf32, #tpu.memory_space<vmem>>, vector<1x32xf32>
    %58 = vector.broadcast %56 : vector<96x1xf32> to vector<96x32xf32>
    %59 = vector.broadcast %57 : vector<1x32xf32> to vector<96x32xf32>
    %60 = arith.mulf %58, %59 : vector<96x32xf32>
    %61 = arith.addf %54, %60 : vector<96x32xf32>
    %c2_43 = arith.constant 2 : index
    %c2_44 = arith.constant 2 : index
    %c0_45 = arith.constant 0 : index
    %62 = vector.load %arg13[%c2_43, %c2_44, %c0_45] : memref<14x10x1xf32, #tpu.memory_space<vmem>>, vector<12x8x1xf32>
    %63 = vector.shape_cast %62 : vector<12x8x1xf32> to vector<96x1xf32>
    %c8 = arith.constant 8 : index
    %c0_46 = arith.constant 0 : index
    %64 = vector.load %arg2[%c8, %c0_46] : memref<9x32xf32, #tpu.memory_space<vmem>>, vector<1x32xf32>
    %65 = vector.broadcast %63 : vector<96x1xf32> to vector<96x32xf32>
    %66 = vector.broadcast %64 : vector<1x32xf32> to vector<96x32xf32>
    %67 = arith.mulf %65, %66 : vector<96x32xf32>
    %68 = arith.addf %61, %67 : vector<96x32xf32>
    %c0_47 = arith.constant 0 : index
    %c0_48 = arith.constant 0 : index
    %69 = vector.load %arg3[%c0_47, %c0_48] : memref<1x32xf32, #tpu.memory_space<vmem>>, vector<1x32xf32>
    %70 = vector.broadcast %69 : vector<1x32xf32> to vector<96x32xf32>
    %71 = arith.addf %68, %70 : vector<96x32xf32>
    %cst_49 = arith.constant 0.000000e+00 : f32
    %72 = vector.broadcast %cst_49 : f32 to vector<96x32xf32>
    %73 = arith.maximumf %71, %72 : vector<96x32xf32>
    %cst_50 = arith.constant 0.000000e+00 : f32
    %74 = vector.broadcast %cst_50 : f32 to vector<14x10x32xf32>
    %c0_51 = arith.constant 0 : index
    %c0_52 = arith.constant 0 : index
    %c0_53 = arith.constant 0 : index
    %75 = vector.load %arg14[%c0_51, %c0_52, %c0_53] : memref<14x10x32xf32, #tpu.memory_space<vmem>>, vector<14x10x32xf32>
    tpu.vector_store %arg14[%c0_51, %c0_52, %c0_53], %74 {strides = array<i32>} : memref<14x10x32xf32, #tpu.memory_space<vmem>>, vector<14x10x32xf32>,
    %76 = vector.shape_cast %73 : vector<96x32xf32> to vector<12x8x32xf32>
    %c1_54 = arith.constant 1 : index
    %c1_55 = arith.constant 1 : index
    %c0_56 = arith.constant 0 : index
    %77 = vector.load %arg14[%c1_54, %c1_55, %c0_56] : memref<14x10x32xf32, #tpu.memory_space<vmem>>, vector<12x8x32xf32>
    tpu.vector_store %arg14[%c1_54, %c1_55, %c0_56], %76 {strides = array<i32>} : memref<14x10x32xf32, #tpu.memory_space<vmem>>, vector<12x8x32xf32>,
    %c0_57 = arith.constant 0 : index
    %c0_58 = arith.constant 0 : index
    %c0_59 = arith.constant 0 : index
    %78 = vector.load %arg14[%c0_57, %c0_58, %c0_59] : memref<14x10x32xf32, #tpu.memory_space<vmem>>, vector<12x8x32xf32>
    %79 = vector.shape_cast %78 : vector<12x8x32xf32> to vector<96x32xf32>
    %c0_60 = arith.constant 0 : index
    %c1_61 = arith.constant 1 : index
    %c0_62 = arith.constant 0 : index
    %80 = vector.load %arg14[%c0_60, %c1_61, %c0_62] : memref<14x10x32xf32, #tpu.memory_space<vmem>>, vector<12x8x32xf32>
    %81 = vector.shape_cast %80 : vector<12x8x32xf32> to vector<96x32xf32>
    %c0_63 = arith.constant 0 : index
    %c2_64 = arith.constant 2 : index
    %c0_65 = arith.constant 0 : index
    %82 = vector.load %arg14[%c0_63, %c2_64, %c0_65] : memref<14x10x32xf32, #tpu.memory_space<vmem>>, vector<12x8x32xf32>
    %83 = vector.shape_cast %82 : vector<12x8x32xf32> to vector<96x32xf32>
    %c1_66 = arith.constant 1 : index
    %c0_67 = arith.constant 0 : index
    %c0_68 = arith.constant 0 : index
    %84 = vector.load %arg14[%c1_66, %c0_67, %c0_68] : memref<14x10x32xf32, #tpu.memory_space<vmem>>, vector<12x8x32xf32>
    %85 = vector.shape_cast %84 : vector<12x8x32xf32> to vector<96x32xf32>
    %c1_69 = arith.constant 1 : index
    %c1_70 = arith.constant 1 : index
    %c0_71 = arith.constant 0 : index
    %86 = vector.load %arg14[%c1_69, %c1_70, %c0_71] : memref<14x10x32xf32, #tpu.memory_space<vmem>>, vector<12x8x32xf32>
    %87 = vector.shape_cast %86 : vector<12x8x32xf32> to vector<96x32xf32>
    %c1_72 = arith.constant 1 : index
    %c2_73 = arith.constant 2 : index
    %c0_74 = arith.constant 0 : index
    %88 = vector.load %arg14[%c1_72, %c2_73, %c0_74] : memref<14x10x32xf32, #tpu.memory_space<vmem>>, vector<12x8x32xf32>
    %89 = vector.shape_cast %88 : vector<12x8x32xf32> to vector<96x32xf32>
    %c2_75 = arith.constant 2 : index
    %c0_76 = arith.constant 0 : index
    %c0_77 = arith.constant 0 : index
    %90 = vector.load %arg14[%c2_75, %c0_76, %c0_77] : memref<14x10x32xf32, #tpu.memory_space<vmem>>, vector<12x8x32xf32>
    %91 = vector.shape_cast %90 : vector<12x8x32xf32> to vector<96x32xf32>
    %c2_78 = arith.constant 2 : index
    %c1_79 = arith.constant 1 : index
    %c0_80 = arith.constant 0 : index
    %92 = vector.load %arg14[%c2_78, %c1_79, %c0_80] : memref<14x10x32xf32, #tpu.memory_space<vmem>>, vector<12x8x32xf32>
    %93 = vector.shape_cast %92 : vector<12x8x32xf32> to vector<96x32xf32>
    %c2_81 = arith.constant 2 : index
    %c2_82 = arith.constant 2 : index
    %c0_83 = arith.constant 0 : index
    %94 = vector.load %arg14[%c2_81, %c2_82, %c0_83] : memref<14x10x32xf32, #tpu.memory_space<vmem>>, vector<12x8x32xf32>
    %95 = vector.shape_cast %94 : vector<12x8x32xf32> to vector<96x32xf32>
    %96 = tpu.concatenate %79, %81, %83, %85, %87, %89, %91, %93, %95 in 1 : vector<96x32xf32>, vector<96x32xf32>, vector<96x32xf32>, vector<96x32xf32>, vector<96x32xf32>, vector<96x32xf32>, vector<96x32xf32>, vector<96x32xf32>, vector<96x32xf32> -> vector<96x288xf32>
    %c0_84 = arith.constant 0 : index
    %c0_85 = arith.constant 0 : index
    %97 = vector.load %arg4[%c0_84, %c0_85] : memref<288x64xf32, #tpu.memory_space<vmem>>, vector<288x64xf32>
    %cst_86 = arith.constant dense<0.000000e+00> : vector<96x64xf32>
    %98 = tpu.matmul %96, %97, %cst_86 {dimension_numbers = #tpu.dot_dimension_numbers<[1], [0], [0], [1], [0, 0, 1, 1], [], []>} : vector<96x288xf32>, vector<288x64xf32>, vector<96x64xf32> -> vector<96x64xf32>
    %c0_87 = arith.constant 0 : index
    %c0_88 = arith.constant 0 : index
    %99 = vector.load %arg5[%c0_87, %c0_88] : memref<1x64xf32, #tpu.memory_space<vmem>>, vector<1x64xf32>
    %100 = vector.broadcast %99 : vector<1x64xf32> to vector<96x64xf32>
    %101 = arith.addf %98, %100 : vector<96x64xf32>
    %cst_89 = arith.constant 0.000000e+00 : f32
    %102 = vector.broadcast %cst_89 : f32 to vector<96x64xf32>
    %103 = arith.maximumf %101, %102 : vector<96x64xf32>
    %104 = vector.shape_cast %103 : vector<96x64xf32> to vector<6x2x4x2x64xf32>
    %cst_90 = arith.constant dense<0xFF800000> : vector<6x2x4x64xf32>
    %105 = vector.multi_reduction <maximumf>, %104, %cst_90 [3] : vector<6x2x4x2x64xf32> to vector<6x2x4x64xf32>
    %cst_91 = arith.constant dense<0xFF800000> : vector<6x4x64xf32>
    %106 = vector.multi_reduction <maximumf>, %105, %cst_91 [1] : vector<6x2x4x64xf32> to vector<6x4x64xf32>
    %107 = vector.shape_cast %106 : vector<6x4x64xf32> to vector<24x64xf32>
    %108 = vector.extract_strided_slice %107 {offsets = [0, 0], sizes = [1, 64], strides = [1, 1]} : vector<24x64xf32> to vector<1x64xf32>
    %109 = vector.extract_strided_slice %107 {offsets = [1, 0], sizes = [1, 64], strides = [1, 1]} : vector<24x64xf32> to vector<1x64xf32>
    %110 = vector.extract_strided_slice %107 {offsets = [2, 0], sizes = [1, 64], strides = [1, 1]} : vector<24x64xf32> to vector<1x64xf32>
    %111 = vector.extract_strided_slice %107 {offsets = [3, 0], sizes = [1, 64], strides = [1, 1]} : vector<24x64xf32> to vector<1x64xf32>
    %112 = vector.extract_strided_slice %107 {offsets = [4, 0], sizes = [1, 64], strides = [1, 1]} : vector<24x64xf32> to vector<1x64xf32>
    %113 = vector.extract_strided_slice %107 {offsets = [5, 0], sizes = [1, 64], strides = [1, 1]} : vector<24x64xf32> to vector<1x64xf32>
    %114 = vector.extract_strided_slice %107 {offsets = [6, 0], sizes = [1, 64], strides = [1, 1]} : vector<24x64xf32> to vector<1x64xf32>
    %115 = vector.extract_strided_slice %107 {offsets = [7, 0], sizes = [1, 64], strides = [1, 1]} : vector<24x64xf32> to vector<1x64xf32>
    %116 = vector.extract_strided_slice %107 {offsets = [8, 0], sizes = [1, 64], strides = [1, 1]} : vector<24x64xf32> to vector<1x64xf32>
    %117 = vector.extract_strided_slice %107 {offsets = [9, 0], sizes = [1, 64], strides = [1, 1]} : vector<24x64xf32> to vector<1x64xf32>
    %118 = vector.extract_strided_slice %107 {offsets = [10, 0], sizes = [1, 64], strides = [1, 1]} : vector<24x64xf32> to vector<1x64xf32>
    %119 = vector.extract_strided_slice %107 {offsets = [11, 0], sizes = [1, 64], strides = [1, 1]} : vector<24x64xf32> to vector<1x64xf32>
    %120 = vector.extract_strided_slice %107 {offsets = [12, 0], sizes = [1, 64], strides = [1, 1]} : vector<24x64xf32> to vector<1x64xf32>
    %121 = vector.extract_strided_slice %107 {offsets = [13, 0], sizes = [1, 64], strides = [1, 1]} : vector<24x64xf32> to vector<1x64xf32>
    %122 = vector.extract_strided_slice %107 {offsets = [14, 0], sizes = [1, 64], strides = [1, 1]} : vector<24x64xf32> to vector<1x64xf32>
    %123 = vector.extract_strided_slice %107 {offsets = [15, 0], sizes = [1, 64], strides = [1, 1]} : vector<24x64xf32> to vector<1x64xf32>
    %124 = vector.extract_strided_slice %107 {offsets = [16, 0], sizes = [1, 64], strides = [1, 1]} : vector<24x64xf32> to vector<1x64xf32>
    %125 = vector.extract_strided_slice %107 {offsets = [17, 0], sizes = [1, 64], strides = [1, 1]} : vector<24x64xf32> to vector<1x64xf32>
    %126 = vector.extract_strided_slice %107 {offsets = [18, 0], sizes = [1, 64], strides = [1, 1]} : vector<24x64xf32> to vector<1x64xf32>
    %127 = vector.extract_strided_slice %107 {offsets = [19, 0], sizes = [1, 64], strides = [1, 1]} : vector<24x64xf32> to vector<1x64xf32>
    %128 = vector.extract_strided_slice %107 {offsets = [20, 0], sizes = [1, 64], strides = [1, 1]} : vector<24x64xf32> to vector<1x64xf32>
    %129 = vector.extract_strided_slice %107 {offsets = [21, 0], sizes = [1, 64], strides = [1, 1]} : vector<24x64xf32> to vector<1x64xf32>
    %130 = vector.extract_strided_slice %107 {offsets = [22, 0], sizes = [1, 64], strides = [1, 1]} : vector<24x64xf32> to vector<1x64xf32>
    %131 = vector.extract_strided_slice %107 {offsets = [23, 0], sizes = [1, 64], strides = [1, 1]} : vector<24x64xf32> to vector<1x64xf32>
    %132 = tpu.concatenate %108, %109, %110, %111, %112, %113, %114, %115, %116, %117, %118, %119, %120, %121, %122, %123 in 1 : vector<1x64xf32>, vector<1x64xf32>, vector<1x64xf32>, vector<1x64xf32>, vector<1x64xf32>, vector<1x64xf32>, vector<1x64xf32>, vector<1x64xf32>, vector<1x64xf32>, vector<1x64xf32>, vector<1x64xf32>, vector<1x64xf32>, vector<1x64xf32>, vector<1x64xf32>, vector<1x64xf32>, vector<1x64xf32> -> vector<1x1024xf32>
    %133 = tpu.concatenate %124, %125, %126, %127, %128, %129, %130, %131 in 1 : vector<1x64xf32>, vector<1x64xf32>, vector<1x64xf32>, vector<1x64xf32>, vector<1x64xf32>, vector<1x64xf32>, vector<1x64xf32>, vector<1x64xf32> -> vector<1x512xf32>
    %134 = tpu.concatenate %132, %133 in 1 : vector<1x1024xf32>, vector<1x512xf32> -> vector<1x1536xf32>
    %135 = arith.truncf %134 : vector<1x1536xf32> to vector<1x1536xbf16>
    %c0_92 = arith.constant 0 : index
    %c0_93 = arith.constant 0 : index
    %136 = vector.load %arg6[%c0_92, %c0_93] : memref<1536x1024xbf16, #tpu.memory_space<vmem>>, vector<1536x1024xbf16>
    %cst_94 = arith.constant dense<0.000000e+00> : vector<1x1024xf32>
    %137 = tpu.matmul %135, %136, %cst_94 {dimension_numbers = #tpu.dot_dimension_numbers<[1], [0], [0], [1], [0, 0, 1, 1], [], []>} : vector<1x1536xbf16>, vector<1536x1024xbf16>, vector<1x1024xf32> -> vector<1x1024xf32>
    %c0_95 = arith.constant 0 : index
    %c0_96 = arith.constant 0 : index
    %138 = vector.load %arg7[%c0_95, %c0_96] : memref<1x1024xf32, #tpu.memory_space<vmem>>, vector<1x1024xf32>
    %139 = arith.addf %137, %138 : vector<1x1024xf32>
    %cst_97 = arith.constant 0.000000e+00 : f32
    %140 = vector.broadcast %cst_97 : f32 to vector<1x1024xf32>
    %141 = arith.maximumf %139, %140 : vector<1x1024xf32>
    %142 = arith.truncf %141 : vector<1x1024xf32> to vector<1x1024xbf16>
    %c0_98 = arith.constant 0 : index
    %c0_99 = arith.constant 0 : index
    %143 = vector.load %arg8[%c0_98, %c0_99] : memref<1024x512xbf16, #tpu.memory_space<vmem>>, vector<1024x512xbf16>
    %cst_100 = arith.constant dense<0.000000e+00> : vector<1x512xf32>
    %144 = tpu.matmul %142, %143, %cst_100 {dimension_numbers = #tpu.dot_dimension_numbers<[1], [0], [0], [1], [0, 0, 1, 1], [], []>} : vector<1x1024xbf16>, vector<1024x512xbf16>, vector<1x512xf32> -> vector<1x512xf32>
    %c0_101 = arith.constant 0 : index
    %c0_102 = arith.constant 0 : index
    %145 = vector.load %arg9[%c0_101, %c0_102] : memref<1x512xf32, #tpu.memory_space<vmem>>, vector<1x512xf32>
    %146 = arith.addf %144, %145 : vector<1x512xf32>
    %cst_103 = arith.constant 0.000000e+00 : f32
    %147 = vector.broadcast %cst_103 : f32 to vector<1x512xf32>
    %148 = arith.maximumf %146, %147 : vector<1x512xf32>
    %149 = arith.truncf %148 : vector<1x512xf32> to vector<1x512xbf16>
    %c0_104 = arith.constant 0 : index
    %c0_105 = arith.constant 0 : index
    %150 = vector.load %arg10[%c0_104, %c0_105] : memref<512x128xbf16, #tpu.memory_space<vmem>>, vector<512x128xbf16>
    %cst_106 = arith.constant dense<0.000000e+00> : vector<1x128xf32>
    %151 = tpu.matmul %149, %150, %cst_106 {dimension_numbers = #tpu.dot_dimension_numbers<[1], [0], [0], [1], [0, 0, 1, 1], [], []>} : vector<1x512xbf16>, vector<512x128xbf16>, vector<1x128xf32> -> vector<1x128xf32>
    %c0_107 = arith.constant 0 : index
    %c0_108 = arith.constant 0 : index
    %152 = vector.load %arg11[%c0_107, %c0_108] : memref<1x128xf32, #tpu.memory_space<vmem>>, vector<1x128xf32>
    %153 = arith.addf %151, %152 : vector<1x128xf32>
    %cst_109 = arith.constant dense<0xFF800000> : vector<1xf32>
    %154 = vector.multi_reduction <maximumf>, %153, %cst_109 [1] : vector<1x128xf32> to vector<1xf32>
    %155 = vector.shape_cast %154 : vector<1xf32> to vector<1x1xf32>
    %156 = vector.broadcast %155 : vector<1x1xf32> to vector<1x128xf32>
    %157 = arith.subf %153, %156 : vector<1x128xf32>
    %158 = math.exp %157 : vector<1x128xf32>
    %cst_110 = arith.constant dense<0.000000e+00> : vector<1xf32>
    %159 = vector.multi_reduction <add>, %158, %cst_110 [1] : vector<1x128xf32> to vector<1xf32>
    %160 = vector.shape_cast %159 : vector<1xf32> to vector<1x1xf32>
    %161 = vector.broadcast %160 : vector<1x1xf32> to vector<1x128xf32>
    %162 = arith.divf %158, %161 : vector<1x128xf32>
    %c0_111 = arith.constant 0 : index
    %c0_112 = arith.constant 0 : index
    %c0_113 = arith.constant 0 : index
    %163 = vector.load %arg12[%c0_111, %c0_112, %c0_113] : memref<1x1x128xf32, #tpu.memory_space<vmem>>, vector<1x1x128xf32>
    %164 = vector.shape_cast %163 : vector<1x1x128xf32> to vector<1x128xf32>
    %165 = vector.shape_cast %162 : vector<1x128xf32> to vector<1x1x128xf32>
    tpu.vector_store %arg12[%c0_111, %c0_112, %c0_113], %165 {strides = array<i32>} : memref<1x1x128xf32, #tpu.memory_space<vmem>>, vector<1x1x128xf32>,
    return
  }
  func.func @transform_0(%arg0: i32) -> (i32, i32, i32, i32) {
    %c0_i32 = arith.constant 0 : i32
    %c0_i32_0 = arith.constant 0 : i32
    %c0_i32_1 = arith.constant 0 : i32
    %c0_i32_2 = arith.constant 0 : i32
    return %arg0, %c0_i32, %c0_i32_0, %c0_i32_1 : i32, i32, i32, i32
  }
  func.func @transform_1(%arg0: i32) -> (i32, i32) {
    %c0_i32 = arith.constant 0 : i32
    %c0_i32_0 = arith.constant 0 : i32
    %c0_i32_1 = arith.constant 0 : i32
    return %c0_i32, %c0_i32_0 : i32, i32
  }
  func.func @transform_2(%arg0: i32) -> (i32, i32) {
    %c0_i32 = arith.constant 0 : i32
    %c0_i32_0 = arith.constant 0 : i32
    %c0_i32_1 = arith.constant 0 : i32
    return %c0_i32, %c0_i32_0 : i32, i32
  }
  func.func @transform_3(%arg0: i32) -> (i32, i32) {
    %c0_i32 = arith.constant 0 : i32
    %c0_i32_0 = arith.constant 0 : i32
    %c0_i32_1 = arith.constant 0 : i32
    return %c0_i32, %c0_i32_0 : i32, i32
  }
  func.func @transform_4(%arg0: i32) -> (i32, i32) {
    %c0_i32 = arith.constant 0 : i32
    %c0_i32_0 = arith.constant 0 : i32
    %c0_i32_1 = arith.constant 0 : i32
    return %c0_i32, %c0_i32_0 : i32, i32
  }
  func.func @transform_5(%arg0: i32) -> (i32, i32) {
    %c0_i32 = arith.constant 0 : i32
    %c0_i32_0 = arith.constant 0 : i32
    %c0_i32_1 = arith.constant 0 : i32
    return %c0_i32, %c0_i32_0 : i32, i32
  }
  func.func @transform_6(%arg0: i32) -> (i32, i32) {
    %c0_i32 = arith.constant 0 : i32
    %c0_i32_0 = arith.constant 0 : i32
    %c0_i32_1 = arith.constant 0 : i32
    return %c0_i32, %c0_i32_0 : i32, i32
  }
  func.func @transform_7(%arg0: i32) -> (i32, i32) {
    %c0_i32 = arith.constant 0 : i32
    %c0_i32_0 = arith.constant 0 : i32
    %c0_i32_1 = arith.constant 0 : i32
    return %c0_i32, %c0_i32_0 : i32, i32
  }
  func.func @transform_8(%arg0: i32) -> (i32, i32) {
    %c0_i32 = arith.constant 0 : i32
    %c0_i32_0 = arith.constant 0 : i32
    %c0_i32_1 = arith.constant 0 : i32
    return %c0_i32, %c0_i32_0 : i32, i32
  }
  func.func @transform_9(%arg0: i32) -> (i32, i32) {
    %c0_i32 = arith.constant 0 : i32
    %c0_i32_0 = arith.constant 0 : i32
    %c0_i32_1 = arith.constant 0 : i32
    return %c0_i32, %c0_i32_0 : i32, i32
  }
  func.func @transform_10(%arg0: i32) -> (i32, i32) {
    %c0_i32 = arith.constant 0 : i32
    %c0_i32_0 = arith.constant 0 : i32
    %c0_i32_1 = arith.constant 0 : i32
    return %c0_i32, %c0_i32_0 : i32, i32
  }
  func.func @transform_11(%arg0: i32) -> (i32, i32, i32) {
    %c0_i32 = arith.constant 0 : i32
    %c0_i32_0 = arith.constant 0 : i32
    %c0_i32_1 = arith.constant 0 : i32
    return %arg0, %c0_i32, %c0_i32_0 : i32, i32, i32
  }
}

</mosaic_0001>

<llo_original>
// kernel: _lambda_.1
$region0: #{_lambda_.1}
  #allocation0 [shape = 'u32[]', space=smem, size = 0x4, offset = 0x4, fixed_abs, tag = 'smem constant byte address 0x4 - core index']
  #allocation1 [shape = 'u32[72,128]{1,0:T(1,128)}', space=vmem, size = 0x9000, scoped, tag = 'internal scratch']
  #allocation2 [shape = 'f32[14,10,1]{2,1,0:T(8,128)}', space=vmem, size = 0x1c000, scoped, tag = 'scratch operand']
  #allocation3 [shape = 'f32[14,10,32]{2,1,0:T(8,128)}', space=vmem, size = 0x1c000, scoped, tag = 'scratch operand']
  %s0 = inlined_call_operand.vmem [shape: f32[2,12,8,1], index: 0, kind: input, shape index: {}]
  %s1 = inlined_call_operand.hbm [shape: f32[9,32], index: 1, kind: input, shape index: {}]
  %s2 = inlined_call_operand.hbm [shape: f32[1,32], index: 2, kind: input, shape index: {}]
  %s3 = inlined_call_operand.vmem [shape: f32[288,64], index: 3, kind: input, shape index: {}]
  %s4 = inlined_call_operand.hbm [shape: f32[1,64], index: 4, kind: input, shape index: {}]
  %s5 = inlined_call_operand.hbm [shape: bf16[1536,1024], index: 5, kind: input, shape index: {}]
  %s6 = inlined_call_operand.hbm [shape: f32[1,1024], index: 6, kind: input, shape index: {}]
  %s7 = inlined_call_operand.hbm [shape: bf16[1024,512], index: 7, kind: input, shape index: {}]
  %s8 = inlined_call_operand.hbm [shape: f32[1,512], index: 8, kind: input, shape index: {}]
  %s9 = inlined_call_operand.hbm [shape: bf16[512,128], index: 9, kind: input, shape index: {}]
  %s10 = inlined_call_operand.hbm [shape: f32[1,128], index: 10, kind: input, shape index: {}]
  %s11 = inlined_call_operand.hbm [shape: f32[2,1,128], index: 11, kind: output, shape index: {}]
  %s12 = sld [smem:[#allocation0]]
  $region113: #{_lambda_.1} parent=0
    _
  %s14 = ssub.s32 1, %s12
  %s15 = scalar_select 0, %s14, %s12
  $region1: #{_lambda_.1} parent=0
    #allocation4 [shape = 'u8[8192]{0}', space=vmem, size = 0x2000, scoped, tag = 'input window, operand 1, single buffered']
    #allocation5 [shape = 's32[2]{0}', space=sflag, size = 0x8, scoped, tag = 'scoped memory for _lambda_.1']
    #allocation6 [shape = 's32[2]{0}', space=sflag, size = 0x8, scoped, tag = 'scoped memory for _lambda_.1']
    #allocation7 [shape = 'u8[512]{0}', space=vmem, size = 0x400, scoped, tag = 'input window, operand 2, single buffered']
    #allocation8 [shape = 's32[1]{0}', space=sflag, size = 0x4, scoped, tag = 'scoped memory for _lambda_.1']
    #allocation9 [shape = 'u8[512]{0}', space=vmem, size = 0x400, scoped, tag = 'input window, operand 4, single buffered']
    #allocation10 [shape = 'u8[3145728]{0}', space=vmem, size = 0x300000, scoped, tag = 'input window, operand 5, single buffered']
    #allocation11 [shape = 's32[1]{0}', space=sflag, size = 0x4, scoped, tag = 'scoped memory for _lambda_.1']
    #allocation12 [shape = 'u8[4096]{0}', space=vmem, size = 0x1000, scoped, tag = 'input window, operand 6, single buffered']
    #allocation13 [shape = 'u8[1048576]{0}', space=vmem, size = 0x100000, scoped, tag = 'input window, operand 7, single buffered']
    #allocation14 [shape = 's32[1]{0}', space=sflag, size = 0x4, scoped, tag = 'scoped memory for _lambda_.1']
    #allocation15 [shape = 'u8[2048]{0}', space=vmem, size = 0x800, scoped, tag = 'input window, operand 8, single buffered']
    #allocation16 [shape = 'u8[131072]{0}', space=vmem, size = 0x20000, scoped, tag = 'input window, operand 9, single buffered']
    #allocation17 [shape = 's32[1]{0}', space=sflag, size = 0x4, scoped, tag = 'scoped memory for _lambda_.1']
    #allocation18 [shape = 'u8[512]{0}', space=vmem, size = 0x400, scoped, tag = 'input window, operand 10, single buffered']
    #allocation19 [shape = 'u8[1024]{0}', space=vmem, size = 0x400, scoped, tag = 'output window, operand 0']
    %16 = vsyncpa [#allocation5], 0
    %17 = vsyncpa [#allocation8], 0
    %18 = vsyncpa [#allocation11], 0
    %19 = vsyncpa [#allocation14], 0
    %20 = vsyncpa [#allocation17], 0
    %21 = vsyncpa [#allocation6], 0
    %s22 = scalar_lea.sflag [#allocation6], 1
    %23 = vsyncpa %s22, 0
    loop: start=0, step=1, limit=4
    $region2: #{_lambda_.1} parent=1 // loop_pre_header
      _
    $region3: #{_lambda_.1} parent=1 // loop_header
      %s25 = sphi 0, %s29
      %p26 = scmp.ge.s32.totalorder %s25, 4
      %s35 = sphi 0, %s37
      %s38 = sphi 0, %s35
      %s39 = sphi 0, %s38
      %s55 = sphi 0, %s39
      %s59 = sphi 0, %s59
      %s61 = sphi 0, %s59
      %s62 = sphi 0, %s61
      %s76 = sphi 0, %s62
      %s80 = sphi 0, %s80
      %s82 = sphi 0, %s80
      %s83 = sphi 0, %s82
      %s97 = sphi 0, %s83
      %s101 = sphi 0, %s101
      %s103 = sphi 0, %s101
      %s104 = sphi 0, %s103
      %s118 = sphi 0, %s104
      %s122 = sphi 0, %s122
      %s124 = sphi 0, %s122
      %s125 = sphi 0, %s124
      %s139 = sphi 0, %s125
      %s143 = sphi 0, %s143
      %s145 = sphi 0, %s143
      %s146 = sphi 0, %s145
      %s160 = sphi 0, %s146
      %s164 = sphi 0, %s164
      %s166 = sphi 0, %s164
      %s167 = sphi 0, %s166
      %s181 = sphi 0, %s167
      %s185 = sphi 0, %s185
      %s187 = sphi 0, %s185
      %s188 = sphi 0, %s187
      %s202 = sphi 0, %s188
      %s206 = sphi 0, %s206
      %s208 = sphi 0, %s206
      %s209 = sphi 0, %s208
      %s223 = sphi 0, %s209
      %s227 = sphi 0, %s227
      %s229 = sphi 0, %s227
      %s230 = sphi 0, %s229
      %s244 = sphi 0, %s230
      %s248 = sphi 0, %s248
      %s250 = sphi 0, %s248
      %s251 = sphi 0, %s250
      %s265 = sphi 0, %s251
      %s271 = sphi 0, %s273
      %s274 = sphi 0, %s271
      %s275 = sphi 0, %s274
      %s291 = sphi 0, %s275
    $region4: #{_lambda_.1} parent=1 // loop_header_branch
      %28 = sbr.rel (%p26) target = $region8
    $region5: #{_lambda_.1} parent=1 // loop_body
      %s30 = ssub.s32 %s25, 1
      %s31 = ssub.s32 %s25, 2
      %s32 = sadd.s32 %s25, 1
      %s33 = ssub.s32 %s25, %s32
      %p34 = scmp.eq.s32.totalorder %s33, 0
      %s36 = sadd.s32 %s35, 1
      %s37 = scalar_select %p34, %s35, %s36
      %p40 = pneg %p34
      %p41 = scmp.eq.s32.totalorder %s25, 1
      %p42 = por %p40, %p41
      %p43 = scmp.ne.s32.totalorder %s35, %s38
      %p44 = scmp.eq.s32.totalorder %s25, 0
      %p45 = por %p43, %p44
      %p46 = scmp.ne.s32.totalorder %s35, %s38
      %p47 = scmp.eq.s32.totalorder %s30, 1
      %p48 = por %p46, %p47
      %p49 = scmp.ne.s32.totalorder %s38, %s39
      %p50 = scmp.eq.s32.totalorder %s30, 0
      %p51 = por %p49, %p50
      %p52 = scmp.ne.s32.totalorder %s38, %s39
      %p53 = scmp.eq.s32.totalorder %s31, 1
      %p54 = por %p52, %p53
      %p56 = scmp.ne.s32.totalorder %s39, %s55
      %p57 = scmp.eq.s32.totalorder %s31, 0
      %p58 = por %p56, %p57
      %s60 = sadd.s32 %s59, 1
      %p63 = scmp.eq.s32.totalorder %s25, 1
      %p64 = scmp.ne.s32.totalorder %s59, %s61
      %p65 = scmp.eq.s32.totalorder %s25, 0
      %p66 = por %p64, %p65
      %p67 = scmp.ne.s32.totalorder %s59, %s61
      %p68 = scmp.eq.s32.totalorder %s30, 1
      %p69 = por %p67, %p68
      %p70 = scmp.ne.s32.totalorder %s61, %s62
      %p71 = scmp.eq.s32.totalorder %s30, 0
      %p72 = por %p70, %p71
      %p73 = scmp.ne.s32.totalorder %s61, %s62
      %p74 = scmp.eq.s32.totalorder %s31, 1
      %p75 = por %p73, %p74
      %p77 = scmp.ne.s32.totalorder %s62, %s76
      %p78 = scmp.eq.s32.totalorder %s31, 0
      %p79 = por %p77, %p78
      %s81 = sadd.s32 %s80, 1
      %p84 = scmp.eq.s32.totalorder %s25, 1
      %p85 = scmp.ne.s32.totalorder %s80, %s82
      %p86 = scmp.eq.s32.totalorder %s25, 0
      %p87 = por %p85, %p86
      %p88 = scmp.ne.s32.totalorder %s80, %s82
      %p89 = scmp.eq.s32.totalorder %s30, 1
      %p90 = por %p88, %p89
      %p91 = scmp.ne.s32.totalorder %s82, %s83
      %p92 = scmp.eq.s32.totalorder %s30, 0
      %p93 = por %p91, %p92
      %p94 = scmp.ne.s32.totalorder %s82, %s83
      %p95 = scmp.eq.s32.totalorder %s31, 1
      %p96 = por %p94, %p95
      %p98 = scmp.ne.s32.totalorder %s83, %s97
      %p99 = scmp.eq.s32.totalorder %s31, 0
      %p100 = por %p98, %p99
      %s102 = sadd.s32 %s101, 1
      %p105 = scmp.eq.s32.totalorder %s25, 1
      %p106 = scmp.ne.s32.totalorder %s101, %s103
      %p107 = scmp.eq.s32.totalorder %s25, 0
      %p108 = por %p106, %p107
      %p109 = scmp.ne.s32.totalorder %s101, %s103
      %p110 = scmp.eq.s32.totalorder %s30, 1
      %p111 = por %p109, %p110
      %p112 = scmp.ne.s32.totalorder %s103, %s104
      %p113 = scmp.eq.s32.totalorder %s30, 0
      %p114 = por %p112, %p113
      %p115 = scmp.ne.s32.totalorder %s103, %s104
      %p116 = scmp.eq.s32.totalorder %s31, 1
      %p117 = por %p115, %p116
      %p119 = scmp.ne.s32.totalorder %s104, %s118
      %p120 = scmp.eq.s32.totalorder %s31, 0
      %p121 = por %p119, %p120
      %s123 = sadd.s32 %s122, 1
      %p126 = scmp.eq.s32.totalorder %s25, 1
      %p127 = scmp.ne.s32.totalorder %s122, %s124
      %p128 = scmp.eq.s32.totalorder %s25, 0
      %p129 = por %p127, %p128
      %p130 = scmp.ne.s32.totalorder %s122, %s124
      %p131 = scmp.eq.s32.totalorder %s30, 1
      %p132 = por %p130, %p131
      %p133 = scmp.ne.s32.totalorder %s124, %s125
      %p134 = scmp.eq.s32.totalorder %s30, 0
      %p135 = por %p133, %p134
      %p136 = scmp.ne.s32.totalorder %s124, %s125
      %p137 = scmp.eq.s32.totalorder %s31, 1
      %p138 = por %p136, %p137
      %p140 = scmp.ne.s32.totalorder %s125, %s139
      %p141 = scmp.eq.s32.totalorder %s31, 0
      %p142 = por %p140, %p141
      %s144 = sadd.s32 %s143, 1
      %p147 = scmp.eq.s32.totalorder %s25, 1
      %p148 = scmp.ne.s32.totalorder %s143, %s145
      %p149 = scmp.eq.s32.totalorder %s25, 0
      %p150 = por %p148, %p149
      %p151 = scmp.ne.s32.totalorder %s143, %s145
      %p152 = scmp.eq.s32.totalorder %s30, 1
      %p153 = por %p151, %p152
      %p154 = scmp.ne.s32.totalorder %s145, %s146
      %p155 = scmp.eq.s32.totalorder %s30, 0
      %p156 = por %p154, %p155
      %p157 = scmp.ne.s32.totalorder %s145, %s146
      %p158 = scmp.eq.s32.totalorder %s31, 1
      %p159 = por %p157, %p158
      %p161 = scmp.ne.s32.totalorder %s146, %s160
      %p162 = scmp.eq.s32.totalorder %s31, 0
      %p163 = por %p161, %p162
      %s165 = sadd.s32 %s164, 1
      %p168 = scmp.eq.s32.totalorder %s25, 1
      %p169 = scmp.ne.s32.totalorder %s164, %s166
      %p170 = scmp.eq.s32.totalorder %s25, 0
      %p171 = por %p169, %p170
      %p172 = scmp.ne.s32.totalorder %s164, %s166
      %p173 = scmp.eq.s32.totalorder %s30, 1
      %p174 = por %p172, %p173
      %p175 = scmp.ne.s32.totalorder %s166, %s167
      %p176 = scmp.eq.s32.totalorder %s30, 0
      %p177 = por %p175, %p176
      %p178 = scmp.ne.s32.totalorder %s166, %s167
      %p179 = scmp.eq.s32.totalorder %s31, 1
      %p180 = por %p178, %p179
      %p182 = scmp.ne.s32.totalorder %s167, %s181
      %p183 = scmp.eq.s32.totalorder %s31, 0
      %p184 = por %p182, %p183
      %s186 = sadd.s32 %s185, 1
      %p189 = scmp.eq.s32.totalorder %s25, 1
      %p190 = scmp.ne.s32.totalorder %s185, %s187
      %p191 = scmp.eq.s32.totalorder %s25, 0
      %p192 = por %p190, %p191
      %p193 = scmp.ne.s32.totalorder %s185, %s187
      %p194 = scmp.eq.s32.totalorder %s30, 1
      %p195 = por %p193, %p194
      %p196 = scmp.ne.s32.totalorder %s187, %s188
      %p197 = scmp.eq.s32.totalorder %s30, 0
      %p198 = por %p196, %p197
      %p199 = scmp.ne.s32.totalorder %s187, %s188
      %p200 = scmp.eq.s32.totalorder %s31, 1
      %p201 = por %p199, %p200
      %p203 = scmp.ne.s32.totalorder %s188, %s202
      %p204 = scmp.eq.s32.totalorder %s31, 0
      %p205 = por %p203, %p204
      %s207 = sadd.s32 %s206, 1
      %p210 = scmp.eq.s32.totalorder %s25, 1
      %p211 = scmp.ne.s32.totalorder %s206, %s208
      %p212 = scmp.eq.s32.totalorder %s25, 0
      %p213 = por %p211, %p212
      %p214 = scmp.ne.s32.totalorder %s206, %s208
      %p215 = scmp.eq.s32.totalorder %s30, 1
      %p216 = por %p214, %p215
      %p217 = scmp.ne.s32.totalorder %s208, %s209
      %p218 = scmp.eq.s32.totalorder %s30, 0
      %p219 = por %p217, %p218
      %p220 = scmp.ne.s32.totalorder %s208, %s209
      %p221 = scmp.eq.s32.totalorder %s31, 1
      %p222 = por %p220, %p221
      %p224 = scmp.ne.s32.totalorder %s209, %s223
      %p225 = scmp.eq.s32.totalorder %s31, 0
      %p226 = por %p224, %p225
      %s228 = sadd.s32 %s227, 1
      %p231 = scmp.eq.s32.totalorder %s25, 1
      %p232 = scmp.ne.s32.totalorder %s227, %s229
      %p233 = scmp.eq.s32.totalorder %s25, 0
      %p234 = por %p232, %p233
      %p235 = scmp.ne.s32.totalorder %s227, %s229
      %p236 = scmp.eq.s32.totalorder %s30, 1
      %p237 = por %p235, %p236
      %p238 = scmp.ne.s32.totalorder %s229, %s230
      %p239 = scmp.eq.s32.totalorder %s30, 0
      %p240 = por %p238, %p239
      %p241 = scmp.ne.s32.totalorder %s229, %s230
      %p242 = scmp.eq.s32.totalorder %s31, 1
      %p243 = por %p241, %p242
      %p245 = scmp.ne.s32.totalorder %s230, %s244
      %p246 = scmp.eq.s32.totalorder %s31, 0
      %p247 = por %p245, %p246
      %s249 = sadd.s32 %s248, 1
      %p252 = scmp.eq.s32.totalorder %s25, 1
      %p253 = scmp.ne.s32.totalorder %s248, %s250
      %p254 = scmp.eq.s32.totalorder %s25, 0
      %p255 = por %p253, %p254
      %p256 = scmp.ne.s32.totalorder %s248, %s250
      %p257 = scmp.eq.s32.totalorder %s30, 1
      %p258 = por %p256, %p257
      %p259 = scmp.ne.s32.totalorder %s250, %s251
      %p260 = scmp.eq.s32.totalorder %s30, 0
      %p261 = por %p259, %p260
      %p262 = scmp.ne.s32.totalorder %s250, %s251
      %p263 = scmp.eq.s32.totalorder %s31, 1
      %p264 = por %p262, %p263
      %p266 = scmp.ne.s32.totalorder %s251, %s265
      %p267 = scmp.eq.s32.totalorder %s31, 0
      %p268 = por %p266, %p267
      %s269 = ssub.s32 %s25, %s32
      %p270 = scmp.eq.s32.totalorder %s269, 0
      %s272 = sadd.s32 %s271, 1
      %s273 = scalar_select %p270, %s271, %s272
      %p276 = pneg %p270
      %p277 = scmp.eq.s32.totalorder %s25, 1
      %p278 = por %p276, %p277
      %p279 = scmp.ne.s32.totalorder %s271, %s274
      %p280 = scmp.eq.s32.totalorder %s25, 0
      %p281 = por %p279, %p280
      %p282 = scmp.ne.s32.totalorder %s271, %s274
      %p283 = scmp.eq.s32.totalorder %s30, 1
      %p284 = por %p282, %p283
      %p285 = scmp.ne.s32.totalorder %s274, %s275
      %p286 = scmp.eq.s32.totalorder %s30, 0
      %p287 = por %p285, %p286
      %p288 = scmp.ne.s32.totalorder %s274, %s275
      %p289 = scmp.eq.s32.totalorder %s31, 1
      %p290 = por %p288, %p289
      %p292 = scmp.ne.s32.totalorder %s275, %s291
      %p293 = scmp.eq.s32.totalorder %s31, 0
      %p294 = por %p292, %p293
      %p295 = scmp.le.s32.totalorder 1, %s25
      %p296 = scmp.lt.s32.totalorder %s25, 3
      %p297 = pnand %p295, %p296
      %p298 = pneg %p297
      // Predicated region
      $region9: #{_lambda_.1} parent=5 // pred_check
        _
      $region10: #{_lambda_.1} parent=5 // pred_check_branch
        %300 = sbr.rel (%p297) target = $region12
      $region11: #{_lambda_.1} parent=5 // pred_region
        %s301 = ssub.s32 %s25, 1
        // Predicated region
        $region13: #{_lambda_.1} parent=11 // pred_check
          %p302 = pneg %p72
        $region14: #{_lambda_.1} parent=11 // pred_check_branch
          %304 = sbr.rel (%p302) target = $region16
        $region15: #{_lambda_.1} parent=11 // pred_region
          %306 = vsyncadd [#allocation5], 0
          %s307 = sshll.u32 %s1, 4
          %s308 = int_to_ptr.hbm [resolvable:$true] %s307
          %s309 = sshll.u32 [#allocation4], 4
          %s310 = int_to_ptr.vmem [resolvable:$true] %s309
          %315 = dma.hbm_to_vmem [thread:$0]  %s308, 256, %s310, [#allocation5], 128, 128, 8
        $region16: #{_lambda_.1} parent=11 // pred_fallthru
          _
        // Predicated region
        $region17: #{_lambda_.1} parent=11 // pred_check
          %p316 = pneg %p93
        $region18: #{_lambda_.1} parent=11 // pred_check_branch
          %318 = sbr.rel (%p316) target = $region20
        $region19: #{_lambda_.1} parent=11 // pred_region
          %320 = vsyncadd [#allocation8], 0
          %s322 = sshll.u32 %s2, 4
          %s323 = int_to_ptr.hbm [resolvable:$true] %s322
          %s324 = sshll.u32 [#allocation7], 4
          %s325 = int_to_ptr.vmem [resolvable:$true] %s324
          %327 = dma.hbm_to_vmem [thread:$0]  %s323, 16, %s325, [#allocation8]
        $region20: #{_lambda_.1} parent=11 // pred_fallthru
          _
        // Predicated region
        $region21: #{_lambda_.1} parent=11 // pred_check
          %p328 = pneg %p114
        $region22: #{_lambda_.1} parent=11 // pred_check_branch
          %330 = sbr.rel (%p328) target = $region24
        $region23: #{_lambda_.1} parent=11 // pred_region
          _
        $region24: #{_lambda_.1} parent=11 // pred_fallthru
          _
        // Predicated region
        $region25: #{_lambda_.1} parent=11 // pred_check
          %p331 = pneg %p135
        $region26: #{_lambda_.1} parent=11 // pred_check_branch
          %333 = sbr.rel (%p331) target = $region28
        $region27: #{_lambda_.1} parent=11 // pred_region
          %335 = vsyncadd [#allocation8], 0
          %s337 = sshll.u32 %s4, 4
          %s338 = int_to_ptr.hbm [resolvable:$true] %s337
          %s339 = sshll.u32 [#allocation9], 4
          %s340 = int_to_ptr.vmem [resolvable:$true] %s339
          %342 = dma.hbm_to_vmem [thread:$0]  %s338, 16, %s340, [#allocation8]
        $region28: #{_lambda_.1} parent=11 // pred_fallthru
          _
        // Predicated region
        $region29: #{_lambda_.1} parent=11 // pred_check
          %p343 = pneg %p156
        $region30: #{_lambda_.1} parent=11 // pred_check_branch
          %345 = sbr.rel (%p343) target = $region32
        $region31: #{_lambda_.1} parent=11 // pred_region
          %347 = vsyncadd [#allocation11], 0
          %s348 = sshll.u32 %s5, 4
          %s349 = int_to_ptr.hbm [resolvable:$true] %s348
          %s350 = sshll.u32 [#allocation10], 4
          %s351 = int_to_ptr.vmem [resolvable:$true] %s350
          %356 = dma.hbm_to_vmem [thread:$0]  %s349, 98304, %s351, [#allocation11], 512, 512, 32
        $region32: #{_lambda_.1} parent=11 // pred_fallthru
          _
        // Predicated region
        $region33: #{_lambda_.1} parent=11 // pred_check
          %p357 = pneg %p177
        $region34: #{_lambda_.1} parent=11 // pred_check_branch
          %359 = sbr.rel (%p357) target = $region36
        $region35: #{_lambda_.1} parent=11 // pred_region
          %361 = vsyncadd [#allocation11], 0
          %s363 = sshll.u32 %s6, 4
          %s364 = int_to_ptr.hbm [resolvable:$true] %s363
          %s365 = sshll.u32 [#allocation12], 4
          %s366 = int_to_ptr.vmem [resolvable:$true] %s365
          %368 = dma.hbm_to_vmem [thread:$0]  %s364, 128, %s366, [#allocation11]
        $region36: #{_lambda_.1} parent=11 // pred_fallthru
          _
        // Predicated region
        $region37: #{_lambda_.1} parent=11 // pred_check
          %p369 = pneg %p198
        $region38: #{_lambda_.1} parent=11 // pred_check_branch
          %371 = sbr.rel (%p369) target = $region40
        $region39: #{_lambda_.1} parent=11 // pred_region
          %373 = vsyncadd [#allocation14], 0
          %s374 = sshll.u32 %s7, 4
          %s375 = int_to_ptr.hbm [resolvable:$true] %s374
          %s376 = sshll.u32 [#allocation13], 4
          %s377 = int_to_ptr.vmem [resolvable:$true] %s376
          %382 = dma.hbm_to_vmem [thread:$0]  %s375, 32768, %s377, [#allocation14], 256, 256, 16
        $region40: #{_lambda_.1} parent=11 // pred_fallthru
          _
        // Predicated region
        $region41: #{_lambda_.1} parent=11 // pred_check
          %p383 = pneg %p219
        $region42: #{_lambda_.1} parent=11 // pred_check_branch
          %385 = sbr.rel (%p383) target = $region44
        $region43: #{_lambda_.1} parent=11 // pred_region
          %387 = vsyncadd [#allocation14], 0
          %s389 = sshll.u32 %s8, 4
          %s390 = int_to_ptr.hbm [resolvable:$true] %s389
          %s391 = sshll.u32 [#allocation15], 4
          %s392 = int_to_ptr.vmem [resolvable:$true] %s391
          %394 = dma.hbm_to_vmem [thread:$0]  %s390, 64, %s392, [#allocation14]
        $region44: #{_lambda_.1} parent=11 // pred_fallthru
          _
        // Predicated region
        $region45: #{_lambda_.1} parent=11 // pred_check
          %p395 = pneg %p240
        $region46: #{_lambda_.1} parent=11 // pred_check_branch
          %397 = sbr.rel (%p395) target = $region48
        $region47: #{_lambda_.1} parent=11 // pred_region
          %399 = vsyncadd [#allocation17], 0
          %s400 = sshll.u32 %s9, 4
          %s401 = int_to_ptr.hbm [resolvable:$true] %s400
          %s402 = sshll.u32 [#allocation16], 4
          %s403 = int_to_ptr.vmem [resolvable:$true] %s402
          %408 = dma.hbm_to_vmem [thread:$0]  %s401, 4096, %s403, [#allocation17], 64, 64, 4
        $region48: #{_lambda_.1} parent=11 // pred_fallthru
          _
        // Predicated region
        $region49: #{_lambda_.1} parent=11 // pred_check
          %p409 = pneg %p261
        $region50: #{_lambda_.1} parent=11 // pred_check_branch
          %411 = sbr.rel (%p409) target = $region52
        $region51: #{_lambda_.1} parent=11 // pred_region
          %413 = vsyncadd [#allocation17], 0
          %s415 = sshll.u32 %s10, 4
          %s416 = int_to_ptr.hbm [resolvable:$true] %s415
          %s417 = sshll.u32 [#allocation18], 4
          %s418 = int_to_ptr.vmem [resolvable:$true] %s417
          %420 = dma.hbm_to_vmem [thread:$0]  %s416, 16, %s418, [#allocation17]
        $region52: #{_lambda_.1} parent=11 // pred_fallthru
          _
      $region12: #{_lambda_.1} parent=5 // pred_fallthru
        _
      %p421 = scmp.lt.s32.totalorder %s25, 2
      // Predicated region
      $region53: #{_lambda_.1} parent=5 // pred_check
        %p422 = pneg %p421
      $region54: #{_lambda_.1} parent=5 // pred_check_branch
        %424 = sbr.rel (%p422) target = $region56
      $region55: #{_lambda_.1} parent=5 // pred_region
        // Predicated region
        $region57: #{_lambda_.1} parent=55 // pred_check
          %p425 = pneg %p45
        $region58: #{_lambda_.1} parent=55 // pred_check_branch
          %427 = sbr.rel (%p425) target = $region60
        $region59: #{_lambda_.1} parent=55 // pred_region
          %p428 = scmp.lt.s32.totalorder %s25, 1
          %s429 = scalar_select %p428, %s25, 1
          %s430 = smul.addr %s429, 12
          %s431 = smul.addr %s430, 8
          %s432 = scalar_lea.vmem %s0, %s431
        $region60: #{_lambda_.1} parent=55 // pred_fallthru
          _
      $region56: #{_lambda_.1} parent=5 // pred_fallthru
        _
      %p433 = scmp.le.s32.totalorder 1, %s25
      %p434 = scmp.lt.s32.totalorder %s25, 3
      %p435 = pnand %p433, %p434
      %p436 = pneg %p435
      // Predicated region
      $region61: #{_lambda_.1} parent=5 // pred_check
        _
      $region62: #{_lambda_.1} parent=5 // pred_check_branch
        %438 = sbr.rel (%p435) target = $region64
      $region63: #{_lambda_.1} parent=5 // pred_region
        %s439 = ssub.s32 %s25, 1
        // Predicated region
        $region65: #{_lambda_.1} parent=63 // pred_check
          %p440 = pneg %p72
        $region66: #{_lambda_.1} parent=63 // pred_check_branch
          %442 = sbr.rel (%p440) target = $region68
        $region67: #{_lambda_.1} parent=63 // pred_region
          %444 = dma.done [#allocation5], 256
        $region68: #{_lambda_.1} parent=63 // pred_fallthru
          _
        // Predicated region
        $region69: #{_lambda_.1} parent=63 // pred_check
          %p445 = pneg %p93
        $region70: #{_lambda_.1} parent=63 // pred_check_branch
          %447 = sbr.rel (%p445) target = $region72
        $region71: #{_lambda_.1} parent=63 // pred_region
          %449 = dma.done [#allocation8], 16
        $region72: #{_lambda_.1} parent=63 // pred_fallthru
          _
        // Predicated region
        $region73: #{_lambda_.1} parent=63 // pred_check
          %p450 = pneg %p135
        $region74: #{_lambda_.1} parent=63 // pred_check_branch
          %452 = sbr.rel (%p450) target = $region76
        $region75: #{_lambda_.1} parent=63 // pred_region
          %454 = dma.done [#allocation8], 16
        $region76: #{_lambda_.1} parent=63 // pred_fallthru
          _
        // Predicated region
        $region77: #{_lambda_.1} parent=63 // pred_check
          %p455 = pneg %p156
        $region78: #{_lambda_.1} parent=63 // pred_check_branch
          %457 = sbr.rel (%p455) target = $region80
        $region79: #{_lambda_.1} parent=63 // pred_region
          %459 = dma.done [#allocation11], 98304
        $region80: #{_lambda_.1} parent=63 // pred_fallthru
          _
        // Predicated region
        $region81: #{_lambda_.1} parent=63 // pred_check
          %p460 = pneg %p177
        $region82: #{_lambda_.1} parent=63 // pred_check_branch
          %462 = sbr.rel (%p460) target = $region84
        $region83: #{_lambda_.1} parent=63 // pred_region
          %464 = dma.done [#allocation11], 128
        $region84: #{_lambda_.1} parent=63 // pred_fallthru
          _
        // Predicated region
        $region85: #{_lambda_.1} parent=63 // pred_check
          %p465 = pneg %p198
        $region86: #{_lambda_.1} parent=63 // pred_check_branch
          %467 = sbr.rel (%p465) target = $region88
        $region87: #{_lambda_.1} parent=63 // pred_region
          %469 = dma.done [#allocation14], 32768
        $region88: #{_lambda_.1} parent=63 // pred_fallthru
          _
        // Predicated region
        $region89: #{_lambda_.1} parent=63 // pred_check
          %p470 = pneg %p219
        $region90: #{_lambda_.1} parent=63 // pred_check_branch
          %472 = sbr.rel (%p470) target = $region92
        $region91: #{_lambda_.1} parent=63 // pred_region
          %474 = dma.done [#allocation14], 64
        $region92: #{_lambda_.1} parent=63 // pred_fallthru
          _
        // Predicated region
        $region93: #{_lambda_.1} parent=63 // pred_check
          %p475 = pneg %p240
        $region94: #{_lambda_.1} parent=63 // pred_check_branch
          %477 = sbr.rel (%p475) target = $region96
        $region95: #{_lambda_.1} parent=63 // pred_region
          %479 = dma.done [#allocation17], 4096
        $region96: #{_lambda_.1} parent=63 // pred_fallthru
          _
        // Predicated region
        $region97: #{_lambda_.1} parent=63 // pred_check
          %p480 = pneg %p261
        $region98: #{_lambda_.1} parent=63 // pred_check_branch
          %482 = sbr.rel (%p480) target = $region100
        $region99: #{_lambda_.1} parent=63 // pred_region
          %484 = dma.done [#allocation17], 16
        $region100: #{_lambda_.1} parent=63 // pred_fallthru
          _
        %p485 = scmp.lt.s32.totalorder %s30, 1
        %s486 = scalar_select %p485, %s30, 1
        %s487 = smul.addr %s486, 12
        %s488 = smul.addr %s487, 8
        %s489 = scalar_lea.vmem %s0, %s488
        %p490 = pneg %p51
        %p491 = pneg %p48
        %p492 = pneg %p72
        %p493 = pneg %p69
        %p494 = pneg %p93
        %p495 = pneg %p90
        %p496 = pneg %p114
        %p497 = pneg %p111
        %p498 = pneg %p135
        %p499 = pneg %p132
        %p500 = pneg %p156
        %p501 = pneg %p153
        %p502 = pneg %p177
        %p503 = pneg %p174
        %p504 = pneg %p198
        %p505 = pneg %p195
        %p506 = pneg %p219
        %p507 = pneg %p216
        %p508 = pneg %p240
        %p509 = pneg %p237
        %p510 = pneg %p261
        %p511 = pneg %p258
        %p512 = pneg %p287
        %p513 = pneg %p284
        %s514 = sand.u32 %s274, 1
        %s515 = scalar_lea.sflag [#allocation6], %s514
        %s516 = sand.u32 %s274, 1
        %s517 = scalar_lea.vmem [#allocation19], %s516
        %p518 = scmp.lt.s32.totalorder %s30, 1
        %s519 = scalar_select %p518, %s30, 1
        %s520 = smul.addr %s519, 12
        %s521 = smul.addr %s520, 8
        %s522 = scalar_lea.vmem %s0, %s521
        %vm523 = vcmask 7168
        %524 = vst.msk [vmem:[#allocation2] sm:$0xff] %vm523, 0.0
        %vm525 = vcmask 1024
        %526 = vst.msk [vmem:[#allocation2 + $0x8] sm:$0x3] %vm525, 0.0
        %527 = vst.msk [vmem:[#allocation2 + $0x10] sm:$0xff] %vm523, 0.0
        %528 = vst.msk [vmem:[#allocation2 + $0x18] sm:$0x3] %vm525, 0.0
        %529 = vst.msk [vmem:[#allocation2 + $0x20] sm:$0xff] %vm523, 0.0
        %530 = vst.msk [vmem:[#allocation2 + $0x28] sm:$0x3] %vm525, 0.0
        %531 = vst.msk [vmem:[#allocation2 + $0x30] sm:$0xff] %vm523, 0.0
        %532 = vst.msk [vmem:[#allocation2 + $0x38] sm:$0x3] %vm525, 0.0
        %533 = vst.msk [vmem:[#allocation2 + $0x40] sm:$0xff] %vm523, 0.0
        %534 = vst.msk [vmem:[#allocation2 + $0x48] sm:$0x3] %vm525, 0.0
        %535 = vst.msk [vmem:[#allocation2 + $0x50] sm:$0xff] %vm523, 0.0
        %536 = vst.msk [vmem:[#allocation2 + $0x58] sm:$0x3] %vm525, 0.0
        %537 = vst.msk [vmem:[#allocation2 + $0x60] sm:$0xff] %vm523, 0.0
        %538 = vst.msk [vmem:[#allocation2 + $0x68] sm:$0x3] %vm525, 0.0
        %539 = vst.msk [vmem:[#allocation2 + $0x70] sm:$0xff] %vm523, 0.0
        %540 = vst.msk [vmem:[#allocation2 + $0x78] sm:$0x3] %vm525, 0.0
        %541 = vst.msk [vmem:[#allocation2 + $0x80] sm:$0xff] %vm523, 0.0
        %542 = vst.msk [vmem:[#allocation2 + $0x88] sm:$0x3] %vm525, 0.0
        %543 = vst.msk [vmem:[#allocation2 + $0x90] sm:$0xff] %vm523, 0.0
        %544 = vst.msk [vmem:[#allocation2 + $0x98] sm:$0x3] %vm525, 0.0
        %545 = vst.msk [vmem:[#allocation2 + $0xa0] sm:$0xff] %vm523, 0.0
        %546 = vst.msk [vmem:[#allocation2 + $0xa8] sm:$0x3] %vm525, 0.0
        %547 = vst.msk [vmem:[#allocation2 + $0xb0] sm:$0xff] %vm523, 0.0
        %548 = vst.msk [vmem:[#allocation2 + $0xb8] sm:$0x3] %vm525, 0.0
        %549 = vst.msk [vmem:[#allocation2 + $0xc0] sm:$0xff] %vm523, 0.0
        %550 = vst.msk [vmem:[#allocation2 + $0xc8] sm:$0x3] %vm525, 0.0
        %551 = vst.msk [vmem:[#allocation2 + $0xd0] sm:$0xff] %vm523, 0.0
        %552 = vst.msk [vmem:[#allocation2 + $0xd8] sm:$0x3] %vm525, 0.0
        %v553 = vld [vmem:[%s522] sm:$0xff]
        %v554 = vld [vmem:[%s522 + $0x8] sm:$0xff]
        %v555 = vld [vmem:[%s522 + $0x10] sm:$0xff]
        %v556 = vld [vmem:[%s522 + $0x18] sm:$0xff]
        %v557 = vld [vmem:[%s522 + $0x20] sm:$0xff]
        %v558 = vld [vmem:[%s522 + $0x28] sm:$0xff]
        %v559 = vld [vmem:[%s522 + $0x30] sm:$0xff]
        %v560 = vld [vmem:[%s522 + $0x38] sm:$0xff]
        %v561 = vld [vmem:[%s522 + $0x40] sm:$0xff]
        %v562 = vld [vmem:[%s522 + $0x48] sm:$0xff]
        %v563 = vld [vmem:[%s522 + $0x50] sm:$0xff]
        %v564 = vld [vmem:[%s522 + $0x58] sm:$0xff]
        %s565 = scalar_lea.vmem [#allocation2], 16
        %566 = vst.msk [vmem:[%s565 + $0x1] sm:$0xff] %vm523, %v553
        %567 = vst.msk [vmem:[%s565 + $0x11] sm:$0xff] %vm523, %v554
        %568 = vst.msk [vmem:[%s565 + $0x21] sm:$0xff] %vm523, %v555
        %569 = vst.msk [vmem:[%s565 + $0x31] sm:$0xff] %vm523, %v556
        %570 = vst.msk [vmem:[%s565 + $0x41] sm:$0xff] %vm523, %v557
        %571 = vst.msk [vmem:[%s565 + $0x51] sm:$0xff] %vm523, %v558
        %572 = vst.msk [vmem:[%s565 + $0x61] sm:$0xff] %vm523, %v559
        %573 = vst.msk [vmem:[%s565 + $0x71] sm:$0xff] %vm523, %v560
        %574 = vst.msk [vmem:[%s565 + $0x81] sm:$0xff] %vm523, %v561
        %575 = vst.msk [vmem:[%s565 + $0x91] sm:$0xff] %vm523, %v562
        %576 = vst.msk [vmem:[%s565 + $0xa1] sm:$0xff] %vm523, %v563
        %577 = vst.msk [vmem:[%s565 + $0xb1] sm:$0xff] %vm523, %v564
        %v578 = vld [vmem:[#allocation2] sm:$0xff]
        %v579 = vld [vmem:[#allocation2 + $0x10] sm:$0xff]
        %v580 = vld [vmem:[#allocation2 + $0x20] sm:$0xff]
        %v581 = vld [vmem:[#allocation2 + $0x30] sm:$0xff]
        %v582 = vld [vmem:[#allocation2 + $0x40] sm:$0xff]
        %v583 = vld [vmem:[#allocation2 + $0x50] sm:$0xff]
        %v584 = vld [vmem:[#allocation2 + $0x60] sm:$0xff]
        %v585 = vld [vmem:[#allocation2 + $0x70] sm:$0xff]
        %v586 = vld [vmem:[#allocation2 + $0x80] sm:$0xff]
        %v587 = vld [vmem:[#allocation2 + $0x90] sm:$0xff]
        %v588 = vld [vmem:[#allocation2 + $0xa0] sm:$0xff]
        %v589 = vld [vmem:[#allocation2 + $0xb0] sm:$0xff]
        %v590 = vld [vmem:[#allocation4] sm:$0x1]
        %592 = vset.pattern.permute.xlu0 0
        %593 = vperm.xlu0 %592, %v578
        %v594 = vpop.permute.xlu0 %593
        %597 = vset.pattern.permute.xlu0 0
        %598 = vperm.xlu0 %597, %v579
        %v599 = vpop.permute.xlu0 %598
        %602 = vset.pattern.permute.xlu0 0
        %603 = vperm.xlu0 %602, %v580
        %v604 = vpop.permute.xlu0 %603
        %607 = vset.pattern.permute.xlu0 0
        %608 = vperm.xlu0 %607, %v581
        %v609 = vpop.permute.xlu0 %608
        %612 = vset.pattern.permute.xlu0 0
        %613 = vperm.xlu0 %612, %v582
        %v614 = vpop.permute.xlu0 %613
        %617 = vset.pattern.permute.xlu0 0
        %618 = vperm.xlu0 %617, %v583
        %v619 = vpop.permute.xlu0 %618
        %622 = vset.pattern.permute.xlu0 0
        %623 = vperm.xlu0 %622, %v584
        %v624 = vpop.permute.xlu0 %623
        %627 = vset.pattern.permute.xlu0 0
        %628 = vperm.xlu0 %627, %v585
        %v629 = vpop.permute.xlu0 %628
        %632 = vset.pattern.permute.xlu0 0
        %633 = vperm.xlu0 %632, %v586
        %v634 = vpop.permute.xlu0 %633
        %637 = vset.pattern.permute.xlu0 0
        %638 = vperm.xlu0 %637, %v587
        %v639 = vpop.permute.xlu0 %638
        %642 = vset.pattern.permute.xlu0 0
        %643 = vperm.xlu0 %642, %v588
        %v644 = vpop.permute.xlu0 %643
        %647 = vset.pattern.permute.xlu0 0
        %648 = vperm.xlu0 %647, %v589
        %v649 = vpop.permute.xlu0 %648
        %v651 = vperm.slane %v590, 0
        %v652 = vmul.f32 %v594, %v651
        %v653 = vmul.f32 %v599, %v651
        %v654 = vmul.f32 %v604, %v651
        %v655 = vmul.f32 %v609, %v651
        %v656 = vmul.f32 %v614, %v651
        %v657 = vmul.f32 %v619, %v651
        %v658 = vmul.f32 %v624, %v651
        %v659 = vmul.f32 %v629, %v651
        %v660 = vmul.f32 %v634, %v651
        %v661 = vmul.f32 %v639, %v651
        %v662 = vmul.f32 %v644, %v651
        %v663 = vmul.f32 %v649, %v651
        %v664 = vadd.f32 %v652, 0.0
        %v665 = vadd.f32 %v653, 0.0
        %v666 = vadd.f32 %v654, 0.0
        %v667 = vadd.f32 %v655, 0.0
        %v668 = vadd.f32 %v656, 0.0
        %v669 = vadd.f32 %v657, 0.0
        %v670 = vadd.f32 %v658, 0.0
        %v671 = vadd.f32 %v659, 0.0
        %v672 = vadd.f32 %v660, 0.0
        %v673 = vadd.f32 %v661, 0.0
        %v674 = vadd.f32 %v662, 0.0
        %v675 = vadd.f32 %v663, 0.0
        %v676 = vld [vmem:[#allocation2 + $0x1] sm:$0xff]
        %v677 = vld [vmem:[#allocation2 + $0x11] sm:$0xff]
        %v678 = vld [vmem:[#allocation2 + $0x21] sm:$0xff]
        %v679 = vld [vmem:[#allocation2 + $0x31] sm:$0xff]
        %v680 = vld [vmem:[#allocation2 + $0x41] sm:$0xff]
        %v681 = vld [vmem:[#allocation2 + $0x51] sm:$0xff]
        %v682 = vld [vmem:[#allocation2 + $0x61] sm:$0xff]
        %v683 = vld [vmem:[#allocation2 + $0x71] sm:$0xff]
        %v684 = vld [vmem:[#allocation2 + $0x81] sm:$0xff]
        %v685 = vld [vmem:[#allocation2 + $0x91] sm:$0xff]
        %v686 = vld [vmem:[#allocation2 + $0xa1] sm:$0xff]
        %v687 = vld [vmem:[#allocation2 + $0xb1] sm:$0xff]
        %v688 = vld [vmem:[#allocation4 + $0x1] sm:$0x1]
        %690 = vset.pattern.permute.xlu0 0
        %691 = vperm.xlu0 %690, %v676
        %v692 = vpop.permute.xlu0 %691
        %695 = vset.pattern.permute.xlu0 0
        %696 = vperm.xlu0 %695, %v677
        %v697 = vpop.permute.xlu0 %696
        %700 = vset.pattern.permute.xlu0 0
        %701 = vperm.xlu0 %700, %v678
        %v702 = vpop.permute.xlu0 %701
        %705 = vset.pattern.permute.xlu0 0
        %706 = vperm.xlu0 %705, %v679
        %v707 = vpop.permute.xlu0 %706
        %710 = vset.pattern.permute.xlu0 0
        %711 = vperm.xlu0 %710, %v680
        %v712 = vpop.permute.xlu0 %711
        %715 = vset.pattern.permute.xlu0 0
        %716 = vperm.xlu0 %715, %v681
        %v717 = vpop.permute.xlu0 %716
        %720 = vset.pattern.permute.xlu0 0
        %721 = vperm.xlu0 %720, %v682
        %v722 = vpop.permute.xlu0 %721
        %725 = vset.pattern.permute.xlu0 0
        %726 = vperm.xlu0 %725, %v683
        %v727 = vpop.permute.xlu0 %726
        %730 = vset.pattern.permute.xlu0 0
        %731 = vperm.xlu0 %730, %v684
        %v732 = vpop.permute.xlu0 %731
        %735 = vset.pattern.permute.xlu0 0
        %736 = vperm.xlu0 %735, %v685
        %v737 = vpop.permute.xlu0 %736
        %740 = vset.pattern.permute.xlu0 0
        %741 = vperm.xlu0 %740, %v686
        %v742 = vpop.permute.xlu0 %741
        %745 = vset.pattern.permute.xlu0 0
        %746 = vperm.xlu0 %745, %v687
        %v747 = vpop.permute.xlu0 %746
        %v749 = vperm.slane %v688, 0
        %v750 = vmul.f32 %v692, %v749
        %v751 = vmul.f32 %v697, %v749
        %v752 = vmul.f32 %v702, %v749
        %v753 = vmul.f32 %v707, %v749
        %v754 = vmul.f32 %v712, %v749
        %v755 = vmul.f32 %v717, %v749
        %v756 = vmul.f32 %v722, %v749
        %v757 = vmul.f32 %v727, %v749
        %v758 = vmul.f32 %v732, %v749
        %v759 = vmul.f32 %v737, %v749
        %v760 = vmul.f32 %v742, %v749
        %v761 = vmul.f32 %v747, %v749
        %v762 = vadd.f32 %v664, %v750
        %v763 = vadd.f32 %v665, %v751
        %v764 = vadd.f32 %v666, %v752
        %v765 = vadd.f32 %v667, %v753
        %v766 = vadd.f32 %v668, %v754
        %v767 = vadd.f32 %v669, %v755
        %v768 = vadd.f32 %v670, %v756
        %v769 = vadd.f32 %v671, %v757
        %v770 = vadd.f32 %v672, %v758
        %v771 = vadd.f32 %v673, %v759
        %v772 = vadd.f32 %v674, %v760
        %v773 = vadd.f32 %v675, %v761
        %v774 = vld [vmem:[#allocation2 + $0x2] sm:$0xff]
        %v775 = vld [vmem:[#allocation2 + $0x12] sm:$0xff]
        %v776 = vld [vmem:[#allocation2 + $0x22] sm:$0xff]
        %v777 = vld [vmem:[#allocation2 + $0x32] sm:$0xff]
        %v778 = vld [vmem:[#allocation2 + $0x42] sm:$0xff]
        %v779 = vld [vmem:[#allocation2 + $0x52] sm:$0xff]
        %v780 = vld [vmem:[#allocation2 + $0x62] sm:$0xff]
        %v781 = vld [vmem:[#allocation2 + $0x72] sm:$0xff]
        %v782 = vld [vmem:[#allocation2 + $0x82] sm:$0xff]
        %v783 = vld [vmem:[#allocation2 + $0x92] sm:$0xff]
        %v784 = vld [vmem:[#allocation2 + $0xa2] sm:$0xff]
        %v785 = vld [vmem:[#allocation2 + $0xb2] sm:$0xff]
        %v786 = vld [vmem:[#allocation4 + $0x2] sm:$0x1]
        %788 = vset.pattern.permute.xlu0 0
        %789 = vperm.xlu0 %788, %v774
        %v790 = vpop.permute.xlu0 %789
        %793 = vset.pattern.permute.xlu0 0
        %794 = vperm.xlu0 %793, %v775
        %v795 = vpop.permute.xlu0 %794
        %798 = vset.pattern.permute.xlu0 0
        %799 = vperm.xlu0 %798, %v776
        %v800 = vpop.permute.xlu0 %799
        %803 = vset.pattern.permute.xlu0 0
        %804 = vperm.xlu0 %803, %v777
        %v805 = vpop.permute.xlu0 %804
        %808 = vset.pattern.permute.xlu0 0
        %809 = vperm.xlu0 %808, %v778
        %v810 = vpop.permute.xlu0 %809
        %813 = vset.pattern.permute.xlu0 0
        %814 = vperm.xlu0 %813, %v779
        %v815 = vpop.permute.xlu0 %814
        %818 = vset.pattern.permute.xlu0 0
        %819 = vperm.xlu0 %818, %v780
        %v820 = vpop.permute.xlu0 %819
        %823 = vset.pattern.permute.xlu0 0
        %824 = vperm.xlu0 %823, %v781
        %v825 = vpop.permute.xlu0 %824
        %828 = vset.pattern.permute.xlu0 0
        %829 = vperm.xlu0 %828, %v782
        %v830 = vpop.permute.xlu0 %829
        %833 = vset.pattern.permute.xlu0 0
        %834 = vperm.xlu0 %833, %v783
        %v835 = vpop.permute.xlu0 %834
        %838 = vset.pattern.permute.xlu0 0
        %839 = vperm.xlu0 %838, %v784
        %v840 = vpop.permute.xlu0 %839
        %843 = vset.pattern.permute.xlu0 0
        %844 = vperm.xlu0 %843, %v785
        %v845 = vpop.permute.xlu0 %844
        %v847 = vperm.slane %v786, 0
        %v848 = vmul.f32 %v790, %v847
        %v849 = vmul.f32 %v795, %v847
        %v850 = vmul.f32 %v800, %v847
        %v851 = vmul.f32 %v805, %v847
        %v852 = vmul.f32 %v810, %v847
        %v853 = vmul.f32 %v815, %v847
        %v854 = vmul.f32 %v820, %v847
        %v855 = vmul.f32 %v825, %v847
        %v856 = vmul.f32 %v830, %v847
        %v857 = vmul.f32 %v835, %v847
        %v858 = vmul.f32 %v840, %v847
        %v859 = vmul.f32 %v845, %v847
        %v860 = vadd.f32 %v762, %v848
        %v861 = vadd.f32 %v763, %v849
        %v862 = vadd.f32 %v764, %v850
        %v863 = vadd.f32 %v765, %v851
        %v864 = vadd.f32 %v766, %v852
        %v865 = vadd.f32 %v767, %v853
        %v866 = vadd.f32 %v768, %v854
        %v867 = vadd.f32 %v769, %v855
        %v868 = vadd.f32 %v770, %v856
        %v869 = vadd.f32 %v771, %v857
        %v870 = vadd.f32 %v772, %v858
        %v871 = vadd.f32 %v773, %v859
        %v872 = vld [vmem:[%s565] sm:$0xff]
        %v873 = vld [vmem:[%s565 + $0x10] sm:$0xff]
        %v874 = vld [vmem:[%s565 + $0x20] sm:$0xff]
        %v875 = vld [vmem:[%s565 + $0x30] sm:$0xff]
        %v876 = vld [vmem:[%s565 + $0x40] sm:$0xff]
        %v877 = vld [vmem:[%s565 + $0x50] sm:$0xff]
        %v878 = vld [vmem:[%s565 + $0x60] sm:$0xff]
        %v879 = vld [vmem:[%s565 + $0x70] sm:$0xff]
        %v880 = vld [vmem:[%s565 + $0x80] sm:$0xff]
        %v881 = vld [vmem:[%s565 + $0x90] sm:$0xff]
        %v882 = vld [vmem:[%s565 + $0xa0] sm:$0xff]
        %v883 = vld [vmem:[%s565 + $0xb0] sm:$0xff]
        %v884 = vld [vmem:[#allocation4 + $0x3] sm:$0x1]
        %886 = vset.pattern.permute.xlu0 0
        %887 = vperm.xlu0 %886, %v872
        %v888 = vpop.permute.xlu0 %887
        %891 = vset.pattern.permute.xlu0 0
        %892 = vperm.xlu0 %891, %v873
        %v893 = vpop.permute.xlu0 %892
        %896 = vset.pattern.permute.xlu0 0
        %897 = vperm.xlu0 %896, %v874
        %v898 = vpop.permute.xlu0 %897
        %901 = vset.pattern.permute.xlu0 0
        %902 = vperm.xlu0 %901, %v875
        %v903 = vpop.permute.xlu0 %902
        %906 = vset.pattern.permute.xlu0 0
        %907 = vperm.xlu0 %906, %v876
        %v908 = vpop.permute.xlu0 %907
        %911 = vset.pattern.permute.xlu0 0
        %912 = vperm.xlu0 %911, %v877
        %v913 = vpop.permute.xlu0 %912
        %916 = vset.pattern.permute.xlu0 0
        %917 = vperm.xlu0 %916, %v878
        %v918 = vpop.permute.xlu0 %917
        %921 = vset.pattern.permute.xlu0 0
        %922 = vperm.xlu0 %921, %v879
        %v923 = vpop.permute.xlu0 %922
        %926 = vset.pattern.permute.xlu0 0
        %927 = vperm.xlu0 %926, %v880
        %v928 = vpop.permute.xlu0 %927
        %931 = vset.pattern.permute.xlu0 0
        %932 = vperm.xlu0 %931, %v881
        %v933 = vpop.permute.xlu0 %932
        %936 = vset.pattern.permute.xlu0 0
        %937 = vperm.xlu0 %936, %v882
        %v938 = vpop.permute.xlu0 %937
        %941 = vset.pattern.permute.xlu0 0
        %942 = vperm.xlu0 %941, %v883
        %v943 = vpop.permute.xlu0 %942
        %v945 = vperm.slane %v884, 0
        %v946 = vmul.f32 %v888, %v945
        %v947 = vmul.f32 %v893, %v945
        %v948 = vmul.f32 %v898, %v945
        %v949 = vmul.f32 %v903, %v945
        %v950 = vmul.f32 %v908, %v945
        %v951 = vmul.f32 %v913, %v945
        %v952 = vmul.f32 %v918, %v945
        %v953 = vmul.f32 %v923, %v945
        %v954 = vmul.f32 %v928, %v945
        %v955 = vmul.f32 %v933, %v945
        %v956 = vmul.f32 %v938, %v945
        %v957 = vmul.f32 %v943, %v945
        %v958 = vadd.f32 %v860, %v946
        %v959 = vadd.f32 %v861, %v947
        %v960 = vadd.f32 %v862, %v948
        %v961 = vadd.f32 %v863, %v949
        %v962 = vadd.f32 %v864, %v950
        %v963 = vadd.f32 %v865, %v951
        %v964 = vadd.f32 %v866, %v952
        %v965 = vadd.f32 %v867, %v953
        %v966 = vadd.f32 %v868, %v954
        %v967 = vadd.f32 %v869, %v955
        %v968 = vadd.f32 %v870, %v956
        %v969 = vadd.f32 %v871, %v957
        %v970 = vld [vmem:[%s565 + $0x1] sm:$0xff]
        %v971 = vld [vmem:[%s565 + $0x11] sm:$0xff]
        %v972 = vld [vmem:[%s565 + $0x21] sm:$0xff]
        %v973 = vld [vmem:[%s565 + $0x31] sm:$0xff]
        %v974 = vld [vmem:[%s565 + $0x41] sm:$0xff]
        %v975 = vld [vmem:[%s565 + $0x51] sm:$0xff]
        %v976 = vld [vmem:[%s565 + $0x61] sm:$0xff]
        %v977 = vld [vmem:[%s565 + $0x71] sm:$0xff]
        %v978 = vld [vmem:[%s565 + $0x81] sm:$0xff]
        %v979 = vld [vmem:[%s565 + $0x91] sm:$0xff]
        %v980 = vld [vmem:[%s565 + $0xa1] sm:$0xff]
        %v981 = vld [vmem:[%s565 + $0xb1] sm:$0xff]
        %v982 = vld [vmem:[#allocation4 + $0x4] sm:$0x1]
        %984 = vset.pattern.permute.xlu0 0
        %985 = vperm.xlu0 %984, %v970
        %v986 = vpop.permute.xlu0 %985
        %989 = vset.pattern.permute.xlu0 0
        %990 = vperm.xlu0 %989, %v971
        %v991 = vpop.permute.xlu0 %990
        %994 = vset.pattern.permute.xlu0 0
        %995 = vperm.xlu0 %994, %v972
        %v996 = vpop.permute.xlu0 %995
        %999 = vset.pattern.permute.xlu0 0
        %1000 = vperm.xlu0 %999, %v973
        %v1001 = vpop.permute.xlu0 %1000
        %1004 = vset.pattern.permute.xlu0 0
        %1005 = vperm.xlu0 %1004, %v974
        %v1006 = vpop.permute.xlu0 %1005
        %1009 = vset.pattern.permute.xlu0 0
        %1010 = vperm.xlu0 %1009, %v975
        %v1011 = vpop.permute.xlu0 %1010
        %1014 = vset.pattern.permute.xlu0 0
        %1015 = vperm.xlu0 %1014, %v976
        %v1016 = vpop.permute.xlu0 %1015
        %1019 = vset.pattern.permute.xlu0 0
        %1020 = vperm.xlu0 %1019, %v977
        %v1021 = vpop.permute.xlu0 %1020
        %1024 = vset.pattern.permute.xlu0 0
        %1025 = vperm.xlu0 %1024, %v978
        %v1026 = vpop.permute.xlu0 %1025
        %1029 = vset.pattern.permute.xlu0 0
        %1030 = vperm.xlu0 %1029, %v979
        %v1031 = vpop.permute.xlu0 %1030
        %1034 = vset.pattern.permute.xlu0 0
        %1035 = vperm.xlu0 %1034, %v980
        %v1036 = vpop.permute.xlu0 %1035
        %1039 = vset.pattern.permute.xlu0 0
        %1040 = vperm.xlu0 %1039, %v981
        %v1041 = vpop.permute.xlu0 %1040
        %v1043 = vperm.slane %v982, 0
        %v1044 = vmul.f32 %v986, %v1043
        %v1045 = vmul.f32 %v991, %v1043
        %v1046 = vmul.f32 %v996, %v1043
        %v1047 = vmul.f32 %v1001, %v1043
        %v1048 = vmul.f32 %v1006, %v1043
        %v1049 = vmul.f32 %v1011, %v1043
        %v1050 = vmul.f32 %v1016, %v1043
        %v1051 = vmul.f32 %v1021, %v1043
        %v1052 = vmul.f32 %v1026, %v1043
        %v1053 = vmul.f32 %v1031, %v1043
        %v1054 = vmul.f32 %v1036, %v1043
        %v1055 = vmul.f32 %v1041, %v1043
        %v1056 = vadd.f32 %v958, %v1044
        %v1057 = vadd.f32 %v959, %v1045
        %v1058 = vadd.f32 %v960, %v1046
        %v1059 = vadd.f32 %v961, %v1047
        %v1060 = vadd.f32 %v962, %v1048
        %v1061 = vadd.f32 %v963, %v1049
        %v1062 = vadd.f32 %v964, %v1050
        %v1063 = vadd.f32 %v965, %v1051
        %v1064 = vadd.f32 %v966, %v1052
        %v1065 = vadd.f32 %v967, %v1053
        %v1066 = vadd.f32 %v968, %v1054
        %v1067 = vadd.f32 %v969, %v1055
        %v1068 = vld [vmem:[%s565 + $0x2] sm:$0xff]
        %v1069 = vld [vmem:[%s565 + $0x12] sm:$0xff]
        %v1070 = vld [vmem:[%s565 + $0x22] sm:$0xff]
        %v1071 = vld [vmem:[%s565 + $0x32] sm:$0xff]
        %v1072 = vld [vmem:[%s565 + $0x42] sm:$0xff]
        %v1073 = vld [vmem:[%s565 + $0x52] sm:$0xff]
        %v1074 = vld [vmem:[%s565 + $0x62] sm:$0xff]
        %v1075 = vld [vmem:[%s565 + $0x72] sm:$0xff]
        %v1076 = vld [vmem:[%s565 + $0x82] sm:$0xff]
        %v1077 = vld [vmem:[%s565 + $0x92] sm:$0xff]
        %v1078 = vld [vmem:[%s565 + $0xa2] sm:$0xff]
        %v1079 = vld [vmem:[%s565 + $0xb2] sm:$0xff]
        %v1080 = vld [vmem:[#allocation4 + $0x5] sm:$0x1]
        %1082 = vset.pattern.permute.xlu0 0
        %1083 = vperm.xlu0 %1082, %v1068
        %v1084 = vpop.permute.xlu0 %1083
        %1087 = vset.pattern.permute.xlu0 0
        %1088 = vperm.xlu0 %1087, %v1069
        %v1089 = vpop.permute.xlu0 %1088
        %1092 = vset.pattern.permute.xlu0 0
        %1093 = vperm.xlu0 %1092, %v1070
        %v1094 = vpop.permute.xlu0 %1093
        %1097 = vset.pattern.permute.xlu0 0
        %1098 = vperm.xlu0 %1097, %v1071
        %v1099 = vpop.permute.xlu0 %1098
        %1102 = vset.pattern.permute.xlu0 0
        %1103 = vperm.xlu0 %1102, %v1072
        %v1104 = vpop.permute.xlu0 %1103
        %1107 = vset.pattern.permute.xlu0 0
        %1108 = vperm.xlu0 %1107, %v1073
        %v1109 = vpop.permute.xlu0 %1108
        %1112 = vset.pattern.permute.xlu0 0
        %1113 = vperm.xlu0 %1112, %v1074
        %v1114 = vpop.permute.xlu0 %1113
        %1117 = vset.pattern.permute.xlu0 0
        %1118 = vperm.xlu0 %1117, %v1075
        %v1119 = vpop.permute.xlu0 %1118
        %1122 = vset.pattern.permute.xlu0 0
        %1123 = vperm.xlu0 %1122, %v1076
        %v1124 = vpop.permute.xlu0 %1123
        %1127 = vset.pattern.permute.xlu0 0
        %1128 = vperm.xlu0 %1127, %v1077
        %v1129 = vpop.permute.xlu0 %1128
        %1132 = vset.pattern.permute.xlu0 0
        %1133 = vperm.xlu0 %1132, %v1078
        %v1134 = vpop.permute.xlu0 %1133
        %1137 = vset.pattern.permute.xlu0 0
        %1138 = vperm.xlu0 %1137, %v1079
        %v1139 = vpop.permute.xlu0 %1138
        %v1141 = vperm.slane %v1080, 0
        %v1142 = vmul.f32 %v1084, %v1141
        %v1143 = vmul.f32 %v1089, %v1141
        %v1144 = vmul.f32 %v1094, %v1141
        %v1145 = vmul.f32 %v1099, %v1141
        %v1146 = vmul.f32 %v1104, %v1141
        %v1147 = vmul.f32 %v1109, %v1141
        %v1148 = vmul.f32 %v1114, %v1141
        %v1149 = vmul.f32 %v1119, %v1141
        %v1150 = vmul.f32 %v1124, %v1141
        %v1151 = vmul.f32 %v1129, %v1141
        %v1152 = vmul.f32 %v1134, %v1141
        %v1153 = vmul.f32 %v1139, %v1141
        %v1154 = vadd.f32 %v1056, %v1142
        %v1155 = vadd.f32 %v1057, %v1143
        %v1156 = vadd.f32 %v1058, %v1144
        %v1157 = vadd.f32 %v1059, %v1145
        %v1158 = vadd.f32 %v1060, %v1146
        %v1159 = vadd.f32 %v1061, %v1147
        %v1160 = vadd.f32 %v1062, %v1148
        %v1161 = vadd.f32 %v1063, %v1149
        %v1162 = vadd.f32 %v1064, %v1150
        %v1163 = vadd.f32 %v1065, %v1151
        %v1164 = vadd.f32 %v1066, %v1152
        %v1165 = vadd.f32 %v1067, %v1153
        %s1166 = scalar_lea.vmem [#allocation2], 32
        %v1167 = vld [vmem:[%s1166] sm:$0xff]
        %v1168 = vld [vmem:[%s1166 + $0x10] sm:$0xff]
        %v1169 = vld [vmem:[%s1166 + $0x20] sm:$0xff]
        %v1170 = vld [vmem:[%s1166 + $0x30] sm:$0xff]
        %v1171 = vld [vmem:[%s1166 + $0x40] sm:$0xff]
        %v1172 = vld [vmem:[%s1166 + $0x50] sm:$0xff]
        %v1173 = vld [vmem:[%s1166 + $0x60] sm:$0xff]
        %v1174 = vld [vmem:[%s1166 + $0x70] sm:$0xff]
        %v1175 = vld [vmem:[%s1166 + $0x80] sm:$0xff]
        %v1176 = vld [vmem:[%s1166 + $0x90] sm:$0xff]
        %v1177 = vld [vmem:[%s1166 + $0xa0] sm:$0xff]
        %v1178 = vld [vmem:[%s1166 + $0xb0] sm:$0xff]
        %v1179 = vld [vmem:[#allocation4 + $0x6] sm:$0x1]
        %1181 = vset.pattern.permute.xlu0 0
        %1182 = vperm.xlu0 %1181, %v1167
        %v1183 = vpop.permute.xlu0 %1182
        %1186 = vset.pattern.permute.xlu0 0
        %1187 = vperm.xlu0 %1186, %v1168
        %v1188 = vpop.permute.xlu0 %1187
        %1191 = vset.pattern.permute.xlu0 0
        %1192 = vperm.xlu0 %1191, %v1169
        %v1193 = vpop.permute.xlu0 %1192
        %1196 = vset.pattern.permute.xlu0 0
        %1197 = vperm.xlu0 %1196, %v1170
        %v1198 = vpop.permute.xlu0 %1197
        %1201 = vset.pattern.permute.xlu0 0
        %1202 = vperm.xlu0 %1201, %v1171
        %v1203 = vpop.permute.xlu0 %1202
        %1206 = vset.pattern.permute.xlu0 0
        %1207 = vperm.xlu0 %1206, %v1172
        %v1208 = vpop.permute.xlu0 %1207
        %1211 = vset.pattern.permute.xlu0 0
        %1212 = vperm.xlu0 %1211, %v1173
        %v1213 = vpop.permute.xlu0 %1212
        %1216 = vset.pattern.permute.xlu0 0
        %1217 = vperm.xlu0 %1216, %v1174
        %v1218 = vpop.permute.xlu0 %1217
        %1221 = vset.pattern.permute.xlu0 0
        %1222 = vperm.xlu0 %1221, %v1175
        %v1223 = vpop.permute.xlu0 %1222
        %1226 = vset.pattern.permute.xlu0 0
        %1227 = vperm.xlu0 %1226, %v1176
        %v1228 = vpop.permute.xlu0 %1227
        %1231 = vset.pattern.permute.xlu0 0
        %1232 = vperm.xlu0 %1231, %v1177
        %v1233 = vpop.permute.xlu0 %1232
        %1236 = vset.pattern.permute.xlu0 0
        %1237 = vperm.xlu0 %1236, %v1178
        %v1238 = vpop.permute.xlu0 %1237
        %v1240 = vperm.slane %v1179, 0
        %v1241 = vmul.f32 %v1183, %v1240
        %v1242 = vmul.f32 %v1188, %v1240
        %v1243 = vmul.f32 %v1193, %v1240
        %v1244 = vmul.f32 %v1198, %v1240
        %v1245 = vmul.f32 %v1203, %v1240
        %v1246 = vmul.f32 %v1208, %v1240
        %v1247 = vmul.f32 %v1213, %v1240
        %v1248 = vmul.f32 %v1218, %v1240
        %v1249 = vmul.f32 %v1223, %v1240
        %v1250 = vmul.f32 %v1228, %v1240
        %v1251 = vmul.f32 %v1233, %v1240
        %v1252 = vmul.f32 %v1238, %v1240
        %v1253 = vadd.f32 %v1154, %v1241
        %v1254 = vadd.f32 %v1155, %v1242
        %v1255 = vadd.f32 %v1156, %v1243
        %v1256 = vadd.f32 %v1157, %v1244
        %v1257 = vadd.f32 %v1158, %v1245
        %v1258 = vadd.f32 %v1159, %v1246
        %v1259 = vadd.f32 %v1160, %v1247
        %v1260 = vadd.f32 %v1161, %v1248
        %v1261 = vadd.f32 %v1162, %v1249
        %v1262 = vadd.f32 %v1163, %v1250
        %v1263 = vadd.f32 %v1164, %v1251
        %v1264 = vadd.f32 %v1165, %v1252
        %v1265 = vld [vmem:[%s1166 + $0x1] sm:$0xff]
        %v1266 = vld [vmem:[%s1166 + $0x11] sm:$0xff]
        %v1267 = vld [vmem:[%s1166 + $0x21] sm:$0xff]
        %v1268 = vld [vmem:[%s1166 + $0x31] sm:$0xff]
        %v1269 = vld [vmem:[%s1166 + $0x41] sm:$0xff]
        %v1270 = vld [vmem:[%s1166 + $0x51] sm:$0xff]
        %v1271 = vld [vmem:[%s1166 + $0x61] sm:$0xff]
        %v1272 = vld [vmem:[%s1166 + $0x71] sm:$0xff]
        %v1273 = vld [vmem:[%s1166 + $0x81] sm:$0xff]
        %v1274 = vld [vmem:[%s1166 + $0x91] sm:$0xff]
        %v1275 = vld [vmem:[%s1166 + $0xa1] sm:$0xff]
        %v1276 = vld [vmem:[%s1166 + $0xb1] sm:$0xff]
        %v1277 = vld [vmem:[#allocation4 + $0x7] sm:$0x1]
        %1279 = vset.pattern.permute.xlu0 0
        %1280 = vperm.xlu0 %1279, %v1265
        %v1281 = vpop.permute.xlu0 %1280
        %1284 = vset.pattern.permute.xlu0 0
        %1285 = vperm.xlu0 %1284, %v1266
        %v1286 = vpop.permute.xlu0 %1285
        %1289 = vset.pattern.permute.xlu0 0
        %1290 = vperm.xlu0 %1289, %v1267
        %v1291 = vpop.permute.xlu0 %1290
        %1294 = vset.pattern.permute.xlu0 0
        %1295 = vperm.xlu0 %1294, %v1268
        %v1296 = vpop.permute.xlu0 %1295
        %1299 = vset.pattern.permute.xlu0 0
        %1300 = vperm.xlu0 %1299, %v1269
        %v1301 = vpop.permute.xlu0 %1300
        %1304 = vset.pattern.permute.xlu0 0
        %1305 = vperm.xlu0 %1304, %v1270
        %v1306 = vpop.permute.xlu0 %1305
        %1309 = vset.pattern.permute.xlu0 0
        %1310 = vperm.xlu0 %1309, %v1271
        %v1311 = vpop.permute.xlu0 %1310
        %1314 = vset.pattern.permute.xlu0 0
        %1315 = vperm.xlu0 %1314, %v1272
        %v1316 = vpop.permute.xlu0 %1315
        %1319 = vset.pattern.permute.xlu0 0
        %1320 = vperm.xlu0 %1319, %v1273
        %v1321 = vpop.permute.xlu0 %1320
        %1324 = vset.pattern.permute.xlu0 0
        %1325 = vperm.xlu0 %1324, %v1274
        %v1326 = vpop.permute.xlu0 %1325
        %1329 = vset.pattern.permute.xlu0 0
        %1330 = vperm.xlu0 %1329, %v1275
        %v1331 = vpop.permute.xlu0 %1330
        %1334 = vset.pattern.permute.xlu0 0
        %1335 = vperm.xlu0 %1334, %v1276
        %v1336 = vpop.permute.xlu0 %1335
        %v1338 = vperm.slane %v1277, 0
        %v1339 = vmul.f32 %v1281, %v1338
        %v1340 = vmul.f32 %v1286, %v1338
        %v1341 = vmul.f32 %v1291, %v1338
        %v1342 = vmul.f32 %v1296, %v1338
        %v1343 = vmul.f32 %v1301, %v1338
        %v1344 = vmul.f32 %v1306, %v1338
        %v1345 = vmul.f32 %v1311, %v1338
        %v1346 = vmul.f32 %v1316, %v1338
        %v1347 = vmul.f32 %v1321, %v1338
        %v1348 = vmul.f32 %v1326, %v1338
        %v1349 = vmul.f32 %v1331, %v1338
        %v1350 = vmul.f32 %v1336, %v1338
        %v1351 = vadd.f32 %v1253, %v1339
        %v1352 = vadd.f32 %v1254, %v1340
        %v1353 = vadd.f32 %v1255, %v1341
        %v1354 = vadd.f32 %v1256, %v1342
        %v1355 = vadd.f32 %v1257, %v1343
        %v1356 = vadd.f32 %v1258, %v1344
        %v1357 = vadd.f32 %v1259, %v1345
        %v1358 = vadd.f32 %v1260, %v1346
        %v1359 = vadd.f32 %v1261, %v1347
        %v1360 = vadd.f32 %v1262, %v1348
        %v1361 = vadd.f32 %v1263, %v1349
        %v1362 = vadd.f32 %v1264, %v1350
        %v1363 = vld [vmem:[%s1166 + $0x2] sm:$0xff]
        %v1364 = vld [vmem:[%s1166 + $0x12] sm:$0xff]
        %v1365 = vld [vmem:[%s1166 + $0x22] sm:$0xff]
        %v1366 = vld [vmem:[%s1166 + $0x32] sm:$0xff]
        %v1367 = vld [vmem:[%s1166 + $0x42] sm:$0xff]
        %v1368 = vld [vmem:[%s1166 + $0x52] sm:$0xff]
        %v1369 = vld [vmem:[%s1166 + $0x62] sm:$0xff]
        %v1370 = vld [vmem:[%s1166 + $0x72] sm:$0xff]
        %v1371 = vld [vmem:[%s1166 + $0x82] sm:$0xff]
        %v1372 = vld [vmem:[%s1166 + $0x92] sm:$0xff]
        %v1373 = vld [vmem:[%s1166 + $0xa2] sm:$0xff]
        %v1374 = vld [vmem:[%s1166 + $0xb2] sm:$0xff]
        %v1375 = vld [vmem:[#allocation4 + $0x8] sm:$0x1]
        %1377 = vset.pattern.permute.xlu0 0
        %1378 = vperm.xlu0 %1377, %v1363
        %v1379 = vpop.permute.xlu0 %1378
        %1382 = vset.pattern.permute.xlu0 0
        %1383 = vperm.xlu0 %1382, %v1364
        %v1384 = vpop.permute.xlu0 %1383
        %1387 = vset.pattern.permute.xlu0 0
        %1388 = vperm.xlu0 %1387, %v1365
        %v1389 = vpop.permute.xlu0 %1388
        %1392 = vset.pattern.permute.xlu0 0
        %1393 = vperm.xlu0 %1392, %v1366
        %v1394 = vpop.permute.xlu0 %1393
        %1397 = vset.pattern.permute.xlu0 0
        %1398 = vperm.xlu0 %1397, %v1367
        %v1399 = vpop.permute.xlu0 %1398
        %1402 = vset.pattern.permute.xlu0 0
        %1403 = vperm.xlu0 %1402, %v1368
        %v1404 = vpop.permute.xlu0 %1403
        %1407 = vset.pattern.permute.xlu0 0
        %1408 = vperm.xlu0 %1407, %v1369
        %v1409 = vpop.permute.xlu0 %1408
        %1412 = vset.pattern.permute.xlu0 0
        %1413 = vperm.xlu0 %1412, %v1370
        %v1414 = vpop.permute.xlu0 %1413
        %1417 = vset.pattern.permute.xlu0 0
        %1418 = vperm.xlu0 %1417, %v1371
        %v1419 = vpop.permute.xlu0 %1418
        %1422 = vset.pattern.permute.xlu0 0
        %1423 = vperm.xlu0 %1422, %v1372
        %v1424 = vpop.permute.xlu0 %1423
        %1427 = vset.pattern.permute.xlu0 0
        %1428 = vperm.xlu0 %1427, %v1373
        %v1429 = vpop.permute.xlu0 %1428
        %1432 = vset.pattern.permute.xlu0 0
        %1433 = vperm.xlu0 %1432, %v1374
        %v1434 = vpop.permute.xlu0 %1433
        %v1436 = vperm.slane %v1375, 0
        %v1437 = vmul.f32 %v1379, %v1436
        %v1438 = vmul.f32 %v1384, %v1436
        %v1439 = vmul.f32 %v1389, %v1436
        %v1440 = vmul.f32 %v1394, %v1436
        %v1441 = vmul.f32 %v1399, %v1436
        %v1442 = vmul.f32 %v1404, %v1436
        %v1443 = vmul.f32 %v1409, %v1436
        %v1444 = vmul.f32 %v1414, %v1436
        %v1445 = vmul.f32 %v1419, %v1436
        %v1446 = vmul.f32 %v1424, %v1436
        %v1447 = vmul.f32 %v1429, %v1436
        %v1448 = vmul.f32 %v1434, %v1436
        %v1449 = vadd.f32 %v1351, %v1437
        %v1450 = vadd.f32 %v1352, %v1438
        %v1451 = vadd.f32 %v1353, %v1439
        %v1452 = vadd.f32 %v1354, %v1440
        %v1453 = vadd.f32 %v1355, %v1441
        %v1454 = vadd.f32 %v1356, %v1442
        %v1455 = vadd.f32 %v1357, %v1443
        %v1456 = vadd.f32 %v1358, %v1444
        %v1457 = vadd.f32 %v1359, %v1445
        %v1458 = vadd.f32 %v1360, %v1446
        %v1459 = vadd.f32 %v1361, %v1447
        %v1460 = vadd.f32 %v1362, %v1448
        %v1461 = vld [vmem:[#allocation7] sm:$0x1]
        %v1463 = vperm.slane %v1461, 0
        %v1465 = vadd.f32 %v1449, %v1463
        %v1466 = vadd.f32 %v1450, %v1463
        %v1467 = vadd.f32 %v1451, %v1463
        %v1468 = vadd.f32 %v1452, %v1463
        %v1469 = vadd.f32 %v1453, %v1463
        %v1470 = vadd.f32 %v1454, %v1463
        %v1471 = vadd.f32 %v1455, %v1463
        %v1472 = vadd.f32 %v1456, %v1463
        %v1473 = vadd.f32 %v1457, %v1463
        %v1474 = vadd.f32 %v1458, %v1463
        %v1475 = vadd.f32 %v1459, %v1463
        %v1476 = vadd.f32 %v1460, %v1463
        %v1477 = vmax.f32 %v1465, 0.0
        %v1478 = vmax.f32 %v1466, 0.0
        %v1479 = vmax.f32 %v1467, 0.0
        %v1480 = vmax.f32 %v1468, 0.0
        %v1481 = vmax.f32 %v1469, 0.0
        %v1482 = vmax.f32 %v1470, 0.0
        %v1483 = vmax.f32 %v1471, 0.0
        %v1484 = vmax.f32 %v1472, 0.0
        %v1485 = vmax.f32 %v1473, 0.0
        %v1486 = vmax.f32 %v1474, 0.0
        %v1487 = vmax.f32 %v1475, 0.0
        %v1488 = vmax.f32 %v1476, 0.0
        %vm1489 = vcmask 261120
        %1490 = vst.msk [vmem:[#allocation3] sm:$0xff] %vm1489, 0.0
        %vm1491 = vcmask 254976
        %1492 = vst.msk [vmem:[#allocation3 + $0x8] sm:$0x3] %vm1491, 0.0
        %1493 = vst.msk [vmem:[#allocation3 + $0x10] sm:$0xff] %vm1489, 0.0
        %1494 = vst.msk [vmem:[#allocation3 + $0x18] sm:$0x3] %vm1491, 0.0
        %1495 = vst.msk [vmem:[#allocation3 + $0x20] sm:$0xff] %vm1489, 0.0
        %1496 = vst.msk [vmem:[#allocation3 + $0x28] sm:$0x3] %vm1491, 0.0
        %1497 = vst.msk [vmem:[#allocation3 + $0x30] sm:$0xff] %vm1489, 0.0
        %1498 = vst.msk [vmem:[#allocation3 + $0x38] sm:$0x3] %vm1491, 0.0
        %1499 = vst.msk [vmem:[#allocation3 + $0x40] sm:$0xff] %vm1489, 0.0
        %1500 = vst.msk [vmem:[#allocation3 + $0x48] sm:$0x3] %vm1491, 0.0
        %1501 = vst.msk [vmem:[#allocation3 + $0x50] sm:$0xff] %vm1489, 0.0
        %1502 = vst.msk [vmem:[#allocation3 + $0x58] sm:$0x3] %vm1491, 0.0
        %1503 = vst.msk [vmem:[#allocation3 + $0x60] sm:$0xff] %vm1489, 0.0
        %1504 = vst.msk [vmem:[#allocation3 + $0x68] sm:$0x3] %vm1491, 0.0
        %1505 = vst.msk [vmem:[#allocation3 + $0x70] sm:$0xff] %vm1489, 0.0
        %1506 = vst.msk [vmem:[#allocation3 + $0x78] sm:$0x3] %vm1491, 0.0
        %1507 = vst.msk [vmem:[#allocation3 + $0x80] sm:$0xff] %vm1489, 0.0
        %1508 = vst.msk [vmem:[#allocation3 + $0x88] sm:$0x3] %vm1491, 0.0
        %1509 = vst.msk [vmem:[#allocation3 + $0x90] sm:$0xff] %vm1489, 0.0
        %1510 = vst.msk [vmem:[#allocation3 + $0x98] sm:$0x3] %vm1491, 0.0
        %1511 = vst.msk [vmem:[#allocation3 + $0xa0] sm:$0xff] %vm1489, 0.0
        %1512 = vst.msk [vmem:[#allocation3 + $0xa8] sm:$0x3] %vm1491, 0.0
        %1513 = vst.msk [vmem:[#allocation3 + $0xb0] sm:$0xff] %vm1489, 0.0
        %1514 = vst.msk [vmem:[#allocation3 + $0xb8] sm:$0x3] %vm1491, 0.0
        %1515 = vst.msk [vmem:[#allocation3 + $0xc0] sm:$0xff] %vm1489, 0.0
        %1516 = vst.msk [vmem:[#allocation3 + $0xc8] sm:$0x3] %vm1491, 0.0
        %1517 = vst.msk [vmem:[#allocation3 + $0xd0] sm:$0xff] %vm1489, 0.0
        %1518 = vst.msk [vmem:[#allocation3 + $0xd8] sm:$0x3] %vm1491, 0.0
        %s1519 = scalar_lea.vmem [#allocation3], 16
        %1520 = vst.msk [vmem:[%s1519 + $0x1] sm:$0xff] %vm1489, %v1477
        %1521 = vst.msk [vmem:[%s1519 + $0x11] sm:$0xff] %vm1489, %v1478
        %1522 = vst.msk [vmem:[%s1519 + $0x21] sm:$0xff] %vm1489, %v1479
        %1523 = vst.msk [vmem:[%s1519 + $0x31] sm:$0xff] %vm1489, %v1480
        %1524 = vst.msk [vmem:[%s1519 + $0x41] sm:$0xff] %vm1489, %v1481
        %1525 = vst.msk [vmem:[%s1519 + $0x51] sm:$0xff] %vm1489, %v1482
        %1526 = vst.msk [vmem:[%s1519 + $0x61] sm:$0xff] %vm1489, %v1483
        %1527 = vst.msk [vmem:[%s1519 + $0x71] sm:$0xff] %vm1489, %v1484
        %1528 = vst.msk [vmem:[%s1519 + $0x81] sm:$0xff] %vm1489, %v1485
        %1529 = vst.msk [vmem:[%s1519 + $0x91] sm:$0xff] %vm1489, %v1486
        %1530 = vst.msk [vmem:[%s1519 + $0xa1] sm:$0xff] %vm1489, %v1487
        %1531 = vst.msk [vmem:[%s1519 + $0xb1] sm:$0xff] %vm1489, %v1488
        %v1532 = vld [vmem:[#allocation3] sm:$0xff]
        %v1533 = vld [vmem:[#allocation3 + $0x10] sm:$0xff]
        %v1534 = vld [vmem:[#allocation3 + $0x20] sm:$0xff]
        %v1535 = vld [vmem:[#allocation3 + $0x30] sm:$0xff]
        %v1536 = vld [vmem:[#allocation3 + $0x40] sm:$0xff]
        %v1537 = vld [vmem:[#allocation3 + $0x50] sm:$0xff]
        %v1538 = vld [vmem:[#allocation3 + $0x60] sm:$0xff]
        %v1539 = vld [vmem:[#allocation3 + $0x70] sm:$0xff]
        %v1540 = vld [vmem:[#allocation3 + $0x80] sm:$0xff]
        %v1541 = vld [vmem:[#allocation3 + $0x90] sm:$0xff]
        %v1542 = vld [vmem:[#allocation3 + $0xa0] sm:$0xff]
        %v1543 = vld [vmem:[#allocation3 + $0xb0] sm:$0xff]
        %v1544 = vld [vmem:[#allocation3 + $0x1] sm:$0xff]
        %v1545 = vld [vmem:[#allocation3 + $0x11] sm:$0xff]
        %v1546 = vld [vmem:[#allocation3 + $0x21] sm:$0xff]
        %v1547 = vld [vmem:[#allocation3 + $0x31] sm:$0xff]
        %v1548 = vld [vmem:[#allocation3 + $0x41] sm:$0xff]
        %v1549 = vld [vmem:[#allocation3 + $0x51] sm:$0xff]
        %v1550 = vld [vmem:[#allocation3 + $0x61] sm:$0xff]
        %v1551 = vld [vmem:[#allocation3 + $0x71] sm:$0xff]
        %v1552 = vld [vmem:[#allocation3 + $0x81] sm:$0xff]
        %v1553 = vld [vmem:[#allocation3 + $0x91] sm:$0xff]
        %v1554 = vld [vmem:[#allocation3 + $0xa1] sm:$0xff]
        %v1555 = vld [vmem:[#allocation3 + $0xb1] sm:$0xff]
        %v1556 = vld [vmem:[#allocation3 + $0x2] sm:$0xff]
        %v1557 = vld [vmem:[#allocation3 + $0x12] sm:$0xff]
        %v1558 = vld [vmem:[#allocation3 + $0x22] sm:$0xff]
        %v1559 = vld [vmem:[#allocation3 + $0x32] sm:$0xff]
        %v1560 = vld [vmem:[#allocation3 + $0x42] sm:$0xff]
        %v1561 = vld [vmem:[#allocation3 + $0x52] sm:$0xff]
        %v1562 = vld [vmem:[#allocation3 + $0x62] sm:$0xff]
        %v1563 = vld [vmem:[#allocation3 + $0x72] sm:$0xff]
        %v1564 = vld [vmem:[#allocation3 + $0x82] sm:$0xff]
        %v1565 = vld [vmem:[#allocation3 + $0x92] sm:$0xff]
        %v1566 = vld [vmem:[#allocation3 + $0xa2] sm:$0xff]
        %v1567 = vld [vmem:[#allocation3 + $0xb2] sm:$0xff]
        %v1568 = vld [vmem:[%s1519] sm:$0xff]
        %v1569 = vld [vmem:[%s1519 + $0x10] sm:$0xff]
        %v1570 = vld [vmem:[%s1519 + $0x20] sm:$0xff]
        %v1571 = vld [vmem:[%s1519 + $0x30] sm:$0xff]
        %v1572 = vld [vmem:[%s1519 + $0x40] sm:$0xff]
        %v1573 = vld [vmem:[%s1519 + $0x50] sm:$0xff]
        %v1574 = vld [vmem:[%s1519 + $0x60] sm:$0xff]
        %v1575 = vld [vmem:[%s1519 + $0x70] sm:$0xff]
        %v1576 = vld [vmem:[%s1519 + $0x80] sm:$0xff]
        %v1577 = vld [vmem:[%s1519 + $0x90] sm:$0xff]
        %v1578 = vld [vmem:[%s1519 + $0xa0] sm:$0xff]
        %v1579 = vld [vmem:[%s1519 + $0xb0] sm:$0xff]
        %v1580 = vld [vmem:[%s1519 + $0x1] sm:$0xff]
        %v1581 = vld [vmem:[%s1519 + $0x11] sm:$0xff]
        %v1582 = vld [vmem:[%s1519 + $0x21] sm:$0xff]
        %v1583 = vld [vmem:[%s1519 + $0x31] sm:$0xff]
        %v1584 = vld [vmem:[%s1519 + $0x41] sm:$0xff]
        %v1585 = vld [vmem:[%s1519 + $0x51] sm:$0xff]
        %v1586 = vld [vmem:[%s1519 + $0x61] sm:$0xff]
        %v1587 = vld [vmem:[%s1519 + $0x71] sm:$0xff]
        %v1588 = vld [vmem:[%s1519 + $0x81] sm:$0xff]
        %v1589 = vld [vmem:[%s1519 + $0x91] sm:$0xff]
        %v1590 = vld [vmem:[%s1519 + $0xa1] sm:$0xff]
        %v1591 = vld [vmem:[%s1519 + $0xb1] sm:$0xff]
        %v1592 = vld [vmem:[%s1519 + $0x2] sm:$0xff]
        %v1593 = vld [vmem:[%s1519 + $0x12] sm:$0xff]
        %v1594 = vld [vmem:[%s1519 + $0x22] sm:$0xff]
        %v1595 = vld [vmem:[%s1519 + $0x32] sm:$0xff]
        %v1596 = vld [vmem:[%s1519 + $0x42] sm:$0xff]
        %v1597 = vld [vmem:[%s1519 + $0x52] sm:$0xff]
        %v1598 = vld [vmem:[%s1519 + $0x62] sm:$0xff]
        %v1599 = vld [vmem:[%s1519 + $0x72] sm:$0xff]
        %v1600 = vld [vmem:[%s1519 + $0x82] sm:$0xff]
        %v1601 = vld [vmem:[%s1519 + $0x92] sm:$0xff]
        %v1602 = vld [vmem:[%s1519 + $0xa2] sm:$0xff]
        %v1603 = vld [vmem:[%s1519 + $0xb2] sm:$0xff]
        %s1604 = scalar_lea.vmem [#allocation3], 32
        %v1605 = vld [vmem:[%s1604] sm:$0xff]
        %v1606 = vld [vmem:[%s1604 + $0x10] sm:$0xff]
        %v1607 = vld [vmem:[%s1604 + $0x20] sm:$0xff]
        %v1608 = vld [vmem:[%s1604 + $0x30] sm:$0xff]
        %v1609 = vld [vmem:[%s1604 + $0x40] sm:$0xff]
        %v1610 = vld [vmem:[%s1604 + $0x50] sm:$0xff]
        %v1611 = vld [vmem:[%s1604 + $0x60] sm:$0xff]
        %v1612 = vld [vmem:[%s1604 + $0x70] sm:$0xff]
        %v1613 = vld [vmem:[%s1604 + $0x80] sm:$0xff]
        %v1614 = vld [vmem:[%s1604 + $0x90] sm:$0xff]
        %v1615 = vld [vmem:[%s1604 + $0xa0] sm:$0xff]
        %v1616 = vld [vmem:[%s1604 + $0xb0] sm:$0xff]
        %v1617 = vld [vmem:[%s1604 + $0x1] sm:$0xff]
        %v1618 = vld [vmem:[%s1604 + $0x11] sm:$0xff]
        %v1619 = vld [vmem:[%s1604 + $0x21] sm:$0xff]
        %v1620 = vld [vmem:[%s1604 + $0x31] sm:$0xff]
        %v1621 = vld [vmem:[%s1604 + $0x41] sm:$0xff]
        %v1622 = vld [vmem:[%s1604 + $0x51] sm:$0xff]
        %v1623 = vld [vmem:[%s1604 + $0x61] sm:$0xff]
        %v1624 = vld [vmem:[%s1604 + $0x71] sm:$0xff]
        %v1625 = vld [vmem:[%s1604 + $0x81] sm:$0xff]
        %v1626 = vld [vmem:[%s1604 + $0x91] sm:$0xff]
        %v1627 = vld [vmem:[%s1604 + $0xa1] sm:$0xff]
        %v1628 = vld [vmem:[%s1604 + $0xb1] sm:$0xff]
        %v1629 = vld [vmem:[%s1604 + $0x2] sm:$0xff]
        %v1630 = vld [vmem:[%s1604 + $0x12] sm:$0xff]
        %v1631 = vld [vmem:[%s1604 + $0x22] sm:$0xff]
        %v1632 = vld [vmem:[%s1604 + $0x32] sm:$0xff]
        %v1633 = vld [vmem:[%s1604 + $0x42] sm:$0xff]
        %v1634 = vld [vmem:[%s1604 + $0x52] sm:$0xff]
        %v1635 = vld [vmem:[%s1604 + $0x62] sm:$0xff]
        %v1636 = vld [vmem:[%s1604 + $0x72] sm:$0xff]
        %v1637 = vld [vmem:[%s1604 + $0x82] sm:$0xff]
        %v1638 = vld [vmem:[%s1604 + $0x92] sm:$0xff]
        %v1639 = vld [vmem:[%s1604 + $0xa2] sm:$0xff]
        %v1640 = vld [vmem:[%s1604 + $0xb2] sm:$0xff]
        %1653 = vrot.lane.b32.xlu0 %v1544, 32
        %v1654 = vpop.permute.xlu0 %1653
        %1655 = vrot.lane.b32.xlu0 %v1545, 32
        %v1656 = vpop.permute.xlu0 %1655
        %1657 = vrot.lane.b32.xlu0 %v1546, 32
        %v1658 = vpop.permute.xlu0 %1657
        %1659 = vrot.lane.b32.xlu0 %v1547, 32
        %v1660 = vpop.permute.xlu0 %1659
        %1661 = vrot.lane.b32.xlu0 %v1548, 32
        %v1662 = vpop.permute.xlu0 %1661
        %1663 = vrot.lane.b32.xlu0 %v1549, 32
        %v1664 = vpop.permute.xlu0 %1663
        %1665 = vrot.lane.b32.xlu0 %v1550, 32
        %v1666 = vpop.permute.xlu0 %1665
        %1667 = vrot.lane.b32.xlu0 %v1551, 32
        %v1668 = vpop.permute.xlu0 %1667
        %1669 = vrot.lane.b32.xlu0 %v1552, 32
        %v1670 = vpop.permute.xlu0 %1669
        %1671 = vrot.lane.b32.xlu0 %v1553, 32
        %v1672 = vpop.permute.xlu0 %1671
        %1673 = vrot.lane.b32.xlu0 %v1554, 32
        %v1674 = vpop.permute.xlu0 %1673
        %1675 = vrot.lane.b32.xlu0 %v1555, 32
        %v1676 = vpop.permute.xlu0 %1675
        %1701 = vrot.lane.b32.xlu0 %v1556, 64
        %v1702 = vpop.permute.xlu0 %1701
        %1703 = vrot.lane.b32.xlu0 %v1557, 64
        %v1704 = vpop.permute.xlu0 %1703
        %1705 = vrot.lane.b32.xlu0 %v1558, 64
        %v1706 = vpop.permute.xlu0 %1705
        %1707 = vrot.lane.b32.xlu0 %v1559, 64
        %v1708 = vpop.permute.xlu0 %1707
        %1709 = vrot.lane.b32.xlu0 %v1560, 64
        %v1710 = vpop.permute.xlu0 %1709
        %1711 = vrot.lane.b32.xlu0 %v1561, 64
        %v1712 = vpop.permute.xlu0 %1711
        %1713 = vrot.lane.b32.xlu0 %v1562, 64
        %v1714 = vpop.permute.xlu0 %1713
        %1715 = vrot.lane.b32.xlu0 %v1563, 64
        %v1716 = vpop.permute.xlu0 %1715
        %1717 = vrot.lane.b32.xlu0 %v1564, 64
        %v1718 = vpop.permute.xlu0 %1717
        %1719 = vrot.lane.b32.xlu0 %v1565, 64
        %v1720 = vpop.permute.xlu0 %1719
        %1721 = vrot.lane.b32.xlu0 %v1566, 64
        %v1722 = vpop.permute.xlu0 %1721
        %1723 = vrot.lane.b32.xlu0 %v1567, 64
        %v1724 = vpop.permute.xlu0 %1723
        %1749 = vrot.lane.b32.xlu0 %v1568, 96
        %v1750 = vpop.permute.xlu0 %1749
        %1751 = vrot.lane.b32.xlu0 %v1569, 96
        %v1752 = vpop.permute.xlu0 %1751
        %1753 = vrot.lane.b32.xlu0 %v1570, 96
        %v1754 = vpop.permute.xlu0 %1753
        %1755 = vrot.lane.b32.xlu0 %v1571, 96
        %v1756 = vpop.permute.xlu0 %1755
        %1757 = vrot.lane.b32.xlu0 %v1572, 96
        %v1758 = vpop.permute.xlu0 %1757
        %1759 = vrot.lane.b32.xlu0 %v1573, 96
        %v1760 = vpop.permute.xlu0 %1759
        %1761 = vrot.lane.b32.xlu0 %v1574, 96
        %v1762 = vpop.permute.xlu0 %1761
        %1763 = vrot.lane.b32.xlu0 %v1575, 96
        %v1764 = vpop.permute.xlu0 %1763
        %1765 = vrot.lane.b32.xlu0 %v1576, 96
        %v1766 = vpop.permute.xlu0 %1765
        %1767 = vrot.lane.b32.xlu0 %v1577, 96
        %v1768 = vpop.permute.xlu0 %1767
        %1769 = vrot.lane.b32.xlu0 %v1578, 96
        %v1770 = vpop.permute.xlu0 %1769
        %1771 = vrot.lane.b32.xlu0 %v1579, 96
        %v1772 = vpop.permute.xlu0 %1771
        %1797 = vrot.lane.b32.xlu0 %v1592, 32
        %v1798 = vpop.permute.xlu0 %1797
        %1799 = vrot.lane.b32.xlu0 %v1593, 32
        %v1800 = vpop.permute.xlu0 %1799
        %1801 = vrot.lane.b32.xlu0 %v1594, 32
        %v1802 = vpop.permute.xlu0 %1801
        %1803 = vrot.lane.b32.xlu0 %v1595, 32
        %v1804 = vpop.permute.xlu0 %1803
        %1805 = vrot.lane.b32.xlu0 %v1596, 32
        %v1806 = vpop.permute.xlu0 %1805
        %1807 = vrot.lane.b32.xlu0 %v1597, 32
        %v1808 = vpop.permute.xlu0 %1807
        %1809 = vrot.lane.b32.xlu0 %v1598, 32
        %v1810 = vpop.permute.xlu0 %1809
        %1811 = vrot.lane.b32.xlu0 %v1599, 32
        %v1812 = vpop.permute.xlu0 %1811
        %1813 = vrot.lane.b32.xlu0 %v1600, 32
        %v1814 = vpop.permute.xlu0 %1813
        %1815 = vrot.lane.b32.xlu0 %v1601, 32
        %v1816 = vpop.permute.xlu0 %1815
        %1817 = vrot.lane.b32.xlu0 %v1602, 32
        %v1818 = vpop.permute.xlu0 %1817
        %1819 = vrot.lane.b32.xlu0 %v1603, 32
        %v1820 = vpop.permute.xlu0 %1819
        %1845 = vrot.lane.b32.xlu0 %v1605, 64
        %v1846 = vpop.permute.xlu0 %1845
        %1847 = vrot.lane.b32.xlu0 %v1606, 64
        %v1848 = vpop.permute.xlu0 %1847
        %1849 = vrot.lane.b32.xlu0 %v1607, 64
        %v1850 = vpop.permute.xlu0 %1849
        %1851 = vrot.lane.b32.xlu0 %v1608, 64
        %v1852 = vpop.permute.xlu0 %1851
        %1853 = vrot.lane.b32.xlu0 %v1609, 64
        %v1854 = vpop.permute.xlu0 %1853
        %1855 = vrot.lane.b32.xlu0 %v1610, 64
        %v1856 = vpop.permute.xlu0 %1855
        %1857 = vrot.lane.b32.xlu0 %v1611, 64
        %v1858 = vpop.permute.xlu0 %1857
        %1859 = vrot.lane.b32.xlu0 %v1612, 64
        %v1860 = vpop.permute.xlu0 %1859
        %1861 = vrot.lane.b32.xlu0 %v1613, 64
        %v1862 = vpop.permute.xlu0 %1861
        %1863 = vrot.lane.b32.xlu0 %v1614, 64
        %v1864 = vpop.permute.xlu0 %1863
        %1865 = vrot.lane.b32.xlu0 %v1615, 64
        %v1866 = vpop.permute.xlu0 %1865
        %1867 = vrot.lane.b32.xlu0 %v1616, 64
        %v1868 = vpop.permute.xlu0 %1867
        %1893 = vrot.lane.b32.xlu0 %v1617, 96
        %v1894 = vpop.permute.xlu0 %1893
        %1895 = vrot.lane.b32.xlu0 %v1618, 96
        %v1896 = vpop.permute.xlu0 %1895
        %1897 = vrot.lane.b32.xlu0 %v1619, 96
        %v1898 = vpop.permute.xlu0 %1897
        %1899 = vrot.lane.b32.xlu0 %v1620, 96
        %v1900 = vpop.permute.xlu0 %1899
        %1901 = vrot.lane.b32.xlu0 %v1621, 96
        %v1902 = vpop.permute.xlu0 %1901
        %1903 = vrot.lane.b32.xlu0 %v1622, 96
        %v1904 = vpop.permute.xlu0 %1903
        %1905 = vrot.lane.b32.xlu0 %v1623, 96
        %v1906 = vpop.permute.xlu0 %1905
        %1907 = vrot.lane.b32.xlu0 %v1624, 96
        %v1908 = vpop.permute.xlu0 %1907
        %1909 = vrot.lane.b32.xlu0 %v1625, 96
        %v1910 = vpop.permute.xlu0 %1909
        %1911 = vrot.lane.b32.xlu0 %v1626, 96
        %v1912 = vpop.permute.xlu0 %1911
        %1913 = vrot.lane.b32.xlu0 %v1627, 96
        %v1914 = vpop.permute.xlu0 %1913
        %1915 = vrot.lane.b32.xlu0 %v1628, 96
        %v1916 = vpop.permute.xlu0 %1915
        %v1929 = vsel %vm1489, %v1532, %v1654
        %v1930 = vsel %vm1489, %v1533, %v1656
        %v1931 = vsel %vm1489, %v1534, %v1658
        %v1932 = vsel %vm1489, %v1535, %v1660
        %v1933 = vsel %vm1489, %v1536, %v1662
        %v1934 = vsel %vm1489, %v1537, %v1664
        %v1935 = vsel %vm1489, %v1538, %v1666
        %v1936 = vsel %vm1489, %v1539, %v1668
        %v1937 = vsel %vm1489, %v1540, %v1670
        %v1938 = vsel %vm1489, %v1541, %v1672
        %v1939 = vsel %vm1489, %v1542, %v1674
        %v1940 = vsel %vm1489, %v1543, %v1676
        %vm1941 = vcmask 523264
        %v1942 = vsel %vm1941, %v1929, %v1702
        %v1943 = vsel %vm1941, %v1930, %v1704
        %v1944 = vsel %vm1941, %v1931, %v1706
        %v1945 = vsel %vm1941, %v1932, %v1708
        %v1946 = vsel %vm1941, %v1933, %v1710
        %v1947 = vsel %vm1941, %v1934, %v1712
        %v1948 = vsel %vm1941, %v1935, %v1714
        %v1949 = vsel %vm1941, %v1936, %v1716
        %v1950 = vsel %vm1941, %v1937, %v1718
        %v1951 = vsel %vm1941, %v1938, %v1720
        %v1952 = vsel %vm1941, %v1939, %v1722
        %v1953 = vsel %vm1941, %v1940, %v1724
        %vm1954 = vcmask 785408
        %v1955 = vsel %vm1954, %v1942, %v1750
        %v1956 = vsel %vm1954, %v1943, %v1752
        %v1957 = vsel %vm1954, %v1944, %v1754
        %v1958 = vsel %vm1954, %v1945, %v1756
        %v1959 = vsel %vm1954, %v1946, %v1758
        %v1960 = vsel %vm1954, %v1947, %v1760
        %v1961 = vsel %vm1954, %v1948, %v1762
        %v1962 = vsel %vm1954, %v1949, %v1764
        %v1963 = vsel %vm1954, %v1950, %v1766
        %v1964 = vsel %vm1954, %v1951, %v1768
        %v1965 = vsel %vm1954, %v1952, %v1770
        %v1966 = vsel %vm1954, %v1953, %v1772
        %v1967 = vsel %vm1489, %v1580, %v1798
        %v1968 = vsel %vm1489, %v1581, %v1800
        %v1969 = vsel %vm1489, %v1582, %v1802
        %v1970 = vsel %vm1489, %v1583, %v1804
        %v1971 = vsel %vm1489, %v1584, %v1806
        %v1972 = vsel %vm1489, %v1585, %v1808
        %v1973 = vsel %vm1489, %v1586, %v1810
        %v1974 = vsel %vm1489, %v1587, %v1812
        %v1975 = vsel %vm1489, %v1588, %v1814
        %v1976 = vsel %vm1489, %v1589, %v1816
        %v1977 = vsel %vm1489, %v1590, %v1818
        %v1978 = vsel %vm1489, %v1591, %v1820
        %v1979 = vsel %vm1941, %v1967, %v1846
        %v1980 = vsel %vm1941, %v1968, %v1848
        %v1981 = vsel %vm1941, %v1969, %v1850
        %v1982 = vsel %vm1941, %v1970, %v1852
        %v1983 = vsel %vm1941, %v1971, %v1854
        %v1984 = vsel %vm1941, %v1972, %v1856
        %v1985 = vsel %vm1941, %v1973, %v1858
        %v1986 = vsel %vm1941, %v1974, %v1860
        %v1987 = vsel %vm1941, %v1975, %v1862
        %v1988 = vsel %vm1941, %v1976, %v1864
        %v1989 = vsel %vm1941, %v1977, %v1866
        %v1990 = vsel %vm1941, %v1978, %v1868
        %v1991 = vsel %vm1954, %v1979, %v1894
        %v1992 = vsel %vm1954, %v1980, %v1896
        %v1993 = vsel %vm1954, %v1981, %v1898
        %v1994 = vsel %vm1954, %v1982, %v1900
        %v1995 = vsel %vm1954, %v1983, %v1902
        %v1996 = vsel %vm1954, %v1984, %v1904
        %v1997 = vsel %vm1954, %v1985, %v1906
        %v1998 = vsel %vm1954, %v1986, %v1908
        %v1999 = vsel %vm1954, %v1987, %v1910
        %v2000 = vsel %vm1954, %v1988, %v1912
        %v2001 = vsel %vm1954, %v1989, %v1914
        %v2002 = vsel %vm1954, %v1990, %v1916
        %v2003 = vld [vmem:[%s3] sm:$0xff]
        %v2004 = vld [vmem:[%s3 + $0x8] sm:$0xff]
        %v2005 = vld [vmem:[%s3 + $0x10] sm:$0xff]
        %v2006 = vld [vmem:[%s3 + $0x18] sm:$0xff]
        %v2007 = vld [vmem:[%s3 + $0x20] sm:$0xff]
        %v2008 = vld [vmem:[%s3 + $0x28] sm:$0xff]
        %v2009 = vld [vmem:[%s3 + $0x30] sm:$0xff]
        %v2010 = vld [vmem:[%s3 + $0x38] sm:$0xff]
        %v2011 = vld [vmem:[%s3 + $0x40] sm:$0xff]
        %v2012 = vld [vmem:[%s3 + $0x48] sm:$0xff]
        %v2013 = vld [vmem:[%s3 + $0x50] sm:$0xff]
        %v2014 = vld [vmem:[%s3 + $0x58] sm:$0xff]
        %v2015 = vld [vmem:[%s3 + $0x60] sm:$0xff]
        %v2016 = vld [vmem:[%s3 + $0x68] sm:$0xff]
        %v2017 = vld [vmem:[%s3 + $0x70] sm:$0xff]
        %v2018 = vld [vmem:[%s3 + $0x78] sm:$0xff]
        %v2019 = vld [vmem:[%s3 + $0x80] sm:$0xff]
        %v2020 = vld [vmem:[%s3 + $0x88] sm:$0xff]
        %v2021 = vld [vmem:[%s3 + $0x90] sm:$0xff]
        %v2022 = vld [vmem:[%s3 + $0x98] sm:$0xff]
        %v2023 = vld [vmem:[%s3 + $0xa0] sm:$0xff]
        %v2024 = vld [vmem:[%s3 + $0xa8] sm:$0xff]
        %v2025 = vld [vmem:[%s3 + $0xb0] sm:$0xff]
        %v2026 = vld [vmem:[%s3 + $0xb8] sm:$0xff]
        %v2027 = vld [vmem:[%s3 + $0xc0] sm:$0xff]
        %v2028 = vld [vmem:[%s3 + $0xc8] sm:$0xff]
        %v2029 = vld [vmem:[%s3 + $0xd0] sm:$0xff]
        %v2030 = vld [vmem:[%s3 + $0xd8] sm:$0xff]
        %v2031 = vld [vmem:[%s3 + $0xe0] sm:$0xff]
        %v2032 = vld [vmem:[%s3 + $0xe8] sm:$0xff]
        %v2033 = vld [vmem:[%s3 + $0xf0] sm:$0xff]
        %v2034 = vld [vmem:[%s3 + $0xf8] sm:$0xff]
        %v2035 = vld [vmem:[%s3 + $0x100] sm:$0xff]
        %v2036 = vld [vmem:[%s3 + $0x108] sm:$0xff]
        %v2037 = vld [vmem:[%s3 + $0x110] sm:$0xff]
        %v2038 = vld [vmem:[%s3 + $0x118] sm:$0xff]
        %v2039 = vld [vmem:[#allocation9] sm:$0x1]
        %v2041 = vperm.slane %v2039, 0
        %v2044 = vsel %vm1489, %v1629, 0
        %v2047 = vsel %vm1489, %v1630, 0
        %v2050 = vsel %vm1489, %v1631, 0
        %v2053 = vsel %vm1489, %v1632, 0
        %v2056 = vsel %vm1489, %v1633, 0
        %v2059 = vsel %vm1489, %v1634, 0
        %v2062 = vsel %vm1489, %v1635, 0
        %v2065 = vsel %vm1489, %v1636, 0
        %v2068 = vsel %vm1489, %v1637, 0
        %v2071 = vsel %vm1489, %v1638, 0
        %v2074 = vsel %vm1489, %v1639, 0
        %v2077 = vsel %vm1489, %v1640, 0
        %2079 = vmatpush.msra.mxu0 %v2018
        %2080 = vmatpush.msra.mxu0 %v2017
        %2081 = vmatpush.msra.mxu0 %v2016
        %2082 = vmatpush.msra.mxu0 %v2015
        %2083 = vmatpush.msra.mxu0 %v2014
        %2084 = vmatpush.msra.mxu0 %v2013
        %2085 = vmatpush.msra.mxu0 %v2012
        %2086 = vmatpush.msra.mxu0 %v2011
        %2087 = vmatpush.msra.mxu0 %v2010
        %2088 = vmatpush.msra.mxu0 %v2009
        %2089 = vmatpush.msra.mxu0 %v2008
        %2090 = vmatpush.msra.mxu0 %v2007
        %2091 = vmatpush.msra.mxu0 %v2006
        %2092 = vmatpush.msra.mxu0 %v2005
        %2093 = vmatpush.msra.mxu0 %v2004
        %2094 = vmatpush.msra.mxu0 %v2003
        %2095 = vmatmul.f32.gmra.mxu0 %v1955
        %v2096 = vpop.f32.mrf.mxu0
        %v2097 = vadd.f32 %v2041, %v2096
        %2098 = vmatmul.f32.gmra.mxu0 %v1956
        %v2099 = vpop.f32.mrf.mxu0
        %v2100 = vadd.f32 %v2041, %v2099
        %2101 = vmatmul.f32.gmra.mxu0 %v1957
        %v2102 = vpop.f32.mrf.mxu0
        %v2103 = vadd.f32 %v2041, %v2102
        %2104 = vmatmul.f32.gmra.mxu0 %v1958
        %v2105 = vpop.f32.mrf.mxu0
        %v2106 = vadd.f32 %v2041, %v2105
        %2107 = vmatmul.f32.gmra.mxu0 %v1959
        %v2108 = vpop.f32.mrf.mxu0
        %v2109 = vadd.f32 %v2041, %v2108
        %2110 = vmatmul.f32.gmra.mxu0 %v1960
        %v2111 = vpop.f32.mrf.mxu0
        %v2112 = vadd.f32 %v2041, %v2111
        %2113 = vmatmul.f32.gmra.mxu0 %v1961
        %v2114 = vpop.f32.mrf.mxu0
        %v2115 = vadd.f32 %v2041, %v2114
        %2116 = vmatmul.f32.gmra.mxu0 %v1962
        %v2117 = vpop.f32.mrf.mxu0
        %v2118 = vadd.f32 %v2041, %v2117
        %2119 = vmatmul.f32.gmra.mxu0 %v1963
        %v2120 = vpop.f32.mrf.mxu0
        %v2121 = vadd.f32 %v2041, %v2120
        %2122 = vmatmul.f32.gmra.mxu0 %v1964
        %v2123 = vpop.f32.mrf.mxu0
        %v2124 = vadd.f32 %v2041, %v2123
        %2125 = vmatmul.f32.gmra.mxu0 %v1965
        %v2126 = vpop.f32.mrf.mxu0
        %v2127 = vadd.f32 %v2041, %v2126
        %2128 = vmatmul.f32.gmra.mxu0 %v1966
        %v2129 = vpop.f32.mrf.mxu0
        %v2130 = vadd.f32 %v2041, %v2129
        %2131 = vdwg.mxu0
        %2132 = vmatpush.msra.mxu0 %v2034
        %2133 = vmatpush.msra.mxu0 %v2033
        %2134 = vmatpush.msra.mxu0 %v2032
        %2135 = vmatpush.msra.mxu0 %v2031
        %2136 = vmatpush.msra.mxu0 %v2030
        %2137 = vmatpush.msra.mxu0 %v2029
        %2138 = vmatpush.msra.mxu0 %v2028
        %2139 = vmatpush.msra.mxu0 %v2027
        %2140 = vmatpush.msra.mxu0 %v2026
        %2141 = vmatpush.msra.mxu0 %v2025
        %2142 = vmatpush.msra.mxu0 %v2024
        %2143 = vmatpush.msra.mxu0 %v2023
        %2144 = vmatpush.msra.mxu0 %v2022
        %2145 = vmatpush.msra.mxu0 %v2021
        %2146 = vmatpush.msra.mxu0 %v2020
        %2147 = vmatpush.msra.mxu0 %v2019
        %2148 = vmatmul.f32.gmra.mxu0 %v1991
        %v2149 = vpop.f32.mrf.mxu0
        %v2150 = vadd.f32 %v2097, %v2149
        %2151 = vmatmul.f32.gmra.mxu0 %v1992
        %v2152 = vpop.f32.mrf.mxu0
        %v2153 = vadd.f32 %v2100, %v2152
        %2154 = vmatmul.f32.gmra.mxu0 %v1993
        %v2155 = vpop.f32.mrf.mxu0
        %v2156 = vadd.f32 %v2103, %v2155
        %2157 = vmatmul.f32.gmra.mxu0 %v1994
        %v2158 = vpop.f32.mrf.mxu0
        %v2159 = vadd.f32 %v2106, %v2158
        %2160 = vmatmul.f32.gmra.mxu0 %v1995
        %v2161 = vpop.f32.mrf.mxu0
        %v2162 = vadd.f32 %v2109, %v2161
        %2163 = vmatmul.f32.gmra.mxu0 %v1996
        %v2164 = vpop.f32.mrf.mxu0
        %v2165 = vadd.f32 %v2112, %v2164
        %2166 = vmatmul.f32.gmra.mxu0 %v1997
        %v2167 = vpop.f32.mrf.mxu0
        %v2168 = vadd.f32 %v2115, %v2167
        %2169 = vmatmul.f32.gmra.mxu0 %v1998
        %v2170 = vpop.f32.mrf.mxu0
        %v2171 = vadd.f32 %v2118, %v2170
        %2172 = vmatmul.f32.gmra.mxu0 %v1999
        %v2173 = vpop.f32.mrf.mxu0
        %v2174 = vadd.f32 %v2121, %v2173
        %2175 = vmatmul.f32.gmra.mxu0 %v2000
        %v2176 = vpop.f32.mrf.mxu0
        %v2177 = vadd.f32 %v2124, %v2176
        %2178 = vmatmul.f32.gmra.mxu0 %v2001
        %v2179 = vpop.f32.mrf.mxu0
        %v2180 = vadd.f32 %v2127, %v2179
        %2181 = vmatmul.f32.gmra.mxu0 %v2002
        %v2182 = vpop.f32.mrf.mxu0
        %v2183 = vadd.f32 %v2130, %v2182
        %2184 = vdwg.mxu0
        %2185 = vmatpush.msra.mxu0 0.0
        %2186 = vmatpush.msra.mxu0 0.0
        %2187 = vmatpush.msra.mxu0 0.0
        %2188 = vmatpush.msra.mxu0 0.0
        %2189 = vmatpush.msra.mxu0 0.0
        %2190 = vmatpush.msra.mxu0 0.0
        %2191 = vmatpush.msra.mxu0 0.0
        %2192 = vmatpush.msra.mxu0 0.0
        %2193 = vmatpush.msra.mxu0 0.0
        %2194 = vmatpush.msra.mxu0 0.0
        %2195 = vmatpush.msra.mxu0 0.0
        %2196 = vmatpush.msra.mxu0 0.0
        %2197 = vmatpush.msra.mxu0 %v2038
        %2198 = vmatpush.msra.mxu0 %v2037
        %2199 = vmatpush.msra.mxu0 %v2036
        %2200 = vmatpush.msra.mxu0 %v2035
        %2201 = vmatmul.f32.gmra.mxu0 %v2044
        %v2202 = vpop.f32.mrf.mxu0
        %v2203 = vadd.f32 %v2150, %v2202
        %2204 = vmatmul.f32.gmra.mxu0 %v2047
        %v2205 = vpop.f32.mrf.mxu0
        %v2206 = vadd.f32 %v2153, %v2205
        %2207 = vmatmul.f32.gmra.mxu0 %v2050
        %v2208 = vpop.f32.mrf.mxu0
        %v2209 = vadd.f32 %v2156, %v2208
        %2210 = vmatmul.f32.gmra.mxu0 %v2053
        %v2211 = vpop.f32.mrf.mxu0
        %v2212 = vadd.f32 %v2159, %v2211
        %2213 = vmatmul.f32.gmra.mxu0 %v2056
        %v2214 = vpop.f32.mrf.mxu0
        %v2215 = vadd.f32 %v2162, %v2214
        %2216 = vmatmul.f32.gmra.mxu0 %v2059
        %v2217 = vpop.f32.mrf.mxu0
        %v2218 = vadd.f32 %v2165, %v2217
        %2219 = vmatmul.f32.gmra.mxu0 %v2062
        %v2220 = vpop.f32.mrf.mxu0
        %v2221 = vadd.f32 %v2168, %v2220
        %2222 = vmatmul.f32.gmra.mxu0 %v2065
        %v2223 = vpop.f32.mrf.mxu0
        %v2224 = vadd.f32 %v2171, %v2223
        %2225 = vmatmul.f32.gmra.mxu0 %v2068
        %v2226 = vpop.f32.mrf.mxu0
        %v2227 = vadd.f32 %v2174, %v2226
        %2228 = vmatmul.f32.gmra.mxu0 %v2071
        %v2229 = vpop.f32.mrf.mxu0
        %v2230 = vadd.f32 %v2177, %v2229
        %2231 = vmatmul.f32.gmra.mxu0 %v2074
        %v2232 = vpop.f32.mrf.mxu0
        %v2233 = vadd.f32 %v2180, %v2232
        %2234 = vmatmul.f32.gmra.mxu0 %v2077
        %v2235 = vpop.f32.mrf.mxu0
        %v2236 = vadd.f32 %v2183, %v2235
        %2237 = vdwg.mxu0
        %v2238 = vmax.f32 %v2203, 0.0
        %v2239 = vmax.f32 %v2206, 0.0
        %v2240 = vmax.f32 %v2209, 0.0
        %v2241 = vmax.f32 %v2212, 0.0
        %v2242 = vmax.f32 %v2215, 0.0
        %v2243 = vmax.f32 %v2218, 0.0
        %v2244 = vmax.f32 %v2221, 0.0
        %v2245 = vmax.f32 %v2224, 0.0
        %v2246 = vmax.f32 %v2227, 0.0
        %v2247 = vmax.f32 %v2230, 0.0
        %v2248 = vmax.f32 %v2233, 0.0
        %v2249 = vmax.f32 %v2236, 0.0
        %v2262 = vrot.slane %v2238, 2
        %v2263 = vrot.slane %v2238, 4
        %v2264 = vrot.slane %v2238, 6
        %v2265 = vrot.slane %v2239, 2
        %v2266 = vrot.slane %v2239, 4
        %v2267 = vrot.slane %v2239, 6
        %v2268 = vrot.slane %v2240, 2
        %v2269 = vrot.slane %v2240, 4
        %v2270 = vrot.slane %v2240, 6
        %v2271 = vrot.slane %v2241, 2
        %v2272 = vrot.slane %v2241, 4
        %v2273 = vrot.slane %v2241, 6
        %v2274 = vrot.slane %v2242, 2
        %v2275 = vrot.slane %v2242, 4
        %v2276 = vrot.slane %v2242, 6
        %v2277 = vrot.slane %v2243, 2
        %v2278 = vrot.slane %v2243, 4
        %v2279 = vrot.slane %v2243, 6
        %v2280 = vrot.slane %v2244, 2
        %v2281 = vrot.slane %v2244, 4
        %v2282 = vrot.slane %v2244, 6
        %v2283 = vrot.slane %v2245, 2
        %v2284 = vrot.slane %v2245, 4
        %v2285 = vrot.slane %v2245, 6
        %v2286 = vrot.slane %v2246, 2
        %v2287 = vrot.slane %v2246, 4
        %v2288 = vrot.slane %v2246, 6
        %v2289 = vrot.slane %v2247, 2
        %v2290 = vrot.slane %v2247, 4
        %v2291 = vrot.slane %v2247, 6
        %v2292 = vrot.slane %v2248, 2
        %v2293 = vrot.slane %v2248, 4
        %v2294 = vrot.slane %v2248, 6
        %v2295 = vrot.slane %v2249, 2
        %v2296 = vrot.slane %v2249, 4
        %v2297 = vrot.slane %v2249, 6
        %vm2334 = vcmask 517120
        %v2335 = vsel %vm2334, %v2238, -inf
        %v2336 = vrot.slane %v2335, 4
        %v2337 = vmax.f32 %v2335, %v2336
        %v2338 = vrot.slane %v2337, 2
        %v2339 = vmax.f32 %v2337, %v2338
        %v2340 = vrot.slane %v2339, 1
        %v2341 = vmax.f32 %v2339, %v2340
        %v2342 = vsel %vm2334, %v2262, -inf
        %v2343 = vrot.slane %v2342, 4
        %v2344 = vmax.f32 %v2342, %v2343
        %v2345 = vrot.slane %v2344, 2
        %v2346 = vmax.f32 %v2344, %v2345
        %v2347 = vrot.slane %v2346, 1
        %v2348 = vmax.f32 %v2346, %v2347
        %v2349 = vsel %vm2334, %v2263, -inf
        %v2350 = vrot.slane %v2349, 4
        %v2351 = vmax.f32 %v2349, %v2350
        %v2352 = vrot.slane %v2351, 2
        %v2353 = vmax.f32 %v2351, %v2352
        %v2354 = vrot.slane %v2353, 1
        %v2355 = vmax.f32 %v2353, %v2354
        %v2356 = vsel %vm2334, %v2264, -inf
        %v2357 = vrot.slane %v2356, 4
        %v2358 = vmax.f32 %v2356, %v2357
        %v2359 = vrot.slane %v2358, 2
        %v2360 = vmax.f32 %v2358, %v2359
        %v2361 = vrot.slane %v2360, 1
        %v2362 = vmax.f32 %v2360, %v2361
        %v2363 = vsel %vm2334, %v2239, -inf
        %v2364 = vrot.slane %v2363, 4
        %v2365 = vmax.f32 %v2363, %v2364
        %v2366 = vrot.slane %v2365, 2
        %v2367 = vmax.f32 %v2365, %v2366
        %v2368 = vrot.slane %v2367, 1
        %v2369 = vmax.f32 %v2367, %v2368
        %v2370 = vsel %vm2334, %v2265, -inf
        %v2371 = vrot.slane %v2370, 4
        %v2372 = vmax.f32 %v2370, %v2371
        %v2373 = vrot.slane %v2372, 2
        %v2374 = vmax.f32 %v2372, %v2373
        %v2375 = vrot.slane %v2374, 1
        %v2376 = vmax.f32 %v2374, %v2375
        %v2377 = vsel %vm2334, %v2266, -inf
        %v2378 = vrot.slane %v2377, 4
        %v2379 = vmax.f32 %v2377, %v2378
        %v2380 = vrot.slane %v2379, 2
        %v2381 = vmax.f32 %v2379, %v2380
        %v2382 = vrot.slane %v2381, 1
        %v2383 = vmax.f32 %v2381, %v2382
        %v2384 = vsel %vm2334, %v2267, -inf
        %v2385 = vrot.slane %v2384, 4
        %v2386 = vmax.f32 %v2384, %v2385
        %v2387 = vrot.slane %v2386, 2
        %v2388 = vmax.f32 %v2386, %v2387
        %v2389 = vrot.slane %v2388, 1
        %v2390 = vmax.f32 %v2388, %v2389
        %v2391 = vsel %vm2334, %v2240, -inf
        %v2392 = vrot.slane %v2391, 4
        %v2393 = vmax.f32 %v2391, %v2392
        %v2394 = vrot.slane %v2393, 2
        %v2395 = vmax.f32 %v2393, %v2394
        %v2396 = vrot.slane %v2395, 1
        %v2397 = vmax.f32 %v2395, %v2396
        %v2398 = vsel %vm2334, %v2268, -inf
        %v2399 = vrot.slane %v2398, 4
        %v2400 = vmax.f32 %v2398, %v2399
        %v2401 = vrot.slane %v2400, 2
        %v2402 = vmax.f32 %v2400, %v2401
        %v2403 = vrot.slane %v2402, 1
        %v2404 = vmax.f32 %v2402, %v2403
        %v2405 = vsel %vm2334, %v2269, -inf
        %v2406 = vrot.slane %v2405, 4
        %v2407 = vmax.f32 %v2405, %v2406
        %v2408 = vrot.slane %v2407, 2
        %v2409 = vmax.f32 %v2407, %v2408
        %v2410 = vrot.slane %v2409, 1
        %v2411 = vmax.f32 %v2409, %v2410
        %v2412 = vsel %vm2334, %v2270, -inf
        %v2413 = vrot.slane %v2412, 4
        %v2414 = vmax.f32 %v2412, %v2413
        %v2415 = vrot.slane %v2414, 2
        %v2416 = vmax.f32 %v2414, %v2415
        %v2417 = vrot.slane %v2416, 1
        %v2418 = vmax.f32 %v2416, %v2417
        %v2419 = vsel %vm2334, %v2241, -inf
        %v2420 = vrot.slane %v2419, 4
        %v2421 = vmax.f32 %v2419, %v2420
        %v2422 = vrot.slane %v2421, 2
        %v2423 = vmax.f32 %v2421, %v2422
        %v2424 = vrot.slane %v2423, 1
        %v2425 = vmax.f32 %v2423, %v2424
        %v2426 = vsel %vm2334, %v2271, -inf
        %v2427 = vrot.slane %v2426, 4
        %v2428 = vmax.f32 %v2426, %v2427
        %v2429 = vrot.slane %v2428, 2
        %v2430 = vmax.f32 %v2428, %v2429
        %v2431 = vrot.slane %v2430, 1
        %v2432 = vmax.f32 %v2430, %v2431
        %v2433 = vsel %vm2334, %v2272, -inf
        %v2434 = vrot.slane %v2433, 4
        %v2435 = vmax.f32 %v2433, %v2434
        %v2436 = vrot.slane %v2435, 2
        %v2437 = vmax.f32 %v2435, %v2436
        %v2438 = vrot.slane %v2437, 1
        %v2439 = vmax.f32 %v2437, %v2438
        %v2440 = vsel %vm2334, %v2273, -inf
        %v2441 = vrot.slane %v2440, 4
        %v2442 = vmax.f32 %v2440, %v2441
        %v2443 = vrot.slane %v2442, 2
        %v2444 = vmax.f32 %v2442, %v2443
        %v2445 = vrot.slane %v2444, 1
        %v2446 = vmax.f32 %v2444, %v2445
        %v2447 = vsel %vm2334, %v2242, -inf
        %v2448 = vrot.slane %v2447, 4
        %v2449 = vmax.f32 %v2447, %v2448
        %v2450 = vrot.slane %v2449, 2
        %v2451 = vmax.f32 %v2449, %v2450
        %v2452 = vrot.slane %v2451, 1
        %v2453 = vmax.f32 %v2451, %v2452
        %v2454 = vsel %vm2334, %v2274, -inf
        %v2455 = vrot.slane %v2454, 4
        %v2456 = vmax.f32 %v2454, %v2455
        %v2457 = vrot.slane %v2456, 2
        %v2458 = vmax.f32 %v2456, %v2457
        %v2459 = vrot.slane %v2458, 1
        %v2460 = vmax.f32 %v2458, %v2459
        %v2461 = vsel %vm2334, %v2275, -inf
        %v2462 = vrot.slane %v2461, 4
        %v2463 = vmax.f32 %v2461, %v2462
        %v2464 = vrot.slane %v2463, 2
        %v2465 = vmax.f32 %v2463, %v2464
        %v2466 = vrot.slane %v2465, 1
        %v2467 = vmax.f32 %v2465, %v2466
        %v2468 = vsel %vm2334, %v2276, -inf
        %v2469 = vrot.slane %v2468, 4
        %v2470 = vmax.f32 %v2468, %v2469
        %v2471 = vrot.slane %v2470, 2
        %v2472 = vmax.f32 %v2470, %v2471
        %v2473 = vrot.slane %v2472, 1
        %v2474 = vmax.f32 %v2472, %v2473
        %v2475 = vsel %vm2334, %v2243, -inf
        %v2476 = vrot.slane %v2475, 4
        %v2477 = vmax.f32 %v2475, %v2476
        %v2478 = vrot.slane %v2477, 2
        %v2479 = vmax.f32 %v2477, %v2478
        %v2480 = vrot.slane %v2479, 1
        %v2481 = vmax.f32 %v2479, %v2480
        %v2482 = vsel %vm2334, %v2277, -inf
        %v2483 = vrot.slane %v2482, 4
        %v2484 = vmax.f32 %v2482, %v2483
        %v2485 = vrot.slane %v2484, 2
        %v2486 = vmax.f32 %v2484, %v2485
        %v2487 = vrot.slane %v2486, 1
        %v2488 = vmax.f32 %v2486, %v2487
        %v2489 = vsel %vm2334, %v2278, -inf
        %v2490 = vrot.slane %v2489, 4
        %v2491 = vmax.f32 %v2489, %v2490
        %v2492 = vrot.slane %v2491, 2
        %v2493 = vmax.f32 %v2491, %v2492
        %v2494 = vrot.slane %v2493, 1
        %v2495 = vmax.f32 %v2493, %v2494
        %v2496 = vsel %vm2334, %v2279, -inf
        %v2497 = vrot.slane %v2496, 4
        %v2498 = vmax.f32 %v2496, %v2497
        %v2499 = vrot.slane %v2498, 2
        %v2500 = vmax.f32 %v2498, %v2499
        %v2501 = vrot.slane %v2500, 1
        %v2502 = vmax.f32 %v2500, %v2501
        %v2503 = vsel %vm2334, %v2244, -inf
        %v2504 = vrot.slane %v2503, 4
        %v2505 = vmax.f32 %v2503, %v2504
        %v2506 = vrot.slane %v2505, 2
        %v2507 = vmax.f32 %v2505, %v2506
        %v2508 = vrot.slane %v2507, 1
        %v2509 = vmax.f32 %v2507, %v2508
        %v2510 = vsel %vm2334, %v2280, -inf
        %v2511 = vrot.slane %v2510, 4
        %v2512 = vmax.f32 %v2510, %v2511
        %v2513 = vrot.slane %v2512, 2
        %v2514 = vmax.f32 %v2512, %v2513
        %v2515 = vrot.slane %v2514, 1
        %v2516 = vmax.f32 %v2514, %v2515
        %v2517 = vsel %vm2334, %v2281, -inf
        %v2518 = vrot.slane %v2517, 4
        %v2519 = vmax.f32 %v2517, %v2518
        %v2520 = vrot.slane %v2519, 2
        %v2521 = vmax.f32 %v2519, %v2520
        %v2522 = vrot.slane %v2521, 1
        %v2523 = vmax.f32 %v2521, %v2522
        %v2524 = vsel %vm2334, %v2282, -inf
        %v2525 = vrot.slane %v2524, 4
        %v2526 = vmax.f32 %v2524, %v2525
        %v2527 = vrot.slane %v2526, 2
        %v2528 = vmax.f32 %v2526, %v2527
        %v2529 = vrot.slane %v2528, 1
        %v2530 = vmax.f32 %v2528, %v2529
        %v2531 = vsel %vm2334, %v2245, -inf
        %v2532 = vrot.slane %v2531, 4
        %v2533 = vmax.f32 %v2531, %v2532
        %v2534 = vrot.slane %v2533, 2
        %v2535 = vmax.f32 %v2533, %v2534
        %v2536 = vrot.slane %v2535, 1
        %v2537 = vmax.f32 %v2535, %v2536
        %v2538 = vsel %vm2334, %v2283, -inf
        %v2539 = vrot.slane %v2538, 4
        %v2540 = vmax.f32 %v2538, %v2539
        %v2541 = vrot.slane %v2540, 2
        %v2542 = vmax.f32 %v2540, %v2541
        %v2543 = vrot.slane %v2542, 1
        %v2544 = vmax.f32 %v2542, %v2543
        %v2545 = vsel %vm2334, %v2284, -inf
        %v2546 = vrot.slane %v2545, 4
        %v2547 = vmax.f32 %v2545, %v2546
        %v2548 = vrot.slane %v2547, 2
        %v2549 = vmax.f32 %v2547, %v2548
        %v2550 = vrot.slane %v2549, 1
        %v2551 = vmax.f32 %v2549, %v2550
        %v2552 = vsel %vm2334, %v2285, -inf
        %v2553 = vrot.slane %v2552, 4
        %v2554 = vmax.f32 %v2552, %v2553
        %v2555 = vrot.slane %v2554, 2
        %v2556 = vmax.f32 %v2554, %v2555
        %v2557 = vrot.slane %v2556, 1
        %v2558 = vmax.f32 %v2556, %v2557
        %v2559 = vsel %vm2334, %v2246, -inf
        %v2560 = vrot.slane %v2559, 4
        %v2561 = vmax.f32 %v2559, %v2560
        %v2562 = vrot.slane %v2561, 2
        %v2563 = vmax.f32 %v2561, %v2562
        %v2564 = vrot.slane %v2563, 1
        %v2565 = vmax.f32 %v2563, %v2564
        %v2566 = vsel %vm2334, %v2286, -inf
        %v2567 = vrot.slane %v2566, 4
        %v2568 = vmax.f32 %v2566, %v2567
        %v2569 = vrot.slane %v2568, 2
        %v2570 = vmax.f32 %v2568, %v2569
        %v2571 = vrot.slane %v2570, 1
        %v2572 = vmax.f32 %v2570, %v2571
        %v2573 = vsel %vm2334, %v2287, -inf
        %v2574 = vrot.slane %v2573, 4
        %v2575 = vmax.f32 %v2573, %v2574
        %v2576 = vrot.slane %v2575, 2
        %v2577 = vmax.f32 %v2575, %v2576
        %v2578 = vrot.slane %v2577, 1
        %v2579 = vmax.f32 %v2577, %v2578
        %v2580 = vsel %vm2334, %v2288, -inf
        %v2581 = vrot.slane %v2580, 4
        %v2582 = vmax.f32 %v2580, %v2581
        %v2583 = vrot.slane %v2582, 2
        %v2584 = vmax.f32 %v2582, %v2583
        %v2585 = vrot.slane %v2584, 1
        %v2586 = vmax.f32 %v2584, %v2585
        %v2587 = vsel %vm2334, %v2247, -inf
        %v2588 = vrot.slane %v2587, 4
        %v2589 = vmax.f32 %v2587, %v2588
        %v2590 = vrot.slane %v2589, 2
        %v2591 = vmax.f32 %v2589, %v2590
        %v2592 = vrot.slane %v2591, 1
        %v2593 = vmax.f32 %v2591, %v2592
        %v2594 = vsel %vm2334, %v2289, -inf
        %v2595 = vrot.slane %v2594, 4
        %v2596 = vmax.f32 %v2594, %v2595
        %v2597 = vrot.slane %v2596, 2
        %v2598 = vmax.f32 %v2596, %v2597
        %v2599 = vrot.slane %v2598, 1
        %v2600 = vmax.f32 %v2598, %v2599
        %v2601 = vsel %vm2334, %v2290, -inf
        %v2602 = vrot.slane %v2601, 4
        %v2603 = vmax.f32 %v2601, %v2602
        %v2604 = vrot.slane %v2603, 2
        %v2605 = vmax.f32 %v2603, %v2604
        %v2606 = vrot.slane %v2605, 1
        %v2607 = vmax.f32 %v2605, %v2606
        %v2608 = vsel %vm2334, %v2291, -inf
        %v2609 = vrot.slane %v2608, 4
        %v2610 = vmax.f32 %v2608, %v2609
        %v2611 = vrot.slane %v2610, 2
        %v2612 = vmax.f32 %v2610, %v2611
        %v2613 = vrot.slane %v2612, 1
        %v2614 = vmax.f32 %v2612, %v2613
        %v2615 = vsel %vm2334, %v2248, -inf
        %v2616 = vrot.slane %v2615, 4
        %v2617 = vmax.f32 %v2615, %v2616
        %v2618 = vrot.slane %v2617, 2
        %v2619 = vmax.f32 %v2617, %v2618
        %v2620 = vrot.slane %v2619, 1
        %v2621 = vmax.f32 %v2619, %v2620
        %v2622 = vsel %vm2334, %v2292, -inf
        %v2623 = vrot.slane %v2622, 4
        %v2624 = vmax.f32 %v2622, %v2623
        %v2625 = vrot.slane %v2624, 2
        %v2626 = vmax.f32 %v2624, %v2625
        %v2627 = vrot.slane %v2626, 1
        %v2628 = vmax.f32 %v2626, %v2627
        %v2629 = vsel %vm2334, %v2293, -inf
        %v2630 = vrot.slane %v2629, 4
        %v2631 = vmax.f32 %v2629, %v2630
        %v2632 = vrot.slane %v2631, 2
        %v2633 = vmax.f32 %v2631, %v2632
        %v2634 = vrot.slane %v2633, 1
        %v2635 = vmax.f32 %v2633, %v2634
        %v2636 = vsel %vm2334, %v2294, -inf
        %v2637 = vrot.slane %v2636, 4
        %v2638 = vmax.f32 %v2636, %v2637
        %v2639 = vrot.slane %v2638, 2
        %v2640 = vmax.f32 %v2638, %v2639
        %v2641 = vrot.slane %v2640, 1
        %v2642 = vmax.f32 %v2640, %v2641
        %v2643 = vsel %vm2334, %v2249, -inf
        %v2644 = vrot.slane %v2643, 4
        %v2645 = vmax.f32 %v2643, %v2644
        %v2646 = vrot.slane %v2645, 2
        %v2647 = vmax.f32 %v2645, %v2646
        %v2648 = vrot.slane %v2647, 1
        %v2649 = vmax.f32 %v2647, %v2648
        %v2650 = vsel %vm2334, %v2295, -inf
        %v2651 = vrot.slane %v2650, 4
        %v2652 = vmax.f32 %v2650, %v2651
        %v2653 = vrot.slane %v2652, 2
        %v2654 = vmax.f32 %v2652, %v2653
        %v2655 = vrot.slane %v2654, 1
        %v2656 = vmax.f32 %v2654, %v2655
        %v2657 = vsel %vm2334, %v2296, -inf
        %v2658 = vrot.slane %v2657, 4
        %v2659 = vmax.f32 %v2657, %v2658
        %v2660 = vrot.slane %v2659, 2
        %v2661 = vmax.f32 %v2659, %v2660
        %v2662 = vrot.slane %v2661, 1
        %v2663 = vmax.f32 %v2661, %v2662
        %v2664 = vsel %vm2334, %v2297, -inf
        %v2665 = vrot.slane %v2664, 4
        %v2666 = vmax.f32 %v2664, %v2665
        %v2667 = vrot.slane %v2666, 2
        %v2668 = vmax.f32 %v2666, %v2667
        %v2669 = vrot.slane %v2668, 1
        %v2670 = vmax.f32 %v2668, %v2669
        %v2671 = vsel %vm1941, %v2341, -inf
        %v2672 = vsel %vm1941, %v2369, -inf
        %v2673 = vmax.f32 %v2671, %v2672
        %v2674 = vsel %vm1941, %v2348, -inf
        %v2675 = vsel %vm1941, %v2376, -inf
        %v2676 = vmax.f32 %v2674, %v2675
        %v2677 = vsel %vm1941, %v2355, -inf
        %v2678 = vsel %vm1941, %v2383, -inf
        %v2679 = vmax.f32 %v2677, %v2678
        %v2680 = vsel %vm1941, %v2362, -inf
        %v2681 = vsel %vm1941, %v2390, -inf
        %v2682 = vmax.f32 %v2680, %v2681
        %v2683 = vsel %vm1941, %v2397, -inf
        %v2684 = vsel %vm1941, %v2425, -inf
        %v2685 = vmax.f32 %v2683, %v2684
        %v2686 = vsel %vm1941, %v2404, -inf
        %v2687 = vsel %vm1941, %v2432, -inf
        %v2688 = vmax.f32 %v2686, %v2687
        %v2689 = vsel %vm1941, %v2411, -inf
        %v2690 = vsel %vm1941, %v2439, -inf
        %v2691 = vmax.f32 %v2689, %v2690
        %v2692 = vsel %vm1941, %v2418, -inf
        %v2693 = vsel %vm1941, %v2446, -inf
        %v2694 = vmax.f32 %v2692, %v2693
        %v2695 = vsel %vm1941, %v2453, -inf
        %v2696 = vsel %vm1941, %v2481, -inf
        %v2697 = vmax.f32 %v2695, %v2696
        %v2698 = vsel %vm1941, %v2460, -inf
        %v2699 = vsel %vm1941, %v2488, -inf
        %v2700 = vmax.f32 %v2698, %v2699
        %v2701 = vsel %vm1941, %v2467, -inf
        %v2702 = vsel %vm1941, %v2495, -inf
        %v2703 = vmax.f32 %v2701, %v2702
        %v2704 = vsel %vm1941, %v2474, -inf
        %v2705 = vsel %vm1941, %v2502, -inf
        %v2706 = vmax.f32 %v2704, %v2705
        %v2707 = vsel %vm1941, %v2509, -inf
        %v2708 = vsel %vm1941, %v2537, -inf
        %v2709 = vmax.f32 %v2707, %v2708
        %v2710 = vsel %vm1941, %v2516, -inf
        %v2711 = vsel %vm1941, %v2544, -inf
        %v2712 = vmax.f32 %v2710, %v2711
        %v2713 = vsel %vm1941, %v2523, -inf
        %v2714 = vsel %vm1941, %v2551, -inf
        %v2715 = vmax.f32 %v2713, %v2714
        %v2716 = vsel %vm1941, %v2530, -inf
        %v2717 = vsel %vm1941, %v2558, -inf
        %v2718 = vmax.f32 %v2716, %v2717
        %v2719 = vsel %vm1941, %v2565, -inf
        %v2720 = vsel %vm1941, %v2593, -inf
        %v2721 = vmax.f32 %v2719, %v2720
        %v2722 = vsel %vm1941, %v2572, -inf
        %v2723 = vsel %vm1941, %v2600, -inf
        %v2724 = vmax.f32 %v2722, %v2723
        %v2725 = vsel %vm1941, %v2579, -inf
        %v2726 = vsel %vm1941, %v2607, -inf
        %v2727 = vmax.f32 %v2725, %v2726
        %v2728 = vsel %vm1941, %v2586, -inf
        %v2729 = vsel %vm1941, %v2614, -inf
        %v2730 = vmax.f32 %v2728, %v2729
        %v2731 = vsel %vm1941, %v2621, -inf
        %v2732 = vsel %vm1941, %v2649, -inf
        %v2733 = vmax.f32 %v2731, %v2732
        %v2734 = vsel %vm1941, %v2628, -inf
        %v2735 = vsel %vm1941, %v2656, -inf
        %v2736 = vmax.f32 %v2734, %v2735
        %v2737 = vsel %vm1941, %v2635, -inf
        %v2738 = vsel %vm1941, %v2663, -inf
        %v2739 = vmax.f32 %v2737, %v2738
        %v2740 = vsel %vm1941, %v2642, -inf
        %v2741 = vsel %vm1941, %v2670, -inf
        %v2742 = vmax.f32 %v2740, %v2741
        %2744 = vrot.lane.b32.xlu0 %v2676, 64
        %v2745 = vpop.permute.xlu0 %2744
        %2748 = vrot.lane.b32.xlu0 %v2682, 64
        %v2749 = vpop.permute.xlu0 %2748
        %2752 = vrot.lane.b32.xlu0 %v2688, 64
        %v2753 = vpop.permute.xlu0 %2752
        %2756 = vrot.lane.b32.xlu0 %v2694, 64
        %v2757 = vpop.permute.xlu0 %2756
        %2760 = vrot.lane.b32.xlu0 %v2700, 64
        %v2761 = vpop.permute.xlu0 %2760
        %2764 = vrot.lane.b32.xlu0 %v2706, 64
        %v2765 = vpop.permute.xlu0 %2764
        %2768 = vrot.lane.b32.xlu0 %v2712, 64
        %v2769 = vpop.permute.xlu0 %2768
        %2772 = vrot.lane.b32.xlu0 %v2718, 64
        %v2773 = vpop.permute.xlu0 %2772
        %v2775 = vsel %vm1941, %v2673, %v2745
        %v2776 = vsel %vm1941, %v2679, %v2749
        %v2777 = vsel %vm1941, %v2685, %v2753
        %v2778 = vsel %vm1941, %v2691, %v2757
        %v2779 = vsel %vm1941, %v2697, %v2761
        %v2780 = vsel %vm1941, %v2703, %v2765
        %v2781 = vsel %vm1941, %v2709, %v2769
        %v2782 = vsel %vm1941, %v2715, %v2773
        %2784 = vrot.lane.b32.xlu0 %v2724, 64
        %v2785 = vpop.permute.xlu0 %2784
        %2788 = vrot.lane.b32.xlu0 %v2730, 64
        %v2789 = vpop.permute.xlu0 %2788
        %2792 = vrot.lane.b32.xlu0 %v2736, 64
        %v2793 = vpop.permute.xlu0 %2792
        %2796 = vrot.lane.b32.xlu0 %v2742, 64
        %v2797 = vpop.permute.xlu0 %2796
        %v2799 = vsel %vm1941, %v2721, %v2785
        %v2800 = vsel %vm1941, %v2727, %v2789
        %v2801 = vsel %vm1941, %v2733, %v2793
        %v2802 = vsel %vm1941, %v2739, %v2797
        %v2803 = vpack.c.bf16 %v2775, %v2775
        %v2804 = vpack.c.bf16 %v2776, %v2776
        %v2805 = vpack.c.bf16 %v2777, %v2777
        %v2806 = vpack.c.bf16 %v2778, %v2778
        %v2807 = vpack.c.bf16 %v2779, %v2779
        %v2808 = vpack.c.bf16 %v2780, %v2780
        %v2809 = vpack.c.bf16 %v2781, %v2781
        %v2810 = vpack.c.bf16 %v2782, %v2782
        %v2811 = vpack.c.bf16 %v2799, %v2799
        %v2812 = vpack.c.bf16 %v2800, %v2800
        %v2813 = vpack.c.bf16 %v2801, %v2801
        %v2814 = vpack.c.bf16 %v2802, %v2802
        %v2815 = vld [vmem:[#allocation10] sm:$0xff]
        %v2816 = vld [vmem:[#allocation10 + $0x8] sm:$0xff]
        %v2817 = vld [vmem:[#allocation10 + $0x10] sm:$0xff]
        %v2818 = vld [vmem:[#allocation10 + $0x18] sm:$0xff]
        %v2819 = vld [vmem:[#allocation10 + $0x20] sm:$0xff]
        %v2820 = vld [vmem:[#allocation10 + $0x28] sm:$0xff]
        %v2821 = vld [vmem:[#allocation10 + $0x30] sm:$0xff]
        %v2822 = vld [vmem:[#allocation10 + $0x38] sm:$0xff]
        %v2823 = vld [vmem:[#allocation10 + $0x40] sm:$0xff]
        %v2824 = vld [vmem:[#allocation10 + $0x48] sm:$0xff]
        %v2825 = vld [vmem:[#allocation10 + $0x50] sm:$0xff]
        %v2826 = vld [vmem:[#allocation10 + $0x58] sm:$0xff]
        %v2827 = vld [vmem:[#allocation10 + $0x60] sm:$0xff]
        %v2828 = vld [vmem:[#allocation10 + $0x68] sm:$0xff]
        %v2829 = vld [vmem:[#allocation10 + $0x70] sm:$0xff]
        %v2830 = vld [vmem:[#allocation10 + $0x78] sm:$0xff]
        %v2831 = vld [vmem:[#allocation10 + $0x80] sm:$0xff]
        %v2832 = vld [vmem:[#allocation10 + $0x88] sm:$0xff]
        %v2833 = vld [vmem:[#allocation10 + $0x90] sm:$0xff]
        %v2834 = vld [vmem:[#allocation10 + $0x98] sm:$0xff]
        %v2835 = vld [vmem:[#allocation10 + $0xa0] sm:$0xff]
        %v2836 = vld [vmem:[#allocation10 + $0xa8] sm:$0xff]
        %v2837 = vld [vmem:[#allocation10 + $0xb0] sm:$0xff]
        %v2838 = vld [vmem:[#allocation10 + $0xb8] sm:$0xff]
        %v2839 = vld [vmem:[#allocation10 + $0xc0] sm:$0xff]
        %v2840 = vld [vmem:[#allocation10 + $0xc8] sm:$0xff]
        %v2841 = vld [vmem:[#allocation10 + $0xd0] sm:$0xff]
        %v2842 = vld [vmem:[#allocation10 + $0xd8] sm:$0xff]
        %v2843 = vld [vmem:[#allocation10 + $0xe0] sm:$0xff]
        %v2844 = vld [vmem:[#allocation10 + $0xe8] sm:$0xff]
        %v2845 = vld [vmem:[#allocation10 + $0xf0] sm:$0xff]
        %v2846 = vld [vmem:[#allocation10 + $0xf8] sm:$0xff]
        %v2847 = vld [vmem:[#allocation10 + $0x100] sm:$0xff]
        %v2848 = vld [vmem:[#allocation10 + $0x108] sm:$0xff]
        %v2849 = vld [vmem:[#allocation10 + $0x110] sm:$0xff]
        %v2850 = vld [vmem:[#allocation10 + $0x118] sm:$0xff]
        %v2851 = vld [vmem:[#allocation10 + $0x120] sm:$0xff]
        %v2852 = vld [vmem:[#allocation10 + $0x128] sm:$0xff]
        %v2853 = vld [vmem:[#allocation10 + $0x130] sm:$0xff]
        %v2854 = vld [vmem:[#allocation10 + $0x138] sm:$0xff]
        %v2855 = vld [vmem:[#allocation10 + $0x140] sm:$0xff]
        %v2856 = vld [vmem:[#allocation10 + $0x148] sm:$0xff]
        %v2857 = vld [vmem:[#allocation10 + $0x150] sm:$0xff]
        %v2858 = vld [vmem:[#allocation10 + $0x158] sm:$0xff]
        %v2859 = vld [vmem:[#allocation10 + $0x160] sm:$0xff]
        %v2860 = vld [vmem:[#allocation10 + $0x168] sm:$0xff]
        %v2861 = vld [vmem:[#allocation10 + $0x170] sm:$0xff]
        %v2862 = vld [vmem:[#allocation10 + $0x178] sm:$0xff]
        %v2863 = vld [vmem:[#allocation10 + $0x180] sm:$0xff]
        %v2864 = vld [vmem:[#allocation10 + $0x188] sm:$0xff]
        %v2865 = vld [vmem:[#allocation10 + $0x190] sm:$0xff]
        %v2866 = vld [vmem:[#allocation10 + $0x198] sm:$0xff]
        %v2867 = vld [vmem:[#allocation10 + $0x1a0] sm:$0xff]
        %v2868 = vld [vmem:[#allocation10 + $0x1a8] sm:$0xff]
        %v2869 = vld [vmem:[#allocation10 + $0x1b0] sm:$0xff]
        %v2870 = vld [vmem:[#allocation10 + $0x1b8] sm:$0xff]
        %v2871 = vld [vmem:[#allocation10 + $0x1c0] sm:$0xff]
        %v2872 = vld [vmem:[#allocation10 + $0x1c8] sm:$0xff]
        %v2873 = vld [vmem:[#allocation10 + $0x1d0] sm:$0xff]
        %v2874 = vld [vmem:[#allocation10 + $0x1d8] sm:$0xff]
        %v2875 = vld [vmem:[#allocation10 + $0x1e0] sm:$0xff]
        %v2876 = vld [vmem:[#allocation10 + $0x1e8] sm:$0xff]
        %v2877 = vld [vmem:[#allocation10 + $0x1f0] sm:$0xff]
        %v2878 = vld [vmem:[#allocation10 + $0x1f8] sm:$0xff]
        %v2879 = vld [vmem:[#allocation10 + $0x200] sm:$0xff]
        %v2880 = vld [vmem:[#allocation10 + $0x208] sm:$0xff]
        %v2881 = vld [vmem:[#allocation10 + $0x210] sm:$0xff]
        %v2882 = vld [vmem:[#allocation10 + $0x218] sm:$0xff]
        %v2883 = vld [vmem:[#allocation10 + $0x220] sm:$0xff]
        %v2884 = vld [vmem:[#allocation10 + $0x228] sm:$0xff]
        %v2885 = vld [vmem:[#allocation10 + $0x230] sm:$0xff]
        %v2886 = vld [vmem:[#allocation10 + $0x238] sm:$0xff]
        %v2887 = vld [vmem:[#allocation10 + $0x240] sm:$0xff]
        %v2888 = vld [vmem:[#allocation10 + $0x248] sm:$0xff]
        %v2889 = vld [vmem:[#allocation10 + $0x250] sm:$0xff]
        %v2890 = vld [vmem:[#allocation10 + $0x258] sm:$0xff]
        %v2891 = vld [vmem:[#allocation10 + $0x260] sm:$0xff]
        %v2892 = vld [vmem:[#allocation10 + $0x268] sm:$0xff]
        %v2893 = vld [vmem:[#allocation10 + $0x270] sm:$0xff]
        %v2894 = vld [vmem:[#allocation10 + $0x278] sm:$0xff]
        %v2895 = vld [vmem:[#allocation10 + $0x280] sm:$0xff]
        %v2896 = vld [vmem:[#allocation10 + $0x288] sm:$0xff]
        %v2897 = vld [vmem:[#allocation10 + $0x290] sm:$0xff]
        %v2898 = vld [vmem:[#allocation10 + $0x298] sm:$0xff]
        %v2899 = vld [vmem:[#allocation10 + $0x2a0] sm:$0xff]
        %v2900 = vld [vmem:[#allocation10 + $0x2a8] sm:$0xff]
        %v2901 = vld [vmem:[#allocation10 + $0x2b0] sm:$0xff]
        %v2902 = vld [vmem:[#allocation10 + $0x2b8] sm:$0xff]
        %v2903 = vld [vmem:[#allocation10 + $0x2c0] sm:$0xff]
        %v2904 = vld [vmem:[#allocation10 + $0x2c8] sm:$0xff]
        %v2905 = vld [vmem:[#allocation10 + $0x2d0] sm:$0xff]
        %v2906 = vld [vmem:[#allocation10 + $0x2d8] sm:$0xff]
        %v2907 = vld [vmem:[#allocation10 + $0x2e0] sm:$0xff]
        %v2908 = vld [vmem:[#allocation10 + $0x2e8] sm:$0xff]
        %v2909 = vld [vmem:[#allocation10 + $0x2f0] sm:$0xff]
        %v2910 = vld [vmem:[#allocation10 + $0x2f8] sm:$0xff]
        %v2911 = vld [vmem:[#allocation10 + $0x300] sm:$0xff]
        %v2912 = vld [vmem:[#allocation10 + $0x308] sm:$0xff]
        %v2913 = vld [vmem:[#allocation10 + $0x310] sm:$0xff]
        %v2914 = vld [vmem:[#allocation10 + $0x318] sm:$0xff]
        %v2915 = vld [vmem:[#allocation10 + $0x320] sm:$0xff]
        %v2916 = vld [vmem:[#allocation10 + $0x328] sm:$0xff]
        %v2917 = vld [vmem:[#allocation10 + $0x330] sm:$0xff]
        %v2918 = vld [vmem:[#allocation10 + $0x338] sm:$0xff]
        %v2919 = vld [vmem:[#allocation10 + $0x340] sm:$0xff]
        %v2920 = vld [vmem:[#allocation10 + $0x348] sm:$0xff]
        %v2921 = vld [vmem:[#allocation10 + $0x350] sm:$0xff]
        %v2922 = vld [vmem:[#allocation10 + $0x358] sm:$0xff]
        %v2923 = vld [vmem:[#allocation10 + $0x360] sm:$0xff]
        %v2924 = vld [vmem:[#allocation10 + $0x368] sm:$0xff]
        %v2925 = vld [vmem:[#allocation10 + $0x370] sm:$0xff]
        %v2926 = vld [vmem:[#allocation10 + $0x378] sm:$0xff]
        %v2927 = vld [vmem:[#allocation10 + $0x380] sm:$0xff]
        %v2928 = vld [vmem:[#allocation10 + $0x388] sm:$0xff]
        %v2929 = vld [vmem:[#allocation10 + $0x390] sm:$0xff]
        %v2930 = vld [vmem:[#allocation10 + $0x398] sm:$0xff]
        %v2931 = vld [vmem:[#allocation10 + $0x3a0] sm:$0xff]
        %v2932 = vld [vmem:[#allocation10 + $0x3a8] sm:$0xff]
        %v2933 = vld [vmem:[#allocation10 + $0x3b0] sm:$0xff]
        %v2934 = vld [vmem:[#allocation10 + $0x3b8] sm:$0xff]
        %v2935 = vld [vmem:[#allocation10 + $0x3c0] sm:$0xff]
        %v2936 = vld [vmem:[#allocation10 + $0x3c8] sm:$0xff]
        %v2937 = vld [vmem:[#allocation10 + $0x3d0] sm:$0xff]
        %v2938 = vld [vmem:[#allocation10 + $0x3d8] sm:$0xff]
        %v2939 = vld [vmem:[#allocation10 + $0x3e0] sm:$0xff]
        %v2940 = vld [vmem:[#allocation10 + $0x3e8] sm:$0xff]
        %v2941 = vld [vmem:[#allocation10 + $0x3f0] sm:$0xff]
        %v2942 = vld [vmem:[#allocation10 + $0x3f8] sm:$0xff]
        %v2943 = vld [vmem:[#allocation10 + $0x400] sm:$0xff]
        %v2944 = vld [vmem:[#allocation10 + $0x408] sm:$0xff]
        %v2945 = vld [vmem:[#allocation10 + $0x410] sm:$0xff]
        %v2946 = vld [vmem:[#allocation10 + $0x418] sm:$0xff]
        %v2947 = vld [vmem:[#allocation10 + $0x420] sm:$0xff]
        %v2948 = vld [vmem:[#allocation10 + $0x428] sm:$0xff]
        %v2949 = vld [vmem:[#allocation10 + $0x430] sm:$0xff]
        %v2950 = vld [vmem:[#allocation10 + $0x438] sm:$0xff]
        %v2951 = vld [vmem:[#allocation10 + $0x440] sm:$0xff]
        %v2952 = vld [vmem:[#allocation10 + $0x448] sm:$0xff]
        %v2953 = vld [vmem:[#allocation10 + $0x450] sm:$0xff]
        %v2954 = vld [vmem:[#allocation10 + $0x458] sm:$0xff]
        %v2955 = vld [vmem:[#allocation10 + $0x460] sm:$0xff]
        %v2956 = vld [vmem:[#allocation10 + $0x468] sm:$0xff]
        %v2957 = vld [vmem:[#allocation10 + $0x470] sm:$0xff]
        %v2958 = vld [vmem:[#allocation10 + $0x478] sm:$0xff]
        %v2959 = vld [vmem:[#allocation10 + $0x480] sm:$0xff]
        %v2960 = vld [vmem:[#allocation10 + $0x488] sm:$0xff]
        %v2961 = vld [vmem:[#allocation10 + $0x490] sm:$0xff]
        %v2962 = vld [vmem:[#allocation10 + $0x498] sm:$0xff]
        %v2963 = vld [vmem:[#allocation10 + $0x4a0] sm:$0xff]
        %v2964 = vld [vmem:[#allocation10 + $0x4a8] sm:$0xff]
        %v2965 = vld [vmem:[#allocation10 + $0x4b0] sm:$0xff]
        %v2966 = vld [vmem:[#allocation10 + $0x4b8] sm:$0xff]
        %v2967 = vld [vmem:[#allocation10 + $0x4c0] sm:$0xff]
        %v2968 = vld [vmem:[#allocation10 + $0x4c8] sm:$0xff]
        %v2969 = vld [vmem:[#allocation10 + $0x4d0] sm:$0xff]
        %v2970 = vld [vmem:[#allocation10 + $0x4d8] sm:$0xff]
        %v2971 = vld [vmem:[#allocation10 + $0x4e0] sm:$0xff]
        %v2972 = vld [vmem:[#allocation10 + $0x4e8] sm:$0xff]
        %v2973 = vld [vmem:[#allocation10 + $0x4f0] sm:$0xff]
        %v2974 = vld [vmem:[#allocation10 + $0x4f8] sm:$0xff]
        %v2975 = vld [vmem:[#allocation10 + $0x500] sm:$0xff]
        %v2976 = vld [vmem:[#allocation10 + $0x508] sm:$0xff]
        %v2977 = vld [vmem:[#allocation10 + $0x510] sm:$0xff]
        %v2978 = vld [vmem:[#allocation10 + $0x518] sm:$0xff]
        %v2979 = vld [vmem:[#allocation10 + $0x520] sm:$0xff]
        %v2980 = vld [vmem:[#allocation10 + $0x528] sm:$0xff]
        %v2981 = vld [vmem:[#allocation10 + $0x530] sm:$0xff]
        %v2982 = vld [vmem:[#allocation10 + $0x538] sm:$0xff]
        %v2983 = vld [vmem:[#allocation10 + $0x540] sm:$0xff]
        %v2984 = vld [vmem:[#allocation10 + $0x548] sm:$0xff]
        %v2985 = vld [vmem:[#allocation10 + $0x550] sm:$0xff]
        %v2986 = vld [vmem:[#allocation10 + $0x558] sm:$0xff]
        %v2987 = vld [vmem:[#allocation10 + $0x560] sm:$0xff]
        %v2988 = vld [vmem:[#allocation10 + $0x568] sm:$0xff]
        %v2989 = vld [vmem:[#allocation10 + $0x570] sm:$0xff]
        %v2990 = vld [vmem:[#allocation10 + $0x578] sm:$0xff]
        %v2991 = vld [vmem:[#allocation10 + $0x580] sm:$0xff]
        %v2992 = vld [vmem:[#allocation10 + $0x588] sm:$0xff]
        %v2993 = vld [vmem:[#allocation10 + $0x590] sm:$0xff]
        %v2994 = vld [vmem:[#allocation10 + $0x598] sm:$0xff]
        %v2995 = vld [vmem:[#allocation10 + $0x5a0] sm:$0xff]
        %v2996 = vld [vmem:[#allocation10 + $0x5a8] sm:$0xff]
        %v2997 = vld [vmem:[#allocation10 + $0x5b0] sm:$0xff]
        %v2998 = vld [vmem:[#allocation10 + $0x5b8] sm:$0xff]
        %v2999 = vld [vmem:[#allocation10 + $0x5c0] sm:$0xff]
        %v3000 = vld [vmem:[#allocation10 + $0x5c8] sm:$0xff]
        %v3001 = vld [vmem:[#allocation10 + $0x5d0] sm:$0xff]
        %v3002 = vld [vmem:[#allocation10 + $0x5d8] sm:$0xff]
        %v3003 = vld [vmem:[#allocation10 + $0x5e0] sm:$0xff]
        %v3004 = vld [vmem:[#allocation10 + $0x5e8] sm:$0xff]
        %v3005 = vld [vmem:[#allocation10 + $0x5f0] sm:$0xff]
        %v3006 = vld [vmem:[#allocation10 + $0x5f8] sm:$0xff]
        %v3007 = vld [vmem:[#allocation10 + $0x600] sm:$0xff]
        %v3008 = vld [vmem:[#allocation10 + $0x608] sm:$0xff]
        %v3009 = vld [vmem:[#allocation10 + $0x610] sm:$0xff]
        %v3010 = vld [vmem:[#allocation10 + $0x618] sm:$0xff]
        %v3011 = vld [vmem:[#allocation10 + $0x620] sm:$0xff]
        %v3012 = vld [vmem:[#allocation10 + $0x628] sm:$0xff]
        %v3013 = vld [vmem:[#allocation10 + $0x630] sm:$0xff]
        %v3014 = vld [vmem:[#allocation10 + $0x638] sm:$0xff]
        %v3015 = vld [vmem:[#allocation10 + $0x640] sm:$0xff]
        %v3016 = vld [vmem:[#allocation10 + $0x648] sm:$0xff]
        %v3017 = vld [vmem:[#allocation10 + $0x650] sm:$0xff]
        %v3018 = vld [vmem:[#allocation10 + $0x658] sm:$0xff]
        %v3019 = vld [vmem:[#allocation10 + $0x660] sm:$0xff]
        %v3020 = vld [vmem:[#allocation10 + $0x668] sm:$0xff]
        %v3021 = vld [vmem:[#allocation10 + $0x670] sm:$0xff]
        %v3022 = vld [vmem:[#allocation10 + $0x678] sm:$0xff]
        %v3023 = vld [vmem:[#allocation10 + $0x680] sm:$0xff]
        %v3024 = vld [vmem:[#allocation10 + $0x688] sm:$0xff]
        %v3025 = vld [vmem:[#allocation10 + $0x690] sm:$0xff]
        %v3026 = vld [vmem:[#allocation10 + $0x698] sm:$0xff]
        %v3027 = vld [vmem:[#allocation10 + $0x6a0] sm:$0xff]
        %v3028 = vld [vmem:[#allocation10 + $0x6a8] sm:$0xff]
        %v3029 = vld [vmem:[#allocation10 + $0x6b0] sm:$0xff]
        %v3030 = vld [vmem:[#allocation10 + $0x6b8] sm:$0xff]
        %v3031 = vld [vmem:[#allocation10 + $0x6c0] sm:$0xff]
        %v3032 = vld [vmem:[#allocation10 + $0x6c8] sm:$0xff]
        %v3033 = vld [vmem:[#allocation10 + $0x6d0] sm:$0xff]
        %v3034 = vld [vmem:[#allocation10 + $0x6d8] sm:$0xff]
        %v3035 = vld [vmem:[#allocation10 + $0x6e0] sm:$0xff]
        %v3036 = vld [vmem:[#allocation10 + $0x6e8] sm:$0xff]
        %v3037 = vld [vmem:[#allocation10 + $0x6f0] sm:$0xff]
        %v3038 = vld [vmem:[#allocation10 + $0x6f8] sm:$0xff]
        %v3039 = vld [vmem:[#allocation10 + $0x700] sm:$0xff]
        %v3040 = vld [vmem:[#allocation10 + $0x708] sm:$0xff]
        %v3041 = vld [vmem:[#allocation10 + $0x710] sm:$0xff]
        %v3042 = vld [vmem:[#allocation10 + $0x718] sm:$0xff]
        %v3043 = vld [vmem:[#allocation10 + $0x720] sm:$0xff]
        %v3044 = vld [vmem:[#allocation10 + $0x728] sm:$0xff]
        %v3045 = vld [vmem:[#allocation10 + $0x730] sm:$0xff]
        %v3046 = vld [vmem:[#allocation10 + $0x738] sm:$0xff]
        %v3047 = vld [vmem:[#allocation10 + $0x740] sm:$0xff]
        %v3048 = vld [vmem:[#allocation10 + $0x748] sm:$0xff]
        %v3049 = vld [vmem:[#allocation10 + $0x750] sm:$0xff]
        %v3050 = vld [vmem:[#allocation10 + $0x758] sm:$0xff]
        %v3051 = vld [vmem:[#allocation10 + $0x760] sm:$0xff]
        %v3052 = vld [vmem:[#allocation10 + $0x768] sm:$0xff]
        %v3053 = vld [vmem:[#allocation10 + $0x770] sm:$0xff]
        %v3054 = vld [vmem:[#allocation10 + $0x778] sm:$0xff]
        %v3055 = vld [vmem:[#allocation10 + $0x780] sm:$0xff]
        %v3056 = vld [vmem:[#allocation10 + $0x788] sm:$0xff]
        %v3057 = vld [vmem:[#allocation10 + $0x790] sm:$0xff]
        %v3058 = vld [vmem:[#allocation10 + $0x798] sm:$0xff]
        %v3059 = vld [vmem:[#allocation10 + $0x7a0] sm:$0xff]
        %v3060 = vld [vmem:[#allocation10 + $0x7a8] sm:$0xff]
        %v3061 = vld [vmem:[#allocation10 + $0x7b0] sm:$0xff]
        %v3062 = vld [vmem:[#allocation10 + $0x7b8] sm:$0xff]
        %v3063 = vld [vmem:[#allocation10 + $0x7c0] sm:$0xff]
        %v3064 = vld [vmem:[#allocation10 + $0x7c8] sm:$0xff]
        %v3065 = vld [vmem:[#allocation10 + $0x7d0] sm:$0xff]
        %v3066 = vld [vmem:[#allocation10 + $0x7d8] sm:$0xff]
        %v3067 = vld [vmem:[#allocation10 + $0x7e0] sm:$0xff]
        %v3068 = vld [vmem:[#allocation10 + $0x7e8] sm:$0xff]
        %v3069 = vld [vmem:[#allocation10 + $0x7f0] sm:$0xff]
        %v3070 = vld [vmem:[#allocation10 + $0x7f8] sm:$0xff]
        %v3071 = vld [vmem:[#allocation10 + $0x800] sm:$0xff]
        %v3072 = vld [vmem:[#allocation10 + $0x808] sm:$0xff]
        %v3073 = vld [vmem:[#allocation10 + $0x810] sm:$0xff]
        %v3074 = vld [vmem:[#allocation10 + $0x818] sm:$0xff]
        %v3075 = vld [vmem:[#allocation10 + $0x820] sm:$0xff]
        %v3076 = vld [vmem:[#allocation10 + $0x828] sm:$0xff]
        %v3077 = vld [vmem:[#allocation10 + $0x830] sm:$0xff]
        %v3078 = vld [vmem:[#allocation10 + $0x838] sm:$0xff]
        %v3079 = vld [vmem:[#allocation10 + $0x840] sm:$0xff]
        %v3080 = vld [vmem:[#allocation10 + $0x848] sm:$0xff]
        %v3081 = vld [vmem:[#allocation10 + $0x850] sm:$0xff]
        %v3082 = vld [vmem:[#allocation10 + $0x858] sm:$0xff]
        %v3083 = vld [vmem:[#allocation10 + $0x860] sm:$0xff]
        %v3084 = vld [vmem:[#allocation10 + $0x868] sm:$0xff]
        %v3085 = vld [vmem:[#allocation10 + $0x870] sm:$0xff]
        %v3086 = vld [vmem:[#allocation10 + $0x878] sm:$0xff]
        %v3087 = vld [vmem:[#allocation10 + $0x880] sm:$0xff]
        %v3088 = vld [vmem:[#allocation10 + $0x888] sm:$0xff]
        %v3089 = vld [vmem:[#allocation10 + $0x890] sm:$0xff]
        %v3090 = vld [vmem:[#allocation10 + $0x898] sm:$0xff]
        %v3091 = vld [vmem:[#allocation10 + $0x8a0] sm:$0xff]
        %v3092 = vld [vmem:[#allocation10 + $0x8a8] sm:$0xff]
        %v3093 = vld [vmem:[#allocation10 + $0x8b0] sm:$0xff]
        %v3094 = vld [vmem:[#allocation10 + $0x8b8] sm:$0xff]
        %v3095 = vld [vmem:[#allocation10 + $0x8c0] sm:$0xff]
        %v3096 = vld [vmem:[#allocation10 + $0x8c8] sm:$0xff]
        %v3097 = vld [vmem:[#allocation10 + $0x8d0] sm:$0xff]
        %v3098 = vld [vmem:[#allocation10 + $0x8d8] sm:$0xff]
        %v3099 = vld [vmem:[#allocation10 + $0x8e0] sm:$0xff]
        %v3100 = vld [vmem:[#allocation10 + $0x8e8] sm:$0xff]
        %v3101 = vld [vmem:[#allocation10 + $0x8f0] sm:$0xff]
        %v3102 = vld [vmem:[#allocation10 + $0x8f8] sm:$0xff]
        %v3103 = vld [vmem:[#allocation10 + $0x900] sm:$0xff]
        %v3104 = vld [vmem:[#allocation10 + $0x908] sm:$0xff]
        %v3105 = vld [vmem:[#allocation10 + $0x910] sm:$0xff]
        %v3106 = vld [vmem:[#allocation10 + $0x918] sm:$0xff]
        %v3107 = vld [vmem:[#allocation10 + $0x920] sm:$0xff]
        %v3108 = vld [vmem:[#allocation10 + $0x928] sm:$0xff]
        %v3109 = vld [vmem:[#allocation10 + $0x930] sm:$0xff]
        %v3110 = vld [vmem:[#allocation10 + $0x938] sm:$0xff]
        %v3111 = vld [vmem:[#allocation10 + $0x940] sm:$0xff]
        %v3112 = vld [vmem:[#allocation10 + $0x948] sm:$0xff]
        %v3113 = vld [vmem:[#allocation10 + $0x950] sm:$0xff]
        %v3114 = vld [vmem:[#allocation10 + $0x958] sm:$0xff]
        %v3115 = vld [vmem:[#allocation10 + $0x960] sm:$0xff]
        %v3116 = vld [vmem:[#allocation10 + $0x968] sm:$0xff]
        %v3117 = vld [vmem:[#allocation10 + $0x970] sm:$0xff]
        %v3118 = vld [vmem:[#allocation10 + $0x978] sm:$0xff]
        %v3119 = vld [vmem:[#allocation10 + $0x980] sm:$0xff]
        %v3120 = vld [vmem:[#allocation10 + $0x988] sm:$0xff]
        %v3121 = vld [vmem:[#allocation10 + $0x990] sm:$0xff]
        %v3122 = vld [vmem:[#allocation10 + $0x998] sm:$0xff]
        %v3123 = vld [vmem:[#allocation10 + $0x9a0] sm:$0xff]
        %v3124 = vld [vmem:[#allocation10 + $0x9a8] sm:$0xff]
        %v3125 = vld [vmem:[#allocation10 + $0x9b0] sm:$0xff]
        %v3126 = vld [vmem:[#allocation10 + $0x9b8] sm:$0xff]
        %v3127 = vld [vmem:[#allocation10 + $0x9c0] sm:$0xff]
        %v3128 = vld [vmem:[#allocation10 + $0x9c8] sm:$0xff]
        %v3129 = vld [vmem:[#allocation10 + $0x9d0] sm:$0xff]
        %v3130 = vld [vmem:[#allocation10 + $0x9d8] sm:$0xff]
        %v3131 = vld [vmem:[#allocation10 + $0x9e0] sm:$0xff]
        %v3132 = vld [vmem:[#allocation10 + $0x9e8] sm:$0xff]
        %v3133 = vld [vmem:[#allocation10 + $0x9f0] sm:$0xff]
        %v3134 = vld [vmem:[#allocation10 + $0x9f8] sm:$0xff]
        %v3135 = vld [vmem:[#allocation10 + $0xa00] sm:$0xff]
        %v3136 = vld [vmem:[#allocation10 + $0xa08] sm:$0xff]
        %v3137 = vld [vmem:[#allocation10 + $0xa10] sm:$0xff]
        %v3138 = vld [vmem:[#allocation10 + $0xa18] sm:$0xff]
        %v3139 = vld [vmem:[#allocation10 + $0xa20] sm:$0xff]
        %v3140 = vld [vmem:[#allocation10 + $0xa28] sm:$0xff]
        %v3141 = vld [vmem:[#allocation10 + $0xa30] sm:$0xff]
        %v3142 = vld [vmem:[#allocation10 + $0xa38] sm:$0xff]
        %v3143 = vld [vmem:[#allocation10 + $0xa40] sm:$0xff]
        %v3144 = vld [vmem:[#allocation10 + $0xa48] sm:$0xff]
        %v3145 = vld [vmem:[#allocation10 + $0xa50] sm:$0xff]
        %v3146 = vld [vmem:[#allocation10 + $0xa58] sm:$0xff]
        %v3147 = vld [vmem:[#allocation10 + $0xa60] sm:$0xff]
        %v3148 = vld [vmem:[#allocation10 + $0xa68] sm:$0xff]
        %v3149 = vld [vmem:[#allocation10 + $0xa70] sm:$0xff]
        %v3150 = vld [vmem:[#allocation10 + $0xa78] sm:$0xff]
        %v3151 = vld [vmem:[#allocation10 + $0xa80] sm:$0xff]
        %v3152 = vld [vmem:[#allocation10 + $0xa88] sm:$0xff]
        %v3153 = vld [vmem:[#allocation10 + $0xa90] sm:$0xff]
        %v3154 = vld [vmem:[#allocation10 + $0xa98] sm:$0xff]
        %v3155 = vld [vmem:[#allocation10 + $0xaa0] sm:$0xff]
        %v3156 = vld [vmem:[#allocation10 + $0xaa8] sm:$0xff]
        %v3157 = vld [vmem:[#allocation10 + $0xab0] sm:$0xff]
        %v3158 = vld [vmem:[#allocation10 + $0xab8] sm:$0xff]
        %v3159 = vld [vmem:[#allocation10 + $0xac0] sm:$0xff]
        %v3160 = vld [vmem:[#allocation10 + $0xac8] sm:$0xff]
        %v3161 = vld [vmem:[#allocation10 + $0xad0] sm:$0xff]
        %v3162 = vld [vmem:[#allocation10 + $0xad8] sm:$0xff]
        %v3163 = vld [vmem:[#allocation10 + $0xae0] sm:$0xff]
        %v3164 = vld [vmem:[#allocation10 + $0xae8] sm:$0xff]
        %v3165 = vld [vmem:[#allocation10 + $0xaf0] sm:$0xff]
        %v3166 = vld [vmem:[#allocation10 + $0xaf8] sm:$0xff]
        %v3167 = vld [vmem:[#allocation10 + $0xb00] sm:$0xff]
        %v3168 = vld [vmem:[#allocation10 + $0xb08] sm:$0xff]
        %v3169 = vld [vmem:[#allocation10 + $0xb10] sm:$0xff]
        %v3170 = vld [vmem:[#allocation10 + $0xb18] sm:$0xff]
        %v3171 = vld [vmem:[#allocation10 + $0xb20] sm:$0xff]
        %v3172 = vld [vmem:[#allocation10 + $0xb28] sm:$0xff]
        %v3173 = vld [vmem:[#allocation10 + $0xb30] sm:$0xff]
        %v3174 = vld [vmem:[#allocation10 + $0xb38] sm:$0xff]
        %v3175 = vld [vmem:[#allocation10 + $0xb40] sm:$0xff]
        %v3176 = vld [vmem:[#allocation10 + $0xb48] sm:$0xff]
        %v3177 = vld [vmem:[#allocation10 + $0xb50] sm:$0xff]
        %v3178 = vld [vmem:[#allocation10 + $0xb58] sm:$0xff]
        %v3179 = vld [vmem:[#allocation10 + $0xb60] sm:$0xff]
        %v3180 = vld [vmem:[#allocation10 + $0xb68] sm:$0xff]
        %v3181 = vld [vmem:[#allocation10 + $0xb70] sm:$0xff]
        %v3182 = vld [vmem:[#allocation10 + $0xb78] sm:$0xff]
        %v3183 = vld [vmem:[#allocation10 + $0xb80] sm:$0xff]
        %v3184 = vld [vmem:[#allocation10 + $0xb88] sm:$0xff]
        %v3185 = vld [vmem:[#allocation10 + $0xb90] sm:$0xff]
        %v3186 = vld [vmem:[#allocation10 + $0xb98] sm:$0xff]
        %v3187 = vld [vmem:[#allocation10 + $0xba0] sm:$0xff]
        %v3188 = vld [vmem:[#allocation10 + $0xba8] sm:$0xff]
        %v3189 = vld [vmem:[#allocation10 + $0xbb0] sm:$0xff]
        %v3190 = vld [vmem:[#allocation10 + $0xbb8] sm:$0xff]
        %v3191 = vld [vmem:[#allocation10 + $0xbc0] sm:$0xff]
        %v3192 = vld [vmem:[#allocation10 + $0xbc8] sm:$0xff]
        %v3193 = vld [vmem:[#allocation10 + $0xbd0] sm:$0xff]
        %v3194 = vld [vmem:[#allocation10 + $0xbd8] sm:$0xff]
        %v3195 = vld [vmem:[#allocation10 + $0xbe0] sm:$0xff]
        %v3196 = vld [vmem:[#allocation10 + $0xbe8] sm:$0xff]
        %v3197 = vld [vmem:[#allocation10 + $0xbf0] sm:$0xff]
        %v3198 = vld [vmem:[#allocation10 + $0xbf8] sm:$0xff]
        %v3199 = vld [vmem:[#allocation10 + $0xc00] sm:$0xff]
        %v3200 = vld [vmem:[#allocation10 + $0xc08] sm:$0xff]
        %v3201 = vld [vmem:[#allocation10 + $0xc10] sm:$0xff]
        %v3202 = vld [vmem:[#allocation10 + $0xc18] sm:$0xff]
        %v3203 = vld [vmem:[#allocation10 + $0xc20] sm:$0xff]
        %v3204 = vld [vmem:[#allocation10 + $0xc28] sm:$0xff]
        %v3205 = vld [vmem:[#allocation10 + $0xc30] sm:$0xff]
        %v3206 = vld [vmem:[#allocation10 + $0xc38] sm:$0xff]
        %v3207 = vld [vmem:[#allocation10 + $0xc40] sm:$0xff]
        %v3208 = vld [vmem:[#allocation10 + $0xc48] sm:$0xff]
        %v3209 = vld [vmem:[#allocation10 + $0xc50] sm:$0xff]
        %v3210 = vld [vmem:[#allocation10 + $0xc58] sm:$0xff]
        %v3211 = vld [vmem:[#allocation10 + $0xc60] sm:$0xff]
        %v3212 = vld [vmem:[#allocation10 + $0xc68] sm:$0xff]
        %v3213 = vld [vmem:[#allocation10 + $0xc70] sm:$0xff]
        %v3214 = vld [vmem:[#allocation10 + $0xc78] sm:$0xff]
        %v3215 = vld [vmem:[#allocation10 + $0xc80] sm:$0xff]
        %v3216 = vld [vmem:[#allocation10 + $0xc88] sm:$0xff]
        %v3217 = vld [vmem:[#allocation10 + $0xc90] sm:$0xff]
        %v3218 = vld [vmem:[#allocation10 + $0xc98] sm:$0xff]
        %v3219 = vld [vmem:[#allocation10 + $0xca0] sm:$0xff]
        %v3220 = vld [vmem:[#allocation10 + $0xca8] sm:$0xff]
        %v3221 = vld [vmem:[#allocation10 + $0xcb0] sm:$0xff]
        %v3222 = vld [vmem:[#allocation10 + $0xcb8] sm:$0xff]
        %v3223 = vld [vmem:[#allocation10 + $0xcc0] sm:$0xff]
        %v3224 = vld [vmem:[#allocation10 + $0xcc8] sm:$0xff]
        %v3225 = vld [vmem:[#allocation10 + $0xcd0] sm:$0xff]
        %v3226 = vld [vmem:[#allocation10 + $0xcd8] sm:$0xff]
        %v3227 = vld [vmem:[#allocation10 + $0xce0] sm:$0xff]
        %v3228 = vld [vmem:[#allocation10 + $0xce8] sm:$0xff]
        %v3229 = vld [vmem:[#allocation10 + $0xcf0] sm:$0xff]
        %v3230 = vld [vmem:[#allocation10 + $0xcf8] sm:$0xff]
        %v3231 = vld [vmem:[#allocation10 + $0xd00] sm:$0xff]
        %v3232 = vld [vmem:[#allocation10 + $0xd08] sm:$0xff]
        %v3233 = vld [vmem:[#allocation10 + $0xd10] sm:$0xff]
        %v3234 = vld [vmem:[#allocation10 + $0xd18] sm:$0xff]
        %v3235 = vld [vmem:[#allocation10 + $0xd20] sm:$0xff]
        %v3236 = vld [vmem:[#allocation10 + $0xd28] sm:$0xff]
        %v3237 = vld [vmem:[#allocation10 + $0xd30] sm:$0xff]
        %v3238 = vld [vmem:[#allocation10 + $0xd38] sm:$0xff]
        %v3239 = vld [vmem:[#allocation10 + $0xd40] sm:$0xff]
        %v3240 = vld [vmem:[#allocation10 + $0xd48] sm:$0xff]
        %v3241 = vld [vmem:[#allocation10 + $0xd50] sm:$0xff]
        %v3242 = vld [vmem:[#allocation10 + $0xd58] sm:$0xff]
        %v3243 = vld [vmem:[#allocation10 + $0xd60] sm:$0xff]
        %v3244 = vld [vmem:[#allocation10 + $0xd68] sm:$0xff]
        %v3245 = vld [vmem:[#allocation10 + $0xd70] sm:$0xff]
        %v3246 = vld [vmem:[#allocation10 + $0xd78] sm:$0xff]
        %v3247 = vld [vmem:[#allocation10 + $0xd80] sm:$0xff]
        %v3248 = vld [vmem:[#allocation10 + $0xd88] sm:$0xff]
        %v3249 = vld [vmem:[#allocation10 + $0xd90] sm:$0xff]
        %v3250 = vld [vmem:[#allocation10 + $0xd98] sm:$0xff]
        %v3251 = vld [vmem:[#allocation10 + $0xda0] sm:$0xff]
        %v3252 = vld [vmem:[#allocation10 + $0xda8] sm:$0xff]
        %v3253 = vld [vmem:[#allocation10 + $0xdb0] sm:$0xff]
        %v3254 = vld [vmem:[#allocation10 + $0xdb8] sm:$0xff]
        %v3255 = vld [vmem:[#allocation10 + $0xdc0] sm:$0xff]
        %v3256 = vld [vmem:[#allocation10 + $0xdc8] sm:$0xff]
        %v3257 = vld [vmem:[#allocation10 + $0xdd0] sm:$0xff]
        %v3258 = vld [vmem:[#allocation10 + $0xdd8] sm:$0xff]
        %v3259 = vld [vmem:[#allocation10 + $0xde0] sm:$0xff]
        %v3260 = vld [vmem:[#allocation10 + $0xde8] sm:$0xff]
        %v3261 = vld [vmem:[#allocation10 + $0xdf0] sm:$0xff]
        %v3262 = vld [vmem:[#allocation10 + $0xdf8] sm:$0xff]
        %v3263 = vld [vmem:[#allocation10 + $0xe00] sm:$0xff]
        %v3264 = vld [vmem:[#allocation10 + $0xe08] sm:$0xff]
        %v3265 = vld [vmem:[#allocation10 + $0xe10] sm:$0xff]
        %v3266 = vld [vmem:[#allocation10 + $0xe18] sm:$0xff]
        %v3267 = vld [vmem:[#allocation10 + $0xe20] sm:$0xff]
        %v3268 = vld [vmem:[#allocation10 + $0xe28] sm:$0xff]
        %v3269 = vld [vmem:[#allocation10 + $0xe30] sm:$0xff]
        %v3270 = vld [vmem:[#allocation10 + $0xe38] sm:$0xff]
        %v3271 = vld [vmem:[#allocation10 + $0xe40] sm:$0xff]
        %v3272 = vld [vmem:[#allocation10 + $0xe48] sm:$0xff]
        %v3273 = vld [vmem:[#allocation10 + $0xe50] sm:$0xff]
        %v3274 = vld [vmem:[#allocation10 + $0xe58] sm:$0xff]
        %v3275 = vld [vmem:[#allocation10 + $0xe60] sm:$0xff]
        %v3276 = vld [vmem:[#allocation10 + $0xe68] sm:$0xff]
        %v3277 = vld [vmem:[#allocation10 + $0xe70] sm:$0xff]
        %v3278 = vld [vmem:[#allocation10 + $0xe78] sm:$0xff]
        %v3279 = vld [vmem:[#allocation10 + $0xe80] sm:$0xff]
        %v3280 = vld [vmem:[#allocation10 + $0xe88] sm:$0xff]
        %v3281 = vld [vmem:[#allocation10 + $0xe90] sm:$0xff]
        %v3282 = vld [vmem:[#allocation10 + $0xe98] sm:$0xff]
        %v3283 = vld [vmem:[#allocation10 + $0xea0] sm:$0xff]
        %v3284 = vld [vmem:[#allocation10 + $0xea8] sm:$0xff]
        %v3285 = vld [vmem:[#allocation10 + $0xeb0] sm:$0xff]
        %v3286 = vld [vmem:[#allocation10 + $0xeb8] sm:$0xff]
        %v3287 = vld [vmem:[#allocation10 + $0xec0] sm:$0xff]
        %v3288 = vld [vmem:[#allocation10 + $0xec8] sm:$0xff]
        %v3289 = vld [vmem:[#allocation10 + $0xed0] sm:$0xff]
        %v3290 = vld [vmem:[#allocation10 + $0xed8] sm:$0xff]
        %v3291 = vld [vmem:[#allocation10 + $0xee0] sm:$0xff]
        %v3292 = vld [vmem:[#allocation10 + $0xee8] sm:$0xff]
        %v3293 = vld [vmem:[#allocation10 + $0xef0] sm:$0xff]
        %v3294 = vld [vmem:[#allocation10 + $0xef8] sm:$0xff]
        %v3295 = vld [vmem:[#allocation10 + $0xf00] sm:$0xff]
        %v3296 = vld [vmem:[#allocation10 + $0xf08] sm:$0xff]
        %v3297 = vld [vmem:[#allocation10 + $0xf10] sm:$0xff]
        %v3298 = vld [vmem:[#allocation10 + $0xf18] sm:$0xff]
        %v3299 = vld [vmem:[#allocation10 + $0xf20] sm:$0xff]
        %v3300 = vld [vmem:[#allocation10 + $0xf28] sm:$0xff]
        %v3301 = vld [vmem:[#allocation10 + $0xf30] sm:$0xff]
        %v3302 = vld [vmem:[#allocation10 + $0xf38] sm:$0xff]
        %v3303 = vld [vmem:[#allocation10 + $0xf40] sm:$0xff]
        %v3304 = vld [vmem:[#allocation10 + $0xf48] sm:$0xff]
        %v3305 = vld [vmem:[#allocation10 + $0xf50] sm:$0xff]
        %v3306 = vld [vmem:[#allocation10 + $0xf58] sm:$0xff]
        %v3307 = vld [vmem:[#allocation10 + $0xf60] sm:$0xff]
        %v3308 = vld [vmem:[#allocation10 + $0xf68] sm:$0xff]
        %v3309 = vld [vmem:[#allocation10 + $0xf70] sm:$0xff]
        %v3310 = vld [vmem:[#allocation10 + $0xf78] sm:$0xff]
        %v3311 = vld [vmem:[#allocation10 + $0xf80] sm:$0xff]
        %v3312 = vld [vmem:[#allocation10 + $0xf88] sm:$0xff]
        %v3313 = vld [vmem:[#allocation10 + $0xf90] sm:$0xff]
        %v3314 = vld [vmem:[#allocation10 + $0xf98] sm:$0xff]
        %v3315 = vld [vmem:[#allocation10 + $0xfa0] sm:$0xff]
        %v3316 = vld [vmem:[#allocation10 + $0xfa8] sm:$0xff]
        %v3317 = vld [vmem:[#allocation10 + $0xfb0] sm:$0xff]
        %v3318 = vld [vmem:[#allocation10 + $0xfb8] sm:$0xff]
        %v3319 = vld [vmem:[#allocation10 + $0xfc0] sm:$0xff]
        %v3320 = vld [vmem:[#allocation10 + $0xfc8] sm:$0xff]
        %v3321 = vld [vmem:[#allocation10 + $0xfd0] sm:$0xff]
        %v3322 = vld [vmem:[#allocation10 + $0xfd8] sm:$0xff]
        %v3323 = vld [vmem:[#allocation10 + $0xfe0] sm:$0xff]
        %v3324 = vld [vmem:[#allocation10 + $0xfe8] sm:$0xff]
        %v3325 = vld [vmem:[#allocation10 + $0xff0] sm:$0xff]
        %v3326 = vld [vmem:[#allocation10 + $0xff8] sm:$0xff]
        %v3327 = vld [vmem:[#allocation10 + $0x1000] sm:$0xff]
        %v3328 = vld [vmem:[#allocation10 + $0x1008] sm:$0xff]
        %v3329 = vld [vmem:[#allocation10 + $0x1010] sm:$0xff]
        %v3330 = vld [vmem:[#allocation10 + $0x1018] sm:$0xff]
        %v3331 = vld [vmem:[#allocation10 + $0x1020] sm:$0xff]
        %v3332 = vld [vmem:[#allocation10 + $0x1028] sm:$0xff]
        %v3333 = vld [vmem:[#allocation10 + $0x1030] sm:$0xff]
        %v3334 = vld [vmem:[#allocation10 + $0x1038] sm:$0xff]
        %v3335 = vld [vmem:[#allocation10 + $0x1040] sm:$0xff]
        %v3336 = vld [vmem:[#allocation10 + $0x1048] sm:$0xff]
        %v3337 = vld [vmem:[#allocation10 + $0x1050] sm:$0xff]
        %v3338 = vld [vmem:[#allocation10 + $0x1058] sm:$0xff]
        %v3339 = vld [vmem:[#allocation10 + $0x1060] sm:$0xff]
        %v3340 = vld [vmem:[#allocation10 + $0x1068] sm:$0xff]
        %v3341 = vld [vmem:[#allocation10 + $0x1070] sm:$0xff]
        %v3342 = vld [vmem:[#allocation10 + $0x1078] sm:$0xff]
        %v3343 = vld [vmem:[#allocation10 + $0x1080] sm:$0xff]
        %v3344 = vld [vmem:[#allocation10 + $0x1088] sm:$0xff]
        %v3345 = vld [vmem:[#allocation10 + $0x1090] sm:$0xff]
        %v3346 = vld [vmem:[#allocation10 + $0x1098] sm:$0xff]
        %v3347 = vld [vmem:[#allocation10 + $0x10a0] sm:$0xff]
        %v3348 = vld [vmem:[#allocation10 + $0x10a8] sm:$0xff]
        %v3349 = vld [vmem:[#allocation10 + $0x10b0] sm:$0xff]
        %v3350 = vld [vmem:[#allocation10 + $0x10b8] sm:$0xff]
        %v3351 = vld [vmem:[#allocation10 + $0x10c0] sm:$0xff]
        %v3352 = vld [vmem:[#allocation10 + $0x10c8] sm:$0xff]
        %v3353 = vld [vmem:[#allocation10 + $0x10d0] sm:$0xff]
        %v3354 = vld [vmem:[#allocation10 + $0x10d8] sm:$0xff]
        %v3355 = vld [vmem:[#allocation10 + $0x10e0] sm:$0xff]
        %v3356 = vld [vmem:[#allocation10 + $0x10e8] sm:$0xff]
        %v3357 = vld [vmem:[#allocation10 + $0x10f0] sm:$0xff]
        %v3358 = vld [vmem:[#allocation10 + $0x10f8] sm:$0xff]
        %v3359 = vld [vmem:[#allocation10 + $0x1100] sm:$0xff]
        %v3360 = vld [vmem:[#allocation10 + $0x1108] sm:$0xff]
        %v3361 = vld [vmem:[#allocation10 + $0x1110] sm:$0xff]
        %v3362 = vld [vmem:[#allocation10 + $0x1118] sm:$0xff]
        %v3363 = vld [vmem:[#allocation10 + $0x1120] sm:$0xff]
        %v3364 = vld [vmem:[#allocation10 + $0x1128] sm:$0xff]
        %v3365 = vld [vmem:[#allocation10 + $0x1130] sm:$0xff]
        %v3366 = vld [vmem:[#allocation10 + $0x1138] sm:$0xff]
        %v3367 = vld [vmem:[#allocation10 + $0x1140] sm:$0xff]
        %v3368 = vld [vmem:[#allocation10 + $0x1148] sm:$0xff]
        %v3369 = vld [vmem:[#allocation10 + $0x1150] sm:$0xff]
        %v3370 = vld [vmem:[#allocation10 + $0x1158] sm:$0xff]
        %v3371 = vld [vmem:[#allocation10 + $0x1160] sm:$0xff]
        %v3372 = vld [vmem:[#allocation10 + $0x1168] sm:$0xff]
        %v3373 = vld [vmem:[#allocation10 + $0x1170] sm:$0xff]
        %v3374 = vld [vmem:[#allocation10 + $0x1178] sm:$0xff]
        %v3375 = vld [vmem:[#allocation10 + $0x1180] sm:$0xff]
        %v3376 = vld [vmem:[#allocation10 + $0x1188] sm:$0xff]
        %v3377 = vld [vmem:[#allocation10 + $0x1190] sm:$0xff]
        %v3378 = vld [vmem:[#allocation10 + $0x1198] sm:$0xff]
        %v3379 = vld [vmem:[#allocation10 + $0x11a0] sm:$0xff]
        %v3380 = vld [vmem:[#allocation10 + $0x11a8] sm:$0xff]
        %v3381 = vld [vmem:[#allocation10 + $0x11b0] sm:$0xff]
        %v3382 = vld [vmem:[#allocation10 + $0x11b8] sm:$0xff]
        %v3383 = vld [vmem:[#allocation10 + $0x11c0] sm:$0xff]
        %v3384 = vld [vmem:[#allocation10 + $0x11c8] sm:$0xff]
        %v3385 = vld [vmem:[#allocation10 + $0x11d0] sm:$0xff]
        %v3386 = vld [vmem:[#allocation10 + $0x11d8] sm:$0xff]
        %v3387 = vld [vmem:[#allocation10 + $0x11e0] sm:$0xff]
        %v3388 = vld [vmem:[#allocation10 + $0x11e8] sm:$0xff]
        %v3389 = vld [vmem:[#allocation10 + $0x11f0] sm:$0xff]
        %v3390 = vld [vmem:[#allocation10 + $0x11f8] sm:$0xff]
        %v3391 = vld [vmem:[#allocation10 + $0x1200] sm:$0xff]
        %v3392 = vld [vmem:[#allocation10 + $0x1208] sm:$0xff]
        %v3393 = vld [vmem:[#allocation10 + $0x1210] sm:$0xff]
        %v3394 = vld [vmem:[#allocation10 + $0x1218] sm:$0xff]
        %v3395 = vld [vmem:[#allocation10 + $0x1220] sm:$0xff]
        %v3396 = vld [vmem:[#allocation10 + $0x1228] sm:$0xff]
        %v3397 = vld [vmem:[#allocation10 + $0x1230] sm:$0xff]
        %v3398 = vld [vmem:[#allocation10 + $0x1238] sm:$0xff]
        %v3399 = vld [vmem:[#allocation10 + $0x1240] sm:$0xff]
        %v3400 = vld [vmem:[#allocation10 + $0x1248] sm:$0xff]
        %v3401 = vld [vmem:[#allocation10 + $0x1250] sm:$0xff]
        %v3402 = vld [vmem:[#allocation10 + $0x1258] sm:$0xff]
        %v3403 = vld [vmem:[#allocation10 + $0x1260] sm:$0xff]
        %v3404 = vld [vmem:[#allocation10 + $0x1268] sm:$0xff]
        %v3405 = vld [vmem:[#allocation10 + $0x1270] sm:$0xff]
        %v3406 = vld [vmem:[#allocation10 + $0x1278] sm:$0xff]
        %v3407 = vld [vmem:[#allocation10 + $0x1280] sm:$0xff]
        %v3408 = vld [vmem:[#allocation10 + $0x1288] sm:$0xff]
        %v3409 = vld [vmem:[#allocation10 + $0x1290] sm:$0xff]
        %v3410 = vld [vmem:[#allocation10 + $0x1298] sm:$0xff]
        %v3411 = vld [vmem:[#allocation10 + $0x12a0] sm:$0xff]
        %v3412 = vld [vmem:[#allocation10 + $0x12a8] sm:$0xff]
        %v3413 = vld [vmem:[#allocation10 + $0x12b0] sm:$0xff]
        %v3414 = vld [vmem:[#allocation10 + $0x12b8] sm:$0xff]
        %v3415 = vld [vmem:[#allocation10 + $0x12c0] sm:$0xff]
        %v3416 = vld [vmem:[#allocation10 + $0x12c8] sm:$0xff]
        %v3417 = vld [vmem:[#allocation10 + $0x12d0] sm:$0xff]
        %v3418 = vld [vmem:[#allocation10 + $0x12d8] sm:$0xff]
        %v3419 = vld [vmem:[#allocation10 + $0x12e0] sm:$0xff]
        %v3420 = vld [vmem:[#allocation10 + $0x12e8] sm:$0xff]
        %v3421 = vld [vmem:[#allocation10 + $0x12f0] sm:$0xff]
        %v3422 = vld [vmem:[#allocation10 + $0x12f8] sm:$0xff]
        %v3423 = vld [vmem:[#allocation10 + $0x1300] sm:$0xff]
        %v3424 = vld [vmem:[#allocation10 + $0x1308] sm:$0xff]
        %v3425 = vld [vmem:[#allocation10 + $0x1310] sm:$0xff]
        %v3426 = vld [vmem:[#allocation10 + $0x1318] sm:$0xff]
        %v3427 = vld [vmem:[#allocation10 + $0x1320] sm:$0xff]
        %v3428 = vld [vmem:[#allocation10 + $0x1328] sm:$0xff]
        %v3429 = vld [vmem:[#allocation10 + $0x1330] sm:$0xff]
        %v3430 = vld [vmem:[#allocation10 + $0x1338] sm:$0xff]
        %v3431 = vld [vmem:[#allocation10 + $0x1340] sm:$0xff]
        %v3432 = vld [vmem:[#allocation10 + $0x1348] sm:$0xff]
        %v3433 = vld [vmem:[#allocation10 + $0x1350] sm:$0xff]
        %v3434 = vld [vmem:[#allocation10 + $0x1358] sm:$0xff]
        %v3435 = vld [vmem:[#allocation10 + $0x1360] sm:$0xff]
        %v3436 = vld [vmem:[#allocation10 + $0x1368] sm:$0xff]
        %v3437 = vld [vmem:[#allocation10 + $0x1370] sm:$0xff]
        %v3438 = vld [vmem:[#allocation10 + $0x1378] sm:$0xff]
        %v3439 = vld [vmem:[#allocation10 + $0x1380] sm:$0xff]
        %v3440 = vld [vmem:[#allocation10 + $0x1388] sm:$0xff]
        %v3441 = vld [vmem:[#allocation10 + $0x1390] sm:$0xff]
        %v3442 = vld [vmem:[#allocation10 + $0x1398] sm:$0xff]
        %v3443 = vld [vmem:[#allocation10 + $0x13a0] sm:$0xff]
        %v3444 = vld [vmem:[#allocation10 + $0x13a8] sm:$0xff]
        %v3445 = vld [vmem:[#allocation10 + $0x13b0] sm:$0xff]
        %v3446 = vld [vmem:[#allocation10 + $0x13b8] sm:$0xff]
        %v3447 = vld [vmem:[#allocation10 + $0x13c0] sm:$0xff]
        %v3448 = vld [vmem:[#allocation10 + $0x13c8] sm:$0xff]
        %v3449 = vld [vmem:[#allocation10 + $0x13d0] sm:$0xff]
        %v3450 = vld [vmem:[#allocation10 + $0x13d8] sm:$0xff]
        %v3451 = vld [vmem:[#allocation10 + $0x13e0] sm:$0xff]
        %v3452 = vld [vmem:[#allocation10 + $0x13e8] sm:$0xff]
        %v3453 = vld [vmem:[#allocation10 + $0x13f0] sm:$0xff]
        %v3454 = vld [vmem:[#allocation10 + $0x13f8] sm:$0xff]
        %v3455 = vld [vmem:[#allocation10 + $0x1400] sm:$0xff]
        %v3456 = vld [vmem:[#allocation10 + $0x1408] sm:$0xff]
        %v3457 = vld [vmem:[#allocation10 + $0x1410] sm:$0xff]
        %v3458 = vld [vmem:[#allocation10 + $0x1418] sm:$0xff]
        %v3459 = vld [vmem:[#allocation10 + $0x1420] sm:$0xff]
        %v3460 = vld [vmem:[#allocation10 + $0x1428] sm:$0xff]
        %v3461 = vld [vmem:[#allocation10 + $0x1430] sm:$0xff]
        %v3462 = vld [vmem:[#allocation10 + $0x1438] sm:$0xff]
        %v3463 = vld [vmem:[#allocation10 + $0x1440] sm:$0xff]
        %v3464 = vld [vmem:[#allocation10 + $0x1448] sm:$0xff]
        %v3465 = vld [vmem:[#allocation10 + $0x1450] sm:$0xff]
        %v3466 = vld [vmem:[#allocation10 + $0x1458] sm:$0xff]
        %v3467 = vld [vmem:[#allocation10 + $0x1460] sm:$0xff]
        %v3468 = vld [vmem:[#allocation10 + $0x1468] sm:$0xff]
        %v3469 = vld [vmem:[#allocation10 + $0x1470] sm:$0xff]
        %v3470 = vld [vmem:[#allocation10 + $0x1478] sm:$0xff]
        %v3471 = vld [vmem:[#allocation10 + $0x1480] sm:$0xff]
        %v3472 = vld [vmem:[#allocation10 + $0x1488] sm:$0xff]
        %v3473 = vld [vmem:[#allocation10 + $0x1490] sm:$0xff]
        %v3474 = vld [vmem:[#allocation10 + $0x1498] sm:$0xff]
        %v3475 = vld [vmem:[#allocation10 + $0x14a0] sm:$0xff]
        %v3476 = vld [vmem:[#allocation10 + $0x14a8] sm:$0xff]
        %v3477 = vld [vmem:[#allocation10 + $0x14b0] sm:$0xff]
        %v3478 = vld [vmem:[#allocation10 + $0x14b8] sm:$0xff]
        %v3479 = vld [vmem:[#allocation10 + $0x14c0] sm:$0xff]
        %v3480 = vld [vmem:[#allocation10 + $0x14c8] sm:$0xff]
        %v3481 = vld [vmem:[#allocation10 + $0x14d0] sm:$0xff]
        %v3482 = vld [vmem:[#allocation10 + $0x14d8] sm:$0xff]
        %v3483 = vld [vmem:[#allocation10 + $0x14e0] sm:$0xff]
        %v3484 = vld [vmem:[#allocation10 + $0x14e8] sm:$0xff]
        %v3485 = vld [vmem:[#allocation10 + $0x14f0] sm:$0xff]
        %v3486 = vld [vmem:[#allocation10 + $0x14f8] sm:$0xff]
        %v3487 = vld [vmem:[#allocation10 + $0x1500] sm:$0xff]
        %v3488 = vld [vmem:[#allocation10 + $0x1508] sm:$0xff]
        %v3489 = vld [vmem:[#allocation10 + $0x1510] sm:$0xff]
        %v3490 = vld [vmem:[#allocation10 + $0x1518] sm:$0xff]
        %v3491 = vld [vmem:[#allocation10 + $0x1520] sm:$0xff]
        %v3492 = vld [vmem:[#allocation10 + $0x1528] sm:$0xff]
        %v3493 = vld [vmem:[#allocation10 + $0x1530] sm:$0xff]
        %v3494 = vld [vmem:[#allocation10 + $0x1538] sm:$0xff]
        %v3495 = vld [vmem:[#allocation10 + $0x1540] sm:$0xff]
        %v3496 = vld [vmem:[#allocation10 + $0x1548] sm:$0xff]
        %v3497 = vld [vmem:[#allocation10 + $0x1550] sm:$0xff]
        %v3498 = vld [vmem:[#allocation10 + $0x1558] sm:$0xff]
        %v3499 = vld [vmem:[#allocation10 + $0x1560] sm:$0xff]
        %v3500 = vld [vmem:[#allocation10 + $0x1568] sm:$0xff]
        %v3501 = vld [vmem:[#allocation10 + $0x1570] sm:$0xff]
        %v3502 = vld [vmem:[#allocation10 + $0x1578] sm:$0xff]
        %v3503 = vld [vmem:[#allocation10 + $0x1580] sm:$0xff]
        %v3504 = vld [vmem:[#allocation10 + $0x1588] sm:$0xff]
        %v3505 = vld [vmem:[#allocation10 + $0x1590] sm:$0xff]
        %v3506 = vld [vmem:[#allocation10 + $0x1598] sm:$0xff]
        %v3507 = vld [vmem:[#allocation10 + $0x15a0] sm:$0xff]
        %v3508 = vld [vmem:[#allocation10 + $0x15a8] sm:$0xff]
        %v3509 = vld [vmem:[#allocation10 + $0x15b0] sm:$0xff]
        %v3510 = vld [vmem:[#allocation10 + $0x15b8] sm:$0xff]
        %v3511 = vld [vmem:[#allocation10 + $0x15c0] sm:$0xff]
        %v3512 = vld [vmem:[#allocation10 + $0x15c8] sm:$0xff]
        %v3513 = vld [vmem:[#allocation10 + $0x15d0] sm:$0xff]
        %v3514 = vld [vmem:[#allocation10 + $0x15d8] sm:$0xff]
        %v3515 = vld [vmem:[#allocation10 + $0x15e0] sm:$0xff]
        %v3516 = vld [vmem:[#allocation10 + $0x15e8] sm:$0xff]
        %v3517 = vld [vmem:[#allocation10 + $0x15f0] sm:$0xff]
        %v3518 = vld [vmem:[#allocation10 + $0x15f8] sm:$0xff]
        %v3519 = vld [vmem:[#allocation10 + $0x1600] sm:$0xff]
        %v3520 = vld [vmem:[#allocation10 + $0x1608] sm:$0xff]
        %v3521 = vld [vmem:[#allocation10 + $0x1610] sm:$0xff]
        %v3522 = vld [vmem:[#allocation10 + $0x1618] sm:$0xff]
        %v3523 = vld [vmem:[#allocation10 + $0x1620] sm:$0xff]
        %v3524 = vld [vmem:[#allocation10 + $0x1628] sm:$0xff]
        %v3525 = vld [vmem:[#allocation10 + $0x1630] sm:$0xff]
        %v3526 = vld [vmem:[#allocation10 + $0x1638] sm:$0xff]
        %v3527 = vld [vmem:[#allocation10 + $0x1640] sm:$0xff]
        %v3528 = vld [vmem:[#allocation10 + $0x1648] sm:$0xff]
        %v3529 = vld [vmem:[#allocation10 + $0x1650] sm:$0xff]
        %v3530 = vld [vmem:[#allocation10 + $0x1658] sm:$0xff]
        %v3531 = vld [vmem:[#allocation10 + $0x1660] sm:$0xff]
        %v3532 = vld [vmem:[#allocation10 + $0x1668] sm:$0xff]
        %v3533 = vld [vmem:[#allocation10 + $0x1670] sm:$0xff]
        %v3534 = vld [vmem:[#allocation10 + $0x1678] sm:$0xff]
        %v3535 = vld [vmem:[#allocation10 + $0x1680] sm:$0xff]
        %v3536 = vld [vmem:[#allocation10 + $0x1688] sm:$0xff]
        %v3537 = vld [vmem:[#allocation10 + $0x1690] sm:$0xff]
        %v3538 = vld [vmem:[#allocation10 + $0x1698] sm:$0xff]
        %v3539 = vld [vmem:[#allocation10 + $0x16a0] sm:$0xff]
        %v3540 = vld [vmem:[#allocation10 + $0x16a8] sm:$0xff]
        %v3541 = vld [vmem:[#allocation10 + $0x16b0] sm:$0xff]
        %v3542 = vld [vmem:[#allocation10 + $0x16b8] sm:$0xff]
        %v3543 = vld [vmem:[#allocation10 + $0x16c0] sm:$0xff]
        %v3544 = vld [vmem:[#allocation10 + $0x16c8] sm:$0xff]
        %v3545 = vld [vmem:[#allocation10 + $0x16d0] sm:$0xff]
        %v3546 = vld [vmem:[#allocation10 + $0x16d8] sm:$0xff]
        %v3547 = vld [vmem:[#allocation10 + $0x16e0] sm:$0xff]
        %v3548 = vld [vmem:[#allocation10 + $0x16e8] sm:$0xff]
        %v3549 = vld [vmem:[#allocation10 + $0x16f0] sm:$0xff]
        %v3550 = vld [vmem:[#allocation10 + $0x16f8] sm:$0xff]
        %v3551 = vld [vmem:[#allocation10 + $0x1700] sm:$0xff]
        %v3552 = vld [vmem:[#allocation10 + $0x1708] sm:$0xff]
        %v3553 = vld [vmem:[#allocation10 + $0x1710] sm:$0xff]
        %v3554 = vld [vmem:[#allocation10 + $0x1718] sm:$0xff]
        %v3555 = vld [vmem:[#allocation10 + $0x1720] sm:$0xff]
        %v3556 = vld [vmem:[#allocation10 + $0x1728] sm:$0xff]
        %v3557 = vld [vmem:[#allocation10 + $0x1730] sm:$0xff]
        %v3558 = vld [vmem:[#allocation10 + $0x1738] sm:$0xff]
        %v3559 = vld [vmem:[#allocation10 + $0x1740] sm:$0xff]
        %v3560 = vld [vmem:[#allocation10 + $0x1748] sm:$0xff]
        %v3561 = vld [vmem:[#allocation10 + $0x1750] sm:$0xff]
        %v3562 = vld [vmem:[#allocation10 + $0x1758] sm:$0xff]
        %v3563 = vld [vmem:[#allocation10 + $0x1760] sm:$0xff]
        %v3564 = vld [vmem:[#allocation10 + $0x1768] sm:$0xff]
        %v3565 = vld [vmem:[#allocation10 + $0x1770] sm:$0xff]
        %v3566 = vld [vmem:[#allocation10 + $0x1778] sm:$0xff]
        %v3567 = vld [vmem:[#allocation10 + $0x1780] sm:$0xff]
        %v3568 = vld [vmem:[#allocation10 + $0x1788] sm:$0xff]
        %v3569 = vld [vmem:[#allocation10 + $0x1790] sm:$0xff]
        %v3570 = vld [vmem:[#allocation10 + $0x1798] sm:$0xff]
        %v3571 = vld [vmem:[#allocation10 + $0x17a0] sm:$0xff]
        %v3572 = vld [vmem:[#allocation10 + $0x17a8] sm:$0xff]
        %v3573 = vld [vmem:[#allocation10 + $0x17b0] sm:$0xff]
        %v3574 = vld [vmem:[#allocation10 + $0x17b8] sm:$0xff]
        %v3575 = vld [vmem:[#allocation10 + $0x17c0] sm:$0xff]
        %v3576 = vld [vmem:[#allocation10 + $0x17c8] sm:$0xff]
        %v3577 = vld [vmem:[#allocation10 + $0x17d0] sm:$0xff]
        %v3578 = vld [vmem:[#allocation10 + $0x17d8] sm:$0xff]
        %v3579 = vld [vmem:[#allocation10 + $0x17e0] sm:$0xff]
        %v3580 = vld [vmem:[#allocation10 + $0x17e8] sm:$0xff]
        %v3581 = vld [vmem:[#allocation10 + $0x17f0] sm:$0xff]
        %v3582 = vld [vmem:[#allocation10 + $0x17f8] sm:$0xff]
        %v3583 = vld [vmem:[#allocation12] sm:$0xff]
        %v4352 = vunpack.c.l.b16 %v2815
        %v4353 = vunpack.c.h.b16 %v2815
        %v4354 = vunpack.c.l.b16 %v2816
        %v4355 = vunpack.c.h.b16 %v2816
        %v4356 = vunpack.c.l.b16 %v2817
        %v4357 = vunpack.c.h.b16 %v2817
        %v4358 = vunpack.c.l.b16 %v2818
        %v4359 = vunpack.c.h.b16 %v2818
        %v4360 = vunpack.c.l.b16 %v2819
        %v4361 = vunpack.c.h.b16 %v2819
        %v4362 = vunpack.c.l.b16 %v2820
        %v4363 = vunpack.c.h.b16 %v2820
        %v4364 = vunpack.c.l.b16 %v2821
        %v4365 = vunpack.c.h.b16 %v2821
        %v4366 = vunpack.c.l.b16 %v2822
        %v4367 = vunpack.c.h.b16 %v2822
        %v4368 = vunpack.c.l.b16 %v2823
        %v4369 = vunpack.c.h.b16 %v2823
        %v4370 = vunpack.c.l.b16 %v2824
        %v4371 = vunpack.c.h.b16 %v2824
        %v4372 = vunpack.c.l.b16 %v2825
        %v4373 = vunpack.c.h.b16 %v2825
        %v4374 = vunpack.c.l.b16 %v2826
        %v4375 = vunpack.c.h.b16 %v2826
        %v4376 = vunpack.c.l.b16 %v2827
        %v4377 = vunpack.c.h.b16 %v2827
        %v4378 = vunpack.c.l.b16 %v2828
        %v4379 = vunpack.c.h.b16 %v2828
        %v4380 = vunpack.c.l.b16 %v2829
        %v4381 = vunpack.c.h.b16 %v2829
        %v4382 = vunpack.c.l.b16 %v2830
        %v4383 = vunpack.c.h.b16 %v2830
        %v4384 = vunpack.c.l.b16 %v2831
        %v4385 = vunpack.c.h.b16 %v2831
        %v4386 = vunpack.c.l.b16 %v2832
        %v4387 = vunpack.c.h.b16 %v2832
        %v4388 = vunpack.c.l.b16 %v2833
        %v4389 = vunpack.c.h.b16 %v2833
        %v4390 = vunpack.c.l.b16 %v2834
        %v4391 = vunpack.c.h.b16 %v2834
        %v4392 = vunpack.c.l.b16 %v2835
        %v4393 = vunpack.c.h.b16 %v2835
        %v4394 = vunpack.c.l.b16 %v2836
        %v4395 = vunpack.c.h.b16 %v2836
        %v4396 = vunpack.c.l.b16 %v2837
        %v4397 = vunpack.c.h.b16 %v2837
        %v4398 = vunpack.c.l.b16 %v2838
        %v4399 = vunpack.c.h.b16 %v2838
        %v4400 = vunpack.c.l.b16 %v2839
        %v4401 = vunpack.c.h.b16 %v2839
        %v4402 = vunpack.c.l.b16 %v2840
        %v4403 = vunpack.c.h.b16 %v2840
        %v4404 = vunpack.c.l.b16 %v2841
        %v4405 = vunpack.c.h.b16 %v2841
        %v4406 = vunpack.c.l.b16 %v2842
        %v4407 = vunpack.c.h.b16 %v2842
        %v4408 = vunpack.c.l.b16 %v2843
        %v4409 = vunpack.c.h.b16 %v2843
        %v4410 = vunpack.c.l.b16 %v2844
        %v4411 = vunpack.c.h.b16 %v2844
        %v4412 = vunpack.c.l.b16 %v2845
        %v4413 = vunpack.c.h.b16 %v2845
        %v4414 = vunpack.c.l.b16 %v2846
        %v4415 = vunpack.c.h.b16 %v2846
        %v4416 = vunpack.c.l.b16 %v2847
        %v4417 = vunpack.c.h.b16 %v2847
        %v4418 = vunpack.c.l.b16 %v2848
        %v4419 = vunpack.c.h.b16 %v2848
        %v4420 = vunpack.c.l.b16 %v2849
        %v4421 = vunpack.c.h.b16 %v2849
        %v4422 = vunpack.c.l.b16 %v2850
        %v4423 = vunpack.c.h.b16 %v2850
        %v4424 = vunpack.c.l.b16 %v2851
        %v4425 = vunpack.c.h.b16 %v2851
        %v4426 = vunpack.c.l.b16 %v2852
        %v4427 = vunpack.c.h.b16 %v2852
        %v4428 = vunpack.c.l.b16 %v2853
        %v4429 = vunpack.c.h.b16 %v2853
        %v4430 = vunpack.c.l.b16 %v2854
        %v4431 = vunpack.c.h.b16 %v2854
        %v4432 = vunpack.c.l.b16 %v2855
        %v4433 = vunpack.c.h.b16 %v2855
        %v4434 = vunpack.c.l.b16 %v2856
        %v4435 = vunpack.c.h.b16 %v2856
        %v4436 = vunpack.c.l.b16 %v2857
        %v4437 = vunpack.c.h.b16 %v2857
        %v4438 = vunpack.c.l.b16 %v2858
        %v4439 = vunpack.c.h.b16 %v2858
        %v4440 = vunpack.c.l.b16 %v2859
        %v4441 = vunpack.c.h.b16 %v2859
        %v4442 = vunpack.c.l.b16 %v2860
        %v4443 = vunpack.c.h.b16 %v2860
        %v4444 = vunpack.c.l.b16 %v2861
        %v4445 = vunpack.c.h.b16 %v2861
        %v4446 = vunpack.c.l.b16 %v2862
        %v4447 = vunpack.c.h.b16 %v2862
        %v4448 = vunpack.c.l.b16 %v2863
        %v4449 = vunpack.c.h.b16 %v2863
        %v4450 = vunpack.c.l.b16 %v2864
        %v4451 = vunpack.c.h.b16 %v2864
        %v4452 = vunpack.c.l.b16 %v2865
        %v4453 = vunpack.c.h.b16 %v2865
        %v4454 = vunpack.c.l.b16 %v2866
        %v4455 = vunpack.c.h.b16 %v2866
        %v4456 = vunpack.c.l.b16 %v2867
        %v4457 = vunpack.c.h.b16 %v2867
        %v4458 = vunpack.c.l.b16 %v2868
        %v4459 = vunpack.c.h.b16 %v2868
        %v4460 = vunpack.c.l.b16 %v2869
        %v4461 = vunpack.c.h.b16 %v2869
        %v4462 = vunpack.c.l.b16 %v2870
        %v4463 = vunpack.c.h.b16 %v2870
        %v4464 = vunpack.c.l.b16 %v2871
        %v4465 = vunpack.c.h.b16 %v2871
        %v4466 = vunpack.c.l.b16 %v2872
        %v4467 = vunpack.c.h.b16 %v2872
        %v4468 = vunpack.c.l.b16 %v2873
        %v4469 = vunpack.c.h.b16 %v2873
        %v4470 = vunpack.c.l.b16 %v2874
        %v4471 = vunpack.c.h.b16 %v2874
        %v4472 = vunpack.c.l.b16 %v2875
        %v4473 = vunpack.c.h.b16 %v2875
        %v4474 = vunpack.c.l.b16 %v2876
        %v4475 = vunpack.c.h.b16 %v2876
        %v4476 = vunpack.c.l.b16 %v2877
        %v4477 = vunpack.c.h.b16 %v2877
        %v4478 = vunpack.c.l.b16 %v2878
        %v4479 = vunpack.c.h.b16 %v2878
        %v4480 = vunpack.c.l.b16 %v2879
        %v4481 = vunpack.c.h.b16 %v2879
        %v4482 = vunpack.c.l.b16 %v2880
        %v4483 = vunpack.c.h.b16 %v2880
        %v4484 = vunpack.c.l.b16 %v2881
        %v4485 = vunpack.c.h.b16 %v2881
        %v4486 = vunpack.c.l.b16 %v2882
        %v4487 = vunpack.c.h.b16 %v2882
        %v4488 = vunpack.c.l.b16 %v2883
        %v4489 = vunpack.c.h.b16 %v2883
        %v4490 = vunpack.c.l.b16 %v2884
        %v4491 = vunpack.c.h.b16 %v2884
        %v4492 = vunpack.c.l.b16 %v2885
        %v4493 = vunpack.c.h.b16 %v2885
        %v4494 = vunpack.c.l.b16 %v2886
        %v4495 = vunpack.c.h.b16 %v2886
        %v4496 = vunpack.c.l.b16 %v2887
        %v4497 = vunpack.c.h.b16 %v2887
        %v4498 = vunpack.c.l.b16 %v2888
        %v4499 = vunpack.c.h.b16 %v2888
        %v4500 = vunpack.c.l.b16 %v2889
        %v4501 = vunpack.c.h.b16 %v2889
        %v4502 = vunpack.c.l.b16 %v2890
        %v4503 = vunpack.c.h.b16 %v2890
        %v4504 = vunpack.c.l.b16 %v2891
        %v4505 = vunpack.c.h.b16 %v2891
        %v4506 = vunpack.c.l.b16 %v2892
        %v4507 = vunpack.c.h.b16 %v2892
        %v4508 = vunpack.c.l.b16 %v2893
        %v4509 = vunpack.c.h.b16 %v2893
        %v4510 = vunpack.c.l.b16 %v2894
        %v4511 = vunpack.c.h.b16 %v2894
        %v4512 = vunpack.c.l.b16 %v2895
        %v4513 = vunpack.c.h.b16 %v2895
        %v4514 = vunpack.c.l.b16 %v2896
        %v4515 = vunpack.c.h.b16 %v2896
        %v4516 = vunpack.c.l.b16 %v2897
        %v4517 = vunpack.c.h.b16 %v2897
        %v4518 = vunpack.c.l.b16 %v2898
        %v4519 = vunpack.c.h.b16 %v2898
        %v4520 = vunpack.c.l.b16 %v2899
        %v4521 = vunpack.c.h.b16 %v2899
        %v4522 = vunpack.c.l.b16 %v2900
        %v4523 = vunpack.c.h.b16 %v2900
        %v4524 = vunpack.c.l.b16 %v2901
        %v4525 = vunpack.c.h.b16 %v2901
        %v4526 = vunpack.c.l.b16 %v2902
        %v4527 = vunpack.c.h.b16 %v2902
        %v4528 = vunpack.c.l.b16 %v2903
        %v4529 = vunpack.c.h.b16 %v2903
        %v4530 = vunpack.c.l.b16 %v2904
        %v4531 = vunpack.c.h.b16 %v2904
        %v4532 = vunpack.c.l.b16 %v2905
        %v4533 = vunpack.c.h.b16 %v2905
        %v4534 = vunpack.c.l.b16 %v2906
        %v4535 = vunpack.c.h.b16 %v2906
        %v4536 = vunpack.c.l.b16 %v2907
        %v4537 = vunpack.c.h.b16 %v2907
        %v4538 = vunpack.c.l.b16 %v2908
        %v4539 = vunpack.c.h.b16 %v2908
        %v4540 = vunpack.c.l.b16 %v2909
        %v4541 = vunpack.c.h.b16 %v2909
        %v4542 = vunpack.c.l.b16 %v2910
        %v4543 = vunpack.c.h.b16 %v2910
        %v4544 = vunpack.c.l.b16 %v2911
        %v4545 = vunpack.c.h.b16 %v2911
        %v4546 = vunpack.c.l.b16 %v2912
        %v4547 = vunpack.c.h.b16 %v2912
        %v4548 = vunpack.c.l.b16 %v2913
        %v4549 = vunpack.c.h.b16 %v2913
        %v4550 = vunpack.c.l.b16 %v2914
        %v4551 = vunpack.c.h.b16 %v2914
        %v4552 = vunpack.c.l.b16 %v2915
        %v4553 = vunpack.c.h.b16 %v2915
        %v4554 = vunpack.c.l.b16 %v2916
        %v4555 = vunpack.c.h.b16 %v2916
        %v4556 = vunpack.c.l.b16 %v2917
        %v4557 = vunpack.c.h.b16 %v2917
        %v4558 = vunpack.c.l.b16 %v2918
        %v4559 = vunpack.c.h.b16 %v2918
        %v4560 = vunpack.c.l.b16 %v2919
        %v4561 = vunpack.c.h.b16 %v2919
        %v4562 = vunpack.c.l.b16 %v2920
        %v4563 = vunpack.c.h.b16 %v2920
        %v4564 = vunpack.c.l.b16 %v2921
        %v4565 = vunpack.c.h.b16 %v2921
        %v4566 = vunpack.c.l.b16 %v2922
        %v4567 = vunpack.c.h.b16 %v2922
        %v4568 = vunpack.c.l.b16 %v2923
        %v4569 = vunpack.c.h.b16 %v2923
        %v4570 = vunpack.c.l.b16 %v2924
        %v4571 = vunpack.c.h.b16 %v2924
        %v4572 = vunpack.c.l.b16 %v2925
        %v4573 = vunpack.c.h.b16 %v2925
        %v4574 = vunpack.c.l.b16 %v2926
        %v4575 = vunpack.c.h.b16 %v2926
        %v4576 = vunpack.c.l.b16 %v2927
        %v4577 = vunpack.c.h.b16 %v2927
        %v4578 = vunpack.c.l.b16 %v2928
        %v4579 = vunpack.c.h.b16 %v2928
        %v4580 = vunpack.c.l.b16 %v2929
        %v4581 = vunpack.c.h.b16 %v2929
        %v4582 = vunpack.c.l.b16 %v2930
        %v4583 = vunpack.c.h.b16 %v2930
        %v4584 = vunpack.c.l.b16 %v2931
        %v4585 = vunpack.c.h.b16 %v2931
        %v4586 = vunpack.c.l.b16 %v2932
        %v4587 = vunpack.c.h.b16 %v2932
        %v4588 = vunpack.c.l.b16 %v2933
        %v4589 = vunpack.c.h.b16 %v2933
        %v4590 = vunpack.c.l.b16 %v2934
        %v4591 = vunpack.c.h.b16 %v2934
        %v4592 = vunpack.c.l.b16 %v2935
        %v4593 = vunpack.c.h.b16 %v2935
        %v4594 = vunpack.c.l.b16 %v2936
        %v4595 = vunpack.c.h.b16 %v2936
        %v4596 = vunpack.c.l.b16 %v2937
        %v4597 = vunpack.c.h.b16 %v2937
        %v4598 = vunpack.c.l.b16 %v2938
        %v4599 = vunpack.c.h.b16 %v2938
        %v4600 = vunpack.c.l.b16 %v2939
        %v4601 = vunpack.c.h.b16 %v2939
        %v4602 = vunpack.c.l.b16 %v2940
        %v4603 = vunpack.c.h.b16 %v2940
        %v4604 = vunpack.c.l.b16 %v2941
        %v4605 = vunpack.c.h.b16 %v2941
        %v4606 = vunpack.c.l.b16 %v2942
        %v4607 = vunpack.c.h.b16 %v2942
        %v4608 = vunpack.c.l.b16 %v2943
        %v4609 = vunpack.c.h.b16 %v2943
        %v4610 = vunpack.c.l.b16 %v2944
        %v4611 = vunpack.c.h.b16 %v2944
        %v4612 = vunpack.c.l.b16 %v2945
        %v4613 = vunpack.c.h.b16 %v2945
        %v4614 = vunpack.c.l.b16 %v2946
        %v4615 = vunpack.c.h.b16 %v2946
        %v4616 = vunpack.c.l.b16 %v2947
        %v4617 = vunpack.c.h.b16 %v2947
        %v4618 = vunpack.c.l.b16 %v2948
        %v4619 = vunpack.c.h.b16 %v2948
        %v4620 = vunpack.c.l.b16 %v2949
        %v4621 = vunpack.c.h.b16 %v2949
        %v4622 = vunpack.c.l.b16 %v2950
        %v4623 = vunpack.c.h.b16 %v2950
        %v4624 = vunpack.c.l.b16 %v2951
        %v4625 = vunpack.c.h.b16 %v2951
        %v4626 = vunpack.c.l.b16 %v2952
        %v4627 = vunpack.c.h.b16 %v2952
        %v4628 = vunpack.c.l.b16 %v2953
        %v4629 = vunpack.c.h.b16 %v2953
        %v4630 = vunpack.c.l.b16 %v2954
        %v4631 = vunpack.c.h.b16 %v2954
        %v4632 = vunpack.c.l.b16 %v2955
        %v4633 = vunpack.c.h.b16 %v2955
        %v4634 = vunpack.c.l.b16 %v2956
        %v4635 = vunpack.c.h.b16 %v2956
        %v4636 = vunpack.c.l.b16 %v2957
        %v4637 = vunpack.c.h.b16 %v2957
        %v4638 = vunpack.c.l.b16 %v2958
        %v4639 = vunpack.c.h.b16 %v2958
        %v4640 = vunpack.c.l.b16 %v2959
        %v4641 = vunpack.c.h.b16 %v2959
        %v4642 = vunpack.c.l.b16 %v2960
        %v4643 = vunpack.c.h.b16 %v2960
        %v4644 = vunpack.c.l.b16 %v2961
        %v4645 = vunpack.c.h.b16 %v2961
        %v4646 = vunpack.c.l.b16 %v2962
        %v4647 = vunpack.c.h.b16 %v2962
        %v4648 = vunpack.c.l.b16 %v2963
        %v4649 = vunpack.c.h.b16 %v2963
        %v4650 = vunpack.c.l.b16 %v2964
        %v4651 = vunpack.c.h.b16 %v2964
        %v4652 = vunpack.c.l.b16 %v2965
        %v4653 = vunpack.c.h.b16 %v2965
        %v4654 = vunpack.c.l.b16 %v2966
        %v4655 = vunpack.c.h.b16 %v2966
        %v4656 = vunpack.c.l.b16 %v2967
        %v4657 = vunpack.c.h.b16 %v2967
        %v4658 = vunpack.c.l.b16 %v2968
        %v4659 = vunpack.c.h.b16 %v2968
        %v4660 = vunpack.c.l.b16 %v2969
        %v4661 = vunpack.c.h.b16 %v2969
        %v4662 = vunpack.c.l.b16 %v2970
        %v4663 = vunpack.c.h.b16 %v2970
        %v4664 = vunpack.c.l.b16 %v2971
        %v4665 = vunpack.c.h.b16 %v2971
        %v4666 = vunpack.c.l.b16 %v2972
        %v4667 = vunpack.c.h.b16 %v2972
        %v4668 = vunpack.c.l.b16 %v2973
        %v4669 = vunpack.c.h.b16 %v2973
        %v4670 = vunpack.c.l.b16 %v2974
        %v4671 = vunpack.c.h.b16 %v2974
        %v4672 = vunpack.c.l.b16 %v2975
        %v4673 = vunpack.c.h.b16 %v2975
        %v4674 = vunpack.c.l.b16 %v2976
        %v4675 = vunpack.c.h.b16 %v2976
        %v4676 = vunpack.c.l.b16 %v2977
        %v4677 = vunpack.c.h.b16 %v2977
        %v4678 = vunpack.c.l.b16 %v2978
        %v4679 = vunpack.c.h.b16 %v2978
        %v4680 = vunpack.c.l.b16 %v2979
        %v4681 = vunpack.c.h.b16 %v2979
        %v4682 = vunpack.c.l.b16 %v2980
        %v4683 = vunpack.c.h.b16 %v2980
        %v4684 = vunpack.c.l.b16 %v2981
        %v4685 = vunpack.c.h.b16 %v2981
        %v4686 = vunpack.c.l.b16 %v2982
        %v4687 = vunpack.c.h.b16 %v2982
        %v4688 = vunpack.c.l.b16 %v2983
        %v4689 = vunpack.c.h.b16 %v2983
        %v4690 = vunpack.c.l.b16 %v2984
        %v4691 = vunpack.c.h.b16 %v2984
        %v4692 = vunpack.c.l.b16 %v2985
        %v4693 = vunpack.c.h.b16 %v2985
        %v4694 = vunpack.c.l.b16 %v2986
        %v4695 = vunpack.c.h.b16 %v2986
        %v4696 = vunpack.c.l.b16 %v2987
        %v4697 = vunpack.c.h.b16 %v2987
        %v4698 = vunpack.c.l.b16 %v2988
        %v4699 = vunpack.c.h.b16 %v2988
        %v4700 = vunpack.c.l.b16 %v2989
        %v4701 = vunpack.c.h.b16 %v2989
        %v4702 = vunpack.c.l.b16 %v2990
        %v4703 = vunpack.c.h.b16 %v2990
        %v4704 = vunpack.c.l.b16 %v2991
        %v4705 = vunpack.c.h.b16 %v2991
        %v4706 = vunpack.c.l.b16 %v2992
        %v4707 = vunpack.c.h.b16 %v2992
        %v4708 = vunpack.c.l.b16 %v2993
        %v4709 = vunpack.c.h.b16 %v2993
        %v4710 = vunpack.c.l.b16 %v2994
        %v4711 = vunpack.c.h.b16 %v2994
        %v4712 = vunpack.c.l.b16 %v2995
        %v4713 = vunpack.c.h.b16 %v2995
        %v4714 = vunpack.c.l.b16 %v2996
        %v4715 = vunpack.c.h.b16 %v2996
        %v4716 = vunpack.c.l.b16 %v2997
        %v4717 = vunpack.c.h.b16 %v2997
        %v4718 = vunpack.c.l.b16 %v2998
        %v4719 = vunpack.c.h.b16 %v2998
        %v4720 = vunpack.c.l.b16 %v2999
        %v4721 = vunpack.c.h.b16 %v2999
        %v4722 = vunpack.c.l.b16 %v3000
        %v4723 = vunpack.c.h.b16 %v3000
        %v4724 = vunpack.c.l.b16 %v3001
        %v4725 = vunpack.c.h.b16 %v3001
        %v4726 = vunpack.c.l.b16 %v3002
        %v4727 = vunpack.c.h.b16 %v3002
        %v4728 = vunpack.c.l.b16 %v3003
        %v4729 = vunpack.c.h.b16 %v3003
        %v4730 = vunpack.c.l.b16 %v3004
        %v4731 = vunpack.c.h.b16 %v3004
        %v4732 = vunpack.c.l.b16 %v3005
        %v4733 = vunpack.c.h.b16 %v3005
        %v4734 = vunpack.c.l.b16 %v3006
        %v4735 = vunpack.c.h.b16 %v3006
        %v4736 = vunpack.c.l.b16 %v3007
        %v4737 = vunpack.c.h.b16 %v3007
        %v4738 = vunpack.c.l.b16 %v3008
        %v4739 = vunpack.c.h.b16 %v3008
        %v4740 = vunpack.c.l.b16 %v3009
        %v4741 = vunpack.c.h.b16 %v3009
        %v4742 = vunpack.c.l.b16 %v3010
        %v4743 = vunpack.c.h.b16 %v3010
        %v4744 = vunpack.c.l.b16 %v3011
        %v4745 = vunpack.c.h.b16 %v3011
        %v4746 = vunpack.c.l.b16 %v3012
        %v4747 = vunpack.c.h.b16 %v3012
        %v4748 = vunpack.c.l.b16 %v3013
        %v4749 = vunpack.c.h.b16 %v3013
        %v4750 = vunpack.c.l.b16 %v3014
        %v4751 = vunpack.c.h.b16 %v3014
        %v4752 = vunpack.c.l.b16 %v3015
        %v4753 = vunpack.c.h.b16 %v3015
        %v4754 = vunpack.c.l.b16 %v3016
        %v4755 = vunpack.c.h.b16 %v3016
        %v4756 = vunpack.c.l.b16 %v3017
        %v4757 = vunpack.c.h.b16 %v3017
        %v4758 = vunpack.c.l.b16 %v3018
        %v4759 = vunpack.c.h.b16 %v3018
        %v4760 = vunpack.c.l.b16 %v3019
        %v4761 = vunpack.c.h.b16 %v3019
        %v4762 = vunpack.c.l.b16 %v3020
        %v4763 = vunpack.c.h.b16 %v3020
        %v4764 = vunpack.c.l.b16 %v3021
        %v4765 = vunpack.c.h.b16 %v3021
        %v4766 = vunpack.c.l.b16 %v3022
        %v4767 = vunpack.c.h.b16 %v3022
        %v4768 = vunpack.c.l.b16 %v3023
        %v4769 = vunpack.c.h.b16 %v3023
        %v4770 = vunpack.c.l.b16 %v3024
        %v4771 = vunpack.c.h.b16 %v3024
        %v4772 = vunpack.c.l.b16 %v3025
        %v4773 = vunpack.c.h.b16 %v3025
        %v4774 = vunpack.c.l.b16 %v3026
        %v4775 = vunpack.c.h.b16 %v3026
        %v4776 = vunpack.c.l.b16 %v3027
        %v4777 = vunpack.c.h.b16 %v3027
        %v4778 = vunpack.c.l.b16 %v3028
        %v4779 = vunpack.c.h.b16 %v3028
        %v4780 = vunpack.c.l.b16 %v3029
        %v4781 = vunpack.c.h.b16 %v3029
        %v4782 = vunpack.c.l.b16 %v3030
        %v4783 = vunpack.c.h.b16 %v3030
        %v4784 = vunpack.c.l.b16 %v3031
        %v4785 = vunpack.c.h.b16 %v3031
        %v4786 = vunpack.c.l.b16 %v3032
        %v4787 = vunpack.c.h.b16 %v3032
        %v4788 = vunpack.c.l.b16 %v3033
        %v4789 = vunpack.c.h.b16 %v3033
        %v4790 = vunpack.c.l.b16 %v3034
        %v4791 = vunpack.c.h.b16 %v3034
        %v4792 = vunpack.c.l.b16 %v3035
        %v4793 = vunpack.c.h.b16 %v3035
        %v4794 = vunpack.c.l.b16 %v3036
        %v4795 = vunpack.c.h.b16 %v3036
        %v4796 = vunpack.c.l.b16 %v3037
        %v4797 = vunpack.c.h.b16 %v3037
        %v4798 = vunpack.c.l.b16 %v3038
        %v4799 = vunpack.c.h.b16 %v3038
        %v4800 = vunpack.c.l.b16 %v3039
        %v4801 = vunpack.c.h.b16 %v3039
        %v4802 = vunpack.c.l.b16 %v3040
        %v4803 = vunpack.c.h.b16 %v3040
        %v4804 = vunpack.c.l.b16 %v3041
        %v4805 = vunpack.c.h.b16 %v3041
        %v4806 = vunpack.c.l.b16 %v3042
        %v4807 = vunpack.c.h.b16 %v3042
        %v4808 = vunpack.c.l.b16 %v3043
        %v4809 = vunpack.c.h.b16 %v3043
        %v4810 = vunpack.c.l.b16 %v3044
        %v4811 = vunpack.c.h.b16 %v3044
        %v4812 = vunpack.c.l.b16 %v3045
        %v4813 = vunpack.c.h.b16 %v3045
        %v4814 = vunpack.c.l.b16 %v3046
        %v4815 = vunpack.c.h.b16 %v3046
        %v4816 = vunpack.c.l.b16 %v3047
        %v4817 = vunpack.c.h.b16 %v3047
        %v4818 = vunpack.c.l.b16 %v3048
        %v4819 = vunpack.c.h.b16 %v3048
        %v4820 = vunpack.c.l.b16 %v3049
        %v4821 = vunpack.c.h.b16 %v3049
        %v4822 = vunpack.c.l.b16 %v3050
        %v4823 = vunpack.c.h.b16 %v3050
        %v4824 = vunpack.c.l.b16 %v3051
        %v4825 = vunpack.c.h.b16 %v3051
        %v4826 = vunpack.c.l.b16 %v3052
        %v4827 = vunpack.c.h.b16 %v3052
        %v4828 = vunpack.c.l.b16 %v3053
        %v4829 = vunpack.c.h.b16 %v3053
        %v4830 = vunpack.c.l.b16 %v3054
        %v4831 = vunpack.c.h.b16 %v3054
        %v4832 = vunpack.c.l.b16 %v3055
        %v4833 = vunpack.c.h.b16 %v3055
        %v4834 = vunpack.c.l.b16 %v3056
        %v4835 = vunpack.c.h.b16 %v3056
        %v4836 = vunpack.c.l.b16 %v3057
        %v4837 = vunpack.c.h.b16 %v3057
        %v4838 = vunpack.c.l.b16 %v3058
        %v4839 = vunpack.c.h.b16 %v3058
        %v4840 = vunpack.c.l.b16 %v3059
        %v4841 = vunpack.c.h.b16 %v3059
        %v4842 = vunpack.c.l.b16 %v3060
        %v4843 = vunpack.c.h.b16 %v3060
        %v4844 = vunpack.c.l.b16 %v3061
        %v4845 = vunpack.c.h.b16 %v3061
        %v4846 = vunpack.c.l.b16 %v3062
        %v4847 = vunpack.c.h.b16 %v3062
        %v4848 = vunpack.c.l.b16 %v3063
        %v4849 = vunpack.c.h.b16 %v3063
        %v4850 = vunpack.c.l.b16 %v3064
        %v4851 = vunpack.c.h.b16 %v3064
        %v4852 = vunpack.c.l.b16 %v3065
        %v4853 = vunpack.c.h.b16 %v3065
        %v4854 = vunpack.c.l.b16 %v3066
        %v4855 = vunpack.c.h.b16 %v3066
        %v4856 = vunpack.c.l.b16 %v3067
        %v4857 = vunpack.c.h.b16 %v3067
        %v4858 = vunpack.c.l.b16 %v3068
        %v4859 = vunpack.c.h.b16 %v3068
        %v4860 = vunpack.c.l.b16 %v3069
        %v4861 = vunpack.c.h.b16 %v3069
        %v4862 = vunpack.c.l.b16 %v3070
        %v4863 = vunpack.c.h.b16 %v3070
        %v4864 = vunpack.c.l.b16 %v3071
        %v4865 = vunpack.c.h.b16 %v3071
        %v4866 = vunpack.c.l.b16 %v3072
        %v4867 = vunpack.c.h.b16 %v3072
        %v4868 = vunpack.c.l.b16 %v3073
        %v4869 = vunpack.c.h.b16 %v3073
        %v4870 = vunpack.c.l.b16 %v3074
        %v4871 = vunpack.c.h.b16 %v3074
        %v4872 = vunpack.c.l.b16 %v3075
        %v4873 = vunpack.c.h.b16 %v3075
        %v4874 = vunpack.c.l.b16 %v3076
        %v4875 = vunpack.c.h.b16 %v3076
        %v4876 = vunpack.c.l.b16 %v3077
        %v4877 = vunpack.c.h.b16 %v3077
        %v4878 = vunpack.c.l.b16 %v3078
        %v4879 = vunpack.c.h.b16 %v3078
        %v4880 = vunpack.c.l.b16 %v3079
        %v4881 = vunpack.c.h.b16 %v3079
        %v4882 = vunpack.c.l.b16 %v3080
        %v4883 = vunpack.c.h.b16 %v3080
        %v4884 = vunpack.c.l.b16 %v3081
        %v4885 = vunpack.c.h.b16 %v3081
        %v4886 = vunpack.c.l.b16 %v3082
        %v4887 = vunpack.c.h.b16 %v3082
        %v4888 = vunpack.c.l.b16 %v3083
        %v4889 = vunpack.c.h.b16 %v3083
        %v4890 = vunpack.c.l.b16 %v3084
        %v4891 = vunpack.c.h.b16 %v3084
        %v4892 = vunpack.c.l.b16 %v3085
        %v4893 = vunpack.c.h.b16 %v3085
        %v4894 = vunpack.c.l.b16 %v3086
        %v4895 = vunpack.c.h.b16 %v3086
        %v4896 = vunpack.c.l.b16 %v3087
        %v4897 = vunpack.c.h.b16 %v3087
        %v4898 = vunpack.c.l.b16 %v3088
        %v4899 = vunpack.c.h.b16 %v3088
        %v4900 = vunpack.c.l.b16 %v3089
        %v4901 = vunpack.c.h.b16 %v3089
        %v4902 = vunpack.c.l.b16 %v3090
        %v4903 = vunpack.c.h.b16 %v3090
        %v4904 = vunpack.c.l.b16 %v3091
        %v4905 = vunpack.c.h.b16 %v3091
        %v4906 = vunpack.c.l.b16 %v3092
        %v4907 = vunpack.c.h.b16 %v3092
        %v4908 = vunpack.c.l.b16 %v3093
        %v4909 = vunpack.c.h.b16 %v3093
        %v4910 = vunpack.c.l.b16 %v3094
        %v4911 = vunpack.c.h.b16 %v3094
        %v4912 = vunpack.c.l.b16 %v3095
        %v4913 = vunpack.c.h.b16 %v3095
        %v4914 = vunpack.c.l.b16 %v3096
        %v4915 = vunpack.c.h.b16 %v3096
        %v4916 = vunpack.c.l.b16 %v3097
        %v4917 = vunpack.c.h.b16 %v3097
        %v4918 = vunpack.c.l.b16 %v3098
        %v4919 = vunpack.c.h.b16 %v3098
        %v4920 = vunpack.c.l.b16 %v3099
        %v4921 = vunpack.c.h.b16 %v3099
        %v4922 = vunpack.c.l.b16 %v3100
        %v4923 = vunpack.c.h.b16 %v3100
        %v4924 = vunpack.c.l.b16 %v3101
        %v4925 = vunpack.c.h.b16 %v3101
        %v4926 = vunpack.c.l.b16 %v3102
        %v4927 = vunpack.c.h.b16 %v3102
        %v4928 = vunpack.c.l.b16 %v3103
        %v4929 = vunpack.c.h.b16 %v3103
        %v4930 = vunpack.c.l.b16 %v3104
        %v4931 = vunpack.c.h.b16 %v3104
        %v4932 = vunpack.c.l.b16 %v3105
        %v4933 = vunpack.c.h.b16 %v3105
        %v4934 = vunpack.c.l.b16 %v3106
        %v4935 = vunpack.c.h.b16 %v3106
        %v4936 = vunpack.c.l.b16 %v3107
        %v4937 = vunpack.c.h.b16 %v3107
        %v4938 = vunpack.c.l.b16 %v3108
        %v4939 = vunpack.c.h.b16 %v3108
        %v4940 = vunpack.c.l.b16 %v3109
        %v4941 = vunpack.c.h.b16 %v3109
        %v4942 = vunpack.c.l.b16 %v3110
        %v4943 = vunpack.c.h.b16 %v3110
        %v4944 = vunpack.c.l.b16 %v3111
        %v4945 = vunpack.c.h.b16 %v3111
        %v4946 = vunpack.c.l.b16 %v3112
        %v4947 = vunpack.c.h.b16 %v3112
        %v4948 = vunpack.c.l.b16 %v3113
        %v4949 = vunpack.c.h.b16 %v3113
        %v4950 = vunpack.c.l.b16 %v3114
        %v4951 = vunpack.c.h.b16 %v3114
        %v4952 = vunpack.c.l.b16 %v3115
        %v4953 = vunpack.c.h.b16 %v3115
        %v4954 = vunpack.c.l.b16 %v3116
        %v4955 = vunpack.c.h.b16 %v3116
        %v4956 = vunpack.c.l.b16 %v3117
        %v4957 = vunpack.c.h.b16 %v3117
        %v4958 = vunpack.c.l.b16 %v3118
        %v4959 = vunpack.c.h.b16 %v3118
        %v4960 = vunpack.c.l.b16 %v3119
        %v4961 = vunpack.c.h.b16 %v3119
        %v4962 = vunpack.c.l.b16 %v3120
        %v4963 = vunpack.c.h.b16 %v3120
        %v4964 = vunpack.c.l.b16 %v3121
        %v4965 = vunpack.c.h.b16 %v3121
        %v4966 = vunpack.c.l.b16 %v3122
        %v4967 = vunpack.c.h.b16 %v3122
        %v4968 = vunpack.c.l.b16 %v3123
        %v4969 = vunpack.c.h.b16 %v3123
        %v4970 = vunpack.c.l.b16 %v3124
        %v4971 = vunpack.c.h.b16 %v3124
        %v4972 = vunpack.c.l.b16 %v3125
        %v4973 = vunpack.c.h.b16 %v3125
        %v4974 = vunpack.c.l.b16 %v3126
        %v4975 = vunpack.c.h.b16 %v3126
        %v4976 = vunpack.c.l.b16 %v3127
        %v4977 = vunpack.c.h.b16 %v3127
        %v4978 = vunpack.c.l.b16 %v3128
        %v4979 = vunpack.c.h.b16 %v3128
        %v4980 = vunpack.c.l.b16 %v3129
        %v4981 = vunpack.c.h.b16 %v3129
        %v4982 = vunpack.c.l.b16 %v3130
        %v4983 = vunpack.c.h.b16 %v3130
        %v4984 = vunpack.c.l.b16 %v3131
        %v4985 = vunpack.c.h.b16 %v3131
        %v4986 = vunpack.c.l.b16 %v3132
        %v4987 = vunpack.c.h.b16 %v3132
        %v4988 = vunpack.c.l.b16 %v3133
        %v4989 = vunpack.c.h.b16 %v3133
        %v4990 = vunpack.c.l.b16 %v3134
        %v4991 = vunpack.c.h.b16 %v3134
        %v4992 = vunpack.c.l.b16 %v3135
        %v4993 = vunpack.c.h.b16 %v3135
        %v4994 = vunpack.c.l.b16 %v3136
        %v4995 = vunpack.c.h.b16 %v3136
        %v4996 = vunpack.c.l.b16 %v3137
        %v4997 = vunpack.c.h.b16 %v3137
        %v4998 = vunpack.c.l.b16 %v3138
        %v4999 = vunpack.c.h.b16 %v3138
        %v5000 = vunpack.c.l.b16 %v3139
        %v5001 = vunpack.c.h.b16 %v3139
        %v5002 = vunpack.c.l.b16 %v3140
        %v5003 = vunpack.c.h.b16 %v3140
        %v5004 = vunpack.c.l.b16 %v3141
        %v5005 = vunpack.c.h.b16 %v3141
        %v5006 = vunpack.c.l.b16 %v3142
        %v5007 = vunpack.c.h.b16 %v3142
        %v5008 = vunpack.c.l.b16 %v3143
        %v5009 = vunpack.c.h.b16 %v3143
        %v5010 = vunpack.c.l.b16 %v3144
        %v5011 = vunpack.c.h.b16 %v3144
        %v5012 = vunpack.c.l.b16 %v3145
        %v5013 = vunpack.c.h.b16 %v3145
        %v5014 = vunpack.c.l.b16 %v3146
        %v5015 = vunpack.c.h.b16 %v3146
        %v5016 = vunpack.c.l.b16 %v3147
        %v5017 = vunpack.c.h.b16 %v3147
        %v5018 = vunpack.c.l.b16 %v3148
        %v5019 = vunpack.c.h.b16 %v3148
        %v5020 = vunpack.c.l.b16 %v3149
        %v5021 = vunpack.c.h.b16 %v3149
        %v5022 = vunpack.c.l.b16 %v3150
        %v5023 = vunpack.c.h.b16 %v3150
        %v5024 = vunpack.c.l.b16 %v3151
        %v5025 = vunpack.c.h.b16 %v3151
        %v5026 = vunpack.c.l.b16 %v3152
        %v5027 = vunpack.c.h.b16 %v3152
        %v5028 = vunpack.c.l.b16 %v3153
        %v5029 = vunpack.c.h.b16 %v3153
        %v5030 = vunpack.c.l.b16 %v3154
        %v5031 = vunpack.c.h.b16 %v3154
        %v5032 = vunpack.c.l.b16 %v3155
        %v5033 = vunpack.c.h.b16 %v3155
        %v5034 = vunpack.c.l.b16 %v3156
        %v5035 = vunpack.c.h.b16 %v3156
        %v5036 = vunpack.c.l.b16 %v3157
        %v5037 = vunpack.c.h.b16 %v3157
        %v5038 = vunpack.c.l.b16 %v3158
        %v5039 = vunpack.c.h.b16 %v3158
        %v5040 = vunpack.c.l.b16 %v3159
        %v5041 = vunpack.c.h.b16 %v3159
        %v5042 = vunpack.c.l.b16 %v3160
        %v5043 = vunpack.c.h.b16 %v3160
        %v5044 = vunpack.c.l.b16 %v3161
        %v5045 = vunpack.c.h.b16 %v3161
        %v5046 = vunpack.c.l.b16 %v3162
        %v5047 = vunpack.c.h.b16 %v3162
        %v5048 = vunpack.c.l.b16 %v3163
        %v5049 = vunpack.c.h.b16 %v3163
        %v5050 = vunpack.c.l.b16 %v3164
        %v5051 = vunpack.c.h.b16 %v3164
        %v5052 = vunpack.c.l.b16 %v3165
        %v5053 = vunpack.c.h.b16 %v3165
        %v5054 = vunpack.c.l.b16 %v3166
        %v5055 = vunpack.c.h.b16 %v3166
        %v5056 = vunpack.c.l.b16 %v3167
        %v5057 = vunpack.c.h.b16 %v3167
        %v5058 = vunpack.c.l.b16 %v3168
        %v5059 = vunpack.c.h.b16 %v3168
        %v5060 = vunpack.c.l.b16 %v3169
        %v5061 = vunpack.c.h.b16 %v3169
        %v5062 = vunpack.c.l.b16 %v3170
        %v5063 = vunpack.c.h.b16 %v3170
        %v5064 = vunpack.c.l.b16 %v3171
        %v5065 = vunpack.c.h.b16 %v3171
        %v5066 = vunpack.c.l.b16 %v3172
        %v5067 = vunpack.c.h.b16 %v3172
        %v5068 = vunpack.c.l.b16 %v3173
        %v5069 = vunpack.c.h.b16 %v3173
        %v5070 = vunpack.c.l.b16 %v3174
        %v5071 = vunpack.c.h.b16 %v3174
        %v5072 = vunpack.c.l.b16 %v3175
        %v5073 = vunpack.c.h.b16 %v3175
        %v5074 = vunpack.c.l.b16 %v3176
        %v5075 = vunpack.c.h.b16 %v3176
        %v5076 = vunpack.c.l.b16 %v3177
        %v5077 = vunpack.c.h.b16 %v3177
        %v5078 = vunpack.c.l.b16 %v3178
        %v5079 = vunpack.c.h.b16 %v3178
        %v5080 = vunpack.c.l.b16 %v3179
        %v5081 = vunpack.c.h.b16 %v3179
        %v5082 = vunpack.c.l.b16 %v3180
        %v5083 = vunpack.c.h.b16 %v3180
        %v5084 = vunpack.c.l.b16 %v3181
        %v5085 = vunpack.c.h.b16 %v3181
        %v5086 = vunpack.c.l.b16 %v3182
        %v5087 = vunpack.c.h.b16 %v3182
        %v5088 = vunpack.c.l.b16 %v3183
        %v5089 = vunpack.c.h.b16 %v3183
        %v5090 = vunpack.c.l.b16 %v3184
        %v5091 = vunpack.c.h.b16 %v3184
        %v5092 = vunpack.c.l.b16 %v3185
        %v5093 = vunpack.c.h.b16 %v3185
        %v5094 = vunpack.c.l.b16 %v3186
        %v5095 = vunpack.c.h.b16 %v3186
        %v5096 = vunpack.c.l.b16 %v3187
        %v5097 = vunpack.c.h.b16 %v3187
        %v5098 = vunpack.c.l.b16 %v3188
        %v5099 = vunpack.c.h.b16 %v3188
        %v5100 = vunpack.c.l.b16 %v3189
        %v5101 = vunpack.c.h.b16 %v3189
        %v5102 = vunpack.c.l.b16 %v3190
        %v5103 = vunpack.c.h.b16 %v3190
        %v5104 = vunpack.c.l.b16 %v3191
        %v5105 = vunpack.c.h.b16 %v3191
        %v5106 = vunpack.c.l.b16 %v3192
        %v5107 = vunpack.c.h.b16 %v3192
        %v5108 = vunpack.c.l.b16 %v3193
        %v5109 = vunpack.c.h.b16 %v3193
        %v5110 = vunpack.c.l.b16 %v3194
        %v5111 = vunpack.c.h.b16 %v3194
        %v5112 = vunpack.c.l.b16 %v3195
        %v5113 = vunpack.c.h.b16 %v3195
        %v5114 = vunpack.c.l.b16 %v3196
        %v5115 = vunpack.c.h.b16 %v3196
        %v5116 = vunpack.c.l.b16 %v3197
        %v5117 = vunpack.c.h.b16 %v3197
        %v5118 = vunpack.c.l.b16 %v3198
        %v5119 = vunpack.c.h.b16 %v3198
        %v5120 = vunpack.c.l.b16 %v3199
        %v5121 = vunpack.c.h.b16 %v3199
        %v5122 = vunpack.c.l.b16 %v3200
        %v5123 = vunpack.c.h.b16 %v3200
        %v5124 = vunpack.c.l.b16 %v3201
        %v5125 = vunpack.c.h.b16 %v3201
        %v5126 = vunpack.c.l.b16 %v3202
        %v5127 = vunpack.c.h.b16 %v3202
        %v5128 = vunpack.c.l.b16 %v3203
        %v5129 = vunpack.c.h.b16 %v3203
        %v5130 = vunpack.c.l.b16 %v3204
        %v5131 = vunpack.c.h.b16 %v3204
        %v5132 = vunpack.c.l.b16 %v3205
        %v5133 = vunpack.c.h.b16 %v3205
        %v5134 = vunpack.c.l.b16 %v3206
        %v5135 = vunpack.c.h.b16 %v3206
        %v5136 = vunpack.c.l.b16 %v3207
        %v5137 = vunpack.c.h.b16 %v3207
        %v5138 = vunpack.c.l.b16 %v3208
        %v5139 = vunpack.c.h.b16 %v3208
        %v5140 = vunpack.c.l.b16 %v3209
        %v5141 = vunpack.c.h.b16 %v3209
        %v5142 = vunpack.c.l.b16 %v3210
        %v5143 = vunpack.c.h.b16 %v3210
        %v5144 = vunpack.c.l.b16 %v3211
        %v5145 = vunpack.c.h.b16 %v3211
        %v5146 = vunpack.c.l.b16 %v3212
        %v5147 = vunpack.c.h.b16 %v3212
        %v5148 = vunpack.c.l.b16 %v3213
        %v5149 = vunpack.c.h.b16 %v3213
        %v5150 = vunpack.c.l.b16 %v3214
        %v5151 = vunpack.c.h.b16 %v3214
        %v5152 = vunpack.c.l.b16 %v3215
        %v5153 = vunpack.c.h.b16 %v3215
        %v5154 = vunpack.c.l.b16 %v3216
        %v5155 = vunpack.c.h.b16 %v3216
        %v5156 = vunpack.c.l.b16 %v3217
        %v5157 = vunpack.c.h.b16 %v3217
        %v5158 = vunpack.c.l.b16 %v3218
        %v5159 = vunpack.c.h.b16 %v3218
        %v5160 = vunpack.c.l.b16 %v3219
        %v5161 = vunpack.c.h.b16 %v3219
        %v5162 = vunpack.c.l.b16 %v3220
        %v5163 = vunpack.c.h.b16 %v3220
        %v5164 = vunpack.c.l.b16 %v3221
        %v5165 = vunpack.c.h.b16 %v3221
        %v5166 = vunpack.c.l.b16 %v3222
        %v5167 = vunpack.c.h.b16 %v3222
        %v5168 = vunpack.c.l.b16 %v3223
        %v5169 = vunpack.c.h.b16 %v3223
        %v5170 = vunpack.c.l.b16 %v3224
        %v5171 = vunpack.c.h.b16 %v3224
        %v5172 = vunpack.c.l.b16 %v3225
        %v5173 = vunpack.c.h.b16 %v3225
        %v5174 = vunpack.c.l.b16 %v3226
        %v5175 = vunpack.c.h.b16 %v3226
        %v5176 = vunpack.c.l.b16 %v3227
        %v5177 = vunpack.c.h.b16 %v3227
        %v5178 = vunpack.c.l.b16 %v3228
        %v5179 = vunpack.c.h.b16 %v3228
        %v5180 = vunpack.c.l.b16 %v3229
        %v5181 = vunpack.c.h.b16 %v3229
        %v5182 = vunpack.c.l.b16 %v3230
        %v5183 = vunpack.c.h.b16 %v3230
        %v5184 = vunpack.c.l.b16 %v3231
        %v5185 = vunpack.c.h.b16 %v3231
        %v5186 = vunpack.c.l.b16 %v3232
        %v5187 = vunpack.c.h.b16 %v3232
        %v5188 = vunpack.c.l.b16 %v3233
        %v5189 = vunpack.c.h.b16 %v3233
        %v5190 = vunpack.c.l.b16 %v3234
        %v5191 = vunpack.c.h.b16 %v3234
        %v5192 = vunpack.c.l.b16 %v3235
        %v5193 = vunpack.c.h.b16 %v3235
        %v5194 = vunpack.c.l.b16 %v3236
        %v5195 = vunpack.c.h.b16 %v3236
        %v5196 = vunpack.c.l.b16 %v3237
        %v5197 = vunpack.c.h.b16 %v3237
        %v5198 = vunpack.c.l.b16 %v3238
        %v5199 = vunpack.c.h.b16 %v3238
        %v5200 = vunpack.c.l.b16 %v3239
        %v5201 = vunpack.c.h.b16 %v3239
        %v5202 = vunpack.c.l.b16 %v3240
        %v5203 = vunpack.c.h.b16 %v3240
        %v5204 = vunpack.c.l.b16 %v3241
        %v5205 = vunpack.c.h.b16 %v3241
        %v5206 = vunpack.c.l.b16 %v3242
        %v5207 = vunpack.c.h.b16 %v3242
        %v5208 = vunpack.c.l.b16 %v3243
        %v5209 = vunpack.c.h.b16 %v3243
        %v5210 = vunpack.c.l.b16 %v3244
        %v5211 = vunpack.c.h.b16 %v3244
        %v5212 = vunpack.c.l.b16 %v3245
        %v5213 = vunpack.c.h.b16 %v3245
        %v5214 = vunpack.c.l.b16 %v3246
        %v5215 = vunpack.c.h.b16 %v3246
        %v5216 = vunpack.c.l.b16 %v3247
        %v5217 = vunpack.c.h.b16 %v3247
        %v5218 = vunpack.c.l.b16 %v3248
        %v5219 = vunpack.c.h.b16 %v3248
        %v5220 = vunpack.c.l.b16 %v3249
        %v5221 = vunpack.c.h.b16 %v3249
        %v5222 = vunpack.c.l.b16 %v3250
        %v5223 = vunpack.c.h.b16 %v3250
        %v5224 = vunpack.c.l.b16 %v3251
        %v5225 = vunpack.c.h.b16 %v3251
        %v5226 = vunpack.c.l.b16 %v3252
        %v5227 = vunpack.c.h.b16 %v3252
        %v5228 = vunpack.c.l.b16 %v3253
        %v5229 = vunpack.c.h.b16 %v3253
        %v5230 = vunpack.c.l.b16 %v3254
        %v5231 = vunpack.c.h.b16 %v3254
        %v5232 = vunpack.c.l.b16 %v3255
        %v5233 = vunpack.c.h.b16 %v3255
        %v5234 = vunpack.c.l.b16 %v3256
        %v5235 = vunpack.c.h.b16 %v3256
        %v5236 = vunpack.c.l.b16 %v3257
        %v5237 = vunpack.c.h.b16 %v3257
        %v5238 = vunpack.c.l.b16 %v3258
        %v5239 = vunpack.c.h.b16 %v3258
        %v5240 = vunpack.c.l.b16 %v3259
        %v5241 = vunpack.c.h.b16 %v3259
        %v5242 = vunpack.c.l.b16 %v3260
        %v5243 = vunpack.c.h.b16 %v3260
        %v5244 = vunpack.c.l.b16 %v3261
        %v5245 = vunpack.c.h.b16 %v3261
        %v5246 = vunpack.c.l.b16 %v3262
        %v5247 = vunpack.c.h.b16 %v3262
        %v5248 = vunpack.c.l.b16 %v3263
        %v5249 = vunpack.c.h.b16 %v3263
        %v5250 = vunpack.c.l.b16 %v3264
        %v5251 = vunpack.c.h.b16 %v3264
        %v5252 = vunpack.c.l.b16 %v3265
        %v5253 = vunpack.c.h.b16 %v3265
        %v5254 = vunpack.c.l.b16 %v3266
        %v5255 = vunpack.c.h.b16 %v3266
        %v5256 = vunpack.c.l.b16 %v3267
        %v5257 = vunpack.c.h.b16 %v3267
        %v5258 = vunpack.c.l.b16 %v3268
        %v5259 = vunpack.c.h.b16 %v3268
        %v5260 = vunpack.c.l.b16 %v3269
        %v5261 = vunpack.c.h.b16 %v3269
        %v5262 = vunpack.c.l.b16 %v3270
        %v5263 = vunpack.c.h.b16 %v3270
        %v5264 = vunpack.c.l.b16 %v3271
        %v5265 = vunpack.c.h.b16 %v3271
        %v5266 = vunpack.c.l.b16 %v3272
        %v5267 = vunpack.c.h.b16 %v3272
        %v5268 = vunpack.c.l.b16 %v3273
        %v5269 = vunpack.c.h.b16 %v3273
        %v5270 = vunpack.c.l.b16 %v3274
        %v5271 = vunpack.c.h.b16 %v3274
        %v5272 = vunpack.c.l.b16 %v3275
        %v5273 = vunpack.c.h.b16 %v3275
        %v5274 = vunpack.c.l.b16 %v3276
        %v5275 = vunpack.c.h.b16 %v3276
        %v5276 = vunpack.c.l.b16 %v3277
        %v5277 = vunpack.c.h.b16 %v3277
        %v5278 = vunpack.c.l.b16 %v3278
        %v5279 = vunpack.c.h.b16 %v3278
        %v5280 = vunpack.c.l.b16 %v3279
        %v5281 = vunpack.c.h.b16 %v3279
        %v5282 = vunpack.c.l.b16 %v3280
        %v5283 = vunpack.c.h.b16 %v3280
        %v5284 = vunpack.c.l.b16 %v3281
        %v5285 = vunpack.c.h.b16 %v3281
        %v5286 = vunpack.c.l.b16 %v3282
        %v5287 = vunpack.c.h.b16 %v3282
        %v5288 = vunpack.c.l.b16 %v3283
        %v5289 = vunpack.c.h.b16 %v3283
        %v5290 = vunpack.c.l.b16 %v3284
        %v5291 = vunpack.c.h.b16 %v3284
        %v5292 = vunpack.c.l.b16 %v3285
        %v5293 = vunpack.c.h.b16 %v3285
        %v5294 = vunpack.c.l.b16 %v3286
        %v5295 = vunpack.c.h.b16 %v3286
        %v5296 = vunpack.c.l.b16 %v3287
        %v5297 = vunpack.c.h.b16 %v3287
        %v5298 = vunpack.c.l.b16 %v3288
        %v5299 = vunpack.c.h.b16 %v3288
        %v5300 = vunpack.c.l.b16 %v3289
        %v5301 = vunpack.c.h.b16 %v3289
        %v5302 = vunpack.c.l.b16 %v3290
        %v5303 = vunpack.c.h.b16 %v3290
        %v5304 = vunpack.c.l.b16 %v3291
        %v5305 = vunpack.c.h.b16 %v3291
        %v5306 = vunpack.c.l.b16 %v3292
        %v5307 = vunpack.c.h.b16 %v3292
        %v5308 = vunpack.c.l.b16 %v3293
        %v5309 = vunpack.c.h.b16 %v3293
        %v5310 = vunpack.c.l.b16 %v3294
        %v5311 = vunpack.c.h.b16 %v3294
        %v5312 = vunpack.c.l.b16 %v3295
        %v5313 = vunpack.c.h.b16 %v3295
        %v5314 = vunpack.c.l.b16 %v3296
        %v5315 = vunpack.c.h.b16 %v3296
        %v5316 = vunpack.c.l.b16 %v3297
        %v5317 = vunpack.c.h.b16 %v3297
        %v5318 = vunpack.c.l.b16 %v3298
        %v5319 = vunpack.c.h.b16 %v3298
        %v5320 = vunpack.c.l.b16 %v3299
        %v5321 = vunpack.c.h.b16 %v3299
        %v5322 = vunpack.c.l.b16 %v3300
        %v5323 = vunpack.c.h.b16 %v3300
        %v5324 = vunpack.c.l.b16 %v3301
        %v5325 = vunpack.c.h.b16 %v3301
        %v5326 = vunpack.c.l.b16 %v3302
        %v5327 = vunpack.c.h.b16 %v3302
        %v5328 = vunpack.c.l.b16 %v3303
        %v5329 = vunpack.c.h.b16 %v3303
        %v5330 = vunpack.c.l.b16 %v3304
        %v5331 = vunpack.c.h.b16 %v3304
        %v5332 = vunpack.c.l.b16 %v3305
        %v5333 = vunpack.c.h.b16 %v3305
        %v5334 = vunpack.c.l.b16 %v3306
        %v5335 = vunpack.c.h.b16 %v3306
        %v5336 = vunpack.c.l.b16 %v3307
        %v5337 = vunpack.c.h.b16 %v3307
        %v5338 = vunpack.c.l.b16 %v3308
        %v5339 = vunpack.c.h.b16 %v3308
        %v5340 = vunpack.c.l.b16 %v3309
        %v5341 = vunpack.c.h.b16 %v3309
        %v5342 = vunpack.c.l.b16 %v3310
        %v5343 = vunpack.c.h.b16 %v3310
        %v5344 = vunpack.c.l.b16 %v3311
        %v5345 = vunpack.c.h.b16 %v3311
        %v5346 = vunpack.c.l.b16 %v3312
        %v5347 = vunpack.c.h.b16 %v3312
        %v5348 = vunpack.c.l.b16 %v3313
        %v5349 = vunpack.c.h.b16 %v3313
        %v5350 = vunpack.c.l.b16 %v3314
        %v5351 = vunpack.c.h.b16 %v3314
        %v5352 = vunpack.c.l.b16 %v3315
        %v5353 = vunpack.c.h.b16 %v3315
        %v5354 = vunpack.c.l.b16 %v3316
        %v5355 = vunpack.c.h.b16 %v3316
        %v5356 = vunpack.c.l.b16 %v3317
        %v5357 = vunpack.c.h.b16 %v3317
        %v5358 = vunpack.c.l.b16 %v3318
        %v5359 = vunpack.c.h.b16 %v3318
        %v5360 = vunpack.c.l.b16 %v3319
        %v5361 = vunpack.c.h.b16 %v3319
        %v5362 = vunpack.c.l.b16 %v3320
        %v5363 = vunpack.c.h.b16 %v3320
        %v5364 = vunpack.c.l.b16 %v3321
        %v5365 = vunpack.c.h.b16 %v3321
        %v5366 = vunpack.c.l.b16 %v3322
        %v5367 = vunpack.c.h.b16 %v3322
        %v5368 = vunpack.c.l.b16 %v3323
        %v5369 = vunpack.c.h.b16 %v3323
        %v5370 = vunpack.c.l.b16 %v3324
        %v5371 = vunpack.c.h.b16 %v3324
        %v5372 = vunpack.c.l.b16 %v3325
        %v5373 = vunpack.c.h.b16 %v3325
        %v5374 = vunpack.c.l.b16 %v3326
        %v5375 = vunpack.c.h.b16 %v3326
        %v5376 = vunpack.c.l.b16 %v3327
        %v5377 = vunpack.c.h.b16 %v3327
        %v5378 = vunpack.c.l.b16 %v3328
        %v5379 = vunpack.c.h.b16 %v3328
        %v5380 = vunpack.c.l.b16 %v3329
        %v5381 = vunpack.c.h.b16 %v3329
        %v5382 = vunpack.c.l.b16 %v3330
        %v5383 = vunpack.c.h.b16 %v3330
        %v5384 = vunpack.c.l.b16 %v3331
        %v5385 = vunpack.c.h.b16 %v3331
        %v5386 = vunpack.c.l.b16 %v3332
        %v5387 = vunpack.c.h.b16 %v3332
        %v5388 = vunpack.c.l.b16 %v3333
        %v5389 = vunpack.c.h.b16 %v3333
        %v5390 = vunpack.c.l.b16 %v3334
        %v5391 = vunpack.c.h.b16 %v3334
        %v5392 = vunpack.c.l.b16 %v3335
        %v5393 = vunpack.c.h.b16 %v3335
        %v5394 = vunpack.c.l.b16 %v3336
        %v5395 = vunpack.c.h.b16 %v3336
        %v5396 = vunpack.c.l.b16 %v3337
        %v5397 = vunpack.c.h.b16 %v3337
        %v5398 = vunpack.c.l.b16 %v3338
        %v5399 = vunpack.c.h.b16 %v3338
        %v5400 = vunpack.c.l.b16 %v3339
        %v5401 = vunpack.c.h.b16 %v3339
        %v5402 = vunpack.c.l.b16 %v3340
        %v5403 = vunpack.c.h.b16 %v3340
        %v5404 = vunpack.c.l.b16 %v3341
        %v5405 = vunpack.c.h.b16 %v3341
        %v5406 = vunpack.c.l.b16 %v3342
        %v5407 = vunpack.c.h.b16 %v3342
        %v5408 = vunpack.c.l.b16 %v3343
        %v5409 = vunpack.c.h.b16 %v3343
        %v5410 = vunpack.c.l.b16 %v3344
        %v5411 = vunpack.c.h.b16 %v3344
        %v5412 = vunpack.c.l.b16 %v3345
        %v5413 = vunpack.c.h.b16 %v3345
        %v5414 = vunpack.c.l.b16 %v3346
        %v5415 = vunpack.c.h.b16 %v3346
        %v5416 = vunpack.c.l.b16 %v3347
        %v5417 = vunpack.c.h.b16 %v3347
        %v5418 = vunpack.c.l.b16 %v3348
        %v5419 = vunpack.c.h.b16 %v3348
        %v5420 = vunpack.c.l.b16 %v3349
        %v5421 = vunpack.c.h.b16 %v3349
        %v5422 = vunpack.c.l.b16 %v3350
        %v5423 = vunpack.c.h.b16 %v3350
        %v5424 = vunpack.c.l.b16 %v3351
        %v5425 = vunpack.c.h.b16 %v3351
        %v5426 = vunpack.c.l.b16 %v3352
        %v5427 = vunpack.c.h.b16 %v3352
        %v5428 = vunpack.c.l.b16 %v3353
        %v5429 = vunpack.c.h.b16 %v3353
        %v5430 = vunpack.c.l.b16 %v3354
        %v5431 = vunpack.c.h.b16 %v3354
        %v5432 = vunpack.c.l.b16 %v3355
        %v5433 = vunpack.c.h.b16 %v3355
        %v5434 = vunpack.c.l.b16 %v3356
        %v5435 = vunpack.c.h.b16 %v3356
        %v5436 = vunpack.c.l.b16 %v3357
        %v5437 = vunpack.c.h.b16 %v3357
        %v5438 = vunpack.c.l.b16 %v3358
        %v5439 = vunpack.c.h.b16 %v3358
        %v5440 = vunpack.c.l.b16 %v3359
        %v5441 = vunpack.c.h.b16 %v3359
        %v5442 = vunpack.c.l.b16 %v3360
        %v5443 = vunpack.c.h.b16 %v3360
        %v5444 = vunpack.c.l.b16 %v3361
        %v5445 = vunpack.c.h.b16 %v3361
        %v5446 = vunpack.c.l.b16 %v3362
        %v5447 = vunpack.c.h.b16 %v3362
        %v5448 = vunpack.c.l.b16 %v3363
        %v5449 = vunpack.c.h.b16 %v3363
        %v5450 = vunpack.c.l.b16 %v3364
        %v5451 = vunpack.c.h.b16 %v3364
        %v5452 = vunpack.c.l.b16 %v3365
        %v5453 = vunpack.c.h.b16 %v3365
        %v5454 = vunpack.c.l.b16 %v3366
        %v5455 = vunpack.c.h.b16 %v3366
        %v5456 = vunpack.c.l.b16 %v3367
        %v5457 = vunpack.c.h.b16 %v3367
        %v5458 = vunpack.c.l.b16 %v3368
        %v5459 = vunpack.c.h.b16 %v3368
        %v5460 = vunpack.c.l.b16 %v3369
        %v5461 = vunpack.c.h.b16 %v3369
        %v5462 = vunpack.c.l.b16 %v3370
        %v5463 = vunpack.c.h.b16 %v3370
        %v5464 = vunpack.c.l.b16 %v3371
        %v5465 = vunpack.c.h.b16 %v3371
        %v5466 = vunpack.c.l.b16 %v3372
        %v5467 = vunpack.c.h.b16 %v3372
        %v5468 = vunpack.c.l.b16 %v3373
        %v5469 = vunpack.c.h.b16 %v3373
        %v5470 = vunpack.c.l.b16 %v3374
        %v5471 = vunpack.c.h.b16 %v3374
        %v5472 = vunpack.c.l.b16 %v3375
        %v5473 = vunpack.c.h.b16 %v3375
        %v5474 = vunpack.c.l.b16 %v3376
        %v5475 = vunpack.c.h.b16 %v3376
        %v5476 = vunpack.c.l.b16 %v3377
        %v5477 = vunpack.c.h.b16 %v3377
        %v5478 = vunpack.c.l.b16 %v3378
        %v5479 = vunpack.c.h.b16 %v3378
        %v5480 = vunpack.c.l.b16 %v3379
        %v5481 = vunpack.c.h.b16 %v3379
        %v5482 = vunpack.c.l.b16 %v3380
        %v5483 = vunpack.c.h.b16 %v3380
        %v5484 = vunpack.c.l.b16 %v3381
        %v5485 = vunpack.c.h.b16 %v3381
        %v5486 = vunpack.c.l.b16 %v3382
        %v5487 = vunpack.c.h.b16 %v3382
        %v5488 = vunpack.c.l.b16 %v3383
        %v5489 = vunpack.c.h.b16 %v3383
        %v5490 = vunpack.c.l.b16 %v3384
        %v5491 = vunpack.c.h.b16 %v3384
        %v5492 = vunpack.c.l.b16 %v3385
        %v5493 = vunpack.c.h.b16 %v3385
        %v5494 = vunpack.c.l.b16 %v3386
        %v5495 = vunpack.c.h.b16 %v3386
        %v5496 = vunpack.c.l.b16 %v3387
        %v5497 = vunpack.c.h.b16 %v3387
        %v5498 = vunpack.c.l.b16 %v3388
        %v5499 = vunpack.c.h.b16 %v3388
        %v5500 = vunpack.c.l.b16 %v3389
        %v5501 = vunpack.c.h.b16 %v3389
        %v5502 = vunpack.c.l.b16 %v3390
        %v5503 = vunpack.c.h.b16 %v3390
        %v5504 = vunpack.c.l.b16 %v3391
        %v5505 = vunpack.c.h.b16 %v3391
        %v5506 = vunpack.c.l.b16 %v3392
        %v5507 = vunpack.c.h.b16 %v3392
        %v5508 = vunpack.c.l.b16 %v3393
        %v5509 = vunpack.c.h.b16 %v3393
        %v5510 = vunpack.c.l.b16 %v3394
        %v5511 = vunpack.c.h.b16 %v3394
        %v5512 = vunpack.c.l.b16 %v3395
        %v5513 = vunpack.c.h.b16 %v3395
        %v5514 = vunpack.c.l.b16 %v3396
        %v5515 = vunpack.c.h.b16 %v3396
        %v5516 = vunpack.c.l.b16 %v3397
        %v5517 = vunpack.c.h.b16 %v3397
        %v5518 = vunpack.c.l.b16 %v3398
        %v5519 = vunpack.c.h.b16 %v3398
        %v5520 = vunpack.c.l.b16 %v3399
        %v5521 = vunpack.c.h.b16 %v3399
        %v5522 = vunpack.c.l.b16 %v3400
        %v5523 = vunpack.c.h.b16 %v3400
        %v5524 = vunpack.c.l.b16 %v3401
        %v5525 = vunpack.c.h.b16 %v3401
        %v5526 = vunpack.c.l.b16 %v3402
        %v5527 = vunpack.c.h.b16 %v3402
        %v5528 = vunpack.c.l.b16 %v3403
        %v5529 = vunpack.c.h.b16 %v3403
        %v5530 = vunpack.c.l.b16 %v3404
        %v5531 = vunpack.c.h.b16 %v3404
        %v5532 = vunpack.c.l.b16 %v3405
        %v5533 = vunpack.c.h.b16 %v3405
        %v5534 = vunpack.c.l.b16 %v3406
        %v5535 = vunpack.c.h.b16 %v3406
        %v5536 = vunpack.c.l.b16 %v3407
        %v5537 = vunpack.c.h.b16 %v3407
        %v5538 = vunpack.c.l.b16 %v3408
        %v5539 = vunpack.c.h.b16 %v3408
        %v5540 = vunpack.c.l.b16 %v3409
        %v5541 = vunpack.c.h.b16 %v3409
        %v5542 = vunpack.c.l.b16 %v3410
        %v5543 = vunpack.c.h.b16 %v3410
        %v5544 = vunpack.c.l.b16 %v3411
        %v5545 = vunpack.c.h.b16 %v3411
        %v5546 = vunpack.c.l.b16 %v3412
        %v5547 = vunpack.c.h.b16 %v3412
        %v5548 = vunpack.c.l.b16 %v3413
        %v5549 = vunpack.c.h.b16 %v3413
        %v5550 = vunpack.c.l.b16 %v3414
        %v5551 = vunpack.c.h.b16 %v3414
        %v5552 = vunpack.c.l.b16 %v3415
        %v5553 = vunpack.c.h.b16 %v3415
        %v5554 = vunpack.c.l.b16 %v3416
        %v5555 = vunpack.c.h.b16 %v3416
        %v5556 = vunpack.c.l.b16 %v3417
        %v5557 = vunpack.c.h.b16 %v3417
        %v5558 = vunpack.c.l.b16 %v3418
        %v5559 = vunpack.c.h.b16 %v3418
        %v5560 = vunpack.c.l.b16 %v3419
        %v5561 = vunpack.c.h.b16 %v3419
        %v5562 = vunpack.c.l.b16 %v3420
        %v5563 = vunpack.c.h.b16 %v3420
        %v5564 = vunpack.c.l.b16 %v3421
        %v5565 = vunpack.c.h.b16 %v3421
        %v5566 = vunpack.c.l.b16 %v3422
        %v5567 = vunpack.c.h.b16 %v3422
        %v5568 = vunpack.c.l.b16 %v3423
        %v5569 = vunpack.c.h.b16 %v3423
        %v5570 = vunpack.c.l.b16 %v3424
        %v5571 = vunpack.c.h.b16 %v3424
        %v5572 = vunpack.c.l.b16 %v3425
        %v5573 = vunpack.c.h.b16 %v3425
        %v5574 = vunpack.c.l.b16 %v3426
        %v5575 = vunpack.c.h.b16 %v3426
        %v5576 = vunpack.c.l.b16 %v3427
        %v5577 = vunpack.c.h.b16 %v3427
        %v5578 = vunpack.c.l.b16 %v3428
        %v5579 = vunpack.c.h.b16 %v3428
        %v5580 = vunpack.c.l.b16 %v3429
        %v5581 = vunpack.c.h.b16 %v3429
        %v5582 = vunpack.c.l.b16 %v3430
        %v5583 = vunpack.c.h.b16 %v3430
        %v5584 = vunpack.c.l.b16 %v3431
        %v5585 = vunpack.c.h.b16 %v3431
        %v5586 = vunpack.c.l.b16 %v3432
        %v5587 = vunpack.c.h.b16 %v3432
        %v5588 = vunpack.c.l.b16 %v3433
        %v5589 = vunpack.c.h.b16 %v3433
        %v5590 = vunpack.c.l.b16 %v3434
        %v5591 = vunpack.c.h.b16 %v3434
        %v5592 = vunpack.c.l.b16 %v3435
        %v5593 = vunpack.c.h.b16 %v3435
        %v5594 = vunpack.c.l.b16 %v3436
        %v5595 = vunpack.c.h.b16 %v3436
        %v5596 = vunpack.c.l.b16 %v3437
        %v5597 = vunpack.c.h.b16 %v3437
        %v5598 = vunpack.c.l.b16 %v3438
        %v5599 = vunpack.c.h.b16 %v3438
        %v5600 = vunpack.c.l.b16 %v3439
        %v5601 = vunpack.c.h.b16 %v3439
        %v5602 = vunpack.c.l.b16 %v3440
        %v5603 = vunpack.c.h.b16 %v3440
        %v5604 = vunpack.c.l.b16 %v3441
        %v5605 = vunpack.c.h.b16 %v3441
        %v5606 = vunpack.c.l.b16 %v3442
        %v5607 = vunpack.c.h.b16 %v3442
        %v5608 = vunpack.c.l.b16 %v3443
        %v5609 = vunpack.c.h.b16 %v3443
        %v5610 = vunpack.c.l.b16 %v3444
        %v5611 = vunpack.c.h.b16 %v3444
        %v5612 = vunpack.c.l.b16 %v3445
        %v5613 = vunpack.c.h.b16 %v3445
        %v5614 = vunpack.c.l.b16 %v3446
        %v5615 = vunpack.c.h.b16 %v3446
        %v5616 = vunpack.c.l.b16 %v3447
        %v5617 = vunpack.c.h.b16 %v3447
        %v5618 = vunpack.c.l.b16 %v3448
        %v5619 = vunpack.c.h.b16 %v3448
        %v5620 = vunpack.c.l.b16 %v3449
        %v5621 = vunpack.c.h.b16 %v3449
        %v5622 = vunpack.c.l.b16 %v3450
        %v5623 = vunpack.c.h.b16 %v3450
        %v5624 = vunpack.c.l.b16 %v3451
        %v5625 = vunpack.c.h.b16 %v3451
        %v5626 = vunpack.c.l.b16 %v3452
        %v5627 = vunpack.c.h.b16 %v3452
        %v5628 = vunpack.c.l.b16 %v3453
        %v5629 = vunpack.c.h.b16 %v3453
        %v5630 = vunpack.c.l.b16 %v3454
        %v5631 = vunpack.c.h.b16 %v3454
        %v5632 = vunpack.c.l.b16 %v3455
        %v5633 = vunpack.c.h.b16 %v3455
        %v5634 = vunpack.c.l.b16 %v3456
        %v5635 = vunpack.c.h.b16 %v3456
        %v5636 = vunpack.c.l.b16 %v3457
        %v5637 = vunpack.c.h.b16 %v3457
        %v5638 = vunpack.c.l.b16 %v3458
        %v5639 = vunpack.c.h.b16 %v3458
        %v5640 = vunpack.c.l.b16 %v3459
        %v5641 = vunpack.c.h.b16 %v3459
        %v5642 = vunpack.c.l.b16 %v3460
        %v5643 = vunpack.c.h.b16 %v3460
        %v5644 = vunpack.c.l.b16 %v3461
        %v5645 = vunpack.c.h.b16 %v3461
        %v5646 = vunpack.c.l.b16 %v3462
        %v5647 = vunpack.c.h.b16 %v3462
        %v5648 = vunpack.c.l.b16 %v3463
        %v5649 = vunpack.c.h.b16 %v3463
        %v5650 = vunpack.c.l.b16 %v3464
        %v5651 = vunpack.c.h.b16 %v3464
        %v5652 = vunpack.c.l.b16 %v3465
        %v5653 = vunpack.c.h.b16 %v3465
        %v5654 = vunpack.c.l.b16 %v3466
        %v5655 = vunpack.c.h.b16 %v3466
        %v5656 = vunpack.c.l.b16 %v3467
        %v5657 = vunpack.c.h.b16 %v3467
        %v5658 = vunpack.c.l.b16 %v3468
        %v5659 = vunpack.c.h.b16 %v3468
        %v5660 = vunpack.c.l.b16 %v3469
        %v5661 = vunpack.c.h.b16 %v3469
        %v5662 = vunpack.c.l.b16 %v3470
        %v5663 = vunpack.c.h.b16 %v3470
        %v5664 = vunpack.c.l.b16 %v3471
        %v5665 = vunpack.c.h.b16 %v3471
        %v5666 = vunpack.c.l.b16 %v3472
        %v5667 = vunpack.c.h.b16 %v3472
        %v5668 = vunpack.c.l.b16 %v3473
        %v5669 = vunpack.c.h.b16 %v3473
        %v5670 = vunpack.c.l.b16 %v3474
        %v5671 = vunpack.c.h.b16 %v3474
        %v5672 = vunpack.c.l.b16 %v3475
        %v5673 = vunpack.c.h.b16 %v3475
        %v5674 = vunpack.c.l.b16 %v3476
        %v5675 = vunpack.c.h.b16 %v3476
        %v5676 = vunpack.c.l.b16 %v3477
        %v5677 = vunpack.c.h.b16 %v3477
        %v5678 = vunpack.c.l.b16 %v3478
        %v5679 = vunpack.c.h.b16 %v3478
        %v5680 = vunpack.c.l.b16 %v3479
        %v5681 = vunpack.c.h.b16 %v3479
        %v5682 = vunpack.c.l.b16 %v3480
        %v5683 = vunpack.c.h.b16 %v3480
        %v5684 = vunpack.c.l.b16 %v3481
        %v5685 = vunpack.c.h.b16 %v3481
        %v5686 = vunpack.c.l.b16 %v3482
        %v5687 = vunpack.c.h.b16 %v3482
        %v5688 = vunpack.c.l.b16 %v3483
        %v5689 = vunpack.c.h.b16 %v3483
        %v5690 = vunpack.c.l.b16 %v3484
        %v5691 = vunpack.c.h.b16 %v3484
        %v5692 = vunpack.c.l.b16 %v3485
        %v5693 = vunpack.c.h.b16 %v3485
        %v5694 = vunpack.c.l.b16 %v3486
        %v5695 = vunpack.c.h.b16 %v3486
        %v5696 = vunpack.c.l.b16 %v3487
        %v5697 = vunpack.c.h.b16 %v3487
        %v5698 = vunpack.c.l.b16 %v3488
        %v5699 = vunpack.c.h.b16 %v3488
        %v5700 = vunpack.c.l.b16 %v3489
        %v5701 = vunpack.c.h.b16 %v3489
        %v5702 = vunpack.c.l.b16 %v3490
        %v5703 = vunpack.c.h.b16 %v3490
        %v5704 = vunpack.c.l.b16 %v3491
        %v5705 = vunpack.c.h.b16 %v3491
        %v5706 = vunpack.c.l.b16 %v3492
        %v5707 = vunpack.c.h.b16 %v3492
        %v5708 = vunpack.c.l.b16 %v3493
        %v5709 = vunpack.c.h.b16 %v3493
        %v5710 = vunpack.c.l.b16 %v3494
        %v5711 = vunpack.c.h.b16 %v3494
        %v5712 = vunpack.c.l.b16 %v3495
        %v5713 = vunpack.c.h.b16 %v3495
        %v5714 = vunpack.c.l.b16 %v3496
        %v5715 = vunpack.c.h.b16 %v3496
        %v5716 = vunpack.c.l.b16 %v3497
        %v5717 = vunpack.c.h.b16 %v3497
        %v5718 = vunpack.c.l.b16 %v3498
        %v5719 = vunpack.c.h.b16 %v3498
        %v5720 = vunpack.c.l.b16 %v3499
        %v5721 = vunpack.c.h.b16 %v3499
        %v5722 = vunpack.c.l.b16 %v3500
        %v5723 = vunpack.c.h.b16 %v3500
        %v5724 = vunpack.c.l.b16 %v3501
        %v5725 = vunpack.c.h.b16 %v3501
        %v5726 = vunpack.c.l.b16 %v3502
        %v5727 = vunpack.c.h.b16 %v3502
        %v5728 = vunpack.c.l.b16 %v3503
        %v5729 = vunpack.c.h.b16 %v3503
        %v5730 = vunpack.c.l.b16 %v3504
        %v5731 = vunpack.c.h.b16 %v3504
        %v5732 = vunpack.c.l.b16 %v3505
        %v5733 = vunpack.c.h.b16 %v3505
        %v5734 = vunpack.c.l.b16 %v3506
        %v5735 = vunpack.c.h.b16 %v3506
        %v5736 = vunpack.c.l.b16 %v3507
        %v5737 = vunpack.c.h.b16 %v3507
        %v5738 = vunpack.c.l.b16 %v3508
        %v5739 = vunpack.c.h.b16 %v3508
        %v5740 = vunpack.c.l.b16 %v3509
        %v5741 = vunpack.c.h.b16 %v3509
        %v5742 = vunpack.c.l.b16 %v3510
        %v5743 = vunpack.c.h.b16 %v3510
        %v5744 = vunpack.c.l.b16 %v3511
        %v5745 = vunpack.c.h.b16 %v3511
        %v5746 = vunpack.c.l.b16 %v3512
        %v5747 = vunpack.c.h.b16 %v3512
        %v5748 = vunpack.c.l.b16 %v3513
        %v5749 = vunpack.c.h.b16 %v3513
        %v5750 = vunpack.c.l.b16 %v3514
        %v5751 = vunpack.c.h.b16 %v3514
        %v5752 = vunpack.c.l.b16 %v3515
        %v5753 = vunpack.c.h.b16 %v3515
        %v5754 = vunpack.c.l.b16 %v3516
        %v5755 = vunpack.c.h.b16 %v3516
        %v5756 = vunpack.c.l.b16 %v3517
        %v5757 = vunpack.c.h.b16 %v3517
        %v5758 = vunpack.c.l.b16 %v3518
        %v5759 = vunpack.c.h.b16 %v3518
        %v5760 = vunpack.c.l.b16 %v3519
        %v5761 = vunpack.c.h.b16 %v3519
        %v5762 = vunpack.c.l.b16 %v3520
        %v5763 = vunpack.c.h.b16 %v3520
        %v5764 = vunpack.c.l.b16 %v3521
        %v5765 = vunpack.c.h.b16 %v3521
        %v5766 = vunpack.c.l.b16 %v3522
        %v5767 = vunpack.c.h.b16 %v3522
        %v5768 = vunpack.c.l.b16 %v3523
        %v5769 = vunpack.c.h.b16 %v3523
        %v5770 = vunpack.c.l.b16 %v3524
        %v5771 = vunpack.c.h.b16 %v3524
        %v5772 = vunpack.c.l.b16 %v3525
        %v5773 = vunpack.c.h.b16 %v3525
        %v5774 = vunpack.c.l.b16 %v3526
        %v5775 = vunpack.c.h.b16 %v3526
        %v5776 = vunpack.c.l.b16 %v3527
        %v5777 = vunpack.c.h.b16 %v3527
        %v5778 = vunpack.c.l.b16 %v3528
        %v5779 = vunpack.c.h.b16 %v3528
        %v5780 = vunpack.c.l.b16 %v3529
        %v5781 = vunpack.c.h.b16 %v3529
        %v5782 = vunpack.c.l.b16 %v3530
        %v5783 = vunpack.c.h.b16 %v3530
        %v5784 = vunpack.c.l.b16 %v3531
        %v5785 = vunpack.c.h.b16 %v3531
        %v5786 = vunpack.c.l.b16 %v3532
        %v5787 = vunpack.c.h.b16 %v3532
        %v5788 = vunpack.c.l.b16 %v3533
        %v5789 = vunpack.c.h.b16 %v3533
        %v5790 = vunpack.c.l.b16 %v3534
        %v5791 = vunpack.c.h.b16 %v3534
        %v5792 = vunpack.c.l.b16 %v3535
        %v5793 = vunpack.c.h.b16 %v3535
        %v5794 = vunpack.c.l.b16 %v3536
        %v5795 = vunpack.c.h.b16 %v3536
        %v5796 = vunpack.c.l.b16 %v3537
        %v5797 = vunpack.c.h.b16 %v3537
        %v5798 = vunpack.c.l.b16 %v3538
        %v5799 = vunpack.c.h.b16 %v3538
        %v5800 = vunpack.c.l.b16 %v3539
        %v5801 = vunpack.c.h.b16 %v3539
        %v5802 = vunpack.c.l.b16 %v3540
        %v5803 = vunpack.c.h.b16 %v3540
        %v5804 = vunpack.c.l.b16 %v3541
        %v5805 = vunpack.c.h.b16 %v3541
        %v5806 = vunpack.c.l.b16 %v3542
        %v5807 = vunpack.c.h.b16 %v3542
        %v5808 = vunpack.c.l.b16 %v3543
        %v5809 = vunpack.c.h.b16 %v3543
        %v5810 = vunpack.c.l.b16 %v3544
        %v5811 = vunpack.c.h.b16 %v3544
        %v5812 = vunpack.c.l.b16 %v3545
        %v5813 = vunpack.c.h.b16 %v3545
        %v5814 = vunpack.c.l.b16 %v3546
        %v5815 = vunpack.c.h.b16 %v3546
        %v5816 = vunpack.c.l.b16 %v3547
        %v5817 = vunpack.c.h.b16 %v3547
        %v5818 = vunpack.c.l.b16 %v3548
        %v5819 = vunpack.c.h.b16 %v3548
        %v5820 = vunpack.c.l.b16 %v3549
        %v5821 = vunpack.c.h.b16 %v3549
        %v5822 = vunpack.c.l.b16 %v3550
        %v5823 = vunpack.c.h.b16 %v3550
        %v5824 = vunpack.c.l.b16 %v3551
        %v5825 = vunpack.c.h.b16 %v3551
        %v5826 = vunpack.c.l.b16 %v3552
        %v5827 = vunpack.c.h.b16 %v3552
        %v5828 = vunpack.c.l.b16 %v3553
        %v5829 = vunpack.c.h.b16 %v3553
        %v5830 = vunpack.c.l.b16 %v3554
        %v5831 = vunpack.c.h.b16 %v3554
        %v5832 = vunpack.c.l.b16 %v3555
        %v5833 = vunpack.c.h.b16 %v3555
        %v5834 = vunpack.c.l.b16 %v3556
        %v5835 = vunpack.c.h.b16 %v3556
        %v5836 = vunpack.c.l.b16 %v3557
        %v5837 = vunpack.c.h.b16 %v3557
        %v5838 = vunpack.c.l.b16 %v3558
        %v5839 = vunpack.c.h.b16 %v3558
        %v5840 = vunpack.c.l.b16 %v3559
        %v5841 = vunpack.c.h.b16 %v3559
        %v5842 = vunpack.c.l.b16 %v3560
        %v5843 = vunpack.c.h.b16 %v3560
        %v5844 = vunpack.c.l.b16 %v3561
        %v5845 = vunpack.c.h.b16 %v3561
        %v5846 = vunpack.c.l.b16 %v3562
        %v5847 = vunpack.c.h.b16 %v3562
        %v5848 = vunpack.c.l.b16 %v3563
        %v5849 = vunpack.c.h.b16 %v3563
        %v5850 = vunpack.c.l.b16 %v3564
        %v5851 = vunpack.c.h.b16 %v3564
        %v5852 = vunpack.c.l.b16 %v3565
        %v5853 = vunpack.c.h.b16 %v3565
        %v5854 = vunpack.c.l.b16 %v3566
        %v5855 = vunpack.c.h.b16 %v3566
        %v5856 = vunpack.c.l.b16 %v3567
        %v5857 = vunpack.c.h.b16 %v3567
        %v5858 = vunpack.c.l.b16 %v3568
        %v5859 = vunpack.c.h.b16 %v3568
        %v5860 = vunpack.c.l.b16 %v3569
        %v5861 = vunpack.c.h.b16 %v3569
        %v5862 = vunpack.c.l.b16 %v3570
        %v5863 = vunpack.c.h.b16 %v3570
        %v5864 = vunpack.c.l.b16 %v3571
        %v5865 = vunpack.c.h.b16 %v3571
        %v5866 = vunpack.c.l.b16 %v3572
        %v5867 = vunpack.c.h.b16 %v3572
        %v5868 = vunpack.c.l.b16 %v3573
        %v5869 = vunpack.c.h.b16 %v3573
        %v5870 = vunpack.c.l.b16 %v3574
        %v5871 = vunpack.c.h.b16 %v3574
        %v5872 = vunpack.c.l.b16 %v3575
        %v5873 = vunpack.c.h.b16 %v3575
        %v5874 = vunpack.c.l.b16 %v3576
        %v5875 = vunpack.c.h.b16 %v3576
        %v5876 = vunpack.c.l.b16 %v3577
        %v5877 = vunpack.c.h.b16 %v3577
        %v5878 = vunpack.c.l.b16 %v3578
        %v5879 = vunpack.c.h.b16 %v3578
        %v5880 = vunpack.c.l.b16 %v3579
        %v5881 = vunpack.c.h.b16 %v3579
        %v5882 = vunpack.c.l.b16 %v3580
        %v5883 = vunpack.c.h.b16 %v3580
        %v5884 = vunpack.c.l.b16 %v3581
        %v5885 = vunpack.c.h.b16 %v3581
        %v5886 = vunpack.c.l.b16 %v3582
        %v5887 = vunpack.c.h.b16 %v3582
        %v5888 = vpack.c.b16 %v4360, %v4352
        %v5889 = vpack.c.b16 %v4361, %v4353
        %v5890 = vpack.c.b16 %v4362, %v4354
        %v5891 = vpack.c.b16 %v4363, %v4355
        %v5892 = vpack.c.b16 %v4364, %v4356
        %v5893 = vpack.c.b16 %v4365, %v4357
        %v5894 = vpack.c.b16 %v4366, %v4358
        %v5895 = vpack.c.b16 %v4367, %v4359
        %v5896 = vpack.c.b16 %v4376, %v4368
        %v5897 = vpack.c.b16 %v4377, %v4369
        %v5898 = vpack.c.b16 %v4378, %v4370
        %v5899 = vpack.c.b16 %v4379, %v4371
        %v5900 = vpack.c.b16 %v4380, %v4372
        %v5901 = vpack.c.b16 %v4381, %v4373
        %v5902 = vpack.c.b16 %v4382, %v4374
        %v5903 = vpack.c.b16 %v4383, %v4375
        %v5904 = vpack.c.b16 %v4392, %v4384
        %v5905 = vpack.c.b16 %v4393, %v4385
        %v5906 = vpack.c.b16 %v4394, %v4386
        %v5907 = vpack.c.b16 %v4395, %v4387
        %v5908 = vpack.c.b16 %v4396, %v4388
        %v5909 = vpack.c.b16 %v4397, %v4389
        %v5910 = vpack.c.b16 %v4398, %v4390
        %v5911 = vpack.c.b16 %v4399, %v4391
        %v5912 = vpack.c.b16 %v4408, %v4400
        %v5913 = vpack.c.b16 %v4409, %v4401
        %v5914 = vpack.c.b16 %v4410, %v4402
        %v5915 = vpack.c.b16 %v4411, %v4403
        %v5916 = vpack.c.b16 %v4412, %v4404
        %v5917 = vpack.c.b16 %v4413, %v4405
        %v5918 = vpack.c.b16 %v4414, %v4406
        %v5919 = vpack.c.b16 %v4415, %v4407
        %v5920 = vpack.c.b16 %v4424, %v4416
        %v5921 = vpack.c.b16 %v4425, %v4417
        %v5922 = vpack.c.b16 %v4426, %v4418
        %v5923 = vpack.c.b16 %v4427, %v4419
        %v5924 = vpack.c.b16 %v4428, %v4420
        %v5925 = vpack.c.b16 %v4429, %v4421
        %v5926 = vpack.c.b16 %v4430, %v4422
        %v5927 = vpack.c.b16 %v4431, %v4423
        %v5928 = vpack.c.b16 %v4440, %v4432
        %v5929 = vpack.c.b16 %v4441, %v4433
        %v5930 = vpack.c.b16 %v4442, %v4434
        %v5931 = vpack.c.b16 %v4443, %v4435
        %v5932 = vpack.c.b16 %v4444, %v4436
        %v5933 = vpack.c.b16 %v4445, %v4437
        %v5934 = vpack.c.b16 %v4446, %v4438
        %v5935 = vpack.c.b16 %v4447, %v4439
        %v5936 = vpack.c.b16 %v4456, %v4448
        %v5937 = vpack.c.b16 %v4457, %v4449
        %v5938 = vpack.c.b16 %v4458, %v4450
        %v5939 = vpack.c.b16 %v4459, %v4451
        %v5940 = vpack.c.b16 %v4460, %v4452
        %v5941 = vpack.c.b16 %v4461, %v4453
        %v5942 = vpack.c.b16 %v4462, %v4454
        %v5943 = vpack.c.b16 %v4463, %v4455
        %v5944 = vpack.c.b16 %v4472, %v4464
        %v5945 = vpack.c.b16 %v4473, %v4465
        %v5946 = vpack.c.b16 %v4474, %v4466
        %v5947 = vpack.c.b16 %v4475, %v4467
        %v5948 = vpack.c.b16 %v4476, %v4468
        %v5949 = vpack.c.b16 %v4477, %v4469
        %v5950 = vpack.c.b16 %v4478, %v4470
        %v5951 = vpack.c.b16 %v4479, %v4471
        %v5952 = vpack.c.b16 %v4488, %v4480
        %v5953 = vpack.c.b16 %v4489, %v4481
        %v5954 = vpack.c.b16 %v4490, %v4482
        %v5955 = vpack.c.b16 %v4491, %v4483
        %v5956 = vpack.c.b16 %v4492, %v4484
        %v5957 = vpack.c.b16 %v4493, %v4485
        %v5958 = vpack.c.b16 %v4494, %v4486
        %v5959 = vpack.c.b16 %v4495, %v4487
        %v5960 = vpack.c.b16 %v4504, %v4496
        %v5961 = vpack.c.b16 %v4505, %v4497
        %v5962 = vpack.c.b16 %v4506, %v4498
        %v5963 = vpack.c.b16 %v4507, %v4499
        %v5964 = vpack.c.b16 %v4508, %v4500
        %v5965 = vpack.c.b16 %v4509, %v4501
        %v5966 = vpack.c.b16 %v4510, %v4502
        %v5967 = vpack.c.b16 %v4511, %v4503
        %v5968 = vpack.c.b16 %v4520, %v4512
        %v5969 = vpack.c.b16 %v4521, %v4513
        %v5970 = vpack.c.b16 %v4522, %v4514
        %v5971 = vpack.c.b16 %v4523, %v4515
        %v5972 = vpack.c.b16 %v4524, %v4516
        %v5973 = vpack.c.b16 %v4525, %v4517
        %v5974 = vpack.c.b16 %v4526, %v4518
        %v5975 = vpack.c.b16 %v4527, %v4519
        %v5976 = vpack.c.b16 %v4536, %v4528
        %v5977 = vpack.c.b16 %v4537, %v4529
        %v5978 = vpack.c.b16 %v4538, %v4530
        %v5979 = vpack.c.b16 %v4539, %v4531
        %v5980 = vpack.c.b16 %v4540, %v4532
        %v5981 = vpack.c.b16 %v4541, %v4533
        %v5982 = vpack.c.b16 %v4542, %v4534
        %v5983 = vpack.c.b16 %v4543, %v4535
        %v5984 = vpack.c.b16 %v4552, %v4544
        %v5985 = vpack.c.b16 %v4553, %v4545
        %v5986 = vpack.c.b16 %v4554, %v4546
        %v5987 = vpack.c.b16 %v4555, %v4547
        %v5988 = vpack.c.b16 %v4556, %v4548
        %v5989 = vpack.c.b16 %v4557, %v4549
        %v5990 = vpack.c.b16 %v4558, %v4550
        %v5991 = vpack.c.b16 %v4559, %v4551
        %v5992 = vpack.c.b16 %v4568, %v4560
        %v5993 = vpack.c.b16 %v4569, %v4561
        %v5994 = vpack.c.b16 %v4570, %v4562
        %v5995 = vpack.c.b16 %v4571, %v4563
        %v5996 = vpack.c.b16 %v4572, %v4564
        %v5997 = vpack.c.b16 %v4573, %v4565
        %v5998 = vpack.c.b16 %v4574, %v4566
        %v5999 = vpack.c.b16 %v4575, %v4567
        %v6000 = vpack.c.b16 %v4584, %v4576
        %v6001 = vpack.c.b16 %v4585, %v4577
        %v6002 = vpack.c.b16 %v4586, %v4578
        %v6003 = vpack.c.b16 %v4587, %v4579
        %v6004 = vpack.c.b16 %v4588, %v4580
        %v6005 = vpack.c.b16 %v4589, %v4581
        %v6006 = vpack.c.b16 %v4590, %v4582
        %v6007 = vpack.c.b16 %v4591, %v4583
        %v6008 = vpack.c.b16 %v4600, %v4592
        %v6009 = vpack.c.b16 %v4601, %v4593
        %v6010 = vpack.c.b16 %v4602, %v4594
        %v6011 = vpack.c.b16 %v4603, %v4595
        %v6012 = vpack.c.b16 %v4604, %v4596
        %v6013 = vpack.c.b16 %v4605, %v4597
        %v6014 = vpack.c.b16 %v4606, %v4598
        %v6015 = vpack.c.b16 %v4607, %v4599
        %v6016 = vpack.c.b16 %v4616, %v4608
        %v6017 = vpack.c.b16 %v4617, %v4609
        %v6018 = vpack.c.b16 %v4618, %v4610
        %v6019 = vpack.c.b16 %v4619, %v4611
        %v6020 = vpack.c.b16 %v4620, %v4612
        %v6021 = vpack.c.b16 %v4621, %v4613
        %v6022 = vpack.c.b16 %v4622, %v4614
        %v6023 = vpack.c.b16 %v4623, %v4615
        %v6024 = vpack.c.b16 %v4632, %v4624
        %v6025 = vpack.c.b16 %v4633, %v4625
        %v6026 = vpack.c.b16 %v4634, %v4626
        %v6027 = vpack.c.b16 %v4635, %v4627
        %v6028 = vpack.c.b16 %v4636, %v4628
        %v6029 = vpack.c.b16 %v4637, %v4629
        %v6030 = vpack.c.b16 %v4638, %v4630
        %v6031 = vpack.c.b16 %v4639, %v4631
        %v6032 = vpack.c.b16 %v4648, %v4640
        %v6033 = vpack.c.b16 %v4649, %v4641
        %v6034 = vpack.c.b16 %v4650, %v4642
        %v6035 = vpack.c.b16 %v4651, %v4643
        %v6036 = vpack.c.b16 %v4652, %v4644
        %v6037 = vpack.c.b16 %v4653, %v4645
        %v6038 = vpack.c.b16 %v4654, %v4646
        %v6039 = vpack.c.b16 %v4655, %v4647
        %v6040 = vpack.c.b16 %v4664, %v4656
        %v6041 = vpack.c.b16 %v4665, %v4657
        %v6042 = vpack.c.b16 %v4666, %v4658
        %v6043 = vpack.c.b16 %v4667, %v4659
        %v6044 = vpack.c.b16 %v4668, %v4660
        %v6045 = vpack.c.b16 %v4669, %v4661
        %v6046 = vpack.c.b16 %v4670, %v4662
        %v6047 = vpack.c.b16 %v4671, %v4663
        %v6048 = vpack.c.b16 %v4680, %v4672
        %v6049 = vpack.c.b16 %v4681, %v4673
        %v6050 = vpack.c.b16 %v4682, %v4674
        %v6051 = vpack.c.b16 %v4683, %v4675
        %v6052 = vpack.c.b16 %v4684, %v4676
        %v6053 = vpack.c.b16 %v4685, %v4677
        %v6054 = vpack.c.b16 %v4686, %v4678
        %v6055 = vpack.c.b16 %v4687, %v4679
        %v6056 = vpack.c.b16 %v4696, %v4688
        %v6057 = vpack.c.b16 %v4697, %v4689
        %v6058 = vpack.c.b16 %v4698, %v4690
        %v6059 = vpack.c.b16 %v4699, %v4691
        %v6060 = vpack.c.b16 %v4700, %v4692
        %v6061 = vpack.c.b16 %v4701, %v4693
        %v6062 = vpack.c.b16 %v4702, %v4694
        %v6063 = vpack.c.b16 %v4703, %v4695
        %v6064 = vpack.c.b16 %v4712, %v4704
        %v6065 = vpack.c.b16 %v4713, %v4705
        %v6066 = vpack.c.b16 %v4714, %v4706
        %v6067 = vpack.c.b16 %v4715, %v4707
        %v6068 = vpack.c.b16 %v4716, %v4708
        %v6069 = vpack.c.b16 %v4717, %v4709
        %v6070 = vpack.c.b16 %v4718, %v4710
        %v6071 = vpack.c.b16 %v4719, %v4711
        %v6072 = vpack.c.b16 %v4728, %v4720
        %v6073 = vpack.c.b16 %v4729, %v4721
        %v6074 = vpack.c.b16 %v4730, %v4722
        %v6075 = vpack.c.b16 %v4731, %v4723
        %v6076 = vpack.c.b16 %v4732, %v4724
        %v6077 = vpack.c.b16 %v4733, %v4725
        %v6078 = vpack.c.b16 %v4734, %v4726
        %v6079 = vpack.c.b16 %v4735, %v4727
        %v6080 = vpack.c.b16 %v4744, %v4736
        %v6081 = vpack.c.b16 %v4745, %v4737
        %v6082 = vpack.c.b16 %v4746, %v4738
        %v6083 = vpack.c.b16 %v4747, %v4739
        %v6084 = vpack.c.b16 %v4748, %v4740
        %v6085 = vpack.c.b16 %v4749, %v4741
        %v6086 = vpack.c.b16 %v4750, %v4742
        %v6087 = vpack.c.b16 %v4751, %v4743
        %v6088 = vpack.c.b16 %v4760, %v4752
        %v6089 = vpack.c.b16 %v4761, %v4753
        %v6090 = vpack.c.b16 %v4762, %v4754
        %v6091 = vpack.c.b16 %v4763, %v4755
        %v6092 = vpack.c.b16 %v4764, %v4756
        %v6093 = vpack.c.b16 %v4765, %v4757
        %v6094 = vpack.c.b16 %v4766, %v4758
        %v6095 = vpack.c.b16 %v4767, %v4759
        %v6096 = vpack.c.b16 %v4776, %v4768
        %v6097 = vpack.c.b16 %v4777, %v4769
        %v6098 = vpack.c.b16 %v4778, %v4770
        %v6099 = vpack.c.b16 %v4779, %v4771
        %v6100 = vpack.c.b16 %v4780, %v4772
        %v6101 = vpack.c.b16 %v4781, %v4773
        %v6102 = vpack.c.b16 %v4782, %v4774
        %v6103 = vpack.c.b16 %v4783, %v4775
        %v6104 = vpack.c.b16 %v4792, %v4784
        %v6105 = vpack.c.b16 %v4793, %v4785
        %v6106 = vpack.c.b16 %v4794, %v4786
        %v6107 = vpack.c.b16 %v4795, %v4787
        %v6108 = vpack.c.b16 %v4796, %v4788
        %v6109 = vpack.c.b16 %v4797, %v4789
        %v6110 = vpack.c.b16 %v4798, %v4790
        %v6111 = vpack.c.b16 %v4799, %v4791
        %v6112 = vpack.c.b16 %v4808, %v4800
        %v6113 = vpack.c.b16 %v4809, %v4801
        %v6114 = vpack.c.b16 %v4810, %v4802
        %v6115 = vpack.c.b16 %v4811, %v4803
        %v6116 = vpack.c.b16 %v4812, %v4804
        %v6117 = vpack.c.b16 %v4813, %v4805
        %v6118 = vpack.c.b16 %v4814, %v4806
        %v6119 = vpack.c.b16 %v4815, %v4807
        %v6120 = vpack.c.b16 %v4824, %v4816
        %v6121 = vpack.c.b16 %v4825, %v4817
        %v6122 = vpack.c.b16 %v4826, %v4818
        %v6123 = vpack.c.b16 %v4827, %v4819
        %v6124 = vpack.c.b16 %v4828, %v4820
        %v6125 = vpack.c.b16 %v4829, %v4821
        %v6126 = vpack.c.b16 %v4830, %v4822
        %v6127 = vpack.c.b16 %v4831, %v4823
        %v6128 = vpack.c.b16 %v4840, %v4832
        %v6129 = vpack.c.b16 %v4841, %v4833
        %v6130 = vpack.c.b16 %v4842, %v4834
        %v6131 = vpack.c.b16 %v4843, %v4835
        %v6132 = vpack.c.b16 %v4844, %v4836
        %v6133 = vpack.c.b16 %v4845, %v4837
        %v6134 = vpack.c.b16 %v4846, %v4838
        %v6135 = vpack.c.b16 %v4847, %v4839
        %v6136 = vpack.c.b16 %v4856, %v4848
        %v6137 = vpack.c.b16 %v4857, %v4849
        %v6138 = vpack.c.b16 %v4858, %v4850
        %v6139 = vpack.c.b16 %v4859, %v4851
        %v6140 = vpack.c.b16 %v4860, %v4852
        %v6141 = vpack.c.b16 %v4861, %v4853
        %v6142 = vpack.c.b16 %v4862, %v4854
        %v6143 = vpack.c.b16 %v4863, %v4855
        %v6144 = vpack.c.b16 %v4872, %v4864
        %v6145 = vpack.c.b16 %v4873, %v4865
        %v6146 = vpack.c.b16 %v4874, %v4866
        %v6147 = vpack.c.b16 %v4875, %v4867
        %v6148 = vpack.c.b16 %v4876, %v4868
        %v6149 = vpack.c.b16 %v4877, %v4869
        %v6150 = vpack.c.b16 %v4878, %v4870
        %v6151 = vpack.c.b16 %v4879, %v4871
        %v6152 = vpack.c.b16 %v4888, %v4880
        %v6153 = vpack.c.b16 %v4889, %v4881
        %v6154 = vpack.c.b16 %v4890, %v4882
        %v6155 = vpack.c.b16 %v4891, %v4883
        %v6156 = vpack.c.b16 %v4892, %v4884
        %v6157 = vpack.c.b16 %v4893, %v4885
        %v6158 = vpack.c.b16 %v4894, %v4886
        %v6159 = vpack.c.b16 %v4895, %v4887
        %v6160 = vpack.c.b16 %v4904, %v4896
        %v6161 = vpack.c.b16 %v4905, %v4897
        %v6162 = vpack.c.b16 %v4906, %v4898
        %v6163 = vpack.c.b16 %v4907, %v4899
        %v6164 = vpack.c.b16 %v4908, %v4900
        %v6165 = vpack.c.b16 %v4909, %v4901
        %v6166 = vpack.c.b16 %v4910, %v4902
        %v6167 = vpack.c.b16 %v4911, %v4903
        %v6168 = vpack.c.b16 %v4920, %v4912
        %v6169 = vpack.c.b16 %v4921, %v4913
        %v6170 = vpack.c.b16 %v4922, %v4914
        %v6171 = vpack.c.b16 %v4923, %v4915
        %v6172 = vpack.c.b16 %v4924, %v4916
        %v6173 = vpack.c.b16 %v4925, %v4917
        %v6174 = vpack.c.b16 %v4926, %v4918
        %v6175 = vpack.c.b16 %v4927, %v4919
        %v6176 = vpack.c.b16 %v4936, %v4928
        %v6177 = vpack.c.b16 %v4937, %v4929
        %v6178 = vpack.c.b16 %v4938, %v4930
        %v6179 = vpack.c.b16 %v4939, %v4931
        %v6180 = vpack.c.b16 %v4940, %v4932
        %v6181 = vpack.c.b16 %v4941, %v4933
        %v6182 = vpack.c.b16 %v4942, %v4934
        %v6183 = vpack.c.b16 %v4943, %v4935
        %v6184 = vpack.c.b16 %v4952, %v4944
        %v6185 = vpack.c.b16 %v4953, %v4945
        %v6186 = vpack.c.b16 %v4954, %v4946
        %v6187 = vpack.c.b16 %v4955, %v4947
        %v6188 = vpack.c.b16 %v4956, %v4948
        %v6189 = vpack.c.b16 %v4957, %v4949
        %v6190 = vpack.c.b16 %v4958, %v4950
        %v6191 = vpack.c.b16 %v4959, %v4951
        %v6192 = vpack.c.b16 %v4968, %v4960
        %v6193 = vpack.c.b16 %v4969, %v4961
        %v6194 = vpack.c.b16 %v4970, %v4962
        %v6195 = vpack.c.b16 %v4971, %v4963
        %v6196 = vpack.c.b16 %v4972, %v4964
        %v6197 = vpack.c.b16 %v4973, %v4965
        %v6198 = vpack.c.b16 %v4974, %v4966
        %v6199 = vpack.c.b16 %v4975, %v4967
        %v6200 = vpack.c.b16 %v4984, %v4976
        %v6201 = vpack.c.b16 %v4985, %v4977
        %v6202 = vpack.c.b16 %v4986, %v4978
        %v6203 = vpack.c.b16 %v4987, %v4979
        %v6204 = vpack.c.b16 %v4988, %v4980
        %v6205 = vpack.c.b16 %v4989, %v4981
        %v6206 = vpack.c.b16 %v4990, %v4982
        %v6207 = vpack.c.b16 %v4991, %v4983
        %v6208 = vpack.c.b16 %v5000, %v4992
        %v6209 = vpack.c.b16 %v5001, %v4993
        %v6210 = vpack.c.b16 %v5002, %v4994
        %v6211 = vpack.c.b16 %v5003, %v4995
        %v6212 = vpack.c.b16 %v5004, %v4996
        %v6213 = vpack.c.b16 %v5005, %v4997
        %v6214 = vpack.c.b16 %v5006, %v4998
        %v6215 = vpack.c.b16 %v5007, %v4999
        %v6216 = vpack.c.b16 %v5016, %v5008
        %v6217 = vpack.c.b16 %v5017, %v5009
        %v6218 = vpack.c.b16 %v5018, %v5010
        %v6219 = vpack.c.b16 %v5019, %v5011
        %v6220 = vpack.c.b16 %v5020, %v5012
        %v6221 = vpack.c.b16 %v5021, %v5013
        %v6222 = vpack.c.b16 %v5022, %v5014
        %v6223 = vpack.c.b16 %v5023, %v5015
        %v6224 = vpack.c.b16 %v5032, %v5024
        %v6225 = vpack.c.b16 %v5033, %v5025
        %v6226 = vpack.c.b16 %v5034, %v5026
        %v6227 = vpack.c.b16 %v5035, %v5027
        %v6228 = vpack.c.b16 %v5036, %v5028
        %v6229 = vpack.c.b16 %v5037, %v5029
        %v6230 = vpack.c.b16 %v5038, %v5030
        %v6231 = vpack.c.b16 %v5039, %v5031
        %v6232 = vpack.c.b16 %v5048, %v5040
        %v6233 = vpack.c.b16 %v5049, %v5041
        %v6234 = vpack.c.b16 %v5050, %v5042
        %v6235 = vpack.c.b16 %v5051, %v5043
        %v6236 = vpack.c.b16 %v5052, %v5044
        %v6237 = vpack.c.b16 %v5053, %v5045
        %v6238 = vpack.c.b16 %v5054, %v5046
        %v6239 = vpack.c.b16 %v5055, %v5047
        %v6240 = vpack.c.b16 %v5064, %v5056
        %v6241 = vpack.c.b16 %v5065, %v5057
        %v6242 = vpack.c.b16 %v5066, %v5058
        %v6243 = vpack.c.b16 %v5067, %v5059
        %v6244 = vpack.c.b16 %v5068, %v5060
        %v6245 = vpack.c.b16 %v5069, %v5061
        %v6246 = vpack.c.b16 %v5070, %v5062
        %v6247 = vpack.c.b16 %v5071, %v5063
        %v6248 = vpack.c.b16 %v5080, %v5072
        %v6249 = vpack.c.b16 %v5081, %v5073
        %v6250 = vpack.c.b16 %v5082, %v5074
        %v6251 = vpack.c.b16 %v5083, %v5075
        %v6252 = vpack.c.b16 %v5084, %v5076
        %v6253 = vpack.c.b16 %v5085, %v5077
        %v6254 = vpack.c.b16 %v5086, %v5078
        %v6255 = vpack.c.b16 %v5087, %v5079
        %v6256 = vpack.c.b16 %v5096, %v5088
        %v6257 = vpack.c.b16 %v5097, %v5089
        %v6258 = vpack.c.b16 %v5098, %v5090
        %v6259 = vpack.c.b16 %v5099, %v5091
        %v6260 = vpack.c.b16 %v5100, %v5092
        %v6261 = vpack.c.b16 %v5101, %v5093
        %v6262 = vpack.c.b16 %v5102, %v5094
        %v6263 = vpack.c.b16 %v5103, %v5095
        %v6264 = vpack.c.b16 %v5112, %v5104
        %v6265 = vpack.c.b16 %v5113, %v5105
        %v6266 = vpack.c.b16 %v5114, %v5106
        %v6267 = vpack.c.b16 %v5115, %v5107
        %v6268 = vpack.c.b16 %v5116, %v5108
        %v6269 = vpack.c.b16 %v5117, %v5109
        %v6270 = vpack.c.b16 %v5118, %v5110
        %v6271 = vpack.c.b16 %v5119, %v5111
        %v6272 = vpack.c.b16 %v5128, %v5120
        %v6273 = vpack.c.b16 %v5129, %v5121
        %v6274 = vpack.c.b16 %v5130, %v5122
        %v6275 = vpack.c.b16 %v5131, %v5123
        %v6276 = vpack.c.b16 %v5132, %v5124
        %v6277 = vpack.c.b16 %v5133, %v5125
        %v6278 = vpack.c.b16 %v5134, %v5126
        %v6279 = vpack.c.b16 %v5135, %v5127
        %v6280 = vpack.c.b16 %v5144, %v5136
        %v6281 = vpack.c.b16 %v5145, %v5137
        %v6282 = vpack.c.b16 %v5146, %v5138
        %v6283 = vpack.c.b16 %v5147, %v5139
        %v6284 = vpack.c.b16 %v5148, %v5140
        %v6285 = vpack.c.b16 %v5149, %v5141
        %v6286 = vpack.c.b16 %v5150, %v5142
        %v6287 = vpack.c.b16 %v5151, %v5143
        %v6288 = vpack.c.b16 %v5160, %v5152
        %v6289 = vpack.c.b16 %v5161, %v5153
        %v6290 = vpack.c.b16 %v5162, %v5154
        %v6291 = vpack.c.b16 %v5163, %v5155
        %v6292 = vpack.c.b16 %v5164, %v5156
        %v6293 = vpack.c.b16 %v5165, %v5157
        %v6294 = vpack.c.b16 %v5166, %v5158
        %v6295 = vpack.c.b16 %v5167, %v5159
        %v6296 = vpack.c.b16 %v5176, %v5168
        %v6297 = vpack.c.b16 %v5177, %v5169
        %v6298 = vpack.c.b16 %v5178, %v5170
        %v6299 = vpack.c.b16 %v5179, %v5171
        %v6300 = vpack.c.b16 %v5180, %v5172
        %v6301 = vpack.c.b16 %v5181, %v5173
        %v6302 = vpack.c.b16 %v5182, %v5174
        %v6303 = vpack.c.b16 %v5183, %v5175
        %v6304 = vpack.c.b16 %v5192, %v5184
        %v6305 = vpack.c.b16 %v5193, %v5185
        %v6306 = vpack.c.b16 %v5194, %v5186
        %v6307 = vpack.c.b16 %v5195, %v5187
        %v6308 = vpack.c.b16 %v5196, %v5188
        %v6309 = vpack.c.b16 %v5197, %v5189
        %v6310 = vpack.c.b16 %v5198, %v5190
        %v6311 = vpack.c.b16 %v5199, %v5191
        %v6312 = vpack.c.b16 %v5208, %v5200
        %v6313 = vpack.c.b16 %v5209, %v5201
        %v6314 = vpack.c.b16 %v5210, %v5202
        %v6315 = vpack.c.b16 %v5211, %v5203
        %v6316 = vpack.c.b16 %v5212, %v5204
        %v6317 = vpack.c.b16 %v5213, %v5205
        %v6318 = vpack.c.b16 %v5214, %v5206
        %v6319 = vpack.c.b16 %v5215, %v5207
        %v6320 = vpack.c.b16 %v5224, %v5216
        %v6321 = vpack.c.b16 %v5225, %v5217
        %v6322 = vpack.c.b16 %v5226, %v5218
        %v6323 = vpack.c.b16 %v5227, %v5219
        %v6324 = vpack.c.b16 %v5228, %v5220
        %v6325 = vpack.c.b16 %v5229, %v5221
        %v6326 = vpack.c.b16 %v5230, %v5222
        %v6327 = vpack.c.b16 %v5231, %v5223
        %v6328 = vpack.c.b16 %v5240, %v5232
        %v6329 = vpack.c.b16 %v5241, %v5233
        %v6330 = vpack.c.b16 %v5242, %v5234
        %v6331 = vpack.c.b16 %v5243, %v5235
        %v6332 = vpack.c.b16 %v5244, %v5236
        %v6333 = vpack.c.b16 %v5245, %v5237
        %v6334 = vpack.c.b16 %v5246, %v5238
        %v6335 = vpack.c.b16 %v5247, %v5239
        %v6336 = vpack.c.b16 %v5256, %v5248
        %v6337 = vpack.c.b16 %v5257, %v5249
        %v6338 = vpack.c.b16 %v5258, %v5250
        %v6339 = vpack.c.b16 %v5259, %v5251
        %v6340 = vpack.c.b16 %v5260, %v5252
        %v6341 = vpack.c.b16 %v5261, %v5253
        %v6342 = vpack.c.b16 %v5262, %v5254
        %v6343 = vpack.c.b16 %v5263, %v5255
        %v6344 = vpack.c.b16 %v5272, %v5264
        %v6345 = vpack.c.b16 %v5273, %v5265
        %v6346 = vpack.c.b16 %v5274, %v5266
        %v6347 = vpack.c.b16 %v5275, %v5267
        %v6348 = vpack.c.b16 %v5276, %v5268
        %v6349 = vpack.c.b16 %v5277, %v5269
        %v6350 = vpack.c.b16 %v5278, %v5270
        %v6351 = vpack.c.b16 %v5279, %v5271
        %v6352 = vpack.c.b16 %v5288, %v5280
        %v6353 = vpack.c.b16 %v5289, %v5281
        %v6354 = vpack.c.b16 %v5290, %v5282
        %v6355 = vpack.c.b16 %v5291, %v5283
        %v6356 = vpack.c.b16 %v5292, %v5284
        %v6357 = vpack.c.b16 %v5293, %v5285
        %v6358 = vpack.c.b16 %v5294, %v5286
        %v6359 = vpack.c.b16 %v5295, %v5287
        %v6360 = vpack.c.b16 %v5304, %v5296
        %v6361 = vpack.c.b16 %v5305, %v5297
        %v6362 = vpack.c.b16 %v5306, %v5298
        %v6363 = vpack.c.b16 %v5307, %v5299
        %v6364 = vpack.c.b16 %v5308, %v5300
        %v6365 = vpack.c.b16 %v5309, %v5301
        %v6366 = vpack.c.b16 %v5310, %v5302
        %v6367 = vpack.c.b16 %v5311, %v5303
        %v6368 = vpack.c.b16 %v5320, %v5312
        %v6369 = vpack.c.b16 %v5321, %v5313
        %v6370 = vpack.c.b16 %v5322, %v5314
        %v6371 = vpack.c.b16 %v5323, %v5315
        %v6372 = vpack.c.b16 %v5324, %v5316
        %v6373 = vpack.c.b16 %v5325, %v5317
        %v6374 = vpack.c.b16 %v5326, %v5318
        %v6375 = vpack.c.b16 %v5327, %v5319
        %v6376 = vpack.c.b16 %v5336, %v5328
        %v6377 = vpack.c.b16 %v5337, %v5329
        %v6378 = vpack.c.b16 %v5338, %v5330
        %v6379 = vpack.c.b16 %v5339, %v5331
        %v6380 = vpack.c.b16 %v5340, %v5332
        %v6381 = vpack.c.b16 %v5341, %v5333
        %v6382 = vpack.c.b16 %v5342, %v5334
        %v6383 = vpack.c.b16 %v5343, %v5335
        %v6384 = vpack.c.b16 %v5352, %v5344
        %v6385 = vpack.c.b16 %v5353, %v5345
        %v6386 = vpack.c.b16 %v5354, %v5346
        %v6387 = vpack.c.b16 %v5355, %v5347
        %v6388 = vpack.c.b16 %v5356, %v5348
        %v6389 = vpack.c.b16 %v5357, %v5349
        %v6390 = vpack.c.b16 %v5358, %v5350
        %v6391 = vpack.c.b16 %v5359, %v5351
        %v6392 = vpack.c.b16 %v5368, %v5360
        %v6393 = vpack.c.b16 %v5369, %v5361
        %v6394 = vpack.c.b16 %v5370, %v5362
        %v6395 = vpack.c.b16 %v5371, %v5363
        %v6396 = vpack.c.b16 %v5372, %v5364
        %v6397 = vpack.c.b16 %v5373, %v5365
        %v6398 = vpack.c.b16 %v5374, %v5366
        %v6399 = vpack.c.b16 %v5375, %v5367
        %v6400 = vpack.c.b16 %v5384, %v5376
        %v6401 = vpack.c.b16 %v5385, %v5377
        %v6402 = vpack.c.b16 %v5386, %v5378
        %v6403 = vpack.c.b16 %v5387, %v5379
        %v6404 = vpack.c.b16 %v5388, %v5380
        %v6405 = vpack.c.b16 %v5389, %v5381
        %v6406 = vpack.c.b16 %v5390, %v5382
        %v6407 = vpack.c.b16 %v5391, %v5383
        %v6408 = vpack.c.b16 %v5400, %v5392
        %v6409 = vpack.c.b16 %v5401, %v5393
        %v6410 = vpack.c.b16 %v5402, %v5394
        %v6411 = vpack.c.b16 %v5403, %v5395
        %v6412 = vpack.c.b16 %v5404, %v5396
        %v6413 = vpack.c.b16 %v5405, %v5397
        %v6414 = vpack.c.b16 %v5406, %v5398
        %v6415 = vpack.c.b16 %v5407, %v5399
        %v6416 = vpack.c.b16 %v5416, %v5408
        %v6417 = vpack.c.b16 %v5417, %v5409
        %v6418 = vpack.c.b16 %v5418, %v5410
        %v6419 = vpack.c.b16 %v5419, %v5411
        %v6420 = vpack.c.b16 %v5420, %v5412
        %v6421 = vpack.c.b16 %v5421, %v5413
        %v6422 = vpack.c.b16 %v5422, %v5414
        %v6423 = vpack.c.b16 %v5423, %v5415
        %v6424 = vpack.c.b16 %v5432, %v5424
        %v6425 = vpack.c.b16 %v5433, %v5425
        %v6426 = vpack.c.b16 %v5434, %v5426
        %v6427 = vpack.c.b16 %v5435, %v5427
        %v6428 = vpack.c.b16 %v5436, %v5428
        %v6429 = vpack.c.b16 %v5437, %v5429
        %v6430 = vpack.c.b16 %v5438, %v5430
        %v6431 = vpack.c.b16 %v5439, %v5431
        %v6432 = vpack.c.b16 %v5448, %v5440
        %v6433 = vpack.c.b16 %v5449, %v5441
        %v6434 = vpack.c.b16 %v5450, %v5442
        %v6435 = vpack.c.b16 %v5451, %v5443
        %v6436 = vpack.c.b16 %v5452, %v5444
        %v6437 = vpack.c.b16 %v5453, %v5445
        %v6438 = vpack.c.b16 %v5454, %v5446
        %v6439 = vpack.c.b16 %v5455, %v5447
        %v6440 = vpack.c.b16 %v5464, %v5456
        %v6441 = vpack.c.b16 %v5465, %v5457
        %v6442 = vpack.c.b16 %v5466, %v5458
        %v6443 = vpack.c.b16 %v5467, %v5459
        %v6444 = vpack.c.b16 %v5468, %v5460
        %v6445 = vpack.c.b16 %v5469, %v5461
        %v6446 = vpack.c.b16 %v5470, %v5462
        %v6447 = vpack.c.b16 %v5471, %v5463
        %v6448 = vpack.c.b16 %v5480, %v5472
        %v6449 = vpack.c.b16 %v5481, %v5473
        %v6450 = vpack.c.b16 %v5482, %v5474
        %v6451 = vpack.c.b16 %v5483, %v5475
        %v6452 = vpack.c.b16 %v5484, %v5476
        %v6453 = vpack.c.b16 %v5485, %v5477
        %v6454 = vpack.c.b16 %v5486, %v5478
        %v6455 = vpack.c.b16 %v5487, %v5479
        %v6456 = vpack.c.b16 %v5496, %v5488
        %v6457 = vpack.c.b16 %v5497, %v5489
        %v6458 = vpack.c.b16 %v5498, %v5490
        %v6459 = vpack.c.b16 %v5499, %v5491
        %v6460 = vpack.c.b16 %v5500, %v5492
        %v6461 = vpack.c.b16 %v5501, %v5493
        %v6462 = vpack.c.b16 %v5502, %v5494
        %v6463 = vpack.c.b16 %v5503, %v5495
        %v6464 = vpack.c.b16 %v5512, %v5504
        %v6465 = vpack.c.b16 %v5513, %v5505
        %v6466 = vpack.c.b16 %v5514, %v5506
        %v6467 = vpack.c.b16 %v5515, %v5507
        %v6468 = vpack.c.b16 %v5516, %v5508
        %v6469 = vpack.c.b16 %v5517, %v5509
        %v6470 = vpack.c.b16 %v5518, %v5510
        %v6471 = vpack.c.b16 %v5519, %v5511
        %v6472 = vpack.c.b16 %v5528, %v5520
        %v6473 = vpack.c.b16 %v5529, %v5521
        %v6474 = vpack.c.b16 %v5530, %v5522
        %v6475 = vpack.c.b16 %v5531, %v5523
        %v6476 = vpack.c.b16 %v5532, %v5524
        %v6477 = vpack.c.b16 %v5533, %v5525
        %v6478 = vpack.c.b16 %v5534, %v5526
        %v6479 = vpack.c.b16 %v5535, %v5527
        %v6480 = vpack.c.b16 %v5544, %v5536
        %v6481 = vpack.c.b16 %v5545, %v5537
        %v6482 = vpack.c.b16 %v5546, %v5538
        %v6483 = vpack.c.b16 %v5547, %v5539
        %v6484 = vpack.c.b16 %v5548, %v5540
        %v6485 = vpack.c.b16 %v5549, %v5541
        %v6486 = vpack.c.b16 %v5550, %v5542
        %v6487 = vpack.c.b16 %v5551, %v5543
        %v6488 = vpack.c.b16 %v5560, %v5552
        %v6489 = vpack.c.b16 %v5561, %v5553
        %v6490 = vpack.c.b16 %v5562, %v5554
        %v6491 = vpack.c.b16 %v5563, %v5555
        %v6492 = vpack.c.b16 %v5564, %v5556
        %v6493 = vpack.c.b16 %v5565, %v5557
        %v6494 = vpack.c.b16 %v5566, %v5558
        %v6495 = vpack.c.b16 %v5567, %v5559
        %v6496 = vpack.c.b16 %v5576, %v5568
        %v6497 = vpack.c.b16 %v5577, %v5569
        %v6498 = vpack.c.b16 %v5578, %v5570
        %v6499 = vpack.c.b16 %v5579, %v5571
        %v6500 = vpack.c.b16 %v5580, %v5572
        %v6501 = vpack.c.b16 %v5581, %v5573
        %v6502 = vpack.c.b16 %v5582, %v5574
        %v6503 = vpack.c.b16 %v5583, %v5575
        %v6504 = vpack.c.b16 %v5592, %v5584
        %v6505 = vpack.c.b16 %v5593, %v5585
        %v6506 = vpack.c.b16 %v5594, %v5586
        %v6507 = vpack.c.b16 %v5595, %v5587
        %v6508 = vpack.c.b16 %v5596, %v5588
        %v6509 = vpack.c.b16 %v5597, %v5589
        %v6510 = vpack.c.b16 %v5598, %v5590
        %v6511 = vpack.c.b16 %v5599, %v5591
        %v6512 = vpack.c.b16 %v5608, %v5600
        %v6513 = vpack.c.b16 %v5609, %v5601
        %v6514 = vpack.c.b16 %v5610, %v5602
        %v6515 = vpack.c.b16 %v5611, %v5603
        %v6516 = vpack.c.b16 %v5612, %v5604
        %v6517 = vpack.c.b16 %v5613, %v5605
        %v6518 = vpack.c.b16 %v5614, %v5606
        %v6519 = vpack.c.b16 %v5615, %v5607
        %v6520 = vpack.c.b16 %v5624, %v5616
        %v6521 = vpack.c.b16 %v5625, %v5617
        %v6522 = vpack.c.b16 %v5626, %v5618
        %v6523 = vpack.c.b16 %v5627, %v5619
        %v6524 = vpack.c.b16 %v5628, %v5620
        %v6525 = vpack.c.b16 %v5629, %v5621
        %v6526 = vpack.c.b16 %v5630, %v5622
        %v6527 = vpack.c.b16 %v5631, %v5623
        %v6528 = vpack.c.b16 %v5640, %v5632
        %v6529 = vpack.c.b16 %v5641, %v5633
        %v6530 = vpack.c.b16 %v5642, %v5634
        %v6531 = vpack.c.b16 %v5643, %v5635
        %v6532 = vpack.c.b16 %v5644, %v5636
        %v6533 = vpack.c.b16 %v5645, %v5637
        %v6534 = vpack.c.b16 %v5646, %v5638
        %v6535 = vpack.c.b16 %v5647, %v5639
        %v6536 = vpack.c.b16 %v5656, %v5648
        %v6537 = vpack.c.b16 %v5657, %v5649
        %v6538 = vpack.c.b16 %v5658, %v5650
        %v6539 = vpack.c.b16 %v5659, %v5651
        %v6540 = vpack.c.b16 %v5660, %v5652
        %v6541 = vpack.c.b16 %v5661, %v5653
        %v6542 = vpack.c.b16 %v5662, %v5654
        %v6543 = vpack.c.b16 %v5663, %v5655
        %v6544 = vpack.c.b16 %v5672, %v5664
        %v6545 = vpack.c.b16 %v5673, %v5665
        %v6546 = vpack.c.b16 %v5674, %v5666
        %v6547 = vpack.c.b16 %v5675, %v5667
        %v6548 = vpack.c.b16 %v5676, %v5668
        %v6549 = vpack.c.b16 %v5677, %v5669
        %v6550 = vpack.c.b16 %v5678, %v5670
        %v6551 = vpack.c.b16 %v5679, %v5671
        %v6552 = vpack.c.b16 %v5688, %v5680
        %v6553 = vpack.c.b16 %v5689, %v5681
        %v6554 = vpack.c.b16 %v5690, %v5682
        %v6555 = vpack.c.b16 %v5691, %v5683
        %v6556 = vpack.c.b16 %v5692, %v5684
        %v6557 = vpack.c.b16 %v5693, %v5685
        %v6558 = vpack.c.b16 %v5694, %v5686
        %v6559 = vpack.c.b16 %v5695, %v5687
        %v6560 = vpack.c.b16 %v5704, %v5696
        %v6561 = vpack.c.b16 %v5705, %v5697
        %v6562 = vpack.c.b16 %v5706, %v5698
        %v6563 = vpack.c.b16 %v5707, %v5699
        %v6564 = vpack.c.b16 %v5708, %v5700
        %v6565 = vpack.c.b16 %v5709, %v5701
        %v6566 = vpack.c.b16 %v5710, %v5702
        %v6567 = vpack.c.b16 %v5711, %v5703
        %v6568 = vpack.c.b16 %v5720, %v5712
        %v6569 = vpack.c.b16 %v5721, %v5713
        %v6570 = vpack.c.b16 %v5722, %v5714
        %v6571 = vpack.c.b16 %v5723, %v5715
        %v6572 = vpack.c.b16 %v5724, %v5716
        %v6573 = vpack.c.b16 %v5725, %v5717
        %v6574 = vpack.c.b16 %v5726, %v5718
        %v6575 = vpack.c.b16 %v5727, %v5719
        %v6576 = vpack.c.b16 %v5736, %v5728
        %v6577 = vpack.c.b16 %v5737, %v5729
        %v6578 = vpack.c.b16 %v5738, %v5730
        %v6579 = vpack.c.b16 %v5739, %v5731
        %v6580 = vpack.c.b16 %v5740, %v5732
        %v6581 = vpack.c.b16 %v5741, %v5733
        %v6582 = vpack.c.b16 %v5742, %v5734
        %v6583 = vpack.c.b16 %v5743, %v5735
        %v6584 = vpack.c.b16 %v5752, %v5744
        %v6585 = vpack.c.b16 %v5753, %v5745
        %v6586 = vpack.c.b16 %v5754, %v5746
        %v6587 = vpack.c.b16 %v5755, %v5747
        %v6588 = vpack.c.b16 %v5756, %v5748
        %v6589 = vpack.c.b16 %v5757, %v5749
        %v6590 = vpack.c.b16 %v5758, %v5750
        %v6591 = vpack.c.b16 %v5759, %v5751
        %v6592 = vpack.c.b16 %v5768, %v5760
        %v6593 = vpack.c.b16 %v5769, %v5761
        %v6594 = vpack.c.b16 %v5770, %v5762
        %v6595 = vpack.c.b16 %v5771, %v5763
        %v6596 = vpack.c.b16 %v5772, %v5764
        %v6597 = vpack.c.b16 %v5773, %v5765
        %v6598 = vpack.c.b16 %v5774, %v5766
        %v6599 = vpack.c.b16 %v5775, %v5767
        %v6600 = vpack.c.b16 %v5784, %v5776
        %v6601 = vpack.c.b16 %v5785, %v5777
        %v6602 = vpack.c.b16 %v5786, %v5778
        %v6603 = vpack.c.b16 %v5787, %v5779
        %v6604 = vpack.c.b16 %v5788, %v5780
        %v6605 = vpack.c.b16 %v5789, %v5781
        %v6606 = vpack.c.b16 %v5790, %v5782
        %v6607 = vpack.c.b16 %v5791, %v5783
        %v6608 = vpack.c.b16 %v5800, %v5792
        %v6609 = vpack.c.b16 %v5801, %v5793
        %v6610 = vpack.c.b16 %v5802, %v5794
        %v6611 = vpack.c.b16 %v5803, %v5795
        %v6612 = vpack.c.b16 %v5804, %v5796
        %v6613 = vpack.c.b16 %v5805, %v5797
        %v6614 = vpack.c.b16 %v5806, %v5798
        %v6615 = vpack.c.b16 %v5807, %v5799
        %v6616 = vpack.c.b16 %v5816, %v5808
        %v6617 = vpack.c.b16 %v5817, %v5809
        %v6618 = vpack.c.b16 %v5818, %v5810
        %v6619 = vpack.c.b16 %v5819, %v5811
        %v6620 = vpack.c.b16 %v5820, %v5812
        %v6621 = vpack.c.b16 %v5821, %v5813
        %v6622 = vpack.c.b16 %v5822, %v5814
        %v6623 = vpack.c.b16 %v5823, %v5815
        %v6624 = vpack.c.b16 %v5832, %v5824
        %v6625 = vpack.c.b16 %v5833, %v5825
        %v6626 = vpack.c.b16 %v5834, %v5826
        %v6627 = vpack.c.b16 %v5835, %v5827
        %v6628 = vpack.c.b16 %v5836, %v5828
        %v6629 = vpack.c.b16 %v5837, %v5829
        %v6630 = vpack.c.b16 %v5838, %v5830
        %v6631 = vpack.c.b16 %v5839, %v5831
        %v6632 = vpack.c.b16 %v5848, %v5840
        %v6633 = vpack.c.b16 %v5849, %v5841
        %v6634 = vpack.c.b16 %v5850, %v5842
        %v6635 = vpack.c.b16 %v5851, %v5843
        %v6636 = vpack.c.b16 %v5852, %v5844
        %v6637 = vpack.c.b16 %v5853, %v5845
        %v6638 = vpack.c.b16 %v5854, %v5846
        %v6639 = vpack.c.b16 %v5855, %v5847
        %v6640 = vpack.c.b16 %v5864, %v5856
        %v6641 = vpack.c.b16 %v5865, %v5857
        %v6642 = vpack.c.b16 %v5866, %v5858
        %v6643 = vpack.c.b16 %v5867, %v5859
        %v6644 = vpack.c.b16 %v5868, %v5860
        %v6645 = vpack.c.b16 %v5869, %v5861
        %v6646 = vpack.c.b16 %v5870, %v5862
        %v6647 = vpack.c.b16 %v5871, %v5863
        %v6648 = vpack.c.b16 %v5880, %v5872
        %v6649 = vpack.c.b16 %v5881, %v5873
        %v6650 = vpack.c.b16 %v5882, %v5874
        %v6651 = vpack.c.b16 %v5883, %v5875
        %v6652 = vpack.c.b16 %v5884, %v5876
        %v6653 = vpack.c.b16 %v5885, %v5877
        %v6654 = vpack.c.b16 %v5886, %v5878
        %v6655 = vpack.c.b16 %v5887, %v5879
        %v7425 = vperm.slane %v3583, 0
        %v7426 = vperm.slane %v3583, 1
        %v7427 = vperm.slane %v3583, 2
        %v7428 = vperm.slane %v3583, 3
        %v7429 = vperm.slane %v3583, 4
        %v7430 = vperm.slane %v3583, 5
        %v7431 = vperm.slane %v3583, 6
        %v7432 = vperm.slane %v3583, 7
        %7441 = vmatpush.bf16.msra.mxu0 %v5944
        %7442 = vmatpush.bf16.msra.mxu0 %v5936
        %7443 = vmatpush.bf16.msra.mxu0 %v5928
        %7444 = vmatpush.bf16.msra.mxu0 %v5920
        %7445 = vmatpush.bf16.msra.mxu0 %v5912
        %7446 = vmatpush.bf16.msra.mxu0 %v5904
        %7447 = vmatpush.bf16.msra.mxu0 %v5896
        %7448 = vmatpush.bf16.msra.mxu0 %v5888
        %7449 = vmatmul.bf16.gmra.mxu0 %v2803
        %v7450 = vpop.f32.mrf.mxu0
        %v7451 = vadd.f32 %v7425, %v7450
        %v7452 = vpop.f32.mrf.mxu0
        %7453 = vdwg.mxu0
        %7454 = vmatpush.bf16.msra.mxu0 %v6008
        %7455 = vmatpush.bf16.msra.mxu0 %v6000
        %7456 = vmatpush.bf16.msra.mxu0 %v5992
        %7457 = vmatpush.bf16.msra.mxu0 %v5984
        %7458 = vmatpush.bf16.msra.mxu0 %v5976
        %7459 = vmatpush.bf16.msra.mxu0 %v5968
        %7460 = vmatpush.bf16.msra.mxu0 %v5960
        %7461 = vmatpush.bf16.msra.mxu0 %v5952
        %7462 = vmatmul.bf16.gmra.mxu0 %v2804
        %v7463 = vpop.f32.mrf.mxu0
        %v7464 = vadd.f32 %v7451, %v7463
        %v7465 = vpop.f32.mrf.mxu0
        %7466 = vdwg.mxu0
        %7467 = vmatpush.bf16.msra.mxu0 %v6072
        %7468 = vmatpush.bf16.msra.mxu0 %v6064
        %7469 = vmatpush.bf16.msra.mxu0 %v6056
        %7470 = vmatpush.bf16.msra.mxu0 %v6048
        %7471 = vmatpush.bf16.msra.mxu0 %v6040
        %7472 = vmatpush.bf16.msra.mxu0 %v6032
        %7473 = vmatpush.bf16.msra.mxu0 %v6024
        %7474 = vmatpush.bf16.msra.mxu0 %v6016
        %7475 = vmatmul.bf16.gmra.mxu0 %v2805
        %v7476 = vpop.f32.mrf.mxu0
        %v7477 = vadd.f32 %v7464, %v7476
        %v7478 = vpop.f32.mrf.mxu0
        %7479 = vdwg.mxu0
        %7480 = vmatpush.bf16.msra.mxu0 %v6136
        %7481 = vmatpush.bf16.msra.mxu0 %v6128
        %7482 = vmatpush.bf16.msra.mxu0 %v6120
        %7483 = vmatpush.bf16.msra.mxu0 %v6112
        %7484 = vmatpush.bf16.msra.mxu0 %v6104
        %7485 = vmatpush.bf16.msra.mxu0 %v6096
        %7486 = vmatpush.bf16.msra.mxu0 %v6088
        %7487 = vmatpush.bf16.msra.mxu0 %v6080
        %7488 = vmatmul.bf16.gmra.mxu0 %v2806
        %v7489 = vpop.f32.mrf.mxu0
        %v7490 = vadd.f32 %v7477, %v7489
        %v7491 = vpop.f32.mrf.mxu0
        %7492 = vdwg.mxu0
        %7493 = vmatpush.bf16.msra.mxu0 %v6200
        %7494 = vmatpush.bf16.msra.mxu0 %v6192
        %7495 = vmatpush.bf16.msra.mxu0 %v6184
        %7496 = vmatpush.bf16.msra.mxu0 %v6176
        %7497 = vmatpush.bf16.msra.mxu0 %v6168
        %7498 = vmatpush.bf16.msra.mxu0 %v6160
        %7499 = vmatpush.bf16.msra.mxu0 %v6152
        %7500 = vmatpush.bf16.msra.mxu0 %v6144
        %7501 = vmatmul.bf16.gmra.mxu0 %v2807
        %v7502 = vpop.f32.mrf.mxu0
        %v7503 = vadd.f32 %v7490, %v7502
        %v7504 = vpop.f32.mrf.mxu0
        %7505 = vdwg.mxu0
        %7506 = vmatpush.bf16.msra.mxu0 %v6264
        %7507 = vmatpush.bf16.msra.mxu0 %v6256
        %7508 = vmatpush.bf16.msra.mxu0 %v6248
        %7509 = vmatpush.bf16.msra.mxu0 %v6240
        %7510 = vmatpush.bf16.msra.mxu0 %v6232
        %7511 = vmatpush.bf16.msra.mxu0 %v6224
        %7512 = vmatpush.bf16.msra.mxu0 %v6216
        %7513 = vmatpush.bf16.msra.mxu0 %v6208
        %7514 = vmatmul.bf16.gmra.mxu0 %v2808
        %v7515 = vpop.f32.mrf.mxu0
        %v7516 = vadd.f32 %v7503, %v7515
        %v7517 = vpop.f32.mrf.mxu0
        %7518 = vdwg.mxu0
        %7519 = vmatpush.bf16.msra.mxu0 %v6328
        %7520 = vmatpush.bf16.msra.mxu0 %v6320
        %7521 = vmatpush.bf16.msra.mxu0 %v6312
        %7522 = vmatpush.bf16.msra.mxu0 %v6304
        %7523 = vmatpush.bf16.msra.mxu0 %v6296
        %7524 = vmatpush.bf16.msra.mxu0 %v6288
        %7525 = vmatpush.bf16.msra.mxu0 %v6280
        %7526 = vmatpush.bf16.msra.mxu0 %v6272
        %7527 = vmatmul.bf16.gmra.mxu0 %v2809
        %v7528 = vpop.f32.mrf.mxu0
        %v7529 = vadd.f32 %v7516, %v7528
        %v7530 = vpop.f32.mrf.mxu0
        %7531 = vdwg.mxu0
        %7532 = vmatpush.bf16.msra.mxu0 %v6392
        %7533 = vmatpush.bf16.msra.mxu0 %v6384
        %7534 = vmatpush.bf16.msra.mxu0 %v6376
        %7535 = vmatpush.bf16.msra.mxu0 %v6368
        %7536 = vmatpush.bf16.msra.mxu0 %v6360
        %7537 = vmatpush.bf16.msra.mxu0 %v6352
        %7538 = vmatpush.bf16.msra.mxu0 %v6344
        %7539 = vmatpush.bf16.msra.mxu0 %v6336
        %7540 = vmatmul.bf16.gmra.mxu0 %v2810
        %v7541 = vpop.f32.mrf.mxu0
        %v7542 = vadd.f32 %v7529, %v7541
        %v7543 = vpop.f32.mrf.mxu0
        %7544 = vdwg.mxu0
        %7545 = vmatpush.bf16.msra.mxu0 %v6456
        %7546 = vmatpush.bf16.msra.mxu0 %v6448
        %7547 = vmatpush.bf16.msra.mxu0 %v6440
        %7548 = vmatpush.bf16.msra.mxu0 %v6432
        %7549 = vmatpush.bf16.msra.mxu0 %v6424
        %7550 = vmatpush.bf16.msra.mxu0 %v6416
        %7551 = vmatpush.bf16.msra.mxu0 %v6408
        %7552 = vmatpush.bf16.msra.mxu0 %v6400
        %7553 = vmatmul.bf16.gmra.mxu0 %v2811
        %v7554 = vpop.f32.mrf.mxu0
        %v7555 = vadd.f32 %v7542, %v7554
        %v7556 = vpop.f32.mrf.mxu0
        %7557 = vdwg.mxu0
        %7558 = vmatpush.bf16.msra.mxu0 %v6520
        %7559 = vmatpush.bf16.msra.mxu0 %v6512
        %7560 = vmatpush.bf16.msra.mxu0 %v6504
        %7561 = vmatpush.bf16.msra.mxu0 %v6496
        %7562 = vmatpush.bf16.msra.mxu0 %v6488
        %7563 = vmatpush.bf16.msra.mxu0 %v6480
        %7564 = vmatpush.bf16.msra.mxu0 %v6472
        %7565 = vmatpush.bf16.msra.mxu0 %v6464
        %7566 = vmatmul.bf16.gmra.mxu0 %v2812
        %v7567 = vpop.f32.mrf.mxu0
        %v7568 = vadd.f32 %v7555, %v7567
        %v7569 = vpop.f32.mrf.mxu0
        %7570 = vdwg.mxu0
        %7571 = vmatpush.bf16.msra.mxu0 %v6584
        %7572 = vmatpush.bf16.msra.mxu0 %v6576
        %7573 = vmatpush.bf16.msra.mxu0 %v6568
        %7574 = vmatpush.bf16.msra.mxu0 %v6560
        %7575 = vmatpush.bf16.msra.mxu0 %v6552
        %7576 = vmatpush.bf16.msra.mxu0 %v6544
        %7577 = vmatpush.bf16.msra.mxu0 %v6536
        %7578 = vmatpush.bf16.msra.mxu0 %v6528
        %7579 = vmatmul.bf16.gmra.mxu0 %v2813
        %v7580 = vpop.f32.mrf.mxu0
        %v7581 = vadd.f32 %v7568, %v7580
        %v7582 = vpop.f32.mrf.mxu0
        %7583 = vdwg.mxu0
        %7584 = vmatpush.bf16.msra.mxu0 %v6648
        %7585 = vmatpush.bf16.msra.mxu0 %v6640
        %7586 = vmatpush.bf16.msra.mxu0 %v6632
        %7587 = vmatpush.bf16.msra.mxu0 %v6624
        %7588 = vmatpush.bf16.msra.mxu0 %v6616
        %7589 = vmatpush.bf16.msra.mxu0 %v6608
        %7590 = vmatpush.bf16.msra.mxu0 %v6600
        %7591 = vmatpush.bf16.msra.mxu0 %v6592
        %7592 = vmatmul.bf16.gmra.mxu0 %v2814
        %v7593 = vpop.f32.mrf.mxu0
        %v7594 = vadd.f32 %v7581, %v7593
        %v7595 = vpop.f32.mrf.mxu0
        %7596 = vdwg.mxu0
        %7597 = vmatpush.bf16.msra.mxu0 %v5945
        %7598 = vmatpush.bf16.msra.mxu0 %v5937
        %7599 = vmatpush.bf16.msra.mxu0 %v5929
        %7600 = vmatpush.bf16.msra.mxu0 %v5921
        %7601 = vmatpush.bf16.msra.mxu0 %v5913
        %7602 = vmatpush.bf16.msra.mxu0 %v5905
        %7603 = vmatpush.bf16.msra.mxu0 %v5897
        %7604 = vmatpush.bf16.msra.mxu0 %v5889
        %7605 = vmatmul.bf16.gmra.mxu0 %v2803
        %v7606 = vpop.f32.mrf.mxu0
        %v7607 = vadd.f32 %v7426, %v7606
        %v7608 = vpop.f32.mrf.mxu0
        %7609 = vdwg.mxu0
        %7610 = vmatpush.bf16.msra.mxu0 %v6009
        %7611 = vmatpush.bf16.msra.mxu0 %v6001
        %7612 = vmatpush.bf16.msra.mxu0 %v5993
        %7613 = vmatpush.bf16.msra.mxu0 %v5985
        %7614 = vmatpush.bf16.msra.mxu0 %v5977
        %7615 = vmatpush.bf16.msra.mxu0 %v5969
        %7616 = vmatpush.bf16.msra.mxu0 %v5961
        %7617 = vmatpush.bf16.msra.mxu0 %v5953
        %7618 = vmatmul.bf16.gmra.mxu0 %v2804
        %v7619 = vpop.f32.mrf.mxu0
        %v7620 = vadd.f32 %v7607, %v7619
        %v7621 = vpop.f32.mrf.mxu0
        %7622 = vdwg.mxu0
        %7623 = vmatpush.bf16.msra.mxu0 %v6073
        %7624 = vmatpush.bf16.msra.mxu0 %v6065
        %7625 = vmatpush.bf16.msra.mxu0 %v6057
        %7626 = vmatpush.bf16.msra.mxu0 %v6049
        %7627 = vmatpush.bf16.msra.mxu0 %v6041
        %7628 = vmatpush.bf16.msra.mxu0 %v6033
        %7629 = vmatpush.bf16.msra.mxu0 %v6025
        %7630 = vmatpush.bf16.msra.mxu0 %v6017
        %7631 = vmatmul.bf16.gmra.mxu0 %v2805
        %v7632 = vpop.f32.mrf.mxu0
        %v7633 = vadd.f32 %v7620, %v7632
        %v7634 = vpop.f32.mrf.mxu0
        %7635 = vdwg.mxu0
        %7636 = vmatpush.bf16.msra.mxu0 %v6137
        %7637 = vmatpush.bf16.msra.mxu0 %v6129
        %7638 = vmatpush.bf16.msra.mxu0 %v6121
        %7639 = vmatpush.bf16.msra.mxu0 %v6113
        %7640 = vmatpush.bf16.msra.mxu0 %v6105
        %7641 = vmatpush.bf16.msra.mxu0 %v6097
        %7642 = vmatpush.bf16.msra.mxu0 %v6089
        %7643 = vmatpush.bf16.msra.mxu0 %v6081
        %7644 = vmatmul.bf16.gmra.mxu0 %v2806
        %v7645 = vpop.f32.mrf.mxu0
        %v7646 = vadd.f32 %v7633, %v7645
        %v7647 = vpop.f32.mrf.mxu0
        %7648 = vdwg.mxu0
        %7649 = vmatpush.bf16.msra.mxu0 %v6201
        %7650 = vmatpush.bf16.msra.mxu0 %v6193
        %7651 = vmatpush.bf16.msra.mxu0 %v6185
        %7652 = vmatpush.bf16.msra.mxu0 %v6177
        %7653 = vmatpush.bf16.msra.mxu0 %v6169
        %7654 = vmatpush.bf16.msra.mxu0 %v6161
        %7655 = vmatpush.bf16.msra.mxu0 %v6153
        %7656 = vmatpush.bf16.msra.mxu0 %v6145
        %7657 = vmatmul.bf16.gmra.mxu0 %v2807
        %v7658 = vpop.f32.mrf.mxu0
        %v7659 = vadd.f32 %v7646, %v7658
        %v7660 = vpop.f32.mrf.mxu0
        %7661 = vdwg.mxu0
        %7662 = vmatpush.bf16.msra.mxu0 %v6265
        %7663 = vmatpush.bf16.msra.mxu0 %v6257
        %7664 = vmatpush.bf16.msra.mxu0 %v6249
        %7665 = vmatpush.bf16.msra.mxu0 %v6241
        %7666 = vmatpush.bf16.msra.mxu0 %v6233
        %7667 = vmatpush.bf16.msra.mxu0 %v6225
        %7668 = vmatpush.bf16.msra.mxu0 %v6217
        %7669 = vmatpush.bf16.msra.mxu0 %v6209
        %7670 = vmatmul.bf16.gmra.mxu0 %v2808
        %v7671 = vpop.f32.mrf.mxu0
        %v7672 = vadd.f32 %v7659, %v7671
        %v7673 = vpop.f32.mrf.mxu0
        %7674 = vdwg.mxu0
        %7675 = vmatpush.bf16.msra.mxu0 %v6329
        %7676 = vmatpush.bf16.msra.mxu0 %v6321
        %7677 = vmatpush.bf16.msra.mxu0 %v6313
        %7678 = vmatpush.bf16.msra.mxu0 %v6305
        %7679 = vmatpush.bf16.msra.mxu0 %v6297
        %7680 = vmatpush.bf16.msra.mxu0 %v6289
        %7681 = vmatpush.bf16.msra.mxu0 %v6281
        %7682 = vmatpush.bf16.msra.mxu0 %v6273
        %7683 = vmatmul.bf16.gmra.mxu0 %v2809
        %v7684 = vpop.f32.mrf.mxu0
        %v7685 = vadd.f32 %v7672, %v7684
        %v7686 = vpop.f32.mrf.mxu0
        %7687 = vdwg.mxu0
        %7688 = vmatpush.bf16.msra.mxu0 %v6393
        %7689 = vmatpush.bf16.msra.mxu0 %v6385
        %7690 = vmatpush.bf16.msra.mxu0 %v6377
        %7691 = vmatpush.bf16.msra.mxu0 %v6369
        %7692 = vmatpush.bf16.msra.mxu0 %v6361
        %7693 = vmatpush.bf16.msra.mxu0 %v6353
        %7694 = vmatpush.bf16.msra.mxu0 %v6345
        %7695 = vmatpush.bf16.msra.mxu0 %v6337
        %7696 = vmatmul.bf16.gmra.mxu0 %v2810
        %v7697 = vpop.f32.mrf.mxu0
        %v7698 = vadd.f32 %v7685, %v7697
        %v7699 = vpop.f32.mrf.mxu0
        %7700 = vdwg.mxu0
        %7701 = vmatpush.bf16.msra.mxu0 %v6457
        %7702 = vmatpush.bf16.msra.mxu0 %v6449
        %7703 = vmatpush.bf16.msra.mxu0 %v6441
        %7704 = vmatpush.bf16.msra.mxu0 %v6433
        %7705 = vmatpush.bf16.msra.mxu0 %v6425
        %7706 = vmatpush.bf16.msra.mxu0 %v6417
        %7707 = vmatpush.bf16.msra.mxu0 %v6409
        %7708 = vmatpush.bf16.msra.mxu0 %v6401
        %7709 = vmatmul.bf16.gmra.mxu0 %v2811
        %v7710 = vpop.f32.mrf.mxu0
        %v7711 = vadd.f32 %v7698, %v7710
        %v7712 = vpop.f32.mrf.mxu0
        %7713 = vdwg.mxu0
        %7714 = vmatpush.bf16.msra.mxu0 %v6521
        %7715 = vmatpush.bf16.msra.mxu0 %v6513
        %7716 = vmatpush.bf16.msra.mxu0 %v6505
        %7717 = vmatpush.bf16.msra.mxu0 %v6497
        %7718 = vmatpush.bf16.msra.mxu0 %v6489
        %7719 = vmatpush.bf16.msra.mxu0 %v6481
        %7720 = vmatpush.bf16.msra.mxu0 %v6473
        %7721 = vmatpush.bf16.msra.mxu0 %v6465
        %7722 = vmatmul.bf16.gmra.mxu0 %v2812
        %v7723 = vpop.f32.mrf.mxu0
        %v7724 = vadd.f32 %v7711, %v7723
        %v7725 = vpop.f32.mrf.mxu0
        %7726 = vdwg.mxu0
        %7727 = vmatpush.bf16.msra.mxu0 %v6585
        %7728 = vmatpush.bf16.msra.mxu0 %v6577
        %7729 = vmatpush.bf16.msra.mxu0 %v6569
        %7730 = vmatpush.bf16.msra.mxu0 %v6561
        %7731 = vmatpush.bf16.msra.mxu0 %v6553
        %7732 = vmatpush.bf16.msra.mxu0 %v6545
        %7733 = vmatpush.bf16.msra.mxu0 %v6537
        %7734 = vmatpush.bf16.msra.mxu0 %v6529
        %7735 = vmatmul.bf16.gmra.mxu0 %v2813
        %v7736 = vpop.f32.mrf.mxu0
        %v7737 = vadd.f32 %v7724, %v7736
        %v7738 = vpop.f32.mrf.mxu0
        %7739 = vdwg.mxu0
        %7740 = vmatpush.bf16.msra.mxu0 %v6649
        %7741 = vmatpush.bf16.msra.mxu0 %v6641
        %7742 = vmatpush.bf16.msra.mxu0 %v6633
        %7743 = vmatpush.bf16.msra.mxu0 %v6625
        %7744 = vmatpush.bf16.msra.mxu0 %v6617
        %7745 = vmatpush.bf16.msra.mxu0 %v6609
        %7746 = vmatpush.bf16.msra.mxu0 %v6601
        %7747 = vmatpush.bf16.msra.mxu0 %v6593
        %7748 = vmatmul.bf16.gmra.mxu0 %v2814
        %v7749 = vpop.f32.mrf.mxu0
        %v7750 = vadd.f32 %v7737, %v7749
        %v7751 = vpop.f32.mrf.mxu0
        %7752 = vdwg.mxu0
        %7753 = vmatpush.bf16.msra.mxu0 %v5946
        %7754 = vmatpush.bf16.msra.mxu0 %v5938
        %7755 = vmatpush.bf16.msra.mxu0 %v5930
        %7756 = vmatpush.bf16.msra.mxu0 %v5922
        %7757 = vmatpush.bf16.msra.mxu0 %v5914
        %7758 = vmatpush.bf16.msra.mxu0 %v5906
        %7759 = vmatpush.bf16.msra.mxu0 %v5898
        %7760 = vmatpush.bf16.msra.mxu0 %v5890
        %7761 = vmatmul.bf16.gmra.mxu0 %v2803
        %v7762 = vpop.f32.mrf.mxu0
        %v7763 = vadd.f32 %v7427, %v7762
        %v7764 = vpop.f32.mrf.mxu0
        %7765 = vdwg.mxu0
        %7766 = vmatpush.bf16.msra.mxu0 %v6010
        %7767 = vmatpush.bf16.msra.mxu0 %v6002
        %7768 = vmatpush.bf16.msra.mxu0 %v5994
        %7769 = vmatpush.bf16.msra.mxu0 %v5986
        %7770 = vmatpush.bf16.msra.mxu0 %v5978
        %7771 = vmatpush.bf16.msra.mxu0 %v5970
        %7772 = vmatpush.bf16.msra.mxu0 %v5962
        %7773 = vmatpush.bf16.msra.mxu0 %v5954
        %7774 = vmatmul.bf16.gmra.mxu0 %v2804
        %v7775 = vpop.f32.mrf.mxu0
        %v7776 = vadd.f32 %v7763, %v7775
        %v7777 = vpop.f32.mrf.mxu0
        %7778 = vdwg.mxu0
        %7779 = vmatpush.bf16.msra.mxu0 %v6074
        %7780 = vmatpush.bf16.msra.mxu0 %v6066
        %7781 = vmatpush.bf16.msra.mxu0 %v6058
        %7782 = vmatpush.bf16.msra.mxu0 %v6050
        %7783 = vmatpush.bf16.msra.mxu0 %v6042
        %7784 = vmatpush.bf16.msra.mxu0 %v6034
        %7785 = vmatpush.bf16.msra.mxu0 %v6026
        %7786 = vmatpush.bf16.msra.mxu0 %v6018
        %7787 = vmatmul.bf16.gmra.mxu0 %v2805
        %v7788 = vpop.f32.mrf.mxu0
        %v7789 = vadd.f32 %v7776, %v7788
        %v7790 = vpop.f32.mrf.mxu0
        %7791 = vdwg.mxu0
        %7792 = vmatpush.bf16.msra.mxu0 %v6138
        %7793 = vmatpush.bf16.msra.mxu0 %v6130
        %7794 = vmatpush.bf16.msra.mxu0 %v6122
        %7795 = vmatpush.bf16.msra.mxu0 %v6114
        %7796 = vmatpush.bf16.msra.mxu0 %v6106
        %7797 = vmatpush.bf16.msra.mxu0 %v6098
        %7798 = vmatpush.bf16.msra.mxu0 %v6090
        %7799 = vmatpush.bf16.msra.mxu0 %v6082
        %7800 = vmatmul.bf16.gmra.mxu0 %v2806
        %v7801 = vpop.f32.mrf.mxu0
        %v7802 = vadd.f32 %v7789, %v7801
        %v7803 = vpop.f32.mrf.mxu0
        %7804 = vdwg.mxu0
        %7805 = vmatpush.bf16.msra.mxu0 %v6202
        %7806 = vmatpush.bf16.msra.mxu0 %v6194
        %7807 = vmatpush.bf16.msra.mxu0 %v6186
        %7808 = vmatpush.bf16.msra.mxu0 %v6178
        %7809 = vmatpush.bf16.msra.mxu0 %v6170
        %7810 = vmatpush.bf16.msra.mxu0 %v6162
        %7811 = vmatpush.bf16.msra.mxu0 %v6154
        %7812 = vmatpush.bf16.msra.mxu0 %v6146
        %7813 = vmatmul.bf16.gmra.mxu0 %v2807
        %v7814 = vpop.f32.mrf.mxu0
        %v7815 = vadd.f32 %v7802, %v7814
        %v7816 = vpop.f32.mrf.mxu0
        %7817 = vdwg.mxu0
        %7818 = vmatpush.bf16.msra.mxu0 %v6266
        %7819 = vmatpush.bf16.msra.mxu0 %v6258
        %7820 = vmatpush.bf16.msra.mxu0 %v6250
        %7821 = vmatpush.bf16.msra.mxu0 %v6242
        %7822 = vmatpush.bf16.msra.mxu0 %v6234
        %7823 = vmatpush.bf16.msra.mxu0 %v6226
        %7824 = vmatpush.bf16.msra.mxu0 %v6218
        %7825 = vmatpush.bf16.msra.mxu0 %v6210
        %7826 = vmatmul.bf16.gmra.mxu0 %v2808
        %v7827 = vpop.f32.mrf.mxu0
        %v7828 = vadd.f32 %v7815, %v7827
        %v7829 = vpop.f32.mrf.mxu0
        %7830 = vdwg.mxu0
        %7831 = vmatpush.bf16.msra.mxu0 %v6330
        %7832 = vmatpush.bf16.msra.mxu0 %v6322
        %7833 = vmatpush.bf16.msra.mxu0 %v6314
        %7834 = vmatpush.bf16.msra.mxu0 %v6306
        %7835 = vmatpush.bf16.msra.mxu0 %v6298
        %7836 = vmatpush.bf16.msra.mxu0 %v6290
        %7837 = vmatpush.bf16.msra.mxu0 %v6282
        %7838 = vmatpush.bf16.msra.mxu0 %v6274
        %7839 = vmatmul.bf16.gmra.mxu0 %v2809
        %v7840 = vpop.f32.mrf.mxu0
        %v7841 = vadd.f32 %v7828, %v7840
        %v7842 = vpop.f32.mrf.mxu0
        %7843 = vdwg.mxu0
        %7844 = vmatpush.bf16.msra.mxu0 %v6394
        %7845 = vmatpush.bf16.msra.mxu0 %v6386
        %7846 = vmatpush.bf16.msra.mxu0 %v6378
        %7847 = vmatpush.bf16.msra.mxu0 %v6370
        %7848 = vmatpush.bf16.msra.mxu0 %v6362
        %7849 = vmatpush.bf16.msra.mxu0 %v6354
        %7850 = vmatpush.bf16.msra.mxu0 %v6346
        %7851 = vmatpush.bf16.msra.mxu0 %v6338
        %7852 = vmatmul.bf16.gmra.mxu0 %v2810
        %v7853 = vpop.f32.mrf.mxu0
        %v7854 = vadd.f32 %v7841, %v7853
        %v7855 = vpop.f32.mrf.mxu0
        %7856 = vdwg.mxu0
        %7857 = vmatpush.bf16.msra.mxu0 %v6458
        %7858 = vmatpush.bf16.msra.mxu0 %v6450
        %7859 = vmatpush.bf16.msra.mxu0 %v6442
        %7860 = vmatpush.bf16.msra.mxu0 %v6434
        %7861 = vmatpush.bf16.msra.mxu0 %v6426
        %7862 = vmatpush.bf16.msra.mxu0 %v6418
        %7863 = vmatpush.bf16.msra.mxu0 %v6410
        %7864 = vmatpush.bf16.msra.mxu0 %v6402
        %7865 = vmatmul.bf16.gmra.mxu0 %v2811
        %v7866 = vpop.f32.mrf.mxu0
        %v7867 = vadd.f32 %v7854, %v7866
        %v7868 = vpop.f32.mrf.mxu0
        %7869 = vdwg.mxu0
        %7870 = vmatpush.bf16.msra.mxu0 %v6522
        %7871 = vmatpush.bf16.msra.mxu0 %v6514
        %7872 = vmatpush.bf16.msra.mxu0 %v6506
        %7873 = vmatpush.bf16.msra.mxu0 %v6498
        %7874 = vmatpush.bf16.msra.mxu0 %v6490
        %7875 = vmatpush.bf16.msra.mxu0 %v6482
        %7876 = vmatpush.bf16.msra.mxu0 %v6474
        %7877 = vmatpush.bf16.msra.mxu0 %v6466
        %7878 = vmatmul.bf16.gmra.mxu0 %v2812
        %v7879 = vpop.f32.mrf.mxu0
        %v7880 = vadd.f32 %v7867, %v7879
        %v7881 = vpop.f32.mrf.mxu0
        %7882 = vdwg.mxu0
        %7883 = vmatpush.bf16.msra.mxu0 %v6586
        %7884 = vmatpush.bf16.msra.mxu0 %v6578
        %7885 = vmatpush.bf16.msra.mxu0 %v6570
        %7886 = vmatpush.bf16.msra.mxu0 %v6562
        %7887 = vmatpush.bf16.msra.mxu0 %v6554
        %7888 = vmatpush.bf16.msra.mxu0 %v6546
        %7889 = vmatpush.bf16.msra.mxu0 %v6538
        %7890 = vmatpush.bf16.msra.mxu0 %v6530
        %7891 = vmatmul.bf16.gmra.mxu0 %v2813
        %v7892 = vpop.f32.mrf.mxu0
        %v7893 = vadd.f32 %v7880, %v7892
        %v7894 = vpop.f32.mrf.mxu0
        %7895 = vdwg.mxu0
        %7896 = vmatpush.bf16.msra.mxu0 %v6650
        %7897 = vmatpush.bf16.msra.mxu0 %v6642
        %7898 = vmatpush.bf16.msra.mxu0 %v6634
        %7899 = vmatpush.bf16.msra.mxu0 %v6626
        %7900 = vmatpush.bf16.msra.mxu0 %v6618
        %7901 = vmatpush.bf16.msra.mxu0 %v6610
        %7902 = vmatpush.bf16.msra.mxu0 %v6602
        %7903 = vmatpush.bf16.msra.mxu0 %v6594
        %7904 = vmatmul.bf16.gmra.mxu0 %v2814
        %v7905 = vpop.f32.mrf.mxu0
        %v7906 = vadd.f32 %v7893, %v7905
        %v7907 = vpop.f32.mrf.mxu0
        %7908 = vdwg.mxu0
        %7909 = vmatpush.bf16.msra.mxu0 %v5947
        %7910 = vmatpush.bf16.msra.mxu0 %v5939
        %7911 = vmatpush.bf16.msra.mxu0 %v5931
        %7912 = vmatpush.bf16.msra.mxu0 %v5923
        %7913 = vmatpush.bf16.msra.mxu0 %v5915
        %7914 = vmatpush.bf16.msra.mxu0 %v5907
        %7915 = vmatpush.bf16.msra.mxu0 %v5899
        %7916 = vmatpush.bf16.msra.mxu0 %v5891
        %7917 = vmatmul.bf16.gmra.mxu0 %v2803
        %v7918 = vpop.f32.mrf.mxu0
        %v7919 = vadd.f32 %v7428, %v7918
        %v7920 = vpop.f32.mrf.mxu0
        %7921 = vdwg.mxu0
        %7922 = vmatpush.bf16.msra.mxu0 %v6011
        %7923 = vmatpush.bf16.msra.mxu0 %v6003
        %7924 = vmatpush.bf16.msra.mxu0 %v5995
        %7925 = vmatpush.bf16.msra.mxu0 %v5987
        %7926 = vmatpush.bf16.msra.mxu0 %v5979
        %7927 = vmatpush.bf16.msra.mxu0 %v5971
        %7928 = vmatpush.bf16.msra.mxu0 %v5963
        %7929 = vmatpush.bf16.msra.mxu0 %v5955
        %7930 = vmatmul.bf16.gmra.mxu0 %v2804
        %v7931 = vpop.f32.mrf.mxu0
        %v7932 = vadd.f32 %v7919, %v7931
        %v7933 = vpop.f32.mrf.mxu0
        %7934 = vdwg.mxu0
        %7935 = vmatpush.bf16.msra.mxu0 %v6075
        %7936 = vmatpush.bf16.msra.mxu0 %v6067
        %7937 = vmatpush.bf16.msra.mxu0 %v6059
        %7938 = vmatpush.bf16.msra.mxu0 %v6051
        %7939 = vmatpush.bf16.msra.mxu0 %v6043
        %7940 = vmatpush.bf16.msra.mxu0 %v6035
        %7941 = vmatpush.bf16.msra.mxu0 %v6027
        %7942 = vmatpush.bf16.msra.mxu0 %v6019
        %7943 = vmatmul.bf16.gmra.mxu0 %v2805
        %v7944 = vpop.f32.mrf.mxu0
        %v7945 = vadd.f32 %v7932, %v7944
        %v7946 = vpop.f32.mrf.mxu0
        %7947 = vdwg.mxu0
        %7948 = vmatpush.bf16.msra.mxu0 %v6139
        %7949 = vmatpush.bf16.msra.mxu0 %v6131
        %7950 = vmatpush.bf16.msra.mxu0 %v6123
        %7951 = vmatpush.bf16.msra.mxu0 %v6115
        %7952 = vmatpush.bf16.msra.mxu0 %v6107
        %7953 = vmatpush.bf16.msra.mxu0 %v6099
        %7954 = vmatpush.bf16.msra.mxu0 %v6091
        %7955 = vmatpush.bf16.msra.mxu0 %v6083
        %7956 = vmatmul.bf16.gmra.mxu0 %v2806
        %v7957 = vpop.f32.mrf.mxu0
        %v7958 = vadd.f32 %v7945, %v7957
        %v7959 = vpop.f32.mrf.mxu0
        %7960 = vdwg.mxu0
        %7961 = vmatpush.bf16.msra.mxu0 %v6203
        %7962 = vmatpush.bf16.msra.mxu0 %v6195
        %7963 = vmatpush.bf16.msra.mxu0 %v6187
        %7964 = vmatpush.bf16.msra.mxu0 %v6179
        %7965 = vmatpush.bf16.msra.mxu0 %v6171
        %7966 = vmatpush.bf16.msra.mxu0 %v6163
        %7967 = vmatpush.bf16.msra.mxu0 %v6155
        %7968 = vmatpush.bf16.msra.mxu0 %v6147
        %7969 = vmatmul.bf16.gmra.mxu0 %v2807
        %v7970 = vpop.f32.mrf.mxu0
        %v7971 = vadd.f32 %v7958, %v7970
        %v7972 = vpop.f32.mrf.mxu0
        %7973 = vdwg.mxu0
        %7974 = vmatpush.bf16.msra.mxu0 %v6267
        %7975 = vmatpush.bf16.msra.mxu0 %v6259
        %7976 = vmatpush.bf16.msra.mxu0 %v6251
        %7977 = vmatpush.bf16.msra.mxu0 %v6243
        %7978 = vmatpush.bf16.msra.mxu0 %v6235
        %7979 = vmatpush.bf16.msra.mxu0 %v6227
        %7980 = vmatpush.bf16.msra.mxu0 %v6219
        %7981 = vmatpush.bf16.msra.mxu0 %v6211
        %7982 = vmatmul.bf16.gmra.mxu0 %v2808
        %v7983 = vpop.f32.mrf.mxu0
        %v7984 = vadd.f32 %v7971, %v7983
        %v7985 = vpop.f32.mrf.mxu0
        %7986 = vdwg.mxu0
        %7987 = vmatpush.bf16.msra.mxu0 %v6331
        %7988 = vmatpush.bf16.msra.mxu0 %v6323
        %7989 = vmatpush.bf16.msra.mxu0 %v6315
        %7990 = vmatpush.bf16.msra.mxu0 %v6307
        %7991 = vmatpush.bf16.msra.mxu0 %v6299
        %7992 = vmatpush.bf16.msra.mxu0 %v6291
        %7993 = vmatpush.bf16.msra.mxu0 %v6283
        %7994 = vmatpush.bf16.msra.mxu0 %v6275
        %7995 = vmatmul.bf16.gmra.mxu0 %v2809
        %v7996 = vpop.f32.mrf.mxu0
        %v7997 = vadd.f32 %v7984, %v7996
        %v7998 = vpop.f32.mrf.mxu0
        %7999 = vdwg.mxu0
        %8000 = vmatpush.bf16.msra.mxu0 %v6395
        %8001 = vmatpush.bf16.msra.mxu0 %v6387
        %8002 = vmatpush.bf16.msra.mxu0 %v6379
        %8003 = vmatpush.bf16.msra.mxu0 %v6371
        %8004 = vmatpush.bf16.msra.mxu0 %v6363
        %8005 = vmatpush.bf16.msra.mxu0 %v6355
        %8006 = vmatpush.bf16.msra.mxu0 %v6347
        %8007 = vmatpush.bf16.msra.mxu0 %v6339
        %8008 = vmatmul.bf16.gmra.mxu0 %v2810
        %v8009 = vpop.f32.mrf.mxu0
        %v8010 = vadd.f32 %v7997, %v8009
        %v8011 = vpop.f32.mrf.mxu0
        %8012 = vdwg.mxu0
        %8013 = vmatpush.bf16.msra.mxu0 %v6459
        %8014 = vmatpush.bf16.msra.mxu0 %v6451
        %8015 = vmatpush.bf16.msra.mxu0 %v6443
        %8016 = vmatpush.bf16.msra.mxu0 %v6435
        %8017 = vmatpush.bf16.msra.mxu0 %v6427
        %8018 = vmatpush.bf16.msra.mxu0 %v6419
        %8019 = vmatpush.bf16.msra.mxu0 %v6411
        %8020 = vmatpush.bf16.msra.mxu0 %v6403
        %8021 = vmatmul.bf16.gmra.mxu0 %v2811
        %v8022 = vpop.f32.mrf.mxu0
        %v8023 = vadd.f32 %v8010, %v8022
        %v8024 = vpop.f32.mrf.mxu0
        %8025 = vdwg.mxu0
        %8026 = vmatpush.bf16.msra.mxu0 %v6523
        %8027 = vmatpush.bf16.msra.mxu0 %v6515
        %8028 = vmatpush.bf16.msra.mxu0 %v6507
        %8029 = vmatpush.bf16.msra.mxu0 %v6499
        %8030 = vmatpush.bf16.msra.mxu0 %v6491
        %8031 = vmatpush.bf16.msra.mxu0 %v6483
        %8032 = vmatpush.bf16.msra.mxu0 %v6475
        %8033 = vmatpush.bf16.msra.mxu0 %v6467
        %8034 = vmatmul.bf16.gmra.mxu0 %v2812
        %v8035 = vpop.f32.mrf.mxu0
        %v8036 = vadd.f32 %v8023, %v8035
        %v8037 = vpop.f32.mrf.mxu0
        %8038 = vdwg.mxu0
        %8039 = vmatpush.bf16.msra.mxu0 %v6587
        %8040 = vmatpush.bf16.msra.mxu0 %v6579
        %8041 = vmatpush.bf16.msra.mxu0 %v6571
        %8042 = vmatpush.bf16.msra.mxu0 %v6563
        %8043 = vmatpush.bf16.msra.mxu0 %v6555
        %8044 = vmatpush.bf16.msra.mxu0 %v6547
        %8045 = vmatpush.bf16.msra.mxu0 %v6539
        %8046 = vmatpush.bf16.msra.mxu0 %v6531
        %8047 = vmatmul.bf16.gmra.mxu0 %v2813
        %v8048 = vpop.f32.mrf.mxu0
        %v8049 = vadd.f32 %v8036, %v8048
        %v8050 = vpop.f32.mrf.mxu0
        %8051 = vdwg.mxu0
        %8052 = vmatpush.bf16.msra.mxu0 %v6651
        %8053 = vmatpush.bf16.msra.mxu0 %v6643
        %8054 = vmatpush.bf16.msra.mxu0 %v6635
        %8055 = vmatpush.bf16.msra.mxu0 %v6627
        %8056 = vmatpush.bf16.msra.mxu0 %v6619
        %8057 = vmatpush.bf16.msra.mxu0 %v6611
        %8058 = vmatpush.bf16.msra.mxu0 %v6603
        %8059 = vmatpush.bf16.msra.mxu0 %v6595
        %8060 = vmatmul.bf16.gmra.mxu0 %v2814
        %v8061 = vpop.f32.mrf.mxu0
        %v8062 = vadd.f32 %v8049, %v8061
        %v8063 = vpop.f32.mrf.mxu0
        %8064 = vdwg.mxu0
        %8065 = vmatpush.bf16.msra.mxu0 %v5948
        %8066 = vmatpush.bf16.msra.mxu0 %v5940
        %8067 = vmatpush.bf16.msra.mxu0 %v5932
        %8068 = vmatpush.bf16.msra.mxu0 %v5924
        %8069 = vmatpush.bf16.msra.mxu0 %v5916
        %8070 = vmatpush.bf16.msra.mxu0 %v5908
        %8071 = vmatpush.bf16.msra.mxu0 %v5900
        %8072 = vmatpush.bf16.msra.mxu0 %v5892
        %8073 = vmatmul.bf16.gmra.mxu0 %v2803
        %v8074 = vpop.f32.mrf.mxu0
        %v8075 = vadd.f32 %v7429, %v8074
        %v8076 = vpop.f32.mrf.mxu0
        %8077 = vdwg.mxu0
        %8078 = vmatpush.bf16.msra.mxu0 %v6012
        %8079 = vmatpush.bf16.msra.mxu0 %v6004
        %8080 = vmatpush.bf16.msra.mxu0 %v5996
        %8081 = vmatpush.bf16.msra.mxu0 %v5988
        %8082 = vmatpush.bf16.msra.mxu0 %v5980
        %8083 = vmatpush.bf16.msra.mxu0 %v5972
        %8084 = vmatpush.bf16.msra.mxu0 %v5964
        %8085 = vmatpush.bf16.msra.mxu0 %v5956
        %8086 = vmatmul.bf16.gmra.mxu0 %v2804
        %v8087 = vpop.f32.mrf.mxu0
        %v8088 = vadd.f32 %v8075, %v8087
        %v8089 = vpop.f32.mrf.mxu0
        %8090 = vdwg.mxu0
        %8091 = vmatpush.bf16.msra.mxu0 %v6076
        %8092 = vmatpush.bf16.msra.mxu0 %v6068
        %8093 = vmatpush.bf16.msra.mxu0 %v6060
        %8094 = vmatpush.bf16.msra.mxu0 %v6052
        %8095 = vmatpush.bf16.msra.mxu0 %v6044
        %8096 = vmatpush.bf16.msra.mxu0 %v6036
        %8097 = vmatpush.bf16.msra.mxu0 %v6028
        %8098 = vmatpush.bf16.msra.mxu0 %v6020
        %8099 = vmatmul.bf16.gmra.mxu0 %v2805
        %v8100 = vpop.f32.mrf.mxu0
        %v8101 = vadd.f32 %v8088, %v8100
        %v8102 = vpop.f32.mrf.mxu0
        %8103 = vdwg.mxu0
        %8104 = vmatpush.bf16.msra.mxu0 %v6140
        %8105 = vmatpush.bf16.msra.mxu0 %v6132
        %8106 = vmatpush.bf16.msra.mxu0 %v6124
        %8107 = vmatpush.bf16.msra.mxu0 %v6116
        %8108 = vmatpush.bf16.msra.mxu0 %v6108
        %8109 = vmatpush.bf16.msra.mxu0 %v6100
        %8110 = vmatpush.bf16.msra.mxu0 %v6092
        %8111 = vmatpush.bf16.msra.mxu0 %v6084
        %8112 = vmatmul.bf16.gmra.mxu0 %v2806
        %v8113 = vpop.f32.mrf.mxu0
        %v8114 = vadd.f32 %v8101, %v8113
        %v8115 = vpop.f32.mrf.mxu0
        %8116 = vdwg.mxu0
        %8117 = vmatpush.bf16.msra.mxu0 %v6204
        %8118 = vmatpush.bf16.msra.mxu0 %v6196
        %8119 = vmatpush.bf16.msra.mxu0 %v6188
        %8120 = vmatpush.bf16.msra.mxu0 %v6180
        %8121 = vmatpush.bf16.msra.mxu0 %v6172
        %8122 = vmatpush.bf16.msra.mxu0 %v6164
        %8123 = vmatpush.bf16.msra.mxu0 %v6156
        %8124 = vmatpush.bf16.msra.mxu0 %v6148
        %8125 = vmatmul.bf16.gmra.mxu0 %v2807
        %v8126 = vpop.f32.mrf.mxu0
        %v8127 = vadd.f32 %v8114, %v8126
        %v8128 = vpop.f32.mrf.mxu0
        %8129 = vdwg.mxu0
        %8130 = vmatpush.bf16.msra.mxu0 %v6268
        %8131 = vmatpush.bf16.msra.mxu0 %v6260
        %8132 = vmatpush.bf16.msra.mxu0 %v6252
        %8133 = vmatpush.bf16.msra.mxu0 %v6244
        %8134 = vmatpush.bf16.msra.mxu0 %v6236
        %8135 = vmatpush.bf16.msra.mxu0 %v6228
        %8136 = vmatpush.bf16.msra.mxu0 %v6220
        %8137 = vmatpush.bf16.msra.mxu0 %v6212
        %8138 = vmatmul.bf16.gmra.mxu0 %v2808
        %v8139 = vpop.f32.mrf.mxu0
        %v8140 = vadd.f32 %v8127, %v8139
        %v8141 = vpop.f32.mrf.mxu0
        %8142 = vdwg.mxu0
        %8143 = vmatpush.bf16.msra.mxu0 %v6332
        %8144 = vmatpush.bf16.msra.mxu0 %v6324
        %8145 = vmatpush.bf16.msra.mxu0 %v6316
        %8146 = vmatpush.bf16.msra.mxu0 %v6308
        %8147 = vmatpush.bf16.msra.mxu0 %v6300
        %8148 = vmatpush.bf16.msra.mxu0 %v6292
        %8149 = vmatpush.bf16.msra.mxu0 %v6284
        %8150 = vmatpush.bf16.msra.mxu0 %v6276
        %8151 = vmatmul.bf16.gmra.mxu0 %v2809
        %v8152 = vpop.f32.mrf.mxu0
        %v8153 = vadd.f32 %v8140, %v8152
        %v8154 = vpop.f32.mrf.mxu0
        %8155 = vdwg.mxu0
        %8156 = vmatpush.bf16.msra.mxu0 %v6396
        %8157 = vmatpush.bf16.msra.mxu0 %v6388
        %8158 = vmatpush.bf16.msra.mxu0 %v6380
        %8159 = vmatpush.bf16.msra.mxu0 %v6372
        %8160 = vmatpush.bf16.msra.mxu0 %v6364
        %8161 = vmatpush.bf16.msra.mxu0 %v6356
        %8162 = vmatpush.bf16.msra.mxu0 %v6348
        %8163 = vmatpush.bf16.msra.mxu0 %v6340
        %8164 = vmatmul.bf16.gmra.mxu0 %v2810
        %v8165 = vpop.f32.mrf.mxu0
        %v8166 = vadd.f32 %v8153, %v8165
        %v8167 = vpop.f32.mrf.mxu0
        %8168 = vdwg.mxu0
        %8169 = vmatpush.bf16.msra.mxu0 %v6460
        %8170 = vmatpush.bf16.msra.mxu0 %v6452
        %8171 = vmatpush.bf16.msra.mxu0 %v6444
        %8172 = vmatpush.bf16.msra.mxu0 %v6436
        %8173 = vmatpush.bf16.msra.mxu0 %v6428
        %8174 = vmatpush.bf16.msra.mxu0 %v6420
        %8175 = vmatpush.bf16.msra.mxu0 %v6412
        %8176 = vmatpush.bf16.msra.mxu0 %v6404
        %8177 = vmatmul.bf16.gmra.mxu0 %v2811
        %v8178 = vpop.f32.mrf.mxu0
        %v8179 = vadd.f32 %v8166, %v8178
        %v8180 = vpop.f32.mrf.mxu0
        %8181 = vdwg.mxu0
        %8182 = vmatpush.bf16.msra.mxu0 %v6524
        %8183 = vmatpush.bf16.msra.mxu0 %v6516
        %8184 = vmatpush.bf16.msra.mxu0 %v6508
        %8185 = vmatpush.bf16.msra.mxu0 %v6500
        %8186 = vmatpush.bf16.msra.mxu0 %v6492
        %8187 = vmatpush.bf16.msra.mxu0 %v6484
        %8188 = vmatpush.bf16.msra.mxu0 %v6476
        %8189 = vmatpush.bf16.msra.mxu0 %v6468
        %8190 = vmatmul.bf16.gmra.mxu0 %v2812
        %v8191 = vpop.f32.mrf.mxu0
        %v8192 = vadd.f32 %v8179, %v8191
        %v8193 = vpop.f32.mrf.mxu0
        %8194 = vdwg.mxu0
        %8195 = vmatpush.bf16.msra.mxu0 %v6588
        %8196 = vmatpush.bf16.msra.mxu0 %v6580
        %8197 = vmatpush.bf16.msra.mxu0 %v6572
        %8198 = vmatpush.bf16.msra.mxu0 %v6564
        %8199 = vmatpush.bf16.msra.mxu0 %v6556
        %8200 = vmatpush.bf16.msra.mxu0 %v6548
        %8201 = vmatpush.bf16.msra.mxu0 %v6540
        %8202 = vmatpush.bf16.msra.mxu0 %v6532
        %8203 = vmatmul.bf16.gmra.mxu0 %v2813
        %v8204 = vpop.f32.mrf.mxu0
        %v8205 = vadd.f32 %v8192, %v8204
        %v8206 = vpop.f32.mrf.mxu0
        %8207 = vdwg.mxu0
        %8208 = vmatpush.bf16.msra.mxu0 %v6652
        %8209 = vmatpush.bf16.msra.mxu0 %v6644
        %8210 = vmatpush.bf16.msra.mxu0 %v6636
        %8211 = vmatpush.bf16.msra.mxu0 %v6628
        %8212 = vmatpush.bf16.msra.mxu0 %v6620
        %8213 = vmatpush.bf16.msra.mxu0 %v6612
        %8214 = vmatpush.bf16.msra.mxu0 %v6604
        %8215 = vmatpush.bf16.msra.mxu0 %v6596
        %8216 = vmatmul.bf16.gmra.mxu0 %v2814
        %v8217 = vpop.f32.mrf.mxu0
        %v8218 = vadd.f32 %v8205, %v8217
        %v8219 = vpop.f32.mrf.mxu0
        %8220 = vdwg.mxu0
        %8221 = vmatpush.bf16.msra.mxu0 %v5949
        %8222 = vmatpush.bf16.msra.mxu0 %v5941
        %8223 = vmatpush.bf16.msra.mxu0 %v5933
        %8224 = vmatpush.bf16.msra.mxu0 %v5925
        %8225 = vmatpush.bf16.msra.mxu0 %v5917
        %8226 = vmatpush.bf16.msra.mxu0 %v5909
        %8227 = vmatpush.bf16.msra.mxu0 %v5901
        %8228 = vmatpush.bf16.msra.mxu0 %v5893
        %8229 = vmatmul.bf16.gmra.mxu0 %v2803
        %v8230 = vpop.f32.mrf.mxu0
        %v8231 = vadd.f32 %v7430, %v8230
        %v8232 = vpop.f32.mrf.mxu0
        %8233 = vdwg.mxu0
        %8234 = vmatpush.bf16.msra.mxu0 %v6013
        %8235 = vmatpush.bf16.msra.mxu0 %v6005
        %8236 = vmatpush.bf16.msra.mxu0 %v5997
        %8237 = vmatpush.bf16.msra.mxu0 %v5989
        %8238 = vmatpush.bf16.msra.mxu0 %v5981
        %8239 = vmatpush.bf16.msra.mxu0 %v5973
        %8240 = vmatpush.bf16.msra.mxu0 %v5965
        %8241 = vmatpush.bf16.msra.mxu0 %v5957
        %8242 = vmatmul.bf16.gmra.mxu0 %v2804
        %v8243 = vpop.f32.mrf.mxu0
        %v8244 = vadd.f32 %v8231, %v8243
        %v8245 = vpop.f32.mrf.mxu0
        %8246 = vdwg.mxu0
        %8247 = vmatpush.bf16.msra.mxu0 %v6077
        %8248 = vmatpush.bf16.msra.mxu0 %v6069
        %8249 = vmatpush.bf16.msra.mxu0 %v6061
        %8250 = vmatpush.bf16.msra.mxu0 %v6053
        %8251 = vmatpush.bf16.msra.mxu0 %v6045
        %8252 = vmatpush.bf16.msra.mxu0 %v6037
        %8253 = vmatpush.bf16.msra.mxu0 %v6029
        %8254 = vmatpush.bf16.msra.mxu0 %v6021
        %8255 = vmatmul.bf16.gmra.mxu0 %v2805
        %v8256 = vpop.f32.mrf.mxu0
        %v8257 = vadd.f32 %v8244, %v8256
        %v8258 = vpop.f32.mrf.mxu0
        %8259 = vdwg.mxu0
        %8260 = vmatpush.bf16.msra.mxu0 %v6141
        %8261 = vmatpush.bf16.msra.mxu0 %v6133
        %8262 = vmatpush.bf16.msra.mxu0 %v6125
        %8263 = vmatpush.bf16.msra.mxu0 %v6117
        %8264 = vmatpush.bf16.msra.mxu0 %v6109
        %8265 = vmatpush.bf16.msra.mxu0 %v6101
        %8266 = vmatpush.bf16.msra.mxu0 %v6093
        %8267 = vmatpush.bf16.msra.mxu0 %v6085
        %8268 = vmatmul.bf16.gmra.mxu0 %v2806
        %v8269 = vpop.f32.mrf.mxu0
        %v8270 = vadd.f32 %v8257, %v8269
        %v8271 = vpop.f32.mrf.mxu0
        %8272 = vdwg.mxu0
        %8273 = vmatpush.bf16.msra.mxu0 %v6205
        %8274 = vmatpush.bf16.msra.mxu0 %v6197
        %8275 = vmatpush.bf16.msra.mxu0 %v6189
        %8276 = vmatpush.bf16.msra.mxu0 %v6181
        %8277 = vmatpush.bf16.msra.mxu0 %v6173
        %8278 = vmatpush.bf16.msra.mxu0 %v6165
        %8279 = vmatpush.bf16.msra.mxu0 %v6157
        %8280 = vmatpush.bf16.msra.mxu0 %v6149
        %8281 = vmatmul.bf16.gmra.mxu0 %v2807
        %v8282 = vpop.f32.mrf.mxu0
        %v8283 = vadd.f32 %v8270, %v8282
        %v8284 = vpop.f32.mrf.mxu0
        %8285 = vdwg.mxu0
        %8286 = vmatpush.bf16.msra.mxu0 %v6269
        %8287 = vmatpush.bf16.msra.mxu0 %v6261
        %8288 = vmatpush.bf16.msra.mxu0 %v6253
        %8289 = vmatpush.bf16.msra.mxu0 %v6245
        %8290 = vmatpush.bf16.msra.mxu0 %v6237
        %8291 = vmatpush.bf16.msra.mxu0 %v6229
        %8292 = vmatpush.bf16.msra.mxu0 %v6221
        %8293 = vmatpush.bf16.msra.mxu0 %v6213
        %8294 = vmatmul.bf16.gmra.mxu0 %v2808
        %v8295 = vpop.f32.mrf.mxu0
        %v8296 = vadd.f32 %v8283, %v8295
        %v8297 = vpop.f32.mrf.mxu0
        %8298 = vdwg.mxu0
        %8299 = vmatpush.bf16.msra.mxu0 %v6333
        %8300 = vmatpush.bf16.msra.mxu0 %v6325
        %8301 = vmatpush.bf16.msra.mxu0 %v6317
        %8302 = vmatpush.bf16.msra.mxu0 %v6309
        %8303 = vmatpush.bf16.msra.mxu0 %v6301
        %8304 = vmatpush.bf16.msra.mxu0 %v6293
        %8305 = vmatpush.bf16.msra.mxu0 %v6285
        %8306 = vmatpush.bf16.msra.mxu0 %v6277
        %8307 = vmatmul.bf16.gmra.mxu0 %v2809
        %v8308 = vpop.f32.mrf.mxu0
        %v8309 = vadd.f32 %v8296, %v8308
        %v8310 = vpop.f32.mrf.mxu0
        %8311 = vdwg.mxu0
        %8312 = vmatpush.bf16.msra.mxu0 %v6397
        %8313 = vmatpush.bf16.msra.mxu0 %v6389
        %8314 = vmatpush.bf16.msra.mxu0 %v6381
        %8315 = vmatpush.bf16.msra.mxu0 %v6373
        %8316 = vmatpush.bf16.msra.mxu0 %v6365
        %8317 = vmatpush.bf16.msra.mxu0 %v6357
        %8318 = vmatpush.bf16.msra.mxu0 %v6349
        %8319 = vmatpush.bf16.msra.mxu0 %v6341
        %8320 = vmatmul.bf16.gmra.mxu0 %v2810
        %v8321 = vpop.f32.mrf.mxu0
        %v8322 = vadd.f32 %v8309, %v8321
        %v8323 = vpop.f32.mrf.mxu0
        %8324 = vdwg.mxu0
        %8325 = vmatpush.bf16.msra.mxu0 %v6461
        %8326 = vmatpush.bf16.msra.mxu0 %v6453
        %8327 = vmatpush.bf16.msra.mxu0 %v6445
        %8328 = vmatpush.bf16.msra.mxu0 %v6437
        %8329 = vmatpush.bf16.msra.mxu0 %v6429
        %8330 = vmatpush.bf16.msra.mxu0 %v6421
        %8331 = vmatpush.bf16.msra.mxu0 %v6413
        %8332 = vmatpush.bf16.msra.mxu0 %v6405
        %8333 = vmatmul.bf16.gmra.mxu0 %v2811
        %v8334 = vpop.f32.mrf.mxu0
        %v8335 = vadd.f32 %v8322, %v8334
        %v8336 = vpop.f32.mrf.mxu0
        %8337 = vdwg.mxu0
        %8338 = vmatpush.bf16.msra.mxu0 %v6525
        %8339 = vmatpush.bf16.msra.mxu0 %v6517
        %8340 = vmatpush.bf16.msra.mxu0 %v6509
        %8341 = vmatpush.bf16.msra.mxu0 %v6501
        %8342 = vmatpush.bf16.msra.mxu0 %v6493
        %8343 = vmatpush.bf16.msra.mxu0 %v6485
        %8344 = vmatpush.bf16.msra.mxu0 %v6477
        %8345 = vmatpush.bf16.msra.mxu0 %v6469
        %8346 = vmatmul.bf16.gmra.mxu0 %v2812
        %v8347 = vpop.f32.mrf.mxu0
        %v8348 = vadd.f32 %v8335, %v8347
        %v8349 = vpop.f32.mrf.mxu0
        %8350 = vdwg.mxu0
        %8351 = vmatpush.bf16.msra.mxu0 %v6589
        %8352 = vmatpush.bf16.msra.mxu0 %v6581
        %8353 = vmatpush.bf16.msra.mxu0 %v6573
        %8354 = vmatpush.bf16.msra.mxu0 %v6565
        %8355 = vmatpush.bf16.msra.mxu0 %v6557
        %8356 = vmatpush.bf16.msra.mxu0 %v6549
        %8357 = vmatpush.bf16.msra.mxu0 %v6541
        %8358 = vmatpush.bf16.msra.mxu0 %v6533
        %8359 = vmatmul.bf16.gmra.mxu0 %v2813
        %v8360 = vpop.f32.mrf.mxu0
        %v8361 = vadd.f32 %v8348, %v8360
        %v8362 = vpop.f32.mrf.mxu0
        %8363 = vdwg.mxu0
        %8364 = vmatpush.bf16.msra.mxu0 %v6653
        %8365 = vmatpush.bf16.msra.mxu0 %v6645
        %8366 = vmatpush.bf16.msra.mxu0 %v6637
        %8367 = vmatpush.bf16.msra.mxu0 %v6629
        %8368 = vmatpush.bf16.msra.mxu0 %v6621
        %8369 = vmatpush.bf16.msra.mxu0 %v6613
        %8370 = vmatpush.bf16.msra.mxu0 %v6605
        %8371 = vmatpush.bf16.msra.mxu0 %v6597
        %8372 = vmatmul.bf16.gmra.mxu0 %v2814
        %v8373 = vpop.f32.mrf.mxu0
        %v8374 = vadd.f32 %v8361, %v8373
        %v8375 = vpop.f32.mrf.mxu0
        %8376 = vdwg.mxu0
        %8377 = vmatpush.bf16.msra.mxu0 %v5950
        %8378 = vmatpush.bf16.msra.mxu0 %v5942
        %8379 = vmatpush.bf16.msra.mxu0 %v5934
        %8380 = vmatpush.bf16.msra.mxu0 %v5926
        %8381 = vmatpush.bf16.msra.mxu0 %v5918
        %8382 = vmatpush.bf16.msra.mxu0 %v5910
        %8383 = vmatpush.bf16.msra.mxu0 %v5902
        %8384 = vmatpush.bf16.msra.mxu0 %v5894
        %8385 = vmatmul.bf16.gmra.mxu0 %v2803
        %v8386 = vpop.f32.mrf.mxu0
        %v8387 = vadd.f32 %v7431, %v8386
        %v8388 = vpop.f32.mrf.mxu0
        %8389 = vdwg.mxu0
        %8390 = vmatpush.bf16.msra.mxu0 %v6014
        %8391 = vmatpush.bf16.msra.mxu0 %v6006
        %8392 = vmatpush.bf16.msra.mxu0 %v5998
        %8393 = vmatpush.bf16.msra.mxu0 %v5990
        %8394 = vmatpush.bf16.msra.mxu0 %v5982
        %8395 = vmatpush.bf16.msra.mxu0 %v5974
        %8396 = vmatpush.bf16.msra.mxu0 %v5966
        %8397 = vmatpush.bf16.msra.mxu0 %v5958
        %8398 = vmatmul.bf16.gmra.mxu0 %v2804
        %v8399 = vpop.f32.mrf.mxu0
        %v8400 = vadd.f32 %v8387, %v8399
        %v8401 = vpop.f32.mrf.mxu0
        %8402 = vdwg.mxu0
        %8403 = vmatpush.bf16.msra.mxu0 %v6078
        %8404 = vmatpush.bf16.msra.mxu0 %v6070
        %8405 = vmatpush.bf16.msra.mxu0 %v6062
        %8406 = vmatpush.bf16.msra.mxu0 %v6054
        %8407 = vmatpush.bf16.msra.mxu0 %v6046
        %8408 = vmatpush.bf16.msra.mxu0 %v6038
        %8409 = vmatpush.bf16.msra.mxu0 %v6030
        %8410 = vmatpush.bf16.msra.mxu0 %v6022
        %8411 = vmatmul.bf16.gmra.mxu0 %v2805
        %v8412 = vpop.f32.mrf.mxu0
        %v8413 = vadd.f32 %v8400, %v8412
        %v8414 = vpop.f32.mrf.mxu0
        %8415 = vdwg.mxu0
        %8416 = vmatpush.bf16.msra.mxu0 %v6142
        %8417 = vmatpush.bf16.msra.mxu0 %v6134
        %8418 = vmatpush.bf16.msra.mxu0 %v6126
        %8419 = vmatpush.bf16.msra.mxu0 %v6118
        %8420 = vmatpush.bf16.msra.mxu0 %v6110
        %8421 = vmatpush.bf16.msra.mxu0 %v6102
        %8422 = vmatpush.bf16.msra.mxu0 %v6094
        %8423 = vmatpush.bf16.msra.mxu0 %v6086
        %8424 = vmatmul.bf16.gmra.mxu0 %v2806
        %v8425 = vpop.f32.mrf.mxu0
        %v8426 = vadd.f32 %v8413, %v8425
        %v8427 = vpop.f32.mrf.mxu0
        %8428 = vdwg.mxu0
        %8429 = vmatpush.bf16.msra.mxu0 %v6206
        %8430 = vmatpush.bf16.msra.mxu0 %v6198
        %8431 = vmatpush.bf16.msra.mxu0 %v6190
        %8432 = vmatpush.bf16.msra.mxu0 %v6182
        %8433 = vmatpush.bf16.msra.mxu0 %v6174
        %8434 = vmatpush.bf16.msra.mxu0 %v6166
        %8435 = vmatpush.bf16.msra.mxu0 %v6158
        %8436 = vmatpush.bf16.msra.mxu0 %v6150
        %8437 = vmatmul.bf16.gmra.mxu0 %v2807
        %v8438 = vpop.f32.mrf.mxu0
        %v8439 = vadd.f32 %v8426, %v8438
        %v8440 = vpop.f32.mrf.mxu0
        %8441 = vdwg.mxu0
        %8442 = vmatpush.bf16.msra.mxu0 %v6270
        %8443 = vmatpush.bf16.msra.mxu0 %v6262
        %8444 = vmatpush.bf16.msra.mxu0 %v6254
        %8445 = vmatpush.bf16.msra.mxu0 %v6246
        %8446 = vmatpush.bf16.msra.mxu0 %v6238
        %8447 = vmatpush.bf16.msra.mxu0 %v6230
        %8448 = vmatpush.bf16.msra.mxu0 %v6222
        %8449 = vmatpush.bf16.msra.mxu0 %v6214
        %8450 = vmatmul.bf16.gmra.mxu0 %v2808
        %v8451 = vpop.f32.mrf.mxu0
        %v8452 = vadd.f32 %v8439, %v8451
        %v8453 = vpop.f32.mrf.mxu0
        %8454 = vdwg.mxu0
        %8455 = vmatpush.bf16.msra.mxu0 %v6334
        %8456 = vmatpush.bf16.msra.mxu0 %v6326
        %8457 = vmatpush.bf16.msra.mxu0 %v6318
        %8458 = vmatpush.bf16.msra.mxu0 %v6310
        %8459 = vmatpush.bf16.msra.mxu0 %v6302
        %8460 = vmatpush.bf16.msra.mxu0 %v6294
        %8461 = vmatpush.bf16.msra.mxu0 %v6286
        %8462 = vmatpush.bf16.msra.mxu0 %v6278
        %8463 = vmatmul.bf16.gmra.mxu0 %v2809
        %v8464 = vpop.f32.mrf.mxu0
        %v8465 = vadd.f32 %v8452, %v8464
        %v8466 = vpop.f32.mrf.mxu0
        %8467 = vdwg.mxu0
        %8468 = vmatpush.bf16.msra.mxu0 %v6398
        %8469 = vmatpush.bf16.msra.mxu0 %v6390
        %8470 = vmatpush.bf16.msra.mxu0 %v6382
        %8471 = vmatpush.bf16.msra.mxu0 %v6374
        %8472 = vmatpush.bf16.msra.mxu0 %v6366
        %8473 = vmatpush.bf16.msra.mxu0 %v6358
        %8474 = vmatpush.bf16.msra.mxu0 %v6350
        %8475 = vmatpush.bf16.msra.mxu0 %v6342
        %8476 = vmatmul.bf16.gmra.mxu0 %v2810
        %v8477 = vpop.f32.mrf.mxu0
        %v8478 = vadd.f32 %v8465, %v8477
        %v8479 = vpop.f32.mrf.mxu0
        %8480 = vdwg.mxu0
        %8481 = vmatpush.bf16.msra.mxu0 %v6462
        %8482 = vmatpush.bf16.msra.mxu0 %v6454
        %8483 = vmatpush.bf16.msra.mxu0 %v6446
        %8484 = vmatpush.bf16.msra.mxu0 %v6438
        %8485 = vmatpush.bf16.msra.mxu0 %v6430
        %8486 = vmatpush.bf16.msra.mxu0 %v6422
        %8487 = vmatpush.bf16.msra.mxu0 %v6414
        %8488 = vmatpush.bf16.msra.mxu0 %v6406
        %8489 = vmatmul.bf16.gmra.mxu0 %v2811
        %v8490 = vpop.f32.mrf.mxu0
        %v8491 = vadd.f32 %v8478, %v8490
        %v8492 = vpop.f32.mrf.mxu0
        %8493 = vdwg.mxu0
        %8494 = vmatpush.bf16.msra.mxu0 %v6526
        %8495 = vmatpush.bf16.msra.mxu0 %v6518
        %8496 = vmatpush.bf16.msra.mxu0 %v6510
        %8497 = vmatpush.bf16.msra.mxu0 %v6502
        %8498 = vmatpush.bf16.msra.mxu0 %v6494
        %8499 = vmatpush.bf16.msra.mxu0 %v6486
        %8500 = vmatpush.bf16.msra.mxu0 %v6478
        %8501 = vmatpush.bf16.msra.mxu0 %v6470
        %8502 = vmatmul.bf16.gmra.mxu0 %v2812
        %v8503 = vpop.f32.mrf.mxu0
        %v8504 = vadd.f32 %v8491, %v8503
        %v8505 = vpop.f32.mrf.mxu0
        %8506 = vdwg.mxu0
        %8507 = vmatpush.bf16.msra.mxu0 %v6590
        %8508 = vmatpush.bf16.msra.mxu0 %v6582
        %8509 = vmatpush.bf16.msra.mxu0 %v6574
        %8510 = vmatpush.bf16.msra.mxu0 %v6566
        %8511 = vmatpush.bf16.msra.mxu0 %v6558
        %8512 = vmatpush.bf16.msra.mxu0 %v6550
        %8513 = vmatpush.bf16.msra.mxu0 %v6542
        %8514 = vmatpush.bf16.msra.mxu0 %v6534
        %8515 = vmatmul.bf16.gmra.mxu0 %v2813
        %v8516 = vpop.f32.mrf.mxu0
        %v8517 = vadd.f32 %v8504, %v8516
        %v8518 = vpop.f32.mrf.mxu0
        %8519 = vdwg.mxu0
        %8520 = vmatpush.bf16.msra.mxu0 %v6654
        %8521 = vmatpush.bf16.msra.mxu0 %v6646
        %8522 = vmatpush.bf16.msra.mxu0 %v6638
        %8523 = vmatpush.bf16.msra.mxu0 %v6630
        %8524 = vmatpush.bf16.msra.mxu0 %v6622
        %8525 = vmatpush.bf16.msra.mxu0 %v6614
        %8526 = vmatpush.bf16.msra.mxu0 %v6606
        %8527 = vmatpush.bf16.msra.mxu0 %v6598
        %8528 = vmatmul.bf16.gmra.mxu0 %v2814
        %v8529 = vpop.f32.mrf.mxu0
        %v8530 = vadd.f32 %v8517, %v8529
        %v8531 = vpop.f32.mrf.mxu0
        %8532 = vdwg.mxu0
        %8533 = vmatpush.bf16.msra.mxu0 %v5951
        %8534 = vmatpush.bf16.msra.mxu0 %v5943
        %8535 = vmatpush.bf16.msra.mxu0 %v5935
        %8536 = vmatpush.bf16.msra.mxu0 %v5927
        %8537 = vmatpush.bf16.msra.mxu0 %v5919
        %8538 = vmatpush.bf16.msra.mxu0 %v5911
        %8539 = vmatpush.bf16.msra.mxu0 %v5903
        %8540 = vmatpush.bf16.msra.mxu0 %v5895
        %8541 = vmatmul.bf16.gmra.mxu0 %v2803
        %v8542 = vpop.f32.mrf.mxu0
        %v8543 = vadd.f32 %v7432, %v8542
        %v8544 = vpop.f32.mrf.mxu0
        %8545 = vdwg.mxu0
        %8546 = vmatpush.bf16.msra.mxu0 %v6015
        %8547 = vmatpush.bf16.msra.mxu0 %v6007
        %8548 = vmatpush.bf16.msra.mxu0 %v5999
        %8549 = vmatpush.bf16.msra.mxu0 %v5991
        %8550 = vmatpush.bf16.msra.mxu0 %v5983
        %8551 = vmatpush.bf16.msra.mxu0 %v5975
        %8552 = vmatpush.bf16.msra.mxu0 %v5967
        %8553 = vmatpush.bf16.msra.mxu0 %v5959
        %8554 = vmatmul.bf16.gmra.mxu0 %v2804
        %v8555 = vpop.f32.mrf.mxu0
        %v8556 = vadd.f32 %v8543, %v8555
        %v8557 = vpop.f32.mrf.mxu0
        %8558 = vdwg.mxu0
        %8559 = vmatpush.bf16.msra.mxu0 %v6079
        %8560 = vmatpush.bf16.msra.mxu0 %v6071
        %8561 = vmatpush.bf16.msra.mxu0 %v6063
        %8562 = vmatpush.bf16.msra.mxu0 %v6055
        %8563 = vmatpush.bf16.msra.mxu0 %v6047
        %8564 = vmatpush.bf16.msra.mxu0 %v6039
        %8565 = vmatpush.bf16.msra.mxu0 %v6031
        %8566 = vmatpush.bf16.msra.mxu0 %v6023
        %8567 = vmatmul.bf16.gmra.mxu0 %v2805
        %v8568 = vpop.f32.mrf.mxu0
        %v8569 = vadd.f32 %v8556, %v8568
        %v8570 = vpop.f32.mrf.mxu0
        %8571 = vdwg.mxu0
        %8572 = vmatpush.bf16.msra.mxu0 %v6143
        %8573 = vmatpush.bf16.msra.mxu0 %v6135
        %8574 = vmatpush.bf16.msra.mxu0 %v6127
        %8575 = vmatpush.bf16.msra.mxu0 %v6119
        %8576 = vmatpush.bf16.msra.mxu0 %v6111
        %8577 = vmatpush.bf16.msra.mxu0 %v6103
        %8578 = vmatpush.bf16.msra.mxu0 %v6095
        %8579 = vmatpush.bf16.msra.mxu0 %v6087
        %8580 = vmatmul.bf16.gmra.mxu0 %v2806
        %v8581 = vpop.f32.mrf.mxu0
        %v8582 = vadd.f32 %v8569, %v8581
        %v8583 = vpop.f32.mrf.mxu0
        %8584 = vdwg.mxu0
        %8585 = vmatpush.bf16.msra.mxu0 %v6207
        %8586 = vmatpush.bf16.msra.mxu0 %v6199
        %8587 = vmatpush.bf16.msra.mxu0 %v6191
        %8588 = vmatpush.bf16.msra.mxu0 %v6183
        %8589 = vmatpush.bf16.msra.mxu0 %v6175
        %8590 = vmatpush.bf16.msra.mxu0 %v6167
        %8591 = vmatpush.bf16.msra.mxu0 %v6159
        %8592 = vmatpush.bf16.msra.mxu0 %v6151
        %8593 = vmatmul.bf16.gmra.mxu0 %v2807
        %v8594 = vpop.f32.mrf.mxu0
        %v8595 = vadd.f32 %v8582, %v8594
        %v8596 = vpop.f32.mrf.mxu0
        %8597 = vdwg.mxu0
        %8598 = vmatpush.bf16.msra.mxu0 %v6271
        %8599 = vmatpush.bf16.msra.mxu0 %v6263
        %8600 = vmatpush.bf16.msra.mxu0 %v6255
        %8601 = vmatpush.bf16.msra.mxu0 %v6247
        %8602 = vmatpush.bf16.msra.mxu0 %v6239
        %8603 = vmatpush.bf16.msra.mxu0 %v6231
        %8604 = vmatpush.bf16.msra.mxu0 %v6223
        %8605 = vmatpush.bf16.msra.mxu0 %v6215
        %8606 = vmatmul.bf16.gmra.mxu0 %v2808
        %v8607 = vpop.f32.mrf.mxu0
        %v8608 = vadd.f32 %v8595, %v8607
        %v8609 = vpop.f32.mrf.mxu0
        %8610 = vdwg.mxu0
        %8611 = vmatpush.bf16.msra.mxu0 %v6335
        %8612 = vmatpush.bf16.msra.mxu0 %v6327
        %8613 = vmatpush.bf16.msra.mxu0 %v6319
        %8614 = vmatpush.bf16.msra.mxu0 %v6311
        %8615 = vmatpush.bf16.msra.mxu0 %v6303
        %8616 = vmatpush.bf16.msra.mxu0 %v6295
        %8617 = vmatpush.bf16.msra.mxu0 %v6287
        %8618 = vmatpush.bf16.msra.mxu0 %v6279
        %8619 = vmatmul.bf16.gmra.mxu0 %v2809
        %v8620 = vpop.f32.mrf.mxu0
        %v8621 = vadd.f32 %v8608, %v8620
        %v8622 = vpop.f32.mrf.mxu0
        %8623 = vdwg.mxu0
        %8624 = vmatpush.bf16.msra.mxu0 %v6399
        %8625 = vmatpush.bf16.msra.mxu0 %v6391
        %8626 = vmatpush.bf16.msra.mxu0 %v6383
        %8627 = vmatpush.bf16.msra.mxu0 %v6375
        %8628 = vmatpush.bf16.msra.mxu0 %v6367
        %8629 = vmatpush.bf16.msra.mxu0 %v6359
        %8630 = vmatpush.bf16.msra.mxu0 %v6351
        %8631 = vmatpush.bf16.msra.mxu0 %v6343
        %8632 = vmatmul.bf16.gmra.mxu0 %v2810
        %v8633 = vpop.f32.mrf.mxu0
        %v8634 = vadd.f32 %v8621, %v8633
        %v8635 = vpop.f32.mrf.mxu0
        %8636 = vdwg.mxu0
        %8637 = vmatpush.bf16.msra.mxu0 %v6463
        %8638 = vmatpush.bf16.msra.mxu0 %v6455
        %8639 = vmatpush.bf16.msra.mxu0 %v6447
        %8640 = vmatpush.bf16.msra.mxu0 %v6439
        %8641 = vmatpush.bf16.msra.mxu0 %v6431
        %8642 = vmatpush.bf16.msra.mxu0 %v6423
        %8643 = vmatpush.bf16.msra.mxu0 %v6415
        %8644 = vmatpush.bf16.msra.mxu0 %v6407
        %8645 = vmatmul.bf16.gmra.mxu0 %v2811
        %v8646 = vpop.f32.mrf.mxu0
        %v8647 = vadd.f32 %v8634, %v8646
        %v8648 = vpop.f32.mrf.mxu0
        %8649 = vdwg.mxu0
        %8650 = vmatpush.bf16.msra.mxu0 %v6527
        %8651 = vmatpush.bf16.msra.mxu0 %v6519
        %8652 = vmatpush.bf16.msra.mxu0 %v6511
        %8653 = vmatpush.bf16.msra.mxu0 %v6503
        %8654 = vmatpush.bf16.msra.mxu0 %v6495
        %8655 = vmatpush.bf16.msra.mxu0 %v6487
        %8656 = vmatpush.bf16.msra.mxu0 %v6479
        %8657 = vmatpush.bf16.msra.mxu0 %v6471
        %8658 = vmatmul.bf16.gmra.mxu0 %v2812
        %v8659 = vpop.f32.mrf.mxu0
        %v8660 = vadd.f32 %v8647, %v8659
        %v8661 = vpop.f32.mrf.mxu0
        %8662 = vdwg.mxu0
        %8663 = vmatpush.bf16.msra.mxu0 %v6591
        %8664 = vmatpush.bf16.msra.mxu0 %v6583
        %8665 = vmatpush.bf16.msra.mxu0 %v6575
        %8666 = vmatpush.bf16.msra.mxu0 %v6567
        %8667 = vmatpush.bf16.msra.mxu0 %v6559
        %8668 = vmatpush.bf16.msra.mxu0 %v6551
        %8669 = vmatpush.bf16.msra.mxu0 %v6543
        %8670 = vmatpush.bf16.msra.mxu0 %v6535
        %8671 = vmatmul.bf16.gmra.mxu0 %v2813
        %v8672 = vpop.f32.mrf.mxu0
        %v8673 = vadd.f32 %v8660, %v8672
        %v8674 = vpop.f32.mrf.mxu0
        %8675 = vdwg.mxu0
        %8676 = vmatpush.bf16.msra.mxu0 %v6655
        %8677 = vmatpush.bf16.msra.mxu0 %v6647
        %8678 = vmatpush.bf16.msra.mxu0 %v6639
        %8679 = vmatpush.bf16.msra.mxu0 %v6631
        %8680 = vmatpush.bf16.msra.mxu0 %v6623
        %8681 = vmatpush.bf16.msra.mxu0 %v6615
        %8682 = vmatpush.bf16.msra.mxu0 %v6607
        %8683 = vmatpush.bf16.msra.mxu0 %v6599
        %8684 = vmatmul.bf16.gmra.mxu0 %v2814
        %v8685 = vpop.f32.mrf.mxu0
        %v8686 = vadd.f32 %v8673, %v8685
        %v8687 = vpop.f32.mrf.mxu0
        %8688 = vdwg.mxu0
        %v8689 = vmax.f32 %v7594, 0.0
        %v8690 = vmax.f32 %v7750, 0.0
        %v8691 = vmax.f32 %v7906, 0.0
        %v8692 = vmax.f32 %v8062, 0.0
        %v8693 = vmax.f32 %v8218, 0.0
        %v8694 = vmax.f32 %v8374, 0.0
        %v8695 = vmax.f32 %v8530, 0.0
        %v8696 = vmax.f32 %v8686, 0.0
        %v8697 = vpack.c.bf16 %v8689, %v8689
        %v8698 = vpack.c.bf16 %v8690, %v8690
        %v8699 = vpack.c.bf16 %v8691, %v8691
        %v8700 = vpack.c.bf16 %v8692, %v8692
        %v8701 = vpack.c.bf16 %v8693, %v8693
        %v8702 = vpack.c.bf16 %v8694, %v8694
        %v8703 = vpack.c.bf16 %v8695, %v8695
        %v8704 = vpack.c.bf16 %v8696, %v8696
        %v8705 = vld [vmem:[#allocation13] sm:$0xff]
        %v8706 = vld [vmem:[#allocation13 + $0x8] sm:$0xff]
        %v8707 = vld [vmem:[#allocation13 + $0x10] sm:$0xff]
        %v8708 = vld [vmem:[#allocation13 + $0x18] sm:$0xff]
        %v8709 = vld [vmem:[#allocation13 + $0x20] sm:$0xff]
        %v8710 = vld [vmem:[#allocation13 + $0x28] sm:$0xff]
        %v8711 = vld [vmem:[#allocation13 + $0x30] sm:$0xff]
        %v8712 = vld [vmem:[#allocation13 + $0x38] sm:$0xff]
        %v8713 = vld [vmem:[#allocation13 + $0x40] sm:$0xff]
        %v8714 = vld [vmem:[#allocation13 + $0x48] sm:$0xff]
        %v8715 = vld [vmem:[#allocation13 + $0x50] sm:$0xff]
        %v8716 = vld [vmem:[#allocation13 + $0x58] sm:$0xff]
        %v8717 = vld [vmem:[#allocation13 + $0x60] sm:$0xff]
        %v8718 = vld [vmem:[#allocation13 + $0x68] sm:$0xff]
        %v8719 = vld [vmem:[#allocation13 + $0x70] sm:$0xff]
        %v8720 = vld [vmem:[#allocation13 + $0x78] sm:$0xff]
        %v8721 = vld [vmem:[#allocation13 + $0x80] sm:$0xff]
        %v8722 = vld [vmem:[#allocation13 + $0x88] sm:$0xff]
        %v8723 = vld [vmem:[#allocation13 + $0x90] sm:$0xff]
        %v8724 = vld [vmem:[#allocation13 + $0x98] sm:$0xff]
        %v8725 = vld [vmem:[#allocation13 + $0xa0] sm:$0xff]
        %v8726 = vld [vmem:[#allocation13 + $0xa8] sm:$0xff]
        %v8727 = vld [vmem:[#allocation13 + $0xb0] sm:$0xff]
        %v8728 = vld [vmem:[#allocation13 + $0xb8] sm:$0xff]
        %v8729 = vld [vmem:[#allocation13 + $0xc0] sm:$0xff]
        %v8730 = vld [vmem:[#allocation13 + $0xc8] sm:$0xff]
        %v8731 = vld [vmem:[#allocation13 + $0xd0] sm:$0xff]
        %v8732 = vld [vmem:[#allocation13 + $0xd8] sm:$0xff]
        %v8733 = vld [vmem:[#allocation13 + $0xe0] sm:$0xff]
        %v8734 = vld [vmem:[#allocation13 + $0xe8] sm:$0xff]
        %v8735 = vld [vmem:[#allocation13 + $0xf0] sm:$0xff]
        %v8736 = vld [vmem:[#allocation13 + $0xf8] sm:$0xff]
        %v8737 = vld [vmem:[#allocation13 + $0x100] sm:$0xff]
        %v8738 = vld [vmem:[#allocation13 + $0x108] sm:$0xff]
        %v8739 = vld [vmem:[#allocation13 + $0x110] sm:$0xff]
        %v8740 = vld [vmem:[#allocation13 + $0x118] sm:$0xff]
        %v8741 = vld [vmem:[#allocation13 + $0x120] sm:$0xff]
        %v8742 = vld [vmem:[#allocation13 + $0x128] sm:$0xff]
        %v8743 = vld [vmem:[#allocation13 + $0x130] sm:$0xff]
        %v8744 = vld [vmem:[#allocation13 + $0x138] sm:$0xff]
        %v8745 = vld [vmem:[#allocation13 + $0x140] sm:$0xff]
        %v8746 = vld [vmem:[#allocation13 + $0x148] sm:$0xff]
        %v8747 = vld [vmem:[#allocation13 + $0x150] sm:$0xff]
        %v8748 = vld [vmem:[#allocation13 + $0x158] sm:$0xff]
        %v8749 = vld [vmem:[#allocation13 + $0x160] sm:$0xff]
        %v8750 = vld [vmem:[#allocation13 + $0x168] sm:$0xff]
        %v8751 = vld [vmem:[#allocation13 + $0x170] sm:$0xff]
        %v8752 = vld [vmem:[#allocation13 + $0x178] sm:$0xff]
        %v8753 = vld [vmem:[#allocation13 + $0x180] sm:$0xff]
        %v8754 = vld [vmem:[#allocation13 + $0x188] sm:$0xff]
        %v8755 = vld [vmem:[#allocation13 + $0x190] sm:$0xff]
        %v8756 = vld [vmem:[#allocation13 + $0x198] sm:$0xff]
        %v8757 = vld [vmem:[#allocation13 + $0x1a0] sm:$0xff]
        %v8758 = vld [vmem:[#allocation13 + $0x1a8] sm:$0xff]
        %v8759 = vld [vmem:[#allocation13 + $0x1b0] sm:$0xff]
        %v8760 = vld [vmem:[#allocation13 + $0x1b8] sm:$0xff]
        %v8761 = vld [vmem:[#allocation13 + $0x1c0] sm:$0xff]
        %v8762 = vld [vmem:[#allocation13 + $0x1c8] sm:$0xff]
        %v8763 = vld [vmem:[#allocation13 + $0x1d0] sm:$0xff]
        %v8764 = vld [vmem:[#allocation13 + $0x1d8] sm:$0xff]
        %v8765 = vld [vmem:[#allocation13 + $0x1e0] sm:$0xff]
        %v8766 = vld [vmem:[#allocation13 + $0x1e8] sm:$0xff]
        %v8767 = vld [vmem:[#allocation13 + $0x1f0] sm:$0xff]
        %v8768 = vld [vmem:[#allocation13 + $0x1f8] sm:$0xff]
        %v8769 = vld [vmem:[#allocation13 + $0x200] sm:$0xff]
        %v8770 = vld [vmem:[#allocation13 + $0x208] sm:$0xff]
        %v8771 = vld [vmem:[#allocation13 + $0x210] sm:$0xff]
        %v8772 = vld [vmem:[#allocation13 + $0x218] sm:$0xff]
        %v8773 = vld [vmem:[#allocation13 + $0x220] sm:$0xff]
        %v8774 = vld [vmem:[#allocation13 + $0x228] sm:$0xff]
        %v8775 = vld [vmem:[#allocation13 + $0x230] sm:$0xff]
        %v8776 = vld [vmem:[#allocation13 + $0x238] sm:$0xff]
        %v8777 = vld [vmem:[#allocation13 + $0x240] sm:$0xff]
        %v8778 = vld [vmem:[#allocation13 + $0x248] sm:$0xff]
        %v8779 = vld [vmem:[#allocation13 + $0x250] sm:$0xff]
        %v8780 = vld [vmem:[#allocation13 + $0x258] sm:$0xff]
        %v8781 = vld [vmem:[#allocation13 + $0x260] sm:$0xff]
        %v8782 = vld [vmem:[#allocation13 + $0x268] sm:$0xff]
        %v8783 = vld [vmem:[#allocation13 + $0x270] sm:$0xff]
        %v8784 = vld [vmem:[#allocation13 + $0x278] sm:$0xff]
        %v8785 = vld [vmem:[#allocation13 + $0x280] sm:$0xff]
        %v8786 = vld [vmem:[#allocation13 + $0x288] sm:$0xff]
        %v8787 = vld [vmem:[#allocation13 + $0x290] sm:$0xff]
        %v8788 = vld [vmem:[#allocation13 + $0x298] sm:$0xff]
        %v8789 = vld [vmem:[#allocation13 + $0x2a0] sm:$0xff]
        %v8790 = vld [vmem:[#allocation13 + $0x2a8] sm:$0xff]
        %v8791 = vld [vmem:[#allocation13 + $0x2b0] sm:$0xff]
        %v8792 = vld [vmem:[#allocation13 + $0x2b8] sm:$0xff]
        %v8793 = vld [vmem:[#allocation13 + $0x2c0] sm:$0xff]
        %v8794 = vld [vmem:[#allocation13 + $0x2c8] sm:$0xff]
        %v8795 = vld [vmem:[#allocation13 + $0x2d0] sm:$0xff]
        %v8796 = vld [vmem:[#allocation13 + $0x2d8] sm:$0xff]
        %v8797 = vld [vmem:[#allocation13 + $0x2e0] sm:$0xff]
        %v8798 = vld [vmem:[#allocation13 + $0x2e8] sm:$0xff]
        %v8799 = vld [vmem:[#allocation13 + $0x2f0] sm:$0xff]
        %v8800 = vld [vmem:[#allocation13 + $0x2f8] sm:$0xff]
        %v8801 = vld [vmem:[#allocation13 + $0x300] sm:$0xff]
        %v8802 = vld [vmem:[#allocation13 + $0x308] sm:$0xff]
        %v8803 = vld [vmem:[#allocation13 + $0x310] sm:$0xff]
        %v8804 = vld [vmem:[#allocation13 + $0x318] sm:$0xff]
        %v8805 = vld [vmem:[#allocation13 + $0x320] sm:$0xff]
        %v8806 = vld [vmem:[#allocation13 + $0x328] sm:$0xff]
        %v8807 = vld [vmem:[#allocation13 + $0x330] sm:$0xff]
        %v8808 = vld [vmem:[#allocation13 + $0x338] sm:$0xff]
        %v8809 = vld [vmem:[#allocation13 + $0x340] sm:$0xff]
        %v8810 = vld [vmem:[#allocation13 + $0x348] sm:$0xff]
        %v8811 = vld [vmem:[#allocation13 + $0x350] sm:$0xff]
        %v8812 = vld [vmem:[#allocation13 + $0x358] sm:$0xff]
        %v8813 = vld [vmem:[#allocation13 + $0x360] sm:$0xff]
        %v8814 = vld [vmem:[#allocation13 + $0x368] sm:$0xff]
        %v8815 = vld [vmem:[#allocation13 + $0x370] sm:$0xff]
        %v8816 = vld [vmem:[#allocation13 + $0x378] sm:$0xff]
        %v8817 = vld [vmem:[#allocation13 + $0x380] sm:$0xff]
        %v8818 = vld [vmem:[#allocation13 + $0x388] sm:$0xff]
        %v8819 = vld [vmem:[#allocation13 + $0x390] sm:$0xff]
        %v8820 = vld [vmem:[#allocation13 + $0x398] sm:$0xff]
        %v8821 = vld [vmem:[#allocation13 + $0x3a0] sm:$0xff]
        %v8822 = vld [vmem:[#allocation13 + $0x3a8] sm:$0xff]
        %v8823 = vld [vmem:[#allocation13 + $0x3b0] sm:$0xff]
        %v8824 = vld [vmem:[#allocation13 + $0x3b8] sm:$0xff]
        %v8825 = vld [vmem:[#allocation13 + $0x3c0] sm:$0xff]
        %v8826 = vld [vmem:[#allocation13 + $0x3c8] sm:$0xff]
        %v8827 = vld [vmem:[#allocation13 + $0x3d0] sm:$0xff]
        %v8828 = vld [vmem:[#allocation13 + $0x3d8] sm:$0xff]
        %v8829 = vld [vmem:[#allocation13 + $0x3e0] sm:$0xff]
        %v8830 = vld [vmem:[#allocation13 + $0x3e8] sm:$0xff]
        %v8831 = vld [vmem:[#allocation13 + $0x3f0] sm:$0xff]
        %v8832 = vld [vmem:[#allocation13 + $0x3f8] sm:$0xff]
        %v8833 = vld [vmem:[#allocation13 + $0x400] sm:$0xff]
        %v8834 = vld [vmem:[#allocation13 + $0x408] sm:$0xff]
        %v8835 = vld [vmem:[#allocation13 + $0x410] sm:$0xff]
        %v8836 = vld [vmem:[#allocation13 + $0x418] sm:$0xff]
        %v8837 = vld [vmem:[#allocation13 + $0x420] sm:$0xff]
        %v8838 = vld [vmem:[#allocation13 + $0x428] sm:$0xff]
        %v8839 = vld [vmem:[#allocation13 + $0x430] sm:$0xff]
        %v8840 = vld [vmem:[#allocation13 + $0x438] sm:$0xff]
        %v8841 = vld [vmem:[#allocation13 + $0x440] sm:$0xff]
        %v8842 = vld [vmem:[#allocation13 + $0x448] sm:$0xff]
        %v8843 = vld [vmem:[#allocation13 + $0x450] sm:$0xff]
        %v8844 = vld [vmem:[#allocation13 + $0x458] sm:$0xff]
        %v8845 = vld [vmem:[#allocation13 + $0x460] sm:$0xff]
        %v8846 = vld [vmem:[#allocation13 + $0x468] sm:$0xff]
        %v8847 = vld [vmem:[#allocation13 + $0x470] sm:$0xff]
        %v8848 = vld [vmem:[#allocation13 + $0x478] sm:$0xff]
        %v8849 = vld [vmem:[#allocation13 + $0x480] sm:$0xff]
        %v8850 = vld [vmem:[#allocation13 + $0x488] sm:$0xff]
        %v8851 = vld [vmem:[#allocation13 + $0x490] sm:$0xff]
        %v8852 = vld [vmem:[#allocation13 + $0x498] sm:$0xff]
        %v8853 = vld [vmem:[#allocation13 + $0x4a0] sm:$0xff]
        %v8854 = vld [vmem:[#allocation13 + $0x4a8] sm:$0xff]
        %v8855 = vld [vmem:[#allocation13 + $0x4b0] sm:$0xff]
        %v8856 = vld [vmem:[#allocation13 + $0x4b8] sm:$0xff]
        %v8857 = vld [vmem:[#allocation13 + $0x4c0] sm:$0xff]
        %v8858 = vld [vmem:[#allocation13 + $0x4c8] sm:$0xff]
        %v8859 = vld [vmem:[#allocation13 + $0x4d0] sm:$0xff]
        %v8860 = vld [vmem:[#allocation13 + $0x4d8] sm:$0xff]
        %v8861 = vld [vmem:[#allocation13 + $0x4e0] sm:$0xff]
        %v8862 = vld [vmem:[#allocation13 + $0x4e8] sm:$0xff]
        %v8863 = vld [vmem:[#allocation13 + $0x4f0] sm:$0xff]
        %v8864 = vld [vmem:[#allocation13 + $0x4f8] sm:$0xff]
        %v8865 = vld [vmem:[#allocation13 + $0x500] sm:$0xff]
        %v8866 = vld [vmem:[#allocation13 + $0x508] sm:$0xff]
        %v8867 = vld [vmem:[#allocation13 + $0x510] sm:$0xff]
        %v8868 = vld [vmem:[#allocation13 + $0x518] sm:$0xff]
        %v8869 = vld [vmem:[#allocation13 + $0x520] sm:$0xff]
        %v8870 = vld [vmem:[#allocation13 + $0x528] sm:$0xff]
        %v8871 = vld [vmem:[#allocation13 + $0x530] sm:$0xff]
        %v8872 = vld [vmem:[#allocation13 + $0x538] sm:$0xff]
        %v8873 = vld [vmem:[#allocation13 + $0x540] sm:$0xff]
        %v8874 = vld [vmem:[#allocation13 + $0x548] sm:$0xff]
        %v8875 = vld [vmem:[#allocation13 + $0x550] sm:$0xff]
        %v8876 = vld [vmem:[#allocation13 + $0x558] sm:$0xff]
        %v8877 = vld [vmem:[#allocation13 + $0x560] sm:$0xff]
        %v8878 = vld [vmem:[#allocation13 + $0x568] sm:$0xff]
        %v8879 = vld [vmem:[#allocation13 + $0x570] sm:$0xff]
        %v8880 = vld [vmem:[#allocation13 + $0x578] sm:$0xff]
        %v8881 = vld [vmem:[#allocation13 + $0x580] sm:$0xff]
        %v8882 = vld [vmem:[#allocation13 + $0x588] sm:$0xff]
        %v8883 = vld [vmem:[#allocation13 + $0x590] sm:$0xff]
        %v8884 = vld [vmem:[#allocation13 + $0x598] sm:$0xff]
        %v8885 = vld [vmem:[#allocation13 + $0x5a0] sm:$0xff]
        %v8886 = vld [vmem:[#allocation13 + $0x5a8] sm:$0xff]
        %v8887 = vld [vmem:[#allocation13 + $0x5b0] sm:$0xff]
        %v8888 = vld [vmem:[#allocation13 + $0x5b8] sm:$0xff]
        %v8889 = vld [vmem:[#allocation13 + $0x5c0] sm:$0xff]
        %v8890 = vld [vmem:[#allocation13 + $0x5c8] sm:$0xff]
        %v8891 = vld [vmem:[#allocation13 + $0x5d0] sm:$0xff]
        %v8892 = vld [vmem:[#allocation13 + $0x5d8] sm:$0xff]
        %v8893 = vld [vmem:[#allocation13 + $0x5e0] sm:$0xff]
        %v8894 = vld [vmem:[#allocation13 + $0x5e8] sm:$0xff]
        %v8895 = vld [vmem:[#allocation13 + $0x5f0] sm:$0xff]
        %v8896 = vld [vmem:[#allocation13 + $0x5f8] sm:$0xff]
        %v8897 = vld [vmem:[#allocation13 + $0x600] sm:$0xff]
        %v8898 = vld [vmem:[#allocation13 + $0x608] sm:$0xff]
        %v8899 = vld [vmem:[#allocation13 + $0x610] sm:$0xff]
        %v8900 = vld [vmem:[#allocation13 + $0x618] sm:$0xff]
        %v8901 = vld [vmem:[#allocation13 + $0x620] sm:$0xff]
        %v8902 = vld [vmem:[#allocation13 + $0x628] sm:$0xff]
        %v8903 = vld [vmem:[#allocation13 + $0x630] sm:$0xff]
        %v8904 = vld [vmem:[#allocation13 + $0x638] sm:$0xff]
        %v8905 = vld [vmem:[#allocation13 + $0x640] sm:$0xff]
        %v8906 = vld [vmem:[#allocation13 + $0x648] sm:$0xff]
        %v8907 = vld [vmem:[#allocation13 + $0x650] sm:$0xff]
        %v8908 = vld [vmem:[#allocation13 + $0x658] sm:$0xff]
        %v8909 = vld [vmem:[#allocation13 + $0x660] sm:$0xff]
        %v8910 = vld [vmem:[#allocation13 + $0x668] sm:$0xff]
        %v8911 = vld [vmem:[#allocation13 + $0x670] sm:$0xff]
        %v8912 = vld [vmem:[#allocation13 + $0x678] sm:$0xff]
        %v8913 = vld [vmem:[#allocation13 + $0x680] sm:$0xff]
        %v8914 = vld [vmem:[#allocation13 + $0x688] sm:$0xff]
        %v8915 = vld [vmem:[#allocation13 + $0x690] sm:$0xff]
        %v8916 = vld [vmem:[#allocation13 + $0x698] sm:$0xff]
        %v8917 = vld [vmem:[#allocation13 + $0x6a0] sm:$0xff]
        %v8918 = vld [vmem:[#allocation13 + $0x6a8] sm:$0xff]
        %v8919 = vld [vmem:[#allocation13 + $0x6b0] sm:$0xff]
        %v8920 = vld [vmem:[#allocation13 + $0x6b8] sm:$0xff]
        %v8921 = vld [vmem:[#allocation13 + $0x6c0] sm:$0xff]
        %v8922 = vld [vmem:[#allocation13 + $0x6c8] sm:$0xff]
        %v8923 = vld [vmem:[#allocation13 + $0x6d0] sm:$0xff]
        %v8924 = vld [vmem:[#allocation13 + $0x6d8] sm:$0xff]
        %v8925 = vld [vmem:[#allocation13 + $0x6e0] sm:$0xff]
        %v8926 = vld [vmem:[#allocation13 + $0x6e8] sm:$0xff]
        %v8927 = vld [vmem:[#allocation13 + $0x6f0] sm:$0xff]
        %v8928 = vld [vmem:[#allocation13 + $0x6f8] sm:$0xff]
        %v8929 = vld [vmem:[#allocation13 + $0x700] sm:$0xff]
        %v8930 = vld [vmem:[#allocation13 + $0x708] sm:$0xff]
        %v8931 = vld [vmem:[#allocation13 + $0x710] sm:$0xff]
        %v8932 = vld [vmem:[#allocation13 + $0x718] sm:$0xff]
        %v8933 = vld [vmem:[#allocation13 + $0x720] sm:$0xff]
        %v8934 = vld [vmem:[#allocation13 + $0x728] sm:$0xff]
        %v8935 = vld [vmem:[#allocation13 + $0x730] sm:$0xff]
        %v8936 = vld [vmem:[#allocation13 + $0x738] sm:$0xff]
        %v8937 = vld [vmem:[#allocation13 + $0x740] sm:$0xff]
        %v8938 = vld [vmem:[#allocation13 + $0x748] sm:$0xff]
        %v8939 = vld [vmem:[#allocation13 + $0x750] sm:$0xff]
        %v8940 = vld [vmem:[#allocation13 + $0x758] sm:$0xff]
        %v8941 = vld [vmem:[#allocation13 + $0x760] sm:$0xff]
        %v8942 = vld [vmem:[#allocation13 + $0x768] sm:$0xff]
        %v8943 = vld [vmem:[#allocation13 + $0x770] sm:$0xff]
        %v8944 = vld [vmem:[#allocation13 + $0x778] sm:$0xff]
        %v8945 = vld [vmem:[#allocation13 + $0x780] sm:$0xff]
        %v8946 = vld [vmem:[#allocation13 + $0x788] sm:$0xff]
        %v8947 = vld [vmem:[#allocation13 + $0x790] sm:$0xff]
        %v8948 = vld [vmem:[#allocation13 + $0x798] sm:$0xff]
        %v8949 = vld [vmem:[#allocation13 + $0x7a0] sm:$0xff]
        %v8950 = vld [vmem:[#allocation13 + $0x7a8] sm:$0xff]
        %v8951 = vld [vmem:[#allocation13 + $0x7b0] sm:$0xff]
        %v8952 = vld [vmem:[#allocation13 + $0x7b8] sm:$0xff]
        %v8953 = vld [vmem:[#allocation13 + $0x7c0] sm:$0xff]
        %v8954 = vld [vmem:[#allocation13 + $0x7c8] sm:$0xff]
        %v8955 = vld [vmem:[#allocation13 + $0x7d0] sm:$0xff]
        %v8956 = vld [vmem:[#allocation13 + $0x7d8] sm:$0xff]
        %v8957 = vld [vmem:[#allocation13 + $0x7e0] sm:$0xff]
        %v8958 = vld [vmem:[#allocation13 + $0x7e8] sm:$0xff]
        %v8959 = vld [vmem:[#allocation13 + $0x7f0] sm:$0xff]
        %v8960 = vld [vmem:[#allocation13 + $0x7f8] sm:$0xff]
        %v8961 = vld [vmem:[#allocation15] sm:$0xf]
        %v9218 = vunpack.c.l.b16 %v8705
        %v9219 = vunpack.c.h.b16 %v8705
        %v9220 = vunpack.c.l.b16 %v8706
        %v9221 = vunpack.c.h.b16 %v8706
        %v9222 = vunpack.c.l.b16 %v8707
        %v9223 = vunpack.c.h.b16 %v8707
        %v9224 = vunpack.c.l.b16 %v8708
        %v9225 = vunpack.c.h.b16 %v8708
        %v9226 = vunpack.c.l.b16 %v8709
        %v9227 = vunpack.c.h.b16 %v8709
        %v9228 = vunpack.c.l.b16 %v8710
        %v9229 = vunpack.c.h.b16 %v8710
        %v9230 = vunpack.c.l.b16 %v8711
        %v9231 = vunpack.c.h.b16 %v8711
        %v9232 = vunpack.c.l.b16 %v8712
        %v9233 = vunpack.c.h.b16 %v8712
        %v9234 = vunpack.c.l.b16 %v8713
        %v9235 = vunpack.c.h.b16 %v8713
        %v9236 = vunpack.c.l.b16 %v8714
        %v9237 = vunpack.c.h.b16 %v8714
        %v9238 = vunpack.c.l.b16 %v8715
        %v9239 = vunpack.c.h.b16 %v8715
        %v9240 = vunpack.c.l.b16 %v8716
        %v9241 = vunpack.c.h.b16 %v8716
        %v9242 = vunpack.c.l.b16 %v8717
        %v9243 = vunpack.c.h.b16 %v8717
        %v9244 = vunpack.c.l.b16 %v8718
        %v9245 = vunpack.c.h.b16 %v8718
        %v9246 = vunpack.c.l.b16 %v8719
        %v9247 = vunpack.c.h.b16 %v8719
        %v9248 = vunpack.c.l.b16 %v8720
        %v9249 = vunpack.c.h.b16 %v8720
        %v9250 = vunpack.c.l.b16 %v8721
        %v9251 = vunpack.c.h.b16 %v8721
        %v9252 = vunpack.c.l.b16 %v8722
        %v9253 = vunpack.c.h.b16 %v8722
        %v9254 = vunpack.c.l.b16 %v8723
        %v9255 = vunpack.c.h.b16 %v8723
        %v9256 = vunpack.c.l.b16 %v8724
        %v9257 = vunpack.c.h.b16 %v8724
        %v9258 = vunpack.c.l.b16 %v8725
        %v9259 = vunpack.c.h.b16 %v8725
        %v9260 = vunpack.c.l.b16 %v8726
        %v9261 = vunpack.c.h.b16 %v8726
        %v9262 = vunpack.c.l.b16 %v8727
        %v9263 = vunpack.c.h.b16 %v8727
        %v9264 = vunpack.c.l.b16 %v8728
        %v9265 = vunpack.c.h.b16 %v8728
        %v9266 = vunpack.c.l.b16 %v8729
        %v9267 = vunpack.c.h.b16 %v8729
        %v9268 = vunpack.c.l.b16 %v8730
        %v9269 = vunpack.c.h.b16 %v8730
        %v9270 = vunpack.c.l.b16 %v8731
        %v9271 = vunpack.c.h.b16 %v8731
        %v9272 = vunpack.c.l.b16 %v8732
        %v9273 = vunpack.c.h.b16 %v8732
        %v9274 = vunpack.c.l.b16 %v8733
        %v9275 = vunpack.c.h.b16 %v8733
        %v9276 = vunpack.c.l.b16 %v8734
        %v9277 = vunpack.c.h.b16 %v8734
        %v9278 = vunpack.c.l.b16 %v8735
        %v9279 = vunpack.c.h.b16 %v8735
        %v9280 = vunpack.c.l.b16 %v8736
        %v9281 = vunpack.c.h.b16 %v8736
        %v9282 = vunpack.c.l.b16 %v8737
        %v9283 = vunpack.c.h.b16 %v8737
        %v9284 = vunpack.c.l.b16 %v8738
        %v9285 = vunpack.c.h.b16 %v8738
        %v9286 = vunpack.c.l.b16 %v8739
        %v9287 = vunpack.c.h.b16 %v8739
        %v9288 = vunpack.c.l.b16 %v8740
        %v9289 = vunpack.c.h.b16 %v8740
        %v9290 = vunpack.c.l.b16 %v8741
        %v9291 = vunpack.c.h.b16 %v8741
        %v9292 = vunpack.c.l.b16 %v8742
        %v9293 = vunpack.c.h.b16 %v8742
        %v9294 = vunpack.c.l.b16 %v8743
        %v9295 = vunpack.c.h.b16 %v8743
        %v9296 = vunpack.c.l.b16 %v8744
        %v9297 = vunpack.c.h.b16 %v8744
        %v9298 = vunpack.c.l.b16 %v8745
        %v9299 = vunpack.c.h.b16 %v8745
        %v9300 = vunpack.c.l.b16 %v8746
        %v9301 = vunpack.c.h.b16 %v8746
        %v9302 = vunpack.c.l.b16 %v8747
        %v9303 = vunpack.c.h.b16 %v8747
        %v9304 = vunpack.c.l.b16 %v8748
        %v9305 = vunpack.c.h.b16 %v8748
        %v9306 = vunpack.c.l.b16 %v8749
        %v9307 = vunpack.c.h.b16 %v8749
        %v9308 = vunpack.c.l.b16 %v8750
        %v9309 = vunpack.c.h.b16 %v8750
        %v9310 = vunpack.c.l.b16 %v8751
        %v9311 = vunpack.c.h.b16 %v8751
        %v9312 = vunpack.c.l.b16 %v8752
        %v9313 = vunpack.c.h.b16 %v8752
        %v9314 = vunpack.c.l.b16 %v8753
        %v9315 = vunpack.c.h.b16 %v8753
        %v9316 = vunpack.c.l.b16 %v8754
        %v9317 = vunpack.c.h.b16 %v8754
        %v9318 = vunpack.c.l.b16 %v8755
        %v9319 = vunpack.c.h.b16 %v8755
        %v9320 = vunpack.c.l.b16 %v8756
        %v9321 = vunpack.c.h.b16 %v8756
        %v9322 = vunpack.c.l.b16 %v8757
        %v9323 = vunpack.c.h.b16 %v8757
        %v9324 = vunpack.c.l.b16 %v8758
        %v9325 = vunpack.c.h.b16 %v8758
        %v9326 = vunpack.c.l.b16 %v8759
        %v9327 = vunpack.c.h.b16 %v8759
        %v9328 = vunpack.c.l.b16 %v8760
        %v9329 = vunpack.c.h.b16 %v8760
        %v9330 = vunpack.c.l.b16 %v8761
        %v9331 = vunpack.c.h.b16 %v8761
        %v9332 = vunpack.c.l.b16 %v8762
        %v9333 = vunpack.c.h.b16 %v8762
        %v9334 = vunpack.c.l.b16 %v8763
        %v9335 = vunpack.c.h.b16 %v8763
        %v9336 = vunpack.c.l.b16 %v8764
        %v9337 = vunpack.c.h.b16 %v8764
        %v9338 = vunpack.c.l.b16 %v8765
        %v9339 = vunpack.c.h.b16 %v8765
        %v9340 = vunpack.c.l.b16 %v8766
        %v9341 = vunpack.c.h.b16 %v8766
        %v9342 = vunpack.c.l.b16 %v8767
        %v9343 = vunpack.c.h.b16 %v8767
        %v9344 = vunpack.c.l.b16 %v8768
        %v9345 = vunpack.c.h.b16 %v8768
        %v9346 = vunpack.c.l.b16 %v8769
        %v9347 = vunpack.c.h.b16 %v8769
        %v9348 = vunpack.c.l.b16 %v8770
        %v9349 = vunpack.c.h.b16 %v8770
        %v9350 = vunpack.c.l.b16 %v8771
        %v9351 = vunpack.c.h.b16 %v8771
        %v9352 = vunpack.c.l.b16 %v8772
        %v9353 = vunpack.c.h.b16 %v8772
        %v9354 = vunpack.c.l.b16 %v8773
        %v9355 = vunpack.c.h.b16 %v8773
        %v9356 = vunpack.c.l.b16 %v8774
        %v9357 = vunpack.c.h.b16 %v8774
        %v9358 = vunpack.c.l.b16 %v8775
        %v9359 = vunpack.c.h.b16 %v8775
        %v9360 = vunpack.c.l.b16 %v8776
        %v9361 = vunpack.c.h.b16 %v8776
        %v9362 = vunpack.c.l.b16 %v8777
        %v9363 = vunpack.c.h.b16 %v8777
        %v9364 = vunpack.c.l.b16 %v8778
        %v9365 = vunpack.c.h.b16 %v8778
        %v9366 = vunpack.c.l.b16 %v8779
        %v9367 = vunpack.c.h.b16 %v8779
        %v9368 = vunpack.c.l.b16 %v8780
        %v9369 = vunpack.c.h.b16 %v8780
        %v9370 = vunpack.c.l.b16 %v8781
        %v9371 = vunpack.c.h.b16 %v8781
        %v9372 = vunpack.c.l.b16 %v8782
        %v9373 = vunpack.c.h.b16 %v8782
        %v9374 = vunpack.c.l.b16 %v8783
        %v9375 = vunpack.c.h.b16 %v8783
        %v9376 = vunpack.c.l.b16 %v8784
        %v9377 = vunpack.c.h.b16 %v8784
        %v9378 = vunpack.c.l.b16 %v8785
        %v9379 = vunpack.c.h.b16 %v8785
        %v9380 = vunpack.c.l.b16 %v8786
        %v9381 = vunpack.c.h.b16 %v8786
        %v9382 = vunpack.c.l.b16 %v8787
        %v9383 = vunpack.c.h.b16 %v8787
        %v9384 = vunpack.c.l.b16 %v8788
        %v9385 = vunpack.c.h.b16 %v8788
        %v9386 = vunpack.c.l.b16 %v8789
        %v9387 = vunpack.c.h.b16 %v8789
        %v9388 = vunpack.c.l.b16 %v8790
        %v9389 = vunpack.c.h.b16 %v8790
        %v9390 = vunpack.c.l.b16 %v8791
        %v9391 = vunpack.c.h.b16 %v8791
        %v9392 = vunpack.c.l.b16 %v8792
        %v9393 = vunpack.c.h.b16 %v8792
        %v9394 = vunpack.c.l.b16 %v8793
        %v9395 = vunpack.c.h.b16 %v8793
        %v9396 = vunpack.c.l.b16 %v8794
        %v9397 = vunpack.c.h.b16 %v8794
        %v9398 = vunpack.c.l.b16 %v8795
        %v9399 = vunpack.c.h.b16 %v8795
        %v9400 = vunpack.c.l.b16 %v8796
        %v9401 = vunpack.c.h.b16 %v8796
        %v9402 = vunpack.c.l.b16 %v8797
        %v9403 = vunpack.c.h.b16 %v8797
        %v9404 = vunpack.c.l.b16 %v8798
        %v9405 = vunpack.c.h.b16 %v8798
        %v9406 = vunpack.c.l.b16 %v8799
        %v9407 = vunpack.c.h.b16 %v8799
        %v9408 = vunpack.c.l.b16 %v8800
        %v9409 = vunpack.c.h.b16 %v8800
        %v9410 = vunpack.c.l.b16 %v8801
        %v9411 = vunpack.c.h.b16 %v8801
        %v9412 = vunpack.c.l.b16 %v8802
        %v9413 = vunpack.c.h.b16 %v8802
        %v9414 = vunpack.c.l.b16 %v8803
        %v9415 = vunpack.c.h.b16 %v8803
        %v9416 = vunpack.c.l.b16 %v8804
        %v9417 = vunpack.c.h.b16 %v8804
        %v9418 = vunpack.c.l.b16 %v8805
        %v9419 = vunpack.c.h.b16 %v8805
        %v9420 = vunpack.c.l.b16 %v8806
        %v9421 = vunpack.c.h.b16 %v8806
        %v9422 = vunpack.c.l.b16 %v8807
        %v9423 = vunpack.c.h.b16 %v8807
        %v9424 = vunpack.c.l.b16 %v8808
        %v9425 = vunpack.c.h.b16 %v8808
        %v9426 = vunpack.c.l.b16 %v8809
        %v9427 = vunpack.c.h.b16 %v8809
        %v9428 = vunpack.c.l.b16 %v8810
        %v9429 = vunpack.c.h.b16 %v8810
        %v9430 = vunpack.c.l.b16 %v8811
        %v9431 = vunpack.c.h.b16 %v8811
        %v9432 = vunpack.c.l.b16 %v8812
        %v9433 = vunpack.c.h.b16 %v8812
        %v9434 = vunpack.c.l.b16 %v8813
        %v9435 = vunpack.c.h.b16 %v8813
        %v9436 = vunpack.c.l.b16 %v8814
        %v9437 = vunpack.c.h.b16 %v8814
        %v9438 = vunpack.c.l.b16 %v8815
        %v9439 = vunpack.c.h.b16 %v8815
        %v9440 = vunpack.c.l.b16 %v8816
        %v9441 = vunpack.c.h.b16 %v8816
        %v9442 = vunpack.c.l.b16 %v8817
        %v9443 = vunpack.c.h.b16 %v8817
        %v9444 = vunpack.c.l.b16 %v8818
        %v9445 = vunpack.c.h.b16 %v8818
        %v9446 = vunpack.c.l.b16 %v8819
        %v9447 = vunpack.c.h.b16 %v8819
        %v9448 = vunpack.c.l.b16 %v8820
        %v9449 = vunpack.c.h.b16 %v8820
        %v9450 = vunpack.c.l.b16 %v8821
        %v9451 = vunpack.c.h.b16 %v8821
        %v9452 = vunpack.c.l.b16 %v8822
        %v9453 = vunpack.c.h.b16 %v8822
        %v9454 = vunpack.c.l.b16 %v8823
        %v9455 = vunpack.c.h.b16 %v8823
        %v9456 = vunpack.c.l.b16 %v8824
        %v9457 = vunpack.c.h.b16 %v8824
        %v9458 = vunpack.c.l.b16 %v8825
        %v9459 = vunpack.c.h.b16 %v8825
        %v9460 = vunpack.c.l.b16 %v8826
        %v9461 = vunpack.c.h.b16 %v8826
        %v9462 = vunpack.c.l.b16 %v8827
        %v9463 = vunpack.c.h.b16 %v8827
        %v9464 = vunpack.c.l.b16 %v8828
        %v9465 = vunpack.c.h.b16 %v8828
        %v9466 = vunpack.c.l.b16 %v8829
        %v9467 = vunpack.c.h.b16 %v8829
        %v9468 = vunpack.c.l.b16 %v8830
        %v9469 = vunpack.c.h.b16 %v8830
        %v9470 = vunpack.c.l.b16 %v8831
        %v9471 = vunpack.c.h.b16 %v8831
        %v9472 = vunpack.c.l.b16 %v8832
        %v9473 = vunpack.c.h.b16 %v8832
        %v9474 = vunpack.c.l.b16 %v8833
        %v9475 = vunpack.c.h.b16 %v8833
        %v9476 = vunpack.c.l.b16 %v8834
        %v9477 = vunpack.c.h.b16 %v8834
        %v9478 = vunpack.c.l.b16 %v8835
        %v9479 = vunpack.c.h.b16 %v8835
        %v9480 = vunpack.c.l.b16 %v8836
        %v9481 = vunpack.c.h.b16 %v8836
        %v9482 = vunpack.c.l.b16 %v8837
        %v9483 = vunpack.c.h.b16 %v8837
        %v9484 = vunpack.c.l.b16 %v8838
        %v9485 = vunpack.c.h.b16 %v8838
        %v9486 = vunpack.c.l.b16 %v8839
        %v9487 = vunpack.c.h.b16 %v8839
        %v9488 = vunpack.c.l.b16 %v8840
        %v9489 = vunpack.c.h.b16 %v8840
        %v9490 = vunpack.c.l.b16 %v8841
        %v9491 = vunpack.c.h.b16 %v8841
        %v9492 = vunpack.c.l.b16 %v8842
        %v9493 = vunpack.c.h.b16 %v8842
        %v9494 = vunpack.c.l.b16 %v8843
        %v9495 = vunpack.c.h.b16 %v8843
        %v9496 = vunpack.c.l.b16 %v8844
        %v9497 = vunpack.c.h.b16 %v8844
        %v9498 = vunpack.c.l.b16 %v8845
        %v9499 = vunpack.c.h.b16 %v8845
        %v9500 = vunpack.c.l.b16 %v8846
        %v9501 = vunpack.c.h.b16 %v8846
        %v9502 = vunpack.c.l.b16 %v8847
        %v9503 = vunpack.c.h.b16 %v8847
        %v9504 = vunpack.c.l.b16 %v8848
        %v9505 = vunpack.c.h.b16 %v8848
        %v9506 = vunpack.c.l.b16 %v8849
        %v9507 = vunpack.c.h.b16 %v8849
        %v9508 = vunpack.c.l.b16 %v8850
        %v9509 = vunpack.c.h.b16 %v8850
        %v9510 = vunpack.c.l.b16 %v8851
        %v9511 = vunpack.c.h.b16 %v8851
        %v9512 = vunpack.c.l.b16 %v8852
        %v9513 = vunpack.c.h.b16 %v8852
        %v9514 = vunpack.c.l.b16 %v8853
        %v9515 = vunpack.c.h.b16 %v8853
        %v9516 = vunpack.c.l.b16 %v8854
        %v9517 = vunpack.c.h.b16 %v8854
        %v9518 = vunpack.c.l.b16 %v8855
        %v9519 = vunpack.c.h.b16 %v8855
        %v9520 = vunpack.c.l.b16 %v8856
        %v9521 = vunpack.c.h.b16 %v8856
        %v9522 = vunpack.c.l.b16 %v8857
        %v9523 = vunpack.c.h.b16 %v8857
        %v9524 = vunpack.c.l.b16 %v8858
        %v9525 = vunpack.c.h.b16 %v8858
        %v9526 = vunpack.c.l.b16 %v8859
        %v9527 = vunpack.c.h.b16 %v8859
        %v9528 = vunpack.c.l.b16 %v8860
        %v9529 = vunpack.c.h.b16 %v8860
        %v9530 = vunpack.c.l.b16 %v8861
        %v9531 = vunpack.c.h.b16 %v8861
        %v9532 = vunpack.c.l.b16 %v8862
        %v9533 = vunpack.c.h.b16 %v8862
        %v9534 = vunpack.c.l.b16 %v8863
        %v9535 = vunpack.c.h.b16 %v8863
        %v9536 = vunpack.c.l.b16 %v8864
        %v9537 = vunpack.c.h.b16 %v8864
        %v9538 = vunpack.c.l.b16 %v8865
        %v9539 = vunpack.c.h.b16 %v8865
        %v9540 = vunpack.c.l.b16 %v8866
        %v9541 = vunpack.c.h.b16 %v8866
        %v9542 = vunpack.c.l.b16 %v8867
        %v9543 = vunpack.c.h.b16 %v8867
        %v9544 = vunpack.c.l.b16 %v8868
        %v9545 = vunpack.c.h.b16 %v8868
        %v9546 = vunpack.c.l.b16 %v8869
        %v9547 = vunpack.c.h.b16 %v8869
        %v9548 = vunpack.c.l.b16 %v8870
        %v9549 = vunpack.c.h.b16 %v8870
        %v9550 = vunpack.c.l.b16 %v8871
        %v9551 = vunpack.c.h.b16 %v8871
        %v9552 = vunpack.c.l.b16 %v8872
        %v9553 = vunpack.c.h.b16 %v8872
        %v9554 = vunpack.c.l.b16 %v8873
        %v9555 = vunpack.c.h.b16 %v8873
        %v9556 = vunpack.c.l.b16 %v8874
        %v9557 = vunpack.c.h.b16 %v8874
        %v9558 = vunpack.c.l.b16 %v8875
        %v9559 = vunpack.c.h.b16 %v8875
        %v9560 = vunpack.c.l.b16 %v8876
        %v9561 = vunpack.c.h.b16 %v8876
        %v9562 = vunpack.c.l.b16 %v8877
        %v9563 = vunpack.c.h.b16 %v8877
        %v9564 = vunpack.c.l.b16 %v8878
        %v9565 = vunpack.c.h.b16 %v8878
        %v9566 = vunpack.c.l.b16 %v8879
        %v9567 = vunpack.c.h.b16 %v8879
        %v9568 = vunpack.c.l.b16 %v8880
        %v9569 = vunpack.c.h.b16 %v8880
        %v9570 = vunpack.c.l.b16 %v8881
        %v9571 = vunpack.c.h.b16 %v8881
        %v9572 = vunpack.c.l.b16 %v8882
        %v9573 = vunpack.c.h.b16 %v8882
        %v9574 = vunpack.c.l.b16 %v8883
        %v9575 = vunpack.c.h.b16 %v8883
        %v9576 = vunpack.c.l.b16 %v8884
        %v9577 = vunpack.c.h.b16 %v8884
        %v9578 = vunpack.c.l.b16 %v8885
        %v9579 = vunpack.c.h.b16 %v8885
        %v9580 = vunpack.c.l.b16 %v8886
        %v9581 = vunpack.c.h.b16 %v8886
        %v9582 = vunpack.c.l.b16 %v8887
        %v9583 = vunpack.c.h.b16 %v8887
        %v9584 = vunpack.c.l.b16 %v8888
        %v9585 = vunpack.c.h.b16 %v8888
        %v9586 = vunpack.c.l.b16 %v8889
        %v9587 = vunpack.c.h.b16 %v8889
        %v9588 = vunpack.c.l.b16 %v8890
        %v9589 = vunpack.c.h.b16 %v8890
        %v9590 = vunpack.c.l.b16 %v8891
        %v9591 = vunpack.c.h.b16 %v8891
        %v9592 = vunpack.c.l.b16 %v8892
        %v9593 = vunpack.c.h.b16 %v8892
        %v9594 = vunpack.c.l.b16 %v8893
        %v9595 = vunpack.c.h.b16 %v8893
        %v9596 = vunpack.c.l.b16 %v8894
        %v9597 = vunpack.c.h.b16 %v8894
        %v9598 = vunpack.c.l.b16 %v8895
        %v9599 = vunpack.c.h.b16 %v8895
        %v9600 = vunpack.c.l.b16 %v8896
        %v9601 = vunpack.c.h.b16 %v8896
        %v9602 = vunpack.c.l.b16 %v8897
        %v9603 = vunpack.c.h.b16 %v8897
        %v9604 = vunpack.c.l.b16 %v8898
        %v9605 = vunpack.c.h.b16 %v8898
        %v9606 = vunpack.c.l.b16 %v8899
        %v9607 = vunpack.c.h.b16 %v8899
        %v9608 = vunpack.c.l.b16 %v8900
        %v9609 = vunpack.c.h.b16 %v8900
        %v9610 = vunpack.c.l.b16 %v8901
        %v9611 = vunpack.c.h.b16 %v8901
        %v9612 = vunpack.c.l.b16 %v8902
        %v9613 = vunpack.c.h.b16 %v8902
        %v9614 = vunpack.c.l.b16 %v8903
        %v9615 = vunpack.c.h.b16 %v8903
        %v9616 = vunpack.c.l.b16 %v8904
        %v9617 = vunpack.c.h.b16 %v8904
        %v9618 = vunpack.c.l.b16 %v8905
        %v9619 = vunpack.c.h.b16 %v8905
        %v9620 = vunpack.c.l.b16 %v8906
        %v9621 = vunpack.c.h.b16 %v8906
        %v9622 = vunpack.c.l.b16 %v8907
        %v9623 = vunpack.c.h.b16 %v8907
        %v9624 = vunpack.c.l.b16 %v8908
        %v9625 = vunpack.c.h.b16 %v8908
        %v9626 = vunpack.c.l.b16 %v8909
        %v9627 = vunpack.c.h.b16 %v8909
        %v9628 = vunpack.c.l.b16 %v8910
        %v9629 = vunpack.c.h.b16 %v8910
        %v9630 = vunpack.c.l.b16 %v8911
        %v9631 = vunpack.c.h.b16 %v8911
        %v9632 = vunpack.c.l.b16 %v8912
        %v9633 = vunpack.c.h.b16 %v8912
        %v9634 = vunpack.c.l.b16 %v8913
        %v9635 = vunpack.c.h.b16 %v8913
        %v9636 = vunpack.c.l.b16 %v8914
        %v9637 = vunpack.c.h.b16 %v8914
        %v9638 = vunpack.c.l.b16 %v8915
        %v9639 = vunpack.c.h.b16 %v8915
        %v9640 = vunpack.c.l.b16 %v8916
        %v9641 = vunpack.c.h.b16 %v8916
        %v9642 = vunpack.c.l.b16 %v8917
        %v9643 = vunpack.c.h.b16 %v8917
        %v9644 = vunpack.c.l.b16 %v8918
        %v9645 = vunpack.c.h.b16 %v8918
        %v9646 = vunpack.c.l.b16 %v8919
        %v9647 = vunpack.c.h.b16 %v8919
        %v9648 = vunpack.c.l.b16 %v8920
        %v9649 = vunpack.c.h.b16 %v8920
        %v9650 = vunpack.c.l.b16 %v8921
        %v9651 = vunpack.c.h.b16 %v8921
        %v9652 = vunpack.c.l.b16 %v8922
        %v9653 = vunpack.c.h.b16 %v8922
        %v9654 = vunpack.c.l.b16 %v8923
        %v9655 = vunpack.c.h.b16 %v8923
        %v9656 = vunpack.c.l.b16 %v8924
        %v9657 = vunpack.c.h.b16 %v8924
        %v9658 = vunpack.c.l.b16 %v8925
        %v9659 = vunpack.c.h.b16 %v8925
        %v9660 = vunpack.c.l.b16 %v8926
        %v9661 = vunpack.c.h.b16 %v8926
        %v9662 = vunpack.c.l.b16 %v8927
        %v9663 = vunpack.c.h.b16 %v8927
        %v9664 = vunpack.c.l.b16 %v8928
        %v9665 = vunpack.c.h.b16 %v8928
        %v9666 = vunpack.c.l.b16 %v8929
        %v9667 = vunpack.c.h.b16 %v8929
        %v9668 = vunpack.c.l.b16 %v8930
        %v9669 = vunpack.c.h.b16 %v8930
        %v9670 = vunpack.c.l.b16 %v8931
        %v9671 = vunpack.c.h.b16 %v8931
        %v9672 = vunpack.c.l.b16 %v8932
        %v9673 = vunpack.c.h.b16 %v8932
        %v9674 = vunpack.c.l.b16 %v8933
        %v9675 = vunpack.c.h.b16 %v8933
        %v9676 = vunpack.c.l.b16 %v8934
        %v9677 = vunpack.c.h.b16 %v8934
        %v9678 = vunpack.c.l.b16 %v8935
        %v9679 = vunpack.c.h.b16 %v8935
        %v9680 = vunpack.c.l.b16 %v8936
        %v9681 = vunpack.c.h.b16 %v8936
        %v9682 = vunpack.c.l.b16 %v8937
        %v9683 = vunpack.c.h.b16 %v8937
        %v9684 = vunpack.c.l.b16 %v8938
        %v9685 = vunpack.c.h.b16 %v8938
        %v9686 = vunpack.c.l.b16 %v8939
        %v9687 = vunpack.c.h.b16 %v8939
        %v9688 = vunpack.c.l.b16 %v8940
        %v9689 = vunpack.c.h.b16 %v8940
        %v9690 = vunpack.c.l.b16 %v8941
        %v9691 = vunpack.c.h.b16 %v8941
        %v9692 = vunpack.c.l.b16 %v8942
        %v9693 = vunpack.c.h.b16 %v8942
        %v9694 = vunpack.c.l.b16 %v8943
        %v9695 = vunpack.c.h.b16 %v8943
        %v9696 = vunpack.c.l.b16 %v8944
        %v9697 = vunpack.c.h.b16 %v8944
        %v9698 = vunpack.c.l.b16 %v8945
        %v9699 = vunpack.c.h.b16 %v8945
        %v9700 = vunpack.c.l.b16 %v8946
        %v9701 = vunpack.c.h.b16 %v8946
        %v9702 = vunpack.c.l.b16 %v8947
        %v9703 = vunpack.c.h.b16 %v8947
        %v9704 = vunpack.c.l.b16 %v8948
        %v9705 = vunpack.c.h.b16 %v8948
        %v9706 = vunpack.c.l.b16 %v8949
        %v9707 = vunpack.c.h.b16 %v8949
        %v9708 = vunpack.c.l.b16 %v8950
        %v9709 = vunpack.c.h.b16 %v8950
        %v9710 = vunpack.c.l.b16 %v8951
        %v9711 = vunpack.c.h.b16 %v8951
        %v9712 = vunpack.c.l.b16 %v8952
        %v9713 = vunpack.c.h.b16 %v8952
        %v9714 = vunpack.c.l.b16 %v8953
        %v9715 = vunpack.c.h.b16 %v8953
        %v9716 = vunpack.c.l.b16 %v8954
        %v9717 = vunpack.c.h.b16 %v8954
        %v9718 = vunpack.c.l.b16 %v8955
        %v9719 = vunpack.c.h.b16 %v8955
        %v9720 = vunpack.c.l.b16 %v8956
        %v9721 = vunpack.c.h.b16 %v8956
        %v9722 = vunpack.c.l.b16 %v8957
        %v9723 = vunpack.c.h.b16 %v8957
        %v9724 = vunpack.c.l.b16 %v8958
        %v9725 = vunpack.c.h.b16 %v8958
        %v9726 = vunpack.c.l.b16 %v8959
        %v9727 = vunpack.c.h.b16 %v8959
        %v9728 = vunpack.c.l.b16 %v8960
        %v9729 = vunpack.c.h.b16 %v8960
        %v9730 = vpack.c.b16 %v9222, %v9218
        %v9731 = vpack.c.b16 %v9223, %v9219
        %v9732 = vpack.c.b16 %v9224, %v9220
        %v9733 = vpack.c.b16 %v9225, %v9221
        %v9734 = vpack.c.b16 %v9230, %v9226
        %v9735 = vpack.c.b16 %v9231, %v9227
        %v9736 = vpack.c.b16 %v9232, %v9228
        %v9737 = vpack.c.b16 %v9233, %v9229
        %v9738 = vpack.c.b16 %v9238, %v9234
        %v9739 = vpack.c.b16 %v9239, %v9235
        %v9740 = vpack.c.b16 %v9240, %v9236
        %v9741 = vpack.c.b16 %v9241, %v9237
        %v9742 = vpack.c.b16 %v9246, %v9242
        %v9743 = vpack.c.b16 %v9247, %v9243
        %v9744 = vpack.c.b16 %v9248, %v9244
        %v9745 = vpack.c.b16 %v9249, %v9245
        %v9746 = vpack.c.b16 %v9254, %v9250
        %v9747 = vpack.c.b16 %v9255, %v9251
        %v9748 = vpack.c.b16 %v9256, %v9252
        %v9749 = vpack.c.b16 %v9257, %v9253
        %v9750 = vpack.c.b16 %v9262, %v9258
        %v9751 = vpack.c.b16 %v9263, %v9259
        %v9752 = vpack.c.b16 %v9264, %v9260
        %v9753 = vpack.c.b16 %v9265, %v9261
        %v9754 = vpack.c.b16 %v9270, %v9266
        %v9755 = vpack.c.b16 %v9271, %v9267
        %v9756 = vpack.c.b16 %v9272, %v9268
        %v9757 = vpack.c.b16 %v9273, %v9269
        %v9758 = vpack.c.b16 %v9278, %v9274
        %v9759 = vpack.c.b16 %v9279, %v9275
        %v9760 = vpack.c.b16 %v9280, %v9276
        %v9761 = vpack.c.b16 %v9281, %v9277
        %v9762 = vpack.c.b16 %v9286, %v9282
        %v9763 = vpack.c.b16 %v9287, %v9283
        %v9764 = vpack.c.b16 %v9288, %v9284
        %v9765 = vpack.c.b16 %v9289, %v9285
        %v9766 = vpack.c.b16 %v9294, %v9290
        %v9767 = vpack.c.b16 %v9295, %v9291
        %v9768 = vpack.c.b16 %v9296, %v9292
        %v9769 = vpack.c.b16 %v9297, %v9293
        %v9770 = vpack.c.b16 %v9302, %v9298
        %v9771 = vpack.c.b16 %v9303, %v9299
        %v9772 = vpack.c.b16 %v9304, %v9300
        %v9773 = vpack.c.b16 %v9305, %v9301
        %v9774 = vpack.c.b16 %v9310, %v9306
        %v9775 = vpack.c.b16 %v9311, %v9307
        %v9776 = vpack.c.b16 %v9312, %v9308
        %v9777 = vpack.c.b16 %v9313, %v9309
        %v9778 = vpack.c.b16 %v9318, %v9314
        %v9779 = vpack.c.b16 %v9319, %v9315
        %v9780 = vpack.c.b16 %v9320, %v9316
        %v9781 = vpack.c.b16 %v9321, %v9317
        %v9782 = vpack.c.b16 %v9326, %v9322
        %v9783 = vpack.c.b16 %v9327, %v9323
        %v9784 = vpack.c.b16 %v9328, %v9324
        %v9785 = vpack.c.b16 %v9329, %v9325
        %v9786 = vpack.c.b16 %v9334, %v9330
        %v9787 = vpack.c.b16 %v9335, %v9331
        %v9788 = vpack.c.b16 %v9336, %v9332
        %v9789 = vpack.c.b16 %v9337, %v9333
        %v9790 = vpack.c.b16 %v9342, %v9338
        %v9791 = vpack.c.b16 %v9343, %v9339
        %v9792 = vpack.c.b16 %v9344, %v9340
        %v9793 = vpack.c.b16 %v9345, %v9341
        %v9794 = vpack.c.b16 %v9350, %v9346
        %v9795 = vpack.c.b16 %v9351, %v9347
        %v9796 = vpack.c.b16 %v9352, %v9348
        %v9797 = vpack.c.b16 %v9353, %v9349
        %v9798 = vpack.c.b16 %v9358, %v9354
        %v9799 = vpack.c.b16 %v9359, %v9355
        %v9800 = vpack.c.b16 %v9360, %v9356
        %v9801 = vpack.c.b16 %v9361, %v9357
        %v9802 = vpack.c.b16 %v9366, %v9362
        %v9803 = vpack.c.b16 %v9367, %v9363
        %v9804 = vpack.c.b16 %v9368, %v9364
        %v9805 = vpack.c.b16 %v9369, %v9365
        %v9806 = vpack.c.b16 %v9374, %v9370
        %v9807 = vpack.c.b16 %v9375, %v9371
        %v9808 = vpack.c.b16 %v9376, %v9372
        %v9809 = vpack.c.b16 %v9377, %v9373
        %v9810 = vpack.c.b16 %v9382, %v9378
        %v9811 = vpack.c.b16 %v9383, %v9379
        %v9812 = vpack.c.b16 %v9384, %v9380
        %v9813 = vpack.c.b16 %v9385, %v9381
        %v9814 = vpack.c.b16 %v9390, %v9386
        %v9815 = vpack.c.b16 %v9391, %v9387
        %v9816 = vpack.c.b16 %v9392, %v9388
        %v9817 = vpack.c.b16 %v9393, %v9389
        %v9818 = vpack.c.b16 %v9398, %v9394
        %v9819 = vpack.c.b16 %v9399, %v9395
        %v9820 = vpack.c.b16 %v9400, %v9396
        %v9821 = vpack.c.b16 %v9401, %v9397
        %v9822 = vpack.c.b16 %v9406, %v9402
        %v9823 = vpack.c.b16 %v9407, %v9403
        %v9824 = vpack.c.b16 %v9408, %v9404
        %v9825 = vpack.c.b16 %v9409, %v9405
        %v9826 = vpack.c.b16 %v9414, %v9410
        %v9827 = vpack.c.b16 %v9415, %v9411
        %v9828 = vpack.c.b16 %v9416, %v9412
        %v9829 = vpack.c.b16 %v9417, %v9413
        %v9830 = vpack.c.b16 %v9422, %v9418
        %v9831 = vpack.c.b16 %v9423, %v9419
        %v9832 = vpack.c.b16 %v9424, %v9420
        %v9833 = vpack.c.b16 %v9425, %v9421
        %v9834 = vpack.c.b16 %v9430, %v9426
        %v9835 = vpack.c.b16 %v9431, %v9427
        %v9836 = vpack.c.b16 %v9432, %v9428
        %v9837 = vpack.c.b16 %v9433, %v9429
        %v9838 = vpack.c.b16 %v9438, %v9434
        %v9839 = vpack.c.b16 %v9439, %v9435
        %v9840 = vpack.c.b16 %v9440, %v9436
        %v9841 = vpack.c.b16 %v9441, %v9437
        %v9842 = vpack.c.b16 %v9446, %v9442
        %v9843 = vpack.c.b16 %v9447, %v9443
        %v9844 = vpack.c.b16 %v9448, %v9444
        %v9845 = vpack.c.b16 %v9449, %v9445
        %v9846 = vpack.c.b16 %v9454, %v9450
        %v9847 = vpack.c.b16 %v9455, %v9451
        %v9848 = vpack.c.b16 %v9456, %v9452
        %v9849 = vpack.c.b16 %v9457, %v9453
        %v9850 = vpack.c.b16 %v9462, %v9458
        %v9851 = vpack.c.b16 %v9463, %v9459
        %v9852 = vpack.c.b16 %v9464, %v9460
        %v9853 = vpack.c.b16 %v9465, %v9461
        %v9854 = vpack.c.b16 %v9470, %v9466
        %v9855 = vpack.c.b16 %v9471, %v9467
        %v9856 = vpack.c.b16 %v9472, %v9468
        %v9857 = vpack.c.b16 %v9473, %v9469
        %v9858 = vpack.c.b16 %v9478, %v9474
        %v9859 = vpack.c.b16 %v9479, %v9475
        %v9860 = vpack.c.b16 %v9480, %v9476
        %v9861 = vpack.c.b16 %v9481, %v9477
        %v9862 = vpack.c.b16 %v9486, %v9482
        %v9863 = vpack.c.b16 %v9487, %v9483
        %v9864 = vpack.c.b16 %v9488, %v9484
        %v9865 = vpack.c.b16 %v9489, %v9485
        %v9866 = vpack.c.b16 %v9494, %v9490
        %v9867 = vpack.c.b16 %v9495, %v9491
        %v9868 = vpack.c.b16 %v9496, %v9492
        %v9869 = vpack.c.b16 %v9497, %v9493
        %v9870 = vpack.c.b16 %v9502, %v9498
        %v9871 = vpack.c.b16 %v9503, %v9499
        %v9872 = vpack.c.b16 %v9504, %v9500
        %v9873 = vpack.c.b16 %v9505, %v9501
        %v9874 = vpack.c.b16 %v9510, %v9506
        %v9875 = vpack.c.b16 %v9511, %v9507
        %v9876 = vpack.c.b16 %v9512, %v9508
        %v9877 = vpack.c.b16 %v9513, %v9509
        %v9878 = vpack.c.b16 %v9518, %v9514
        %v9879 = vpack.c.b16 %v9519, %v9515
        %v9880 = vpack.c.b16 %v9520, %v9516
        %v9881 = vpack.c.b16 %v9521, %v9517
        %v9882 = vpack.c.b16 %v9526, %v9522
        %v9883 = vpack.c.b16 %v9527, %v9523
        %v9884 = vpack.c.b16 %v9528, %v9524
        %v9885 = vpack.c.b16 %v9529, %v9525
        %v9886 = vpack.c.b16 %v9534, %v9530
        %v9887 = vpack.c.b16 %v9535, %v9531
        %v9888 = vpack.c.b16 %v9536, %v9532
        %v9889 = vpack.c.b16 %v9537, %v9533
        %v9890 = vpack.c.b16 %v9542, %v9538
        %v9891 = vpack.c.b16 %v9543, %v9539
        %v9892 = vpack.c.b16 %v9544, %v9540
        %v9893 = vpack.c.b16 %v9545, %v9541
        %v9894 = vpack.c.b16 %v9550, %v9546
        %v9895 = vpack.c.b16 %v9551, %v9547
        %v9896 = vpack.c.b16 %v9552, %v9548
        %v9897 = vpack.c.b16 %v9553, %v9549
        %v9898 = vpack.c.b16 %v9558, %v9554
        %v9899 = vpack.c.b16 %v9559, %v9555
        %v9900 = vpack.c.b16 %v9560, %v9556
        %v9901 = vpack.c.b16 %v9561, %v9557
        %v9902 = vpack.c.b16 %v9566, %v9562
        %v9903 = vpack.c.b16 %v9567, %v9563
        %v9904 = vpack.c.b16 %v9568, %v9564
        %v9905 = vpack.c.b16 %v9569, %v9565
        %v9906 = vpack.c.b16 %v9574, %v9570
        %v9907 = vpack.c.b16 %v9575, %v9571
        %v9908 = vpack.c.b16 %v9576, %v9572
        %v9909 = vpack.c.b16 %v9577, %v9573
        %v9910 = vpack.c.b16 %v9582, %v9578
        %v9911 = vpack.c.b16 %v9583, %v9579
        %v9912 = vpack.c.b16 %v9584, %v9580
        %v9913 = vpack.c.b16 %v9585, %v9581
        %v9914 = vpack.c.b16 %v9590, %v9586
        %v9915 = vpack.c.b16 %v9591, %v9587
        %v9916 = vpack.c.b16 %v9592, %v9588
        %v9917 = vpack.c.b16 %v9593, %v9589
        %v9918 = vpack.c.b16 %v9598, %v9594
        %v9919 = vpack.c.b16 %v9599, %v9595
        %v9920 = vpack.c.b16 %v9600, %v9596
        %v9921 = vpack.c.b16 %v9601, %v9597
        %v9922 = vpack.c.b16 %v9606, %v9602
        %v9923 = vpack.c.b16 %v9607, %v9603
        %v9924 = vpack.c.b16 %v9608, %v9604
        %v9925 = vpack.c.b16 %v9609, %v9605
        %v9926 = vpack.c.b16 %v9614, %v9610
        %v9927 = vpack.c.b16 %v9615, %v9611
        %v9928 = vpack.c.b16 %v9616, %v9612
        %v9929 = vpack.c.b16 %v9617, %v9613
        %v9930 = vpack.c.b16 %v9622, %v9618
        %v9931 = vpack.c.b16 %v9623, %v9619
        %v9932 = vpack.c.b16 %v9624, %v9620
        %v9933 = vpack.c.b16 %v9625, %v9621
        %v9934 = vpack.c.b16 %v9630, %v9626
        %v9935 = vpack.c.b16 %v9631, %v9627
        %v9936 = vpack.c.b16 %v9632, %v9628
        %v9937 = vpack.c.b16 %v9633, %v9629
        %v9938 = vpack.c.b16 %v9638, %v9634
        %v9939 = vpack.c.b16 %v9639, %v9635
        %v9940 = vpack.c.b16 %v9640, %v9636
        %v9941 = vpack.c.b16 %v9641, %v9637
        %v9942 = vpack.c.b16 %v9646, %v9642
        %v9943 = vpack.c.b16 %v9647, %v9643
        %v9944 = vpack.c.b16 %v9648, %v9644
        %v9945 = vpack.c.b16 %v9649, %v9645
        %v9946 = vpack.c.b16 %v9654, %v9650
        %v9947 = vpack.c.b16 %v9655, %v9651
        %v9948 = vpack.c.b16 %v9656, %v9652
        %v9949 = vpack.c.b16 %v9657, %v9653
        %v9950 = vpack.c.b16 %v9662, %v9658
        %v9951 = vpack.c.b16 %v9663, %v9659
        %v9952 = vpack.c.b16 %v9664, %v9660
        %v9953 = vpack.c.b16 %v9665, %v9661
        %v9954 = vpack.c.b16 %v9670, %v9666
        %v9955 = vpack.c.b16 %v9671, %v9667
        %v9956 = vpack.c.b16 %v9672, %v9668
        %v9957 = vpack.c.b16 %v9673, %v9669
        %v9958 = vpack.c.b16 %v9678, %v9674
        %v9959 = vpack.c.b16 %v9679, %v9675
        %v9960 = vpack.c.b16 %v9680, %v9676
        %v9961 = vpack.c.b16 %v9681, %v9677
        %v9962 = vpack.c.b16 %v9686, %v9682
        %v9963 = vpack.c.b16 %v9687, %v9683
        %v9964 = vpack.c.b16 %v9688, %v9684
        %v9965 = vpack.c.b16 %v9689, %v9685
        %v9966 = vpack.c.b16 %v9694, %v9690
        %v9967 = vpack.c.b16 %v9695, %v9691
        %v9968 = vpack.c.b16 %v9696, %v9692
        %v9969 = vpack.c.b16 %v9697, %v9693
        %v9970 = vpack.c.b16 %v9702, %v9698
        %v9971 = vpack.c.b16 %v9703, %v9699
        %v9972 = vpack.c.b16 %v9704, %v9700
        %v9973 = vpack.c.b16 %v9705, %v9701
        %v9974 = vpack.c.b16 %v9710, %v9706
        %v9975 = vpack.c.b16 %v9711, %v9707
        %v9976 = vpack.c.b16 %v9712, %v9708
        %v9977 = vpack.c.b16 %v9713, %v9709
        %v9978 = vpack.c.b16 %v9718, %v9714
        %v9979 = vpack.c.b16 %v9719, %v9715
        %v9980 = vpack.c.b16 %v9720, %v9716
        %v9981 = vpack.c.b16 %v9721, %v9717
        %v9982 = vpack.c.b16 %v9726, %v9722
        %v9983 = vpack.c.b16 %v9727, %v9723
        %v9984 = vpack.c.b16 %v9728, %v9724
        %v9985 = vpack.c.b16 %v9729, %v9725
        %v10243 = vperm.slane %v8961, 0
        %v10244 = vperm.slane %v8961, 1
        %v10245 = vperm.slane %v8961, 2
        %v10246 = vperm.slane %v8961, 3
        %10251 = vmatpush.bf16.msra.mxu0 %v9758
        %10252 = vmatpush.bf16.msra.mxu0 %v9754
        %10253 = vmatpush.bf16.msra.mxu0 %v9750
        %10254 = vmatpush.bf16.msra.mxu0 %v9746
        %10255 = vmatpush.bf16.msra.mxu0 %v9742
        %10256 = vmatpush.bf16.msra.mxu0 %v9738
        %10257 = vmatpush.bf16.msra.mxu0 %v9734
        %10258 = vmatpush.bf16.msra.mxu0 %v9730
        %10259 = vmatmul.bf16.gmra.mxu0 %v8697
        %v10260 = vpop.f32.mrf.mxu0
        %v10261 = vadd.f32 %v10243, %v10260
        %v10262 = vpop.f32.mrf.mxu0
        %10263 = vdwg.mxu0
        %10264 = vmatpush.bf16.msra.mxu0 %v9790
        %10265 = vmatpush.bf16.msra.mxu0 %v9786
        %10266 = vmatpush.bf16.msra.mxu0 %v9782
        %10267 = vmatpush.bf16.msra.mxu0 %v9778
        %10268 = vmatpush.bf16.msra.mxu0 %v9774
        %10269 = vmatpush.bf16.msra.mxu0 %v9770
        %10270 = vmatpush.bf16.msra.mxu0 %v9766
        %10271 = vmatpush.bf16.msra.mxu0 %v9762
        %10272 = vmatmul.bf16.gmra.mxu0 %v8698
        %v10273 = vpop.f32.mrf.mxu0
        %v10274 = vadd.f32 %v10261, %v10273
        %v10275 = vpop.f32.mrf.mxu0
        %10276 = vdwg.mxu0
        %10277 = vmatpush.bf16.msra.mxu0 %v9822
        %10278 = vmatpush.bf16.msra.mxu0 %v9818
        %10279 = vmatpush.bf16.msra.mxu0 %v9814
        %10280 = vmatpush.bf16.msra.mxu0 %v9810
        %10281 = vmatpush.bf16.msra.mxu0 %v9806
        %10282 = vmatpush.bf16.msra.mxu0 %v9802
        %10283 = vmatpush.bf16.msra.mxu0 %v9798
        %10284 = vmatpush.bf16.msra.mxu0 %v9794
        %10285 = vmatmul.bf16.gmra.mxu0 %v8699
        %v10286 = vpop.f32.mrf.mxu0
        %v10287 = vadd.f32 %v10274, %v10286
        %v10288 = vpop.f32.mrf.mxu0
        %10289 = vdwg.mxu0
        %10290 = vmatpush.bf16.msra.mxu0 %v9854
        %10291 = vmatpush.bf16.msra.mxu0 %v9850
        %10292 = vmatpush.bf16.msra.mxu0 %v9846
        %10293 = vmatpush.bf16.msra.mxu0 %v9842
        %10294 = vmatpush.bf16.msra.mxu0 %v9838
        %10295 = vmatpush.bf16.msra.mxu0 %v9834
        %10296 = vmatpush.bf16.msra.mxu0 %v9830
        %10297 = vmatpush.bf16.msra.mxu0 %v9826
        %10298 = vmatmul.bf16.gmra.mxu0 %v8700
        %v10299 = vpop.f32.mrf.mxu0
        %v10300 = vadd.f32 %v10287, %v10299
        %v10301 = vpop.f32.mrf.mxu0
        %10302 = vdwg.mxu0
        %10303 = vmatpush.bf16.msra.mxu0 %v9886
        %10304 = vmatpush.bf16.msra.mxu0 %v9882
        %10305 = vmatpush.bf16.msra.mxu0 %v9878
        %10306 = vmatpush.bf16.msra.mxu0 %v9874
        %10307 = vmatpush.bf16.msra.mxu0 %v9870
        %10308 = vmatpush.bf16.msra.mxu0 %v9866
        %10309 = vmatpush.bf16.msra.mxu0 %v9862
        %10310 = vmatpush.bf16.msra.mxu0 %v9858
        %10311 = vmatmul.bf16.gmra.mxu0 %v8701
        %v10312 = vpop.f32.mrf.mxu0
        %v10313 = vadd.f32 %v10300, %v10312
        %v10314 = vpop.f32.mrf.mxu0
        %10315 = vdwg.mxu0
        %10316 = vmatpush.bf16.msra.mxu0 %v9918
        %10317 = vmatpush.bf16.msra.mxu0 %v9914
        %10318 = vmatpush.bf16.msra.mxu0 %v9910
        %10319 = vmatpush.bf16.msra.mxu0 %v9906
        %10320 = vmatpush.bf16.msra.mxu0 %v9902
        %10321 = vmatpush.bf16.msra.mxu0 %v9898
        %10322 = vmatpush.bf16.msra.mxu0 %v9894
        %10323 = vmatpush.bf16.msra.mxu0 %v9890
        %10324 = vmatmul.bf16.gmra.mxu0 %v8702
        %v10325 = vpop.f32.mrf.mxu0
        %v10326 = vadd.f32 %v10313, %v10325
        %v10327 = vpop.f32.mrf.mxu0
        %10328 = vdwg.mxu0
        %10329 = vmatpush.bf16.msra.mxu0 %v9950
        %10330 = vmatpush.bf16.msra.mxu0 %v9946
        %10331 = vmatpush.bf16.msra.mxu0 %v9942
        %10332 = vmatpush.bf16.msra.mxu0 %v9938
        %10333 = vmatpush.bf16.msra.mxu0 %v9934
        %10334 = vmatpush.bf16.msra.mxu0 %v9930
        %10335 = vmatpush.bf16.msra.mxu0 %v9926
        %10336 = vmatpush.bf16.msra.mxu0 %v9922
        %10337 = vmatmul.bf16.gmra.mxu0 %v8703
        %v10338 = vpop.f32.mrf.mxu0
        %v10339 = vadd.f32 %v10326, %v10338
        %v10340 = vpop.f32.mrf.mxu0
        %10341 = vdwg.mxu0
        %10342 = vmatpush.bf16.msra.mxu0 %v9982
        %10343 = vmatpush.bf16.msra.mxu0 %v9978
        %10344 = vmatpush.bf16.msra.mxu0 %v9974
        %10345 = vmatpush.bf16.msra.mxu0 %v9970
        %10346 = vmatpush.bf16.msra.mxu0 %v9966
        %10347 = vmatpush.bf16.msra.mxu0 %v9962
        %10348 = vmatpush.bf16.msra.mxu0 %v9958
        %10349 = vmatpush.bf16.msra.mxu0 %v9954
        %10350 = vmatmul.bf16.gmra.mxu0 %v8704
        %v10351 = vpop.f32.mrf.mxu0
        %v10352 = vadd.f32 %v10339, %v10351
        %v10353 = vpop.f32.mrf.mxu0
        %10354 = vdwg.mxu0
        %10355 = vmatpush.bf16.msra.mxu0 %v9759
        %10356 = vmatpush.bf16.msra.mxu0 %v9755
        %10357 = vmatpush.bf16.msra.mxu0 %v9751
        %10358 = vmatpush.bf16.msra.mxu0 %v9747
        %10359 = vmatpush.bf16.msra.mxu0 %v9743
        %10360 = vmatpush.bf16.msra.mxu0 %v9739
        %10361 = vmatpush.bf16.msra.mxu0 %v9735
        %10362 = vmatpush.bf16.msra.mxu0 %v9731
        %10363 = vmatmul.bf16.gmra.mxu0 %v8697
        %v10364 = vpop.f32.mrf.mxu0
        %v10365 = vadd.f32 %v10244, %v10364
        %v10366 = vpop.f32.mrf.mxu0
        %10367 = vdwg.mxu0
        %10368 = vmatpush.bf16.msra.mxu0 %v9791
        %10369 = vmatpush.bf16.msra.mxu0 %v9787
        %10370 = vmatpush.bf16.msra.mxu0 %v9783
        %10371 = vmatpush.bf16.msra.mxu0 %v9779
        %10372 = vmatpush.bf16.msra.mxu0 %v9775
        %10373 = vmatpush.bf16.msra.mxu0 %v9771
        %10374 = vmatpush.bf16.msra.mxu0 %v9767
        %10375 = vmatpush.bf16.msra.mxu0 %v9763
        %10376 = vmatmul.bf16.gmra.mxu0 %v8698
        %v10377 = vpop.f32.mrf.mxu0
        %v10378 = vadd.f32 %v10365, %v10377
        %v10379 = vpop.f32.mrf.mxu0
        %10380 = vdwg.mxu0
        %10381 = vmatpush.bf16.msra.mxu0 %v9823
        %10382 = vmatpush.bf16.msra.mxu0 %v9819
        %10383 = vmatpush.bf16.msra.mxu0 %v9815
        %10384 = vmatpush.bf16.msra.mxu0 %v9811
        %10385 = vmatpush.bf16.msra.mxu0 %v9807
        %10386 = vmatpush.bf16.msra.mxu0 %v9803
        %10387 = vmatpush.bf16.msra.mxu0 %v9799
        %10388 = vmatpush.bf16.msra.mxu0 %v9795
        %10389 = vmatmul.bf16.gmra.mxu0 %v8699
        %v10390 = vpop.f32.mrf.mxu0
        %v10391 = vadd.f32 %v10378, %v10390
        %v10392 = vpop.f32.mrf.mxu0
        %10393 = vdwg.mxu0
        %10394 = vmatpush.bf16.msra.mxu0 %v9855
        %10395 = vmatpush.bf16.msra.mxu0 %v9851
        %10396 = vmatpush.bf16.msra.mxu0 %v9847
        %10397 = vmatpush.bf16.msra.mxu0 %v9843
        %10398 = vmatpush.bf16.msra.mxu0 %v9839
        %10399 = vmatpush.bf16.msra.mxu0 %v9835
        %10400 = vmatpush.bf16.msra.mxu0 %v9831
        %10401 = vmatpush.bf16.msra.mxu0 %v9827
        %10402 = vmatmul.bf16.gmra.mxu0 %v8700
        %v10403 = vpop.f32.mrf.mxu0
        %v10404 = vadd.f32 %v10391, %v10403
        %v10405 = vpop.f32.mrf.mxu0
        %10406 = vdwg.mxu0
        %10407 = vmatpush.bf16.msra.mxu0 %v9887
        %10408 = vmatpush.bf16.msra.mxu0 %v9883
        %10409 = vmatpush.bf16.msra.mxu0 %v9879
        %10410 = vmatpush.bf16.msra.mxu0 %v9875
        %10411 = vmatpush.bf16.msra.mxu0 %v9871
        %10412 = vmatpush.bf16.msra.mxu0 %v9867
        %10413 = vmatpush.bf16.msra.mxu0 %v9863
        %10414 = vmatpush.bf16.msra.mxu0 %v9859
        %10415 = vmatmul.bf16.gmra.mxu0 %v8701
        %v10416 = vpop.f32.mrf.mxu0
        %v10417 = vadd.f32 %v10404, %v10416
        %v10418 = vpop.f32.mrf.mxu0
        %10419 = vdwg.mxu0
        %10420 = vmatpush.bf16.msra.mxu0 %v9919
        %10421 = vmatpush.bf16.msra.mxu0 %v9915
        %10422 = vmatpush.bf16.msra.mxu0 %v9911
        %10423 = vmatpush.bf16.msra.mxu0 %v9907
        %10424 = vmatpush.bf16.msra.mxu0 %v9903
        %10425 = vmatpush.bf16.msra.mxu0 %v9899
        %10426 = vmatpush.bf16.msra.mxu0 %v9895
        %10427 = vmatpush.bf16.msra.mxu0 %v9891
        %10428 = vmatmul.bf16.gmra.mxu0 %v8702
        %v10429 = vpop.f32.mrf.mxu0
        %v10430 = vadd.f32 %v10417, %v10429
        %v10431 = vpop.f32.mrf.mxu0
        %10432 = vdwg.mxu0
        %10433 = vmatpush.bf16.msra.mxu0 %v9951
        %10434 = vmatpush.bf16.msra.mxu0 %v9947
        %10435 = vmatpush.bf16.msra.mxu0 %v9943
        %10436 = vmatpush.bf16.msra.mxu0 %v9939
        %10437 = vmatpush.bf16.msra.mxu0 %v9935
        %10438 = vmatpush.bf16.msra.mxu0 %v9931
        %10439 = vmatpush.bf16.msra.mxu0 %v9927
        %10440 = vmatpush.bf16.msra.mxu0 %v9923
        %10441 = vmatmul.bf16.gmra.mxu0 %v8703
        %v10442 = vpop.f32.mrf.mxu0
        %v10443 = vadd.f32 %v10430, %v10442
        %v10444 = vpop.f32.mrf.mxu0
        %10445 = vdwg.mxu0
        %10446 = vmatpush.bf16.msra.mxu0 %v9983
        %10447 = vmatpush.bf16.msra.mxu0 %v9979
        %10448 = vmatpush.bf16.msra.mxu0 %v9975
        %10449 = vmatpush.bf16.msra.mxu0 %v9971
        %10450 = vmatpush.bf16.msra.mxu0 %v9967
        %10451 = vmatpush.bf16.msra.mxu0 %v9963
        %10452 = vmatpush.bf16.msra.mxu0 %v9959
        %10453 = vmatpush.bf16.msra.mxu0 %v9955
        %10454 = vmatmul.bf16.gmra.mxu0 %v8704
        %v10455 = vpop.f32.mrf.mxu0
        %v10456 = vadd.f32 %v10443, %v10455
        %v10457 = vpop.f32.mrf.mxu0
        %10458 = vdwg.mxu0
        %10459 = vmatpush.bf16.msra.mxu0 %v9760
        %10460 = vmatpush.bf16.msra.mxu0 %v9756
        %10461 = vmatpush.bf16.msra.mxu0 %v9752
        %10462 = vmatpush.bf16.msra.mxu0 %v9748
        %10463 = vmatpush.bf16.msra.mxu0 %v9744
        %10464 = vmatpush.bf16.msra.mxu0 %v9740
        %10465 = vmatpush.bf16.msra.mxu0 %v9736
        %10466 = vmatpush.bf16.msra.mxu0 %v9732
        %10467 = vmatmul.bf16.gmra.mxu0 %v8697
        %v10468 = vpop.f32.mrf.mxu0
        %v10469 = vadd.f32 %v10245, %v10468
        %v10470 = vpop.f32.mrf.mxu0
        %10471 = vdwg.mxu0
        %10472 = vmatpush.bf16.msra.mxu0 %v9792
        %10473 = vmatpush.bf16.msra.mxu0 %v9788
        %10474 = vmatpush.bf16.msra.mxu0 %v9784
        %10475 = vmatpush.bf16.msra.mxu0 %v9780
        %10476 = vmatpush.bf16.msra.mxu0 %v9776
        %10477 = vmatpush.bf16.msra.mxu0 %v9772
        %10478 = vmatpush.bf16.msra.mxu0 %v9768
        %10479 = vmatpush.bf16.msra.mxu0 %v9764
        %10480 = vmatmul.bf16.gmra.mxu0 %v8698
        %v10481 = vpop.f32.mrf.mxu0
        %v10482 = vadd.f32 %v10469, %v10481
        %v10483 = vpop.f32.mrf.mxu0
        %10484 = vdwg.mxu0
        %10485 = vmatpush.bf16.msra.mxu0 %v9824
        %10486 = vmatpush.bf16.msra.mxu0 %v9820
        %10487 = vmatpush.bf16.msra.mxu0 %v9816
        %10488 = vmatpush.bf16.msra.mxu0 %v9812
        %10489 = vmatpush.bf16.msra.mxu0 %v9808
        %10490 = vmatpush.bf16.msra.mxu0 %v9804
        %10491 = vmatpush.bf16.msra.mxu0 %v9800
        %10492 = vmatpush.bf16.msra.mxu0 %v9796
        %10493 = vmatmul.bf16.gmra.mxu0 %v8699
        %v10494 = vpop.f32.mrf.mxu0
        %v10495 = vadd.f32 %v10482, %v10494
        %v10496 = vpop.f32.mrf.mxu0
        %10497 = vdwg.mxu0
        %10498 = vmatpush.bf16.msra.mxu0 %v9856
        %10499 = vmatpush.bf16.msra.mxu0 %v9852
        %10500 = vmatpush.bf16.msra.mxu0 %v9848
        %10501 = vmatpush.bf16.msra.mxu0 %v9844
        %10502 = vmatpush.bf16.msra.mxu0 %v9840
        %10503 = vmatpush.bf16.msra.mxu0 %v9836
        %10504 = vmatpush.bf16.msra.mxu0 %v9832
        %10505 = vmatpush.bf16.msra.mxu0 %v9828
        %10506 = vmatmul.bf16.gmra.mxu0 %v8700
        %v10507 = vpop.f32.mrf.mxu0
        %v10508 = vadd.f32 %v10495, %v10507
        %v10509 = vpop.f32.mrf.mxu0
        %10510 = vdwg.mxu0
        %10511 = vmatpush.bf16.msra.mxu0 %v9888
        %10512 = vmatpush.bf16.msra.mxu0 %v9884
        %10513 = vmatpush.bf16.msra.mxu0 %v9880
        %10514 = vmatpush.bf16.msra.mxu0 %v9876
        %10515 = vmatpush.bf16.msra.mxu0 %v9872
        %10516 = vmatpush.bf16.msra.mxu0 %v9868
        %10517 = vmatpush.bf16.msra.mxu0 %v9864
        %10518 = vmatpush.bf16.msra.mxu0 %v9860
        %10519 = vmatmul.bf16.gmra.mxu0 %v8701
        %v10520 = vpop.f32.mrf.mxu0
        %v10521 = vadd.f32 %v10508, %v10520
        %v10522 = vpop.f32.mrf.mxu0
        %10523 = vdwg.mxu0
        %10524 = vmatpush.bf16.msra.mxu0 %v9920
        %10525 = vmatpush.bf16.msra.mxu0 %v9916
        %10526 = vmatpush.bf16.msra.mxu0 %v9912
        %10527 = vmatpush.bf16.msra.mxu0 %v9908
        %10528 = vmatpush.bf16.msra.mxu0 %v9904
        %10529 = vmatpush.bf16.msra.mxu0 %v9900
        %10530 = vmatpush.bf16.msra.mxu0 %v9896
        %10531 = vmatpush.bf16.msra.mxu0 %v9892
        %10532 = vmatmul.bf16.gmra.mxu0 %v8702
        %v10533 = vpop.f32.mrf.mxu0
        %v10534 = vadd.f32 %v10521, %v10533
        %v10535 = vpop.f32.mrf.mxu0
        %10536 = vdwg.mxu0
        %10537 = vmatpush.bf16.msra.mxu0 %v9952
        %10538 = vmatpush.bf16.msra.mxu0 %v9948
        %10539 = vmatpush.bf16.msra.mxu0 %v9944
        %10540 = vmatpush.bf16.msra.mxu0 %v9940
        %10541 = vmatpush.bf16.msra.mxu0 %v9936
        %10542 = vmatpush.bf16.msra.mxu0 %v9932
        %10543 = vmatpush.bf16.msra.mxu0 %v9928
        %10544 = vmatpush.bf16.msra.mxu0 %v9924
        %10545 = vmatmul.bf16.gmra.mxu0 %v8703
        %v10546 = vpop.f32.mrf.mxu0
        %v10547 = vadd.f32 %v10534, %v10546
        %v10548 = vpop.f32.mrf.mxu0
        %10549 = vdwg.mxu0
        %10550 = vmatpush.bf16.msra.mxu0 %v9984
        %10551 = vmatpush.bf16.msra.mxu0 %v9980
        %10552 = vmatpush.bf16.msra.mxu0 %v9976
        %10553 = vmatpush.bf16.msra.mxu0 %v9972
        %10554 = vmatpush.bf16.msra.mxu0 %v9968
        %10555 = vmatpush.bf16.msra.mxu0 %v9964
        %10556 = vmatpush.bf16.msra.mxu0 %v9960
        %10557 = vmatpush.bf16.msra.mxu0 %v9956
        %10558 = vmatmul.bf16.gmra.mxu0 %v8704
        %v10559 = vpop.f32.mrf.mxu0
        %v10560 = vadd.f32 %v10547, %v10559
        %v10561 = vpop.f32.mrf.mxu0
        %10562 = vdwg.mxu0
        %10563 = vmatpush.bf16.msra.mxu0 %v9761
        %10564 = vmatpush.bf16.msra.mxu0 %v9757
        %10565 = vmatpush.bf16.msra.mxu0 %v9753
        %10566 = vmatpush.bf16.msra.mxu0 %v9749
        %10567 = vmatpush.bf16.msra.mxu0 %v9745
        %10568 = vmatpush.bf16.msra.mxu0 %v9741
        %10569 = vmatpush.bf16.msra.mxu0 %v9737
        %10570 = vmatpush.bf16.msra.mxu0 %v9733
        %10571 = vmatmul.bf16.gmra.mxu0 %v8697
        %v10572 = vpop.f32.mrf.mxu0
        %v10573 = vadd.f32 %v10246, %v10572
        %v10574 = vpop.f32.mrf.mxu0
        %10575 = vdwg.mxu0
        %10576 = vmatpush.bf16.msra.mxu0 %v9793
        %10577 = vmatpush.bf16.msra.mxu0 %v9789
        %10578 = vmatpush.bf16.msra.mxu0 %v9785
        %10579 = vmatpush.bf16.msra.mxu0 %v9781
        %10580 = vmatpush.bf16.msra.mxu0 %v9777
        %10581 = vmatpush.bf16.msra.mxu0 %v9773
        %10582 = vmatpush.bf16.msra.mxu0 %v9769
        %10583 = vmatpush.bf16.msra.mxu0 %v9765
        %10584 = vmatmul.bf16.gmra.mxu0 %v8698
        %v10585 = vpop.f32.mrf.mxu0
        %v10586 = vadd.f32 %v10573, %v10585
        %v10587 = vpop.f32.mrf.mxu0
        %10588 = vdwg.mxu0
        %10589 = vmatpush.bf16.msra.mxu0 %v9825
        %10590 = vmatpush.bf16.msra.mxu0 %v9821
        %10591 = vmatpush.bf16.msra.mxu0 %v9817
        %10592 = vmatpush.bf16.msra.mxu0 %v9813
        %10593 = vmatpush.bf16.msra.mxu0 %v9809
        %10594 = vmatpush.bf16.msra.mxu0 %v9805
        %10595 = vmatpush.bf16.msra.mxu0 %v9801
        %10596 = vmatpush.bf16.msra.mxu0 %v9797
        %10597 = vmatmul.bf16.gmra.mxu0 %v8699
        %v10598 = vpop.f32.mrf.mxu0
        %v10599 = vadd.f32 %v10586, %v10598
        %v10600 = vpop.f32.mrf.mxu0
        %10601 = vdwg.mxu0
        %10602 = vmatpush.bf16.msra.mxu0 %v9857
        %10603 = vmatpush.bf16.msra.mxu0 %v9853
        %10604 = vmatpush.bf16.msra.mxu0 %v9849
        %10605 = vmatpush.bf16.msra.mxu0 %v9845
        %10606 = vmatpush.bf16.msra.mxu0 %v9841
        %10607 = vmatpush.bf16.msra.mxu0 %v9837
        %10608 = vmatpush.bf16.msra.mxu0 %v9833
        %10609 = vmatpush.bf16.msra.mxu0 %v9829
        %10610 = vmatmul.bf16.gmra.mxu0 %v8700
        %v10611 = vpop.f32.mrf.mxu0
        %v10612 = vadd.f32 %v10599, %v10611
        %v10613 = vpop.f32.mrf.mxu0
        %10614 = vdwg.mxu0
        %10615 = vmatpush.bf16.msra.mxu0 %v9889
        %10616 = vmatpush.bf16.msra.mxu0 %v9885
        %10617 = vmatpush.bf16.msra.mxu0 %v9881
        %10618 = vmatpush.bf16.msra.mxu0 %v9877
        %10619 = vmatpush.bf16.msra.mxu0 %v9873
        %10620 = vmatpush.bf16.msra.mxu0 %v9869
        %10621 = vmatpush.bf16.msra.mxu0 %v9865
        %10622 = vmatpush.bf16.msra.mxu0 %v9861
        %10623 = vmatmul.bf16.gmra.mxu0 %v8701
        %v10624 = vpop.f32.mrf.mxu0
        %v10625 = vadd.f32 %v10612, %v10624
        %v10626 = vpop.f32.mrf.mxu0
        %10627 = vdwg.mxu0
        %10628 = vmatpush.bf16.msra.mxu0 %v9921
        %10629 = vmatpush.bf16.msra.mxu0 %v9917
        %10630 = vmatpush.bf16.msra.mxu0 %v9913
        %10631 = vmatpush.bf16.msra.mxu0 %v9909
        %10632 = vmatpush.bf16.msra.mxu0 %v9905
        %10633 = vmatpush.bf16.msra.mxu0 %v9901
        %10634 = vmatpush.bf16.msra.mxu0 %v9897
        %10635 = vmatpush.bf16.msra.mxu0 %v9893
        %10636 = vmatmul.bf16.gmra.mxu0 %v8702
        %v10637 = vpop.f32.mrf.mxu0
        %v10638 = vadd.f32 %v10625, %v10637
        %v10639 = vpop.f32.mrf.mxu0
        %10640 = vdwg.mxu0
        %10641 = vmatpush.bf16.msra.mxu0 %v9953
        %10642 = vmatpush.bf16.msra.mxu0 %v9949
        %10643 = vmatpush.bf16.msra.mxu0 %v9945
        %10644 = vmatpush.bf16.msra.mxu0 %v9941
        %10645 = vmatpush.bf16.msra.mxu0 %v9937
        %10646 = vmatpush.bf16.msra.mxu0 %v9933
        %10647 = vmatpush.bf16.msra.mxu0 %v9929
        %10648 = vmatpush.bf16.msra.mxu0 %v9925
        %10649 = vmatmul.bf16.gmra.mxu0 %v8703
        %v10650 = vpop.f32.mrf.mxu0
        %v10651 = vadd.f32 %v10638, %v10650
        %v10652 = vpop.f32.mrf.mxu0
        %10653 = vdwg.mxu0
        %10654 = vmatpush.bf16.msra.mxu0 %v9985
        %10655 = vmatpush.bf16.msra.mxu0 %v9981
        %10656 = vmatpush.bf16.msra.mxu0 %v9977
        %10657 = vmatpush.bf16.msra.mxu0 %v9973
        %10658 = vmatpush.bf16.msra.mxu0 %v9969
        %10659 = vmatpush.bf16.msra.mxu0 %v9965
        %10660 = vmatpush.bf16.msra.mxu0 %v9961
        %10661 = vmatpush.bf16.msra.mxu0 %v9957
        %10662 = vmatmul.bf16.gmra.mxu0 %v8704
        %v10663 = vpop.f32.mrf.mxu0
        %v10664 = vadd.f32 %v10651, %v10663
        %v10665 = vpop.f32.mrf.mxu0
        %10666 = vdwg.mxu0
        %v10667 = vmax.f32 %v10352, 0.0
        %v10668 = vmax.f32 %v10456, 0.0
        %v10669 = vmax.f32 %v10560, 0.0
        %v10670 = vmax.f32 %v10664, 0.0
        %v10671 = vpack.c.bf16 %v10667, %v10667
        %v10672 = vpack.c.bf16 %v10668, %v10668
        %v10673 = vpack.c.bf16 %v10669, %v10669
        %v10674 = vpack.c.bf16 %v10670, %v10670
        %v10675 = vld [vmem:[#allocation16] sm:$0xf]
        %v10676 = vld [vmem:[#allocation16 + $0x4] sm:$0xf]
        %v10677 = vld [vmem:[#allocation16 + $0x8] sm:$0xf]
        %v10678 = vld [vmem:[#allocation16 + $0xc] sm:$0xf]
        %v10679 = vld [vmem:[#allocation16 + $0x10] sm:$0xf]
        %v10680 = vld [vmem:[#allocation16 + $0x14] sm:$0xf]
        %v10681 = vld [vmem:[#allocation16 + $0x18] sm:$0xf]
        %v10682 = vld [vmem:[#allocation16 + $0x1c] sm:$0xf]
        %v10683 = vld [vmem:[#allocation16 + $0x20] sm:$0xf]
        %v10684 = vld [vmem:[#allocation16 + $0x24] sm:$0xf]
        %v10685 = vld [vmem:[#allocation16 + $0x28] sm:$0xf]
        %v10686 = vld [vmem:[#allocation16 + $0x2c] sm:$0xf]
        %v10687 = vld [vmem:[#allocation16 + $0x30] sm:$0xf]
        %v10688 = vld [vmem:[#allocation16 + $0x34] sm:$0xf]
        %v10689 = vld [vmem:[#allocation16 + $0x38] sm:$0xf]
        %v10690 = vld [vmem:[#allocation16 + $0x3c] sm:$0xf]
        %v10691 = vld [vmem:[#allocation16 + $0x40] sm:$0xf]
        %v10692 = vld [vmem:[#allocation16 + $0x44] sm:$0xf]
        %v10693 = vld [vmem:[#allocation16 + $0x48] sm:$0xf]
        %v10694 = vld [vmem:[#allocation16 + $0x4c] sm:$0xf]
        %v10695 = vld [vmem:[#allocation16 + $0x50] sm:$0xf]
        %v10696 = vld [vmem:[#allocation16 + $0x54] sm:$0xf]
        %v10697 = vld [vmem:[#allocation16 + $0x58] sm:$0xf]
        %v10698 = vld [vmem:[#allocation16 + $0x5c] sm:$0xf]
        %v10699 = vld [vmem:[#allocation16 + $0x60] sm:$0xf]
        %v10700 = vld [vmem:[#allocation16 + $0x64] sm:$0xf]
        %v10701 = vld [vmem:[#allocation16 + $0x68] sm:$0xf]
        %v10702 = vld [vmem:[#allocation16 + $0x6c] sm:$0xf]
        %v10703 = vld [vmem:[#allocation16 + $0x70] sm:$0xf]
        %v10704 = vld [vmem:[#allocation16 + $0x74] sm:$0xf]
        %v10705 = vld [vmem:[#allocation16 + $0x78] sm:$0xf]
        %v10706 = vld [vmem:[#allocation16 + $0x7c] sm:$0xf]
        %v10707 = vld [vmem:[#allocation16 + $0x80] sm:$0xf]
        %v10708 = vld [vmem:[#allocation16 + $0x84] sm:$0xf]
        %v10709 = vld [vmem:[#allocation16 + $0x88] sm:$0xf]
        %v10710 = vld [vmem:[#allocation16 + $0x8c] sm:$0xf]
        %v10711 = vld [vmem:[#allocation16 + $0x90] sm:$0xf]
        %v10712 = vld [vmem:[#allocation16 + $0x94] sm:$0xf]
        %v10713 = vld [vmem:[#allocation16 + $0x98] sm:$0xf]
        %v10714 = vld [vmem:[#allocation16 + $0x9c] sm:$0xf]
        %v10715 = vld [vmem:[#allocation16 + $0xa0] sm:$0xf]
        %v10716 = vld [vmem:[#allocation16 + $0xa4] sm:$0xf]
        %v10717 = vld [vmem:[#allocation16 + $0xa8] sm:$0xf]
        %v10718 = vld [vmem:[#allocation16 + $0xac] sm:$0xf]
        %v10719 = vld [vmem:[#allocation16 + $0xb0] sm:$0xf]
        %v10720 = vld [vmem:[#allocation16 + $0xb4] sm:$0xf]
        %v10721 = vld [vmem:[#allocation16 + $0xb8] sm:$0xf]
        %v10722 = vld [vmem:[#allocation16 + $0xbc] sm:$0xf]
        %v10723 = vld [vmem:[#allocation16 + $0xc0] sm:$0xf]
        %v10724 = vld [vmem:[#allocation16 + $0xc4] sm:$0xf]
        %v10725 = vld [vmem:[#allocation16 + $0xc8] sm:$0xf]
        %v10726 = vld [vmem:[#allocation16 + $0xcc] sm:$0xf]
        %v10727 = vld [vmem:[#allocation16 + $0xd0] sm:$0xf]
        %v10728 = vld [vmem:[#allocation16 + $0xd4] sm:$0xf]
        %v10729 = vld [vmem:[#allocation16 + $0xd8] sm:$0xf]
        %v10730 = vld [vmem:[#allocation16 + $0xdc] sm:$0xf]
        %v10731 = vld [vmem:[#allocation16 + $0xe0] sm:$0xf]
        %v10732 = vld [vmem:[#allocation16 + $0xe4] sm:$0xf]
        %v10733 = vld [vmem:[#allocation16 + $0xe8] sm:$0xf]
        %v10734 = vld [vmem:[#allocation16 + $0xec] sm:$0xf]
        %v10735 = vld [vmem:[#allocation16 + $0xf0] sm:$0xf]
        %v10736 = vld [vmem:[#allocation16 + $0xf4] sm:$0xf]
        %v10737 = vld [vmem:[#allocation16 + $0xf8] sm:$0xf]
        %v10738 = vld [vmem:[#allocation16 + $0xfc] sm:$0xf]
        %v10739 = vld [vmem:[#allocation18] sm:$0x1]
        %v10804 = vunpack.c.l.b16 %v10675
        %v10805 = vunpack.c.l.b16 %v10676
        %v10806 = vunpack.c.l.b16 %v10677
        %v10807 = vunpack.c.l.b16 %v10678
        %v10808 = vunpack.c.l.b16 %v10679
        %v10809 = vunpack.c.l.b16 %v10680
        %v10810 = vunpack.c.l.b16 %v10681
        %v10811 = vunpack.c.l.b16 %v10682
        %v10812 = vunpack.c.l.b16 %v10683
        %v10813 = vunpack.c.l.b16 %v10684
        %v10814 = vunpack.c.l.b16 %v10685
        %v10815 = vunpack.c.l.b16 %v10686
        %v10816 = vunpack.c.l.b16 %v10687
        %v10817 = vunpack.c.l.b16 %v10688
        %v10818 = vunpack.c.l.b16 %v10689
        %v10819 = vunpack.c.l.b16 %v10690
        %v10820 = vunpack.c.l.b16 %v10691
        %v10821 = vunpack.c.l.b16 %v10692
        %v10822 = vunpack.c.l.b16 %v10693
        %v10823 = vunpack.c.l.b16 %v10694
        %v10824 = vunpack.c.l.b16 %v10695
        %v10825 = vunpack.c.l.b16 %v10696
        %v10826 = vunpack.c.l.b16 %v10697
        %v10827 = vunpack.c.l.b16 %v10698
        %v10828 = vunpack.c.l.b16 %v10699
        %v10829 = vunpack.c.l.b16 %v10700
        %v10830 = vunpack.c.l.b16 %v10701
        %v10831 = vunpack.c.l.b16 %v10702
        %v10832 = vunpack.c.l.b16 %v10703
        %v10833 = vunpack.c.l.b16 %v10704
        %v10834 = vunpack.c.l.b16 %v10705
        %v10835 = vunpack.c.l.b16 %v10706
        %v10836 = vunpack.c.l.b16 %v10707
        %v10837 = vunpack.c.l.b16 %v10708
        %v10838 = vunpack.c.l.b16 %v10709
        %v10839 = vunpack.c.l.b16 %v10710
        %v10840 = vunpack.c.l.b16 %v10711
        %v10841 = vunpack.c.l.b16 %v10712
        %v10842 = vunpack.c.l.b16 %v10713
        %v10843 = vunpack.c.l.b16 %v10714
        %v10844 = vunpack.c.l.b16 %v10715
        %v10845 = vunpack.c.l.b16 %v10716
        %v10846 = vunpack.c.l.b16 %v10717
        %v10847 = vunpack.c.l.b16 %v10718
        %v10848 = vunpack.c.l.b16 %v10719
        %v10849 = vunpack.c.l.b16 %v10720
        %v10850 = vunpack.c.l.b16 %v10721
        %v10851 = vunpack.c.l.b16 %v10722
        %v10852 = vunpack.c.l.b16 %v10723
        %v10853 = vunpack.c.l.b16 %v10724
        %v10854 = vunpack.c.l.b16 %v10725
        %v10855 = vunpack.c.l.b16 %v10726
        %v10856 = vunpack.c.l.b16 %v10727
        %v10857 = vunpack.c.l.b16 %v10728
        %v10858 = vunpack.c.l.b16 %v10729
        %v10859 = vunpack.c.l.b16 %v10730
        %v10860 = vunpack.c.l.b16 %v10731
        %v10861 = vunpack.c.l.b16 %v10732
        %v10862 = vunpack.c.l.b16 %v10733
        %v10863 = vunpack.c.l.b16 %v10734
        %v10864 = vunpack.c.l.b16 %v10735
        %v10865 = vunpack.c.l.b16 %v10736
        %v10866 = vunpack.c.l.b16 %v10737
        %v10867 = vunpack.c.l.b16 %v10738
        %v10868 = vpack.c.b16 %v10805, %v10804
        %v10869 = vpack.c.b16 %v10807, %v10806
        %v10870 = vpack.c.b16 %v10809, %v10808
        %v10871 = vpack.c.b16 %v10811, %v10810
        %v10872 = vpack.c.b16 %v10813, %v10812
        %v10873 = vpack.c.b16 %v10815, %v10814
        %v10874 = vpack.c.b16 %v10817, %v10816
        %v10875 = vpack.c.b16 %v10819, %v10818
        %v10876 = vpack.c.b16 %v10821, %v10820
        %v10877 = vpack.c.b16 %v10823, %v10822
        %v10878 = vpack.c.b16 %v10825, %v10824
        %v10879 = vpack.c.b16 %v10827, %v10826
        %v10880 = vpack.c.b16 %v10829, %v10828
        %v10881 = vpack.c.b16 %v10831, %v10830
        %v10882 = vpack.c.b16 %v10833, %v10832
        %v10883 = vpack.c.b16 %v10835, %v10834
        %v10884 = vpack.c.b16 %v10837, %v10836
        %v10885 = vpack.c.b16 %v10839, %v10838
        %v10886 = vpack.c.b16 %v10841, %v10840
        %v10887 = vpack.c.b16 %v10843, %v10842
        %v10888 = vpack.c.b16 %v10845, %v10844
        %v10889 = vpack.c.b16 %v10847, %v10846
        %v10890 = vpack.c.b16 %v10849, %v10848
        %v10891 = vpack.c.b16 %v10851, %v10850
        %v10892 = vpack.c.b16 %v10853, %v10852
        %v10893 = vpack.c.b16 %v10855, %v10854
        %v10894 = vpack.c.b16 %v10857, %v10856
        %v10895 = vpack.c.b16 %v10859, %v10858
        %v10896 = vpack.c.b16 %v10861, %v10860
        %v10897 = vpack.c.b16 %v10863, %v10862
        %v10898 = vpack.c.b16 %v10865, %v10864
        %v10899 = vpack.c.b16 %v10867, %v10866
        %10932 = vmatpush.bf16.msra.mxu0 %v10875
        %10933 = vmatpush.bf16.msra.mxu0 %v10874
        %10934 = vmatpush.bf16.msra.mxu0 %v10873
        %10935 = vmatpush.bf16.msra.mxu0 %v10872
        %10936 = vmatpush.bf16.msra.mxu0 %v10871
        %10937 = vmatpush.bf16.msra.mxu0 %v10870
        %10938 = vmatpush.bf16.msra.mxu0 %v10869
        %10939 = vmatpush.bf16.msra.mxu0 %v10868
        %10940 = vmatmul.bf16.gmra.mxu0 %v10671
        %v10941 = vpop.f32.mrf.mxu0
        %v10942 = vadd.f32 %v10739, %v10941
        %v10943 = vpop.f32.mrf.mxu0
        %10944 = vdwg.mxu0
        %10945 = vmatpush.bf16.msra.mxu0 %v10883
        %10946 = vmatpush.bf16.msra.mxu0 %v10882
        %10947 = vmatpush.bf16.msra.mxu0 %v10881
        %10948 = vmatpush.bf16.msra.mxu0 %v10880
        %10949 = vmatpush.bf16.msra.mxu0 %v10879
        %10950 = vmatpush.bf16.msra.mxu0 %v10878
        %10951 = vmatpush.bf16.msra.mxu0 %v10877
        %10952 = vmatpush.bf16.msra.mxu0 %v10876
        %10953 = vmatmul.bf16.gmra.mxu0 %v10672
        %v10954 = vpop.f32.mrf.mxu0
        %v10955 = vadd.f32 %v10942, %v10954
        %v10956 = vpop.f32.mrf.mxu0
        %10957 = vdwg.mxu0
        %10958 = vmatpush.bf16.msra.mxu0 %v10891
        %10959 = vmatpush.bf16.msra.mxu0 %v10890
        %10960 = vmatpush.bf16.msra.mxu0 %v10889
        %10961 = vmatpush.bf16.msra.mxu0 %v10888
        %10962 = vmatpush.bf16.msra.mxu0 %v10887
        %10963 = vmatpush.bf16.msra.mxu0 %v10886
        %10964 = vmatpush.bf16.msra.mxu0 %v10885
        %10965 = vmatpush.bf16.msra.mxu0 %v10884
        %10966 = vmatmul.bf16.gmra.mxu0 %v10673
        %v10967 = vpop.f32.mrf.mxu0
        %v10968 = vadd.f32 %v10955, %v10967
        %v10969 = vpop.f32.mrf.mxu0
        %10970 = vdwg.mxu0
        %10971 = vmatpush.bf16.msra.mxu0 %v10899
        %10972 = vmatpush.bf16.msra.mxu0 %v10898
        %10973 = vmatpush.bf16.msra.mxu0 %v10897
        %10974 = vmatpush.bf16.msra.mxu0 %v10896
        %10975 = vmatpush.bf16.msra.mxu0 %v10895
        %10976 = vmatpush.bf16.msra.mxu0 %v10894
        %10977 = vmatpush.bf16.msra.mxu0 %v10893
        %10978 = vmatpush.bf16.msra.mxu0 %v10892
        %10979 = vmatmul.bf16.gmra.mxu0 %v10674
        %v10980 = vpop.f32.mrf.mxu0
        %v10981 = vadd.f32 %v10968, %v10980
        %v10982 = vpop.f32.mrf.mxu0
        %10983 = vdwg.mxu0
        %vm10984 = vcmask 1040384
        %v10985 = vsel %vm10984, %v10981, -inf
        %10986 = vmax.xlane.f32.xlu0 %v10985
        %v10987 = vpop.xlane.xlu0 %10986
        %v10988 = vsub.f32 %v10981, %v10987
        %v10989 = vmul.f32 %v10988, 1.442695
        %v10990 = vpow.pop %v10989
        %v10991 = vsel %vm10984, %v10990, 0.0
        %10992 = vadd.xlane.f32.xlu0 %v10991
        %v10993 = vpop.xlane.xlu0 %10992
        %v10994 = vrcp.pop %v10993
        %v10995 = vmul.f32 %v10993, %v10994
        %v10996 = vsub.f32 1.0, %v10995
        %v10997 = vmul.f32 %v10994, %v10996
        %v10998 = vadd.f32 %v10994, %v10997
        %vm10999 = vweird.f32 %v10993
        %vm11000 = vweird.f32 %v10994
        %vm11001 = vmor %vm10999, %vm11000
        %v11002 = vsel %vm11001, %v10994, %v10998
        %v11003 = vand.u32 2147483647, %v10993
        %vm11004 = vcmp.eq.f32.partialorder %v11003, 8.507059e+37
        %v11005 = vand.u32 %v10993, 2147483648
        %v11006 = vor.u32 1.1754944e-38, %v11005
        %v11007 = vsel %vm11004, %v11006, %v11002
        %v11008 = vmul.f32 %v10990, %v11007
        %11009 = vst [vmem:[%s517] sm:$0x1] %v11008
        %s11010 = sand.u32 %s274, 1
        %s11011 = scalar_lea.sflag [#allocation6], %s11010
        %s11012 = sand.u32 %s274, 1
        %s11013 = scalar_lea.vmem [#allocation19], %s11012
        // Predicated region
        $region101: #{_lambda_.1} parent=63 // pred_check
          %p11014 = pneg %p284
        $region102: #{_lambda_.1} parent=63 // pred_check_branch
          %11016 = sbr.rel (%p11014) target = $region104
        $region103: #{_lambda_.1} parent=63 // pred_region
          %11018 = vsyncadd %s11011, 0
          %s11019 = scalar_lea.hbm %s11, %s30
          %s11021 = sshll.u32 %s11013, 4
          %s11022 = int_to_ptr.vmem [resolvable:$true] %s11021
          %s11023 = sshll.u32 %s11019, 4
          %s11024 = int_to_ptr.hbm [resolvable:$true] %s11023
          %11026 = dma.vmem_to_hbm [thread:$0]  %s11022, 16, %s11024, %s11011
        $region104: #{_lambda_.1} parent=63 // pred_fallthru
          _
      $region64: #{_lambda_.1} parent=5 // pred_fallthru
        _
      %p11027 = scmp.le.s32.totalorder 2, %s25
      // Predicated region
      $region105: #{_lambda_.1} parent=5 // pred_check
        %p11028 = pneg %p11027
      $region106: #{_lambda_.1} parent=5 // pred_check_branch
        %11030 = sbr.rel (%p11028) target = $region108
      $region107: #{_lambda_.1} parent=5 // pred_region
        %s11031 = ssub.s32 %s25, 2
        // Predicated region
        $region109: #{_lambda_.1} parent=107 // pred_check
          %p11032 = pneg %p290
        $region110: #{_lambda_.1} parent=107 // pred_check_branch
          %11034 = sbr.rel (%p11032) target = $region112
        $region111: #{_lambda_.1} parent=107 // pred_region
          %s11035 = sand.u32 %s275, 1
          %s11036 = scalar_lea.sflag [#allocation6], %s11035
          %s11037 = sand.u32 %s275, 1
          %s11038 = scalar_lea.vmem [#allocation19], %s11037
          %11040 = dma.done %s11036, 16
        $region112: #{_lambda_.1} parent=107 // pred_fallthru
          _
      $region108: #{_lambda_.1} parent=5 // pred_fallthru
        _
    $region6: #{_lambda_.1} parent=1 // loop_footer
      %s29 = sadd.s32 1, %s25
    $region7: #{_lambda_.1} parent=1 // loop_footer_branch
      %24 = sbr.rel target = $region3
    $region8: #{_lambda_.1} parent=1 // loop_exit
      _
    %11041 = vsyncpa [#allocation5], 1
    %s11042 = scalar_lea.sflag [#allocation5], 1
    %11043 = vsyncpa %s11042, 1
    %11044 = vsyncpa [#allocation8], 1
    %11045 = vsyncpa [#allocation11], 1
    %11046 = vsyncpa [#allocation14], 1
    %11047 = vsyncpa [#allocation17], 1
    %11048 = vsyncpa [#allocation6], 1
    %s11049 = scalar_lea.sflag [#allocation6], 1
    %11050 = vsyncpa %s11049, 1

</llo_original>
